<compile_context>
chip_gen: v7x
topology: tpu7x:2x2x1
jax: 0.10.0
libtpu: 0.0.40
codegen_flags: <defaults>
</compile_context>

<pallas_src>
import functools

import jax
import jax.numpy as jnp
from jax import lax
from jax.experimental import pallas as pl
from jax.experimental.pallas import tpu as pltpu


_POS_N = 3               # position-loss tree depth
_MIN_N = 5               # rotation-loss tree depth
_GROUP = 1 << _MIN_N     # = 32, reduction trees never cross a group boundary
_NS_ITERS = 3            # Newton-Schulz iterations (quadratic conv.; 3 ~ f32 eps)
_SUB = 128               # lanes per inner compute step (one vreg width)
_MAX_SUBS_PER_BLOCK = 4  # up to 512 lanes per grid block

# channel map of the packed (25, 32, G) input
_CH_PW = 2               # pred angular velocity (3 channels); pred loc_v = 0,1
_CH_TV = 5               # targ loc_v (2 channels)
_CH_DROT = 7             # targ dRot, 9 channels row-major
_CH_ROT = 16             # targ Rot,  9 channels row-major


# ----------------------------- shared math helpers ----------------------------
# 3x3 matrices are Python lists of 9 row-major arrays; inside the kernel each
# entry is a (rows, 128) slab (batch on sublanes x lanes): pure VPU work.

def _huber(d):
    # torch.nn.HuberLoss(delta=1.0, reduction='none') of a difference d
    ad = jnp.abs(d)
    return jnp.where(ad <= 1.0, 0.5 * d * d, ad - 0.5)


def _mat_mul(A, B):   # A @ B
    return [A[3 * i] * B[j] + A[3 * i + 1] * B[3 + j] + A[3 * i + 2] * B[6 + j]
            for i in range(3) for j in range(3)]


def _mat_tmul(A, B):  # A^T @ B  (bmtm)
    return [A[i] * B[j] + A[3 + i] * B[3 + j] + A[6 + i] * B[6 + j]
            for i in range(3) for j in range(3)]


def _orthonormalize(X, iters):
    # TODO(synk): SO3.dnormalize is an SVD projection; no SVD in Pallas, so we
    # use Newton-Schulz polar iteration (equivalent for near-rotation inputs).
    # G = X^T X is symmetric -> 6 unique entries; 0.5 folded into H.
    for _ in range(iters):
        g00 = X[0] * X[0] + X[3] * X[3] + X[6] * X[6]
        g01 = X[0] * X[1] + X[3] * X[4] + X[6] * X[7]
        g02 = X[0] * X[2] + X[3] * X[5] + X[6] * X[8]
        g11 = X[1] * X[1] + X[4] * X[4] + X[7] * X[7]
        g12 = X[1] * X[2] + X[4] * X[5] + X[7] * X[8]
        g22 = X[2] * X[2] + X[5] * X[5] + X[8] * X[8]
        h00 = 1.5 - 0.5 * g00
        h11 = 1.5 - 0.5 * g11
        h22 = 1.5 - 0.5 * g22
        h01 = -0.5 * g01
        h02 = -0.5 * g02
        h12 = -0.5 * g12
        H = [h00, h01, h02, h01, h11, h12, h02, h12, h22]
        X = _mat_mul(X, H)
    return X


def _so3_exp(wx, wy, wz):
    angle = jnp.sqrt(wx * wx + wy * wy + wz * wz)
    small = angle < 1e-7
    inv = 1.0 / jnp.where(small, 1.0, angle)       # one EUP recip, not 3 divs
    ax, ay, az = wx * inv, wy * inv, wz * inv
    c = jnp.cos(angle)
    s = jnp.sin(angle)
    oc = 1.0 - c
    big = [c + oc * ax * ax,      oc * ax * ay - s * az, oc * ax * az + s * ay,
           oc * ay * ax + s * az, c + oc * ay * ay,      oc * ay * az - s * ax,
           oc * az * ax - s * ay, oc * az * ay + s * ax, c + oc * az * az]
    one = jnp.ones_like(wx)
    lil = [one, -wz,  wy,
           wz,  one, -wx,
           -wy, wx,  one]
    return [jnp.where(small, a, b) for a, b in zip(lil, big)]


def _so3_log(R):
    tr = R[0] + R[4] + R[8]
    c = jnp.clip(0.5 * tr - 0.5, -1.0, 1.0)
    sin_a = jnp.sqrt(jnp.maximum(1.0 - c * c, 0.0))
    angle = jnp.arctan2(sin_a, c)              # == acos(c), better conditioned
    small = angle < 1e-6                       # f32-scale thresholds
    fac = 0.5 * angle / jnp.where(sin_a < 1e-7, 1.0, sin_a)
    px = jnp.where(small, R[7], fac * (R[7] - R[5]))
    py = jnp.where(small, R[2], fac * (R[2] - R[6]))
    pz = jnp.where(small, R[3], fac * (R[3] - R[1]))
    return px, py, pz


# --------------------------------- the kernel ---------------------------------

def _triple_loss_kernel(x_ref, out_ref, tap_ref, *, dt, nsub):
    # x_ref:   (25, 32, BLOCK_LANES)  rows = bit-reversed in-group position
    # out_ref: (1, 1, 128)            per-block, per-lane partial loss
    # tap_ref: (9, 32, 128) VMEM      per-level relative-rotation taps, stacked
    #                                 along sublanes for full-vreg NS/log/Huber

    def sub_loss(s, acc):
        lane = pl.ds(pl.multiple_of(s * _SUB, _SUB), _SUB)

        def ch(c, rows=slice(None)):
            return x_ref[c, rows, lane]

        # ------------------------- position branch -------------------------
        # tree-reduce the pred-targ *difference* directly (linear in dv)
        dvx = (ch(0) - ch(_CH_TV + 0)) * dt
        dvy = (ch(1) - ch(_CH_TV + 1)) * dt
        # bmv(targ_Rot, dv): dv[2]==0 and component 2 never enters the loss,
        # so only 4 rotation entries are needed.
        d0 = ch(_CH_ROT + 0) * dvx + ch(_CH_ROT + 1) * dvy
        d1 = ch(_CH_ROT + 3) * dvx + ch(_CH_ROT + 4) * dvy
        pos = jnp.zeros((1, _SUB), jnp.float32)
        rows = _GROUP
        for _ in range(_POS_N):
            rows //= 2
            d0 = d0[:rows] + d0[rows:]          # even + odd (bit-reversed rows)
            d1 = d1[:rows] + d1[rows:]
            h = _huber(d0) + _huber(d1)
            pos = pos + jnp.sum(h, axis=0, keepdims=True)

        # ------------------------- rotation branch -------------------------
        # Level-0 combine of pred_dRot: exp on all 32 rows, multiply halves.
        E = _so3_exp(ch(_CH_PW) * dt, ch(_CH_PW + 1) * dt, ch(_CH_PW + 2) * dt)
        P = _mat_mul([e[:16] for e in E], [e[16:] for e in E])        # (16, S)
        # Level-0 combine of targ_dRot, odd operand streamed column-by-column
        # from the ref (bounds live vregs; each dRot entry read exactly once).
        A = [ch(_CH_DROT + k, slice(0, 16)) for k in range(9)]
        D = [None] * 9
        for j in range(3):
            col = [ch(_CH_DROT + 3 * k + j, slice(16, 32)) for k in range(3)]
            for i in range(3):
                D[3 * i + j] = (A[3 * i] * col[0] + A[3 * i + 1] * col[1]
                                + A[3 * i + 2] * col[2])

        # Product tree; per-level taps M_k = P_k^T @ D_k go straight to the
        # VMEM scratch, stacked along sublanes: rows 0:16|16:24|24:28|28:30|
        # 30:31 for levels 0..4.
        M = _mat_tmul(P, D)
        for e in range(9):
            tap_ref[e, 0:16, :] = M[e]
        rows, row0 = 16, 16
        for _ in range(_MIN_N - 1):
            rows //= 2
            P = _mat_mul([c[:rows] for c in P], [c[rows:] for c in P])
            D = _mat_mul([c[:rows] for c in D], [c[rows:] for c in D])
            M = _mat_tmul(P, D)
            for e in range(9):
                tap_ref[e, row0:row0 + rows, :] = M[e]
            row0 += rows                                    # ends at 31

        # dnormalize (Newton-Schulz) + SO3.log + Huber on <=8-row chunks:
        # every chunk is one vreg high -> no sublane under-fill at deep levels.
        theta = jnp.zeros((1, _SUB), jnp.float32)
        for a, b in ((0, 8), (8, 16), (16, 24), (24, 31)):
            X = [tap_ref[e, a:b, :] for e in range(9)]
            X = _orthonormalize(X, _NS_ITERS)
            ex, ey, ez = _so3_log(X)
            h = _huber(ex) + _huber(ey) + _huber(ez)
            theta = theta + jnp.sum(h, axis=0, keepdims=True)

        # loss weights hoisted (constant across levels within a branch)
        return acc + 1500.0 * pos + 2000.0 * theta

    acc = lax.fori_loop(0, nsub, sub_loss, jnp.zeros((1, _SUB), jnp.float32))
    out_ref[...] = acc.reshape(1, 1, _SUB)


# ---------------------------------- wrapper ------------------------------------

# neutral group contributes exactly 0 loss: pred == targ == 0, dRot = identity
_NEUTRAL = [0.0] * 7 + [1.0, 0.0, 0.0, 0.0, 1.0, 0.0, 0.0, 0.0, 1.0] + [0.0] * 9


def _to_kernel_layout(pred, targ, G_pad):
    """(B,T,5)+(B,T,20) -> (25, 32, G_pad), in-group axis bit-reversed.

    One combined array -> a single XLA transpose; padding groups are neutral.
    """
    B, T, _ = pred.shape
    N = B * T
    G = N // _GROUP
    x = jnp.concatenate([jnp.asarray(pred, jnp.float32).reshape(N, 5),
                         jnp.asarray(targ, jnp.float32).reshape(N, 20)], axis=-1)
    x = x.reshape(G, _GROUP, 25)
    if G_pad > G:
        neutral = jnp.array(_NEUTRAL, jnp.float32)
        x = jnp.concatenate(
            [x, jnp.broadcast_to(neutral, (G_pad - G, _GROUP, 25))], axis=0)
    # fold the in-group bit reversal into a single transpose (no gather):
    x = x.reshape(G_pad, 2, 2, 2, 2, 2, 25)
    x = jnp.transpose(x, (6, 5, 4, 3, 2, 1, 0))
    return x.reshape(25, _GROUP, G_pad)


def triple_loss(pred, targ, dt):
    """pred: (B, T, 5), targ: (B, T, 20). Returns the scalar loss (float32)."""
    B, T, Cp = pred.shape
    assert Cp == 5 and targ.shape == (B, T, 20)
    N = B * T
    assert N % _GROUP == 0, "batch*seq must be a multiple of 32"
    G = N // _GROUP

    # Pad the group axis with neutral groups so that (a) the lane extent is a
    # multiple of 128 and (b) there are always >= 2 grid blocks (v7x megacore).
    min_lanes = 2 * _SUB
    G_pad = ((G + min_lanes - 1) // min_lanes) * min_lanes
    num_sub = G_pad // _SUB                       # even, >= 2
    subs_per_block = min(_MAX_SUBS_PER_BLOCK, num_sub // 2)
    while num_sub % subs_per_block:
        subs_per_block -= 1
    block_lanes = subs_per_block * _SUB           # <= 512 -> bounded VMEM
    num_blocks = num_sub // subs_per_block        # >= 2

    x = _to_kernel_layout(pred, targ, G_pad)      # (25, 32, G_pad)

    kernel = functools.partial(_triple_loss_kernel, dt=float(dt),
                               nsub=subs_per_block)
    out = pl.pallas_call(
        kernel,
        out_shape=jax.ShapeDtypeStruct((num_blocks, 1, _SUB), jnp.float32),
        grid=(num_blocks,),
        in_specs=[pl.BlockSpec((25, _GROUP, block_lanes), lambda i: (0, 0, i))],
        out_specs=pl.BlockSpec((1, 1, _SUB), lambda i: (i, 0, 0)),
        scratch_shapes=[pltpu.VMEM((9, _GROUP, _SUB), jnp.float32)],
        compiler_params=pltpu.CompilerParams(
            dimension_semantics=("parallel",),
            vmem_limit_bytes=32 * 1024 * 1024),
    )(x)
    # per-block, per-lane partial losses (padding contributes exactly 0)
    return jnp.sum(out)


# ------------------------- pure-JAX reference (for checking) -------------------

def _ref_so3_exp(w):          # (n, 3) -> (n, 3, 3)
    flat = _so3_exp(w[:, 0], w[:, 1], w[:, 2])
    return jnp.stack(flat, axis=-1).reshape(-1, 3, 3)


def _ref_so3_log(R):          # (n, 3, 3) -> (n, 3)
    flat = [R[:, i, j] for i in range(3) for j in range(3)]
    return jnp.stack(_so3_log(flat), axis=-1)


def _ref_bmm(a, b):           # exact-f32 batched 3x3 matmul
    return jnp.sum(a[:, :, :, None] * b[:, None, :, :], axis=2)


def _ref_bmtm(a, b):          # a^T @ b
    return jnp.sum(a[:, :, :, None] * b[:, :, None, :], axis=1)


def _reference_loss(pred, targ, dt):
    """Pure-JAX (XLA, no Pallas) mirror of TripleLoss.forward in float32, using
    the same Newton-Schulz stand-in for SO3.dnormalize."""
    B, T, _ = pred.shape
    N = B * T
    p = jnp.asarray(pred, jnp.float32).reshape(N, 5)
    t = jnp.asarray(targ, jnp.float32).reshape(N, 20)

    pred_loc_v = jnp.concatenate([p[:, :2], jnp.zeros((N, 1), jnp.float32)], axis=1)
    targ_loc_v = jnp.concatenate([t[:, :2], jnp.zeros((N, 1), jnp.float32)], axis=1)
    targ_dRot = t[:, 2:11].reshape(N, 3, 3)
    targ_Rot = t[:, 11:20].reshape(N, 3, 3)

    pred_dp = jnp.sum(targ_Rot * (pred_loc_v * dt)[:, None, :], axis=-1)
    targ_dp = jnp.sum(targ_Rot * (targ_loc_v * dt)[:, None, :], axis=-1)

    pos_loss = jnp.float32(0.0)
    for _ in range(_POS_N):
        pred_dp = pred_dp[0::2] + pred_dp[1::2]
        targ_dp = targ_dp[0::2] + targ_dp[1::2]
        pos_loss = pos_loss + jnp.sum(_huber(pred_dp[:, :2] - targ_dp[:, :2])) * 1500.0

    pred_dRot = _ref_so3_exp(p[:, 2:5] * dt)
    eye = jnp.eye(3, dtype=jnp.float32)
    theta_loss = jnp.float32(0.0)
    for _ in range(_MIN_N):
        pred_dRot = _ref_bmm(pred_dRot[0::2], pred_dRot[1::2])
        targ_dRot = _ref_bmm(targ_dRot[0::2], targ_dRot[1::2])
        X = _ref_bmtm(pred_dRot, targ_dRot)
        for _ in range(_NS_ITERS):
            X = 0.5 * _ref_bmm(X, 3.0 * eye - _ref_bmtm(X, X))
        e = _ref_so3_log(X)
        theta_loss = theta_loss + jnp.sum(_huber(e)) * 2000.0
    return pos_loss + theta_loss


# ----------------------------- example-input glue ------------------------------

if __name__ == "__main__":
    dt = 0.05               # module hyperparameter (deterministic, in-script)

    def make_inputs(key, B, T):
        k1, k2, k3, k4 = jax.random.split(key, 4)
        pred = jax.random.normal(k1, (B, T, 5), jnp.float32) * 0.5
        targ_loc_v = jax.random.normal(k2, (B, T, 2), jnp.float32) * 0.5
        w_small = jax.random.normal(k3, (B, T, 3), jnp.float32) * 0.1
        w_big = jax.random.normal(k4, (B, T, 3), jnp.float32) * 0.5
        dRot = _ref_so3_exp(w_small.reshape(-1, 3)).reshape(B, T, 9)
        Rot = _ref_so3_exp(w_big.reshape(-1, 3)).reshape(B, T, 9)
        targ = jnp.concatenate([targ_loc_v, dRot, Rot], axis=-1)
        return pred, targ

    loss_fn = jax.jit(functools.partial(triple_loss, dt=dt))
    ref_fn = jax.jit(functools.partial(_reference_loss, dt=dt))

    key = jax.random.PRNGKey(0)
    # (16, 1024): 2 grid blocks x 2 inner 128-lane sub-slices, no padding.
    # (2, 48):    tiny input -> exercises neutral group padding (G=3 -> 256).
    for shape in ((16, 1024), (2, 48)):
        key, sub = jax.random.split(key)
        pred, targ = make_inputs(sub, *shape)
        loss = jax.block_until_ready(loss_fn(pred, targ))
        ref = jax.block_until_ready(ref_fn(pred, targ))
        assert bool(jnp.isfinite(loss)), "non-finite kernel loss"
        rel = abs(float(loss) - float(ref)) / max(1.0, abs(float(ref)))
        assert rel < 2e-3, (
            f"shape={shape} kernel={float(loss)} ref={float(ref)} rel_err={rel}")
    print("KERNEL_OK")
</pallas_src>

<mosaic_0001>
module attributes {stable_mosaic.version = 11 : i64} {
  func.func @_triple_loss_kernel(%arg0: i32, %arg1: memref<25x32x256xf32, #tpu.memory_space<vmem>>, %arg2: memref<1x1x128xf32, #tpu.memory_space<vmem>>, %arg3: memref<9x32x128xf32, #tpu.memory_space<vmem>>) attributes {dimension_semantics = [#tpu.dimension_semantics<parallel>], iteration_bounds = array<i64: 2>, scalar_prefetch = 0 : i64, scratch_operands = 1 : i64, tpu.core_type = #tpu.core_type<tc>, window_params = [{transform_indices = @transform_0, window_bounds = array<i64: 25, 32, 256>}, {transform_indices = @transform_1, window_bounds = array<i64: 1, 1, 128>}]} {
    %cst = arith.constant 0.000000e+00 : f32
    %0 = vector.broadcast %cst : f32 to vector<1x128xf32>
    %c0_i32 = arith.constant 0 : i32
    %c2_i32 = arith.constant 2 : i32
    %1 = arith.addi %c0_i32, %c2_i32 : i32
    %c1_i32 = arith.constant 1 : i32
    %2 = scf.for %arg4 = %c0_i32 to %1 step %c1_i32 iter_args(%arg5 = %0) -> (vector<1x128xf32>)  : i32 {
      %c128_i32 = arith.constant 128 : i32
      %5 = arith.muli %arg4, %c128_i32 : i32
      %6 = tpu.assume_multiple %5, 128 : i32
      %c0_3 = arith.constant 0 : index
      %c0_4 = arith.constant 0 : index
      %7 = arith.index_cast %6 : i32 to index
      %8 = vector.load %arg1[%c0_3, %c0_4, %7] : memref<25x32x256xf32, #tpu.memory_space<vmem>>, vector<1x32x128xf32>
      %9 = vector.shape_cast %8 : vector<1x32x128xf32> to vector<32x128xf32>
      %c5 = arith.constant 5 : index
      %c0_5 = arith.constant 0 : index
      %10 = arith.index_cast %6 : i32 to index
      %11 = vector.load %arg1[%c5, %c0_5, %10] : memref<25x32x256xf32, #tpu.memory_space<vmem>>, vector<1x32x128xf32>
      %12 = vector.shape_cast %11 : vector<1x32x128xf32> to vector<32x128xf32>
      %13 = arith.subf %9, %12 : vector<32x128xf32>
      %cst_6 = arith.constant 5.000000e-02 : f32
      %14 = vector.broadcast %cst_6 : f32 to vector<32x128xf32>
      %15 = arith.mulf %13, %14 : vector<32x128xf32>
      %c1 = arith.constant 1 : index
      %c0_7 = arith.constant 0 : index
      %16 = arith.index_cast %6 : i32 to index
      %17 = vector.load %arg1[%c1, %c0_7, %16] : memref<25x32x256xf32, #tpu.memory_space<vmem>>, vector<1x32x128xf32>
      %18 = vector.shape_cast %17 : vector<1x32x128xf32> to vector<32x128xf32>
      %c6 = arith.constant 6 : index
      %c0_8 = arith.constant 0 : index
      %19 = arith.index_cast %6 : i32 to index
      %20 = vector.load %arg1[%c6, %c0_8, %19] : memref<25x32x256xf32, #tpu.memory_space<vmem>>, vector<1x32x128xf32>
      %21 = vector.shape_cast %20 : vector<1x32x128xf32> to vector<32x128xf32>
      %22 = arith.subf %18, %21 : vector<32x128xf32>
      %cst_9 = arith.constant 5.000000e-02 : f32
      %23 = vector.broadcast %cst_9 : f32 to vector<32x128xf32>
      %24 = arith.mulf %22, %23 : vector<32x128xf32>
      %c16 = arith.constant 16 : index
      %c0_10 = arith.constant 0 : index
      %25 = arith.index_cast %6 : i32 to index
      %26 = vector.load %arg1[%c16, %c0_10, %25] : memref<25x32x256xf32, #tpu.memory_space<vmem>>, vector<1x32x128xf32>
      %27 = vector.shape_cast %26 : vector<1x32x128xf32> to vector<32x128xf32>
      %28 = arith.mulf %27, %15 : vector<32x128xf32>
      %c17 = arith.constant 17 : index
      %c0_11 = arith.constant 0 : index
      %29 = arith.index_cast %6 : i32 to index
      %30 = vector.load %arg1[%c17, %c0_11, %29] : memref<25x32x256xf32, #tpu.memory_space<vmem>>, vector<1x32x128xf32>
      %31 = vector.shape_cast %30 : vector<1x32x128xf32> to vector<32x128xf32>
      %32 = arith.mulf %31, %24 : vector<32x128xf32>
      %33 = arith.addf %28, %32 : vector<32x128xf32>
      %c19 = arith.constant 19 : index
      %c0_12 = arith.constant 0 : index
      %34 = arith.index_cast %6 : i32 to index
      %35 = vector.load %arg1[%c19, %c0_12, %34] : memref<25x32x256xf32, #tpu.memory_space<vmem>>, vector<1x32x128xf32>
      %36 = vector.shape_cast %35 : vector<1x32x128xf32> to vector<32x128xf32>
      %37 = arith.mulf %36, %15 : vector<32x128xf32>
      %c20 = arith.constant 20 : index
      %c0_13 = arith.constant 0 : index
      %38 = arith.index_cast %6 : i32 to index
      %39 = vector.load %arg1[%c20, %c0_13, %38] : memref<25x32x256xf32, #tpu.memory_space<vmem>>, vector<1x32x128xf32>
      %40 = vector.shape_cast %39 : vector<1x32x128xf32> to vector<32x128xf32>
      %41 = arith.mulf %40, %24 : vector<32x128xf32>
      %42 = arith.addf %37, %41 : vector<32x128xf32>
      %cst_14 = arith.constant 0.000000e+00 : f32
      %43 = vector.broadcast %cst_14 : f32 to vector<1x128xf32>
      %44 = vector.extract_strided_slice %33 {offsets = [0, 0], sizes = [16, 128], strides = [1, 1]} : vector<32x128xf32> to vector<16x128xf32>
      %45 = vector.extract_strided_slice %33 {offsets = [16, 0], sizes = [16, 128], strides = [1, 1]} : vector<32x128xf32> to vector<16x128xf32>
      %46 = arith.addf %44, %45 : vector<16x128xf32>
      %47 = vector.extract_strided_slice %42 {offsets = [0, 0], sizes = [16, 128], strides = [1, 1]} : vector<32x128xf32> to vector<16x128xf32>
      %48 = vector.extract_strided_slice %42 {offsets = [16, 0], sizes = [16, 128], strides = [1, 1]} : vector<32x128xf32> to vector<16x128xf32>
      %49 = arith.addf %47, %48 : vector<16x128xf32>
      %50 = math.absf %46 : vector<16x128xf32>
      %cst_15 = arith.constant 1.000000e+00 : f32
      %51 = vector.broadcast %cst_15 : f32 to vector<16x128xf32>
      %52 = arith.cmpf ole, %50, %51 : vector<16x128xf32>
      %cst_16 = arith.constant 5.000000e-01 : f32
      %53 = vector.broadcast %cst_16 : f32 to vector<16x128xf32>
      %54 = arith.mulf %53, %46 : vector<16x128xf32>
      %55 = arith.mulf %54, %46 : vector<16x128xf32>
      %cst_17 = arith.constant 5.000000e-01 : f32
      %56 = vector.broadcast %cst_17 : f32 to vector<16x128xf32>
      %57 = arith.subf %50, %56 : vector<16x128xf32>
      %58 = arith.select %52, %55, %57 : vector<16x128xi1>, vector<16x128xf32>
      %59 = math.absf %49 : vector<16x128xf32>
      %cst_18 = arith.constant 1.000000e+00 : f32
      %60 = vector.broadcast %cst_18 : f32 to vector<16x128xf32>
      %61 = arith.cmpf ole, %59, %60 : vector<16x128xf32>
      %cst_19 = arith.constant 5.000000e-01 : f32
      %62 = vector.broadcast %cst_19 : f32 to vector<16x128xf32>
      %63 = arith.mulf %62, %49 : vector<16x128xf32>
      %64 = arith.mulf %63, %49 : vector<16x128xf32>
      %cst_20 = arith.constant 5.000000e-01 : f32
      %65 = vector.broadcast %cst_20 : f32 to vector<16x128xf32>
      %66 = arith.subf %59, %65 : vector<16x128xf32>
      %67 = arith.select %61, %64, %66 : vector<16x128xi1>, vector<16x128xf32>
      %68 = arith.addf %58, %67 : vector<16x128xf32>
      %cst_21 = arith.constant dense<0.000000e+00> : vector<128xf32>
      %69 = vector.multi_reduction <add>, %68, %cst_21 [0] : vector<16x128xf32> to vector<128xf32>
      %70 = vector.shape_cast %69 : vector<128xf32> to vector<1x128xf32>
      %71 = arith.addf %43, %70 : vector<1x128xf32>
      %72 = vector.extract_strided_slice %46 {offsets = [0, 0], sizes = [8, 128], strides = [1, 1]} : vector<16x128xf32> to vector<8x128xf32>
      %73 = vector.extract_strided_slice %46 {offsets = [8, 0], sizes = [8, 128], strides = [1, 1]} : vector<16x128xf32> to vector<8x128xf32>
      %74 = arith.addf %72, %73 : vector<8x128xf32>
      %75 = vector.extract_strided_slice %49 {offsets = [0, 0], sizes = [8, 128], strides = [1, 1]} : vector<16x128xf32> to vector<8x128xf32>
      %76 = vector.extract_strided_slice %49 {offsets = [8, 0], sizes = [8, 128], strides = [1, 1]} : vector<16x128xf32> to vector<8x128xf32>
      %77 = arith.addf %75, %76 : vector<8x128xf32>
      %78 = math.absf %74 : vector<8x128xf32>
      %cst_22 = arith.constant 1.000000e+00 : f32
      %79 = vector.broadcast %cst_22 : f32 to vector<8x128xf32>
      %80 = arith.cmpf ole, %78, %79 : vector<8x128xf32>
      %cst_23 = arith.constant 5.000000e-01 : f32
      %81 = vector.broadcast %cst_23 : f32 to vector<8x128xf32>
      %82 = arith.mulf %81, %74 : vector<8x128xf32>
      %83 = arith.mulf %82, %74 : vector<8x128xf32>
      %cst_24 = arith.constant 5.000000e-01 : f32
      %84 = vector.broadcast %cst_24 : f32 to vector<8x128xf32>
      %85 = arith.subf %78, %84 : vector<8x128xf32>
      %86 = arith.select %80, %83, %85 : vector<8x128xi1>, vector<8x128xf32>
      %87 = math.absf %77 : vector<8x128xf32>
      %cst_25 = arith.constant 1.000000e+00 : f32
      %88 = vector.broadcast %cst_25 : f32 to vector<8x128xf32>
      %89 = arith.cmpf ole, %87, %88 : vector<8x128xf32>
      %cst_26 = arith.constant 5.000000e-01 : f32
      %90 = vector.broadcast %cst_26 : f32 to vector<8x128xf32>
      %91 = arith.mulf %90, %77 : vector<8x128xf32>
      %92 = arith.mulf %91, %77 : vector<8x128xf32>
      %cst_27 = arith.constant 5.000000e-01 : f32
      %93 = vector.broadcast %cst_27 : f32 to vector<8x128xf32>
      %94 = arith.subf %87, %93 : vector<8x128xf32>
      %95 = arith.select %89, %92, %94 : vector<8x128xi1>, vector<8x128xf32>
      %96 = arith.addf %86, %95 : vector<8x128xf32>
      %cst_28 = arith.constant dense<0.000000e+00> : vector<128xf32>
      %97 = vector.multi_reduction <add>, %96, %cst_28 [0] : vector<8x128xf32> to vector<128xf32>
      %98 = vector.shape_cast %97 : vector<128xf32> to vector<1x128xf32>
      %99 = arith.addf %71, %98 : vector<1x128xf32>
      %100 = vector.extract_strided_slice %74 {offsets = [0, 0], sizes = [4, 128], strides = [1, 1]} : vector<8x128xf32> to vector<4x128xf32>
      %101 = vector.extract_strided_slice %74 {offsets = [4, 0], sizes = [4, 128], strides = [1, 1]} : vector<8x128xf32> to vector<4x128xf32>
      %102 = arith.addf %100, %101 : vector<4x128xf32>
      %103 = vector.extract_strided_slice %77 {offsets = [0, 0], sizes = [4, 128], strides = [1, 1]} : vector<8x128xf32> to vector<4x128xf32>
      %104 = vector.extract_strided_slice %77 {offsets = [4, 0], sizes = [4, 128], strides = [1, 1]} : vector<8x128xf32> to vector<4x128xf32>
      %105 = arith.addf %103, %104 : vector<4x128xf32>
      %106 = math.absf %102 : vector<4x128xf32>
      %cst_29 = arith.constant 1.000000e+00 : f32
      %107 = vector.broadcast %cst_29 : f32 to vector<4x128xf32>
      %108 = arith.cmpf ole, %106, %107 : vector<4x128xf32>
      %cst_30 = arith.constant 5.000000e-01 : f32
      %109 = vector.broadcast %cst_30 : f32 to vector<4x128xf32>
      %110 = arith.mulf %109, %102 : vector<4x128xf32>
      %111 = arith.mulf %110, %102 : vector<4x128xf32>
      %cst_31 = arith.constant 5.000000e-01 : f32
      %112 = vector.broadcast %cst_31 : f32 to vector<4x128xf32>
      %113 = arith.subf %106, %112 : vector<4x128xf32>
      %114 = arith.select %108, %111, %113 : vector<4x128xi1>, vector<4x128xf32>
      %115 = math.absf %105 : vector<4x128xf32>
      %cst_32 = arith.constant 1.000000e+00 : f32
      %116 = vector.broadcast %cst_32 : f32 to vector<4x128xf32>
      %117 = arith.cmpf ole, %115, %116 : vector<4x128xf32>
      %cst_33 = arith.constant 5.000000e-01 : f32
      %118 = vector.broadcast %cst_33 : f32 to vector<4x128xf32>
      %119 = arith.mulf %118, %105 : vector<4x128xf32>
      %120 = arith.mulf %119, %105 : vector<4x128xf32>
      %cst_34 = arith.constant 5.000000e-01 : f32
      %121 = vector.broadcast %cst_34 : f32 to vector<4x128xf32>
      %122 = arith.subf %115, %121 : vector<4x128xf32>
      %123 = arith.select %117, %120, %122 : vector<4x128xi1>, vector<4x128xf32>
      %124 = arith.addf %114, %123 : vector<4x128xf32>
      %cst_35 = arith.constant dense<0.000000e+00> : vector<128xf32>
      %125 = vector.multi_reduction <add>, %124, %cst_35 [0] : vector<4x128xf32> to vector<128xf32>
      %126 = vector.shape_cast %125 : vector<128xf32> to vector<1x128xf32>
      %127 = arith.addf %99, %126 : vector<1x128xf32>
      %c2 = arith.constant 2 : index
      %c0_36 = arith.constant 0 : index
      %128 = arith.index_cast %6 : i32 to index
      %129 = vector.load %arg1[%c2, %c0_36, %128] : memref<25x32x256xf32, #tpu.memory_space<vmem>>, vector<1x32x128xf32>
      %130 = vector.shape_cast %129 : vector<1x32x128xf32> to vector<32x128xf32>
      %cst_37 = arith.constant 5.000000e-02 : f32
      %131 = vector.broadcast %cst_37 : f32 to vector<32x128xf32>
      %132 = arith.mulf %130, %131 : vector<32x128xf32>
      %c3 = arith.constant 3 : index
      %c0_38 = arith.constant 0 : index
      %133 = arith.index_cast %6 : i32 to index
      %134 = vector.load %arg1[%c3, %c0_38, %133] : memref<25x32x256xf32, #tpu.memory_space<vmem>>, vector<1x32x128xf32>
      %135 = vector.shape_cast %134 : vector<1x32x128xf32> to vector<32x128xf32>
      %cst_39 = arith.constant 5.000000e-02 : f32
      %136 = vector.broadcast %cst_39 : f32 to vector<32x128xf32>
      %137 = arith.mulf %135, %136 : vector<32x128xf32>
      %c4 = arith.constant 4 : index
      %c0_40 = arith.constant 0 : index
      %138 = arith.index_cast %6 : i32 to index
      %139 = vector.load %arg1[%c4, %c0_40, %138] : memref<25x32x256xf32, #tpu.memory_space<vmem>>, vector<1x32x128xf32>
      %140 = vector.shape_cast %139 : vector<1x32x128xf32> to vector<32x128xf32>
      %cst_41 = arith.constant 5.000000e-02 : f32
      %141 = vector.broadcast %cst_41 : f32 to vector<32x128xf32>
      %142 = arith.mulf %140, %141 : vector<32x128xf32>
      %143 = arith.mulf %132, %132 : vector<32x128xf32>
      %144 = arith.mulf %137, %137 : vector<32x128xf32>
      %145 = arith.addf %143, %144 : vector<32x128xf32>
      %146 = arith.mulf %142, %142 : vector<32x128xf32>
      %147 = arith.addf %145, %146 : vector<32x128xf32>
      %148 = math.sqrt %147 : vector<32x128xf32>
      %cst_42 = arith.constant 1.000000e-07 : f32
      %149 = vector.broadcast %cst_42 : f32 to vector<32x128xf32>
      %150 = arith.cmpf olt, %148, %149 : vector<32x128xf32>
      %cst_43 = arith.constant 1.000000e+00 : f32
      %151 = vector.broadcast %cst_43 : f32 to vector<32x128xf32>
      %152 = arith.select %150, %151, %148 : vector<32x128xi1>, vector<32x128xf32>
      %cst_44 = arith.constant 1.000000e+00 : f32
      %153 = vector.broadcast %cst_44 : f32 to vector<32x128xf32>
      %154 = arith.divf %153, %152 : vector<32x128xf32>
      %155 = arith.mulf %132, %154 : vector<32x128xf32>
      %156 = arith.mulf %137, %154 : vector<32x128xf32>
      %157 = arith.mulf %142, %154 : vector<32x128xf32>
      %158 = math.cos %148 : vector<32x128xf32>
      %159 = math.sin %148 : vector<32x128xf32>
      %cst_45 = arith.constant 1.000000e+00 : f32
      %160 = vector.broadcast %cst_45 : f32 to vector<32x128xf32>
      %161 = arith.subf %160, %158 : vector<32x128xf32>
      %162 = arith.mulf %161, %155 : vector<32x128xf32>
      %163 = arith.mulf %162, %155 : vector<32x128xf32>
      %164 = arith.addf %158, %163 : vector<32x128xf32>
      %165 = arith.mulf %161, %155 : vector<32x128xf32>
      %166 = arith.mulf %165, %156 : vector<32x128xf32>
      %167 = arith.mulf %159, %157 : vector<32x128xf32>
      %168 = arith.subf %166, %167 : vector<32x128xf32>
      %169 = arith.mulf %161, %155 : vector<32x128xf32>
      %170 = arith.mulf %169, %157 : vector<32x128xf32>
      %171 = arith.mulf %159, %156 : vector<32x128xf32>
      %172 = arith.addf %170, %171 : vector<32x128xf32>
      %173 = arith.mulf %161, %156 : vector<32x128xf32>
      %174 = arith.mulf %173, %155 : vector<32x128xf32>
      %175 = arith.mulf %159, %157 : vector<32x128xf32>
      %176 = arith.addf %174, %175 : vector<32x128xf32>
      %177 = arith.mulf %161, %156 : vector<32x128xf32>
      %178 = arith.mulf %177, %156 : vector<32x128xf32>
      %179 = arith.addf %158, %178 : vector<32x128xf32>
      %180 = arith.mulf %161, %156 : vector<32x128xf32>
      %181 = arith.mulf %180, %157 : vector<32x128xf32>
      %182 = arith.mulf %159, %155 : vector<32x128xf32>
      %183 = arith.subf %181, %182 : vector<32x128xf32>
      %184 = arith.mulf %161, %157 : vector<32x128xf32>
      %185 = arith.mulf %184, %155 : vector<32x128xf32>
      %186 = arith.mulf %159, %156 : vector<32x128xf32>
      %187 = arith.subf %185, %186 : vector<32x128xf32>
      %188 = arith.mulf %161, %157 : vector<32x128xf32>
      %189 = arith.mulf %188, %156 : vector<32x128xf32>
      %190 = arith.mulf %159, %155 : vector<32x128xf32>
      %191 = arith.addf %189, %190 : vector<32x128xf32>
      %192 = arith.mulf %161, %157 : vector<32x128xf32>
      %193 = arith.mulf %192, %157 : vector<32x128xf32>
      %194 = arith.addf %158, %193 : vector<32x128xf32>
      %cst_46 = arith.constant 1.000000e+00 : f32
      %195 = vector.broadcast %cst_46 : f32 to vector<32x128xf32>
      %cst_47 = arith.constant 0.000000e+00 : f32
      %196 = vector.broadcast %cst_47 : f32 to vector<32x128xf32>
      %197 = arith.subf %196, %142 : vector<32x128xf32>
      %cst_48 = arith.constant 0.000000e+00 : f32
      %198 = vector.broadcast %cst_48 : f32 to vector<32x128xf32>
      %199 = arith.subf %198, %132 : vector<32x128xf32>
      %cst_49 = arith.constant 0.000000e+00 : f32
      %200 = vector.broadcast %cst_49 : f32 to vector<32x128xf32>
      %201 = arith.subf %200, %137 : vector<32x128xf32>
      %202 = arith.select %150, %195, %164 : vector<32x128xi1>, vector<32x128xf32>
      %203 = arith.select %150, %197, %168 : vector<32x128xi1>, vector<32x128xf32>
      %204 = arith.select %150, %137, %172 : vector<32x128xi1>, vector<32x128xf32>
      %205 = arith.select %150, %142, %176 : vector<32x128xi1>, vector<32x128xf32>
      %206 = arith.select %150, %195, %179 : vector<32x128xi1>, vector<32x128xf32>
      %207 = arith.select %150, %199, %183 : vector<32x128xi1>, vector<32x128xf32>
      %208 = arith.select %150, %201, %187 : vector<32x128xi1>, vector<32x128xf32>
      %209 = arith.select %150, %132, %191 : vector<32x128xi1>, vector<32x128xf32>
      %210 = arith.select %150, %195, %194 : vector<32x128xi1>, vector<32x128xf32>
      %211 = vector.extract_strided_slice %202 {offsets = [0, 0], sizes = [16, 128], strides = [1, 1]} : vector<32x128xf32> to vector<16x128xf32>
      %212 = vector.extract_strided_slice %203 {offsets = [0, 0], sizes = [16, 128], strides = [1, 1]} : vector<32x128xf32> to vector<16x128xf32>
      %213 = vector.extract_strided_slice %204 {offsets = [0, 0], sizes = [16, 128], strides = [1, 1]} : vector<32x128xf32> to vector<16x128xf32>
      %214 = vector.extract_strided_slice %205 {offsets = [0, 0], sizes = [16, 128], strides = [1, 1]} : vector<32x128xf32> to vector<16x128xf32>
      %215 = vector.extract_strided_slice %206 {offsets = [0, 0], sizes = [16, 128], strides = [1, 1]} : vector<32x128xf32> to vector<16x128xf32>
      %216 = vector.extract_strided_slice %207 {offsets = [0, 0], sizes = [16, 128], strides = [1, 1]} : vector<32x128xf32> to vector<16x128xf32>
      %217 = vector.extract_strided_slice %208 {offsets = [0, 0], sizes = [16, 128], strides = [1, 1]} : vector<32x128xf32> to vector<16x128xf32>
      %218 = vector.extract_strided_slice %209 {offsets = [0, 0], sizes = [16, 128], strides = [1, 1]} : vector<32x128xf32> to vector<16x128xf32>
      %219 = vector.extract_strided_slice %210 {offsets = [0, 0], sizes = [16, 128], strides = [1, 1]} : vector<32x128xf32> to vector<16x128xf32>
      %220 = vector.extract_strided_slice %202 {offsets = [16, 0], sizes = [16, 128], strides = [1, 1]} : vector<32x128xf32> to vector<16x128xf32>
      %221 = vector.extract_strided_slice %203 {offsets = [16, 0], sizes = [16, 128], strides = [1, 1]} : vector<32x128xf32> to vector<16x128xf32>
      %222 = vector.extract_strided_slice %204 {offsets = [16, 0], sizes = [16, 128], strides = [1, 1]} : vector<32x128xf32> to vector<16x128xf32>
      %223 = vector.extract_strided_slice %205 {offsets = [16, 0], sizes = [16, 128], strides = [1, 1]} : vector<32x128xf32> to vector<16x128xf32>
      %224 = vector.extract_strided_slice %206 {offsets = [16, 0], sizes = [16, 128], strides = [1, 1]} : vector<32x128xf32> to vector<16x128xf32>
      %225 = vector.extract_strided_slice %207 {offsets = [16, 0], sizes = [16, 128], strides = [1, 1]} : vector<32x128xf32> to vector<16x128xf32>
      %226 = vector.extract_strided_slice %208 {offsets = [16, 0], sizes = [16, 128], strides = [1, 1]} : vector<32x128xf32> to vector<16x128xf32>
      %227 = vector.extract_strided_slice %209 {offsets = [16, 0], sizes = [16, 128], strides = [1, 1]} : vector<32x128xf32> to vector<16x128xf32>
      %228 = vector.extract_strided_slice %210 {offsets = [16, 0], sizes = [16, 128], strides = [1, 1]} : vector<32x128xf32> to vector<16x128xf32>
      %229 = arith.mulf %211, %220 : vector<16x128xf32>
      %230 = arith.mulf %212, %223 : vector<16x128xf32>
      %231 = arith.addf %229, %230 : vector<16x128xf32>
      %232 = arith.mulf %213, %226 : vector<16x128xf32>
      %233 = arith.addf %231, %232 : vector<16x128xf32>
      %234 = arith.mulf %211, %221 : vector<16x128xf32>
      %235 = arith.mulf %212, %224 : vector<16x128xf32>
      %236 = arith.addf %234, %235 : vector<16x128xf32>
      %237 = arith.mulf %213, %227 : vector<16x128xf32>
      %238 = arith.addf %236, %237 : vector<16x128xf32>
      %239 = arith.mulf %211, %222 : vector<16x128xf32>
      %240 = arith.mulf %212, %225 : vector<16x128xf32>
      %241 = arith.addf %239, %240 : vector<16x128xf32>
      %242 = arith.mulf %213, %228 : vector<16x128xf32>
      %243 = arith.addf %241, %242 : vector<16x128xf32>
      %244 = arith.mulf %214, %220 : vector<16x128xf32>
      %245 = arith.mulf %215, %223 : vector<16x128xf32>
      %246 = arith.addf %244, %245 : vector<16x128xf32>
      %247 = arith.mulf %216, %226 : vector<16x128xf32>
      %248 = arith.addf %246, %247 : vector<16x128xf32>
      %249 = arith.mulf %214, %221 : vector<16x128xf32>
      %250 = arith.mulf %215, %224 : vector<16x128xf32>
      %251 = arith.addf %249, %250 : vector<16x128xf32>
      %252 = arith.mulf %216, %227 : vector<16x128xf32>
      %253 = arith.addf %251, %252 : vector<16x128xf32>
      %254 = arith.mulf %214, %222 : vector<16x128xf32>
      %255 = arith.mulf %215, %225 : vector<16x128xf32>
      %256 = arith.addf %254, %255 : vector<16x128xf32>
      %257 = arith.mulf %216, %228 : vector<16x128xf32>
      %258 = arith.addf %256, %257 : vector<16x128xf32>
      %259 = arith.mulf %217, %220 : vector<16x128xf32>
      %260 = arith.mulf %218, %223 : vector<16x128xf32>
      %261 = arith.addf %259, %260 : vector<16x128xf32>
      %262 = arith.mulf %219, %226 : vector<16x128xf32>
      %263 = arith.addf %261, %262 : vector<16x128xf32>
      %264 = arith.mulf %217, %221 : vector<16x128xf32>
      %265 = arith.mulf %218, %224 : vector<16x128xf32>
      %266 = arith.addf %264, %265 : vector<16x128xf32>
      %267 = arith.mulf %219, %227 : vector<16x128xf32>
      %268 = arith.addf %266, %267 : vector<16x128xf32>
      %269 = arith.mulf %217, %222 : vector<16x128xf32>
      %270 = arith.mulf %218, %225 : vector<16x128xf32>
      %271 = arith.addf %269, %270 : vector<16x128xf32>
      %272 = arith.mulf %219, %228 : vector<16x128xf32>
      %273 = arith.addf %271, %272 : vector<16x128xf32>
      %c7 = arith.constant 7 : index
      %c0_50 = arith.constant 0 : index
      %274 = arith.index_cast %6 : i32 to index
      %275 = vector.load %arg1[%c7, %c0_50, %274] : memref<25x32x256xf32, #tpu.memory_space<vmem>>, vector<1x16x128xf32>
      %276 = vector.shape_cast %275 : vector<1x16x128xf32> to vector<16x128xf32>
      %c8 = arith.constant 8 : index
      %c0_51 = arith.constant 0 : index
      %277 = arith.index_cast %6 : i32 to index
      %278 = vector.load %arg1[%c8, %c0_51, %277] : memref<25x32x256xf32, #tpu.memory_space<vmem>>, vector<1x16x128xf32>
      %279 = vector.shape_cast %278 : vector<1x16x128xf32> to vector<16x128xf32>
      %c9 = arith.constant 9 : index
      %c0_52 = arith.constant 0 : index
      %280 = arith.index_cast %6 : i32 to index
      %281 = vector.load %arg1[%c9, %c0_52, %280] : memref<25x32x256xf32, #tpu.memory_space<vmem>>, vector<1x16x128xf32>
      %282 = vector.shape_cast %281 : vector<1x16x128xf32> to vector<16x128xf32>
      %c10 = arith.constant 10 : index
      %c0_53 = arith.constant 0 : index
      %283 = arith.index_cast %6 : i32 to index
      %284 = vector.load %arg1[%c10, %c0_53, %283] : memref<25x32x256xf32, #tpu.memory_space<vmem>>, vector<1x16x128xf32>
      %285 = vector.shape_cast %284 : vector<1x16x128xf32> to vector<16x128xf32>
      %c11 = arith.constant 11 : index
      %c0_54 = arith.constant 0 : index
      %286 = arith.index_cast %6 : i32 to index
      %287 = vector.load %arg1[%c11, %c0_54, %286] : memref<25x32x256xf32, #tpu.memory_space<vmem>>, vector<1x16x128xf32>
      %288 = vector.shape_cast %287 : vector<1x16x128xf32> to vector<16x128xf32>
      %c12 = arith.constant 12 : index
      %c0_55 = arith.constant 0 : index
      %289 = arith.index_cast %6 : i32 to index
      %290 = vector.load %arg1[%c12, %c0_55, %289] : memref<25x32x256xf32, #tpu.memory_space<vmem>>, vector<1x16x128xf32>
      %291 = vector.shape_cast %290 : vector<1x16x128xf32> to vector<16x128xf32>
      %c13 = arith.constant 13 : index
      %c0_56 = arith.constant 0 : index
      %292 = arith.index_cast %6 : i32 to index
      %293 = vector.load %arg1[%c13, %c0_56, %292] : memref<25x32x256xf32, #tpu.memory_space<vmem>>, vector<1x16x128xf32>
      %294 = vector.shape_cast %293 : vector<1x16x128xf32> to vector<16x128xf32>
      %c14 = arith.constant 14 : index
      %c0_57 = arith.constant 0 : index
      %295 = arith.index_cast %6 : i32 to index
      %296 = vector.load %arg1[%c14, %c0_57, %295] : memref<25x32x256xf32, #tpu.memory_space<vmem>>, vector<1x16x128xf32>
      %297 = vector.shape_cast %296 : vector<1x16x128xf32> to vector<16x128xf32>
      %c15 = arith.constant 15 : index
      %c0_58 = arith.constant 0 : index
      %298 = arith.index_cast %6 : i32 to index
      %299 = vector.load %arg1[%c15, %c0_58, %298] : memref<25x32x256xf32, #tpu.memory_space<vmem>>, vector<1x16x128xf32>
      %300 = vector.shape_cast %299 : vector<1x16x128xf32> to vector<16x128xf32>
      %c7_59 = arith.constant 7 : index
      %c16_60 = arith.constant 16 : index
      %301 = arith.index_cast %6 : i32 to index
      %302 = vector.load %arg1[%c7_59, %c16_60, %301] : memref<25x32x256xf32, #tpu.memory_space<vmem>>, vector<1x16x128xf32>
      %303 = vector.shape_cast %302 : vector<1x16x128xf32> to vector<16x128xf32>
      %c10_61 = arith.constant 10 : index
      %c16_62 = arith.constant 16 : index
      %304 = arith.index_cast %6 : i32 to index
      %305 = vector.load %arg1[%c10_61, %c16_62, %304] : memref<25x32x256xf32, #tpu.memory_space<vmem>>, vector<1x16x128xf32>
      %306 = vector.shape_cast %305 : vector<1x16x128xf32> to vector<16x128xf32>
      %c13_63 = arith.constant 13 : index
      %c16_64 = arith.constant 16 : index
      %307 = arith.index_cast %6 : i32 to index
      %308 = vector.load %arg1[%c13_63, %c16_64, %307] : memref<25x32x256xf32, #tpu.memory_space<vmem>>, vector<1x16x128xf32>
      %309 = vector.shape_cast %308 : vector<1x16x128xf32> to vector<16x128xf32>
      %310 = arith.mulf %276, %303 : vector<16x128xf32>
      %311 = arith.mulf %279, %306 : vector<16x128xf32>
      %312 = arith.addf %310, %311 : vector<16x128xf32>
      %313 = arith.mulf %282, %309 : vector<16x128xf32>
      %314 = arith.addf %312, %313 : vector<16x128xf32>
      %315 = arith.mulf %285, %303 : vector<16x128xf32>
      %316 = arith.mulf %288, %306 : vector<16x128xf32>
      %317 = arith.addf %315, %316 : vector<16x128xf32>
      %318 = arith.mulf %291, %309 : vector<16x128xf32>
      %319 = arith.addf %317, %318 : vector<16x128xf32>
      %320 = arith.mulf %294, %303 : vector<16x128xf32>
      %321 = arith.mulf %297, %306 : vector<16x128xf32>
      %322 = arith.addf %320, %321 : vector<16x128xf32>
      %323 = arith.mulf %300, %309 : vector<16x128xf32>
      %324 = arith.addf %322, %323 : vector<16x128xf32>
      %c8_65 = arith.constant 8 : index
      %c16_66 = arith.constant 16 : index
      %325 = arith.index_cast %6 : i32 to index
      %326 = vector.load %arg1[%c8_65, %c16_66, %325] : memref<25x32x256xf32, #tpu.memory_space<vmem>>, vector<1x16x128xf32>
      %327 = vector.shape_cast %326 : vector<1x16x128xf32> to vector<16x128xf32>
      %c11_67 = arith.constant 11 : index
      %c16_68 = arith.constant 16 : index
      %328 = arith.index_cast %6 : i32 to index
      %329 = vector.load %arg1[%c11_67, %c16_68, %328] : memref<25x32x256xf32, #tpu.memory_space<vmem>>, vector<1x16x128xf32>
      %330 = vector.shape_cast %329 : vector<1x16x128xf32> to vector<16x128xf32>
      %c14_69 = arith.constant 14 : index
      %c16_70 = arith.constant 16 : index
      %331 = arith.index_cast %6 : i32 to index
      %332 = vector.load %arg1[%c14_69, %c16_70, %331] : memref<25x32x256xf32, #tpu.memory_space<vmem>>, vector<1x16x128xf32>
      %333 = vector.shape_cast %332 : vector<1x16x128xf32> to vector<16x128xf32>
      %334 = arith.mulf %276, %327 : vector<16x128xf32>
      %335 = arith.mulf %279, %330 : vector<16x128xf32>
      %336 = arith.addf %334, %335 : vector<16x128xf32>
      %337 = arith.mulf %282, %333 : vector<16x128xf32>
      %338 = arith.addf %336, %337 : vector<16x128xf32>
      %339 = arith.mulf %285, %327 : vector<16x128xf32>
      %340 = arith.mulf %288, %330 : vector<16x128xf32>
      %341 = arith.addf %339, %340 : vector<16x128xf32>
      %342 = arith.mulf %291, %333 : vector<16x128xf32>
      %343 = arith.addf %341, %342 : vector<16x128xf32>
      %344 = arith.mulf %294, %327 : vector<16x128xf32>
      %345 = arith.mulf %297, %330 : vector<16x128xf32>
      %346 = arith.addf %344, %345 : vector<16x128xf32>
      %347 = arith.mulf %300, %333 : vector<16x128xf32>
      %348 = arith.addf %346, %347 : vector<16x128xf32>
      %c9_71 = arith.constant 9 : index
      %c16_72 = arith.constant 16 : index
      %349 = arith.index_cast %6 : i32 to index
      %350 = vector.load %arg1[%c9_71, %c16_72, %349] : memref<25x32x256xf32, #tpu.memory_space<vmem>>, vector<1x16x128xf32>
      %351 = vector.shape_cast %350 : vector<1x16x128xf32> to vector<16x128xf32>
      %c12_73 = arith.constant 12 : index
      %c16_74 = arith.constant 16 : index
      %352 = arith.index_cast %6 : i32 to index
      %353 = vector.load %arg1[%c12_73, %c16_74, %352] : memref<25x32x256xf32, #tpu.memory_space<vmem>>, vector<1x16x128xf32>
      %354 = vector.shape_cast %353 : vector<1x16x128xf32> to vector<16x128xf32>
      %c15_75 = arith.constant 15 : index
      %c16_76 = arith.constant 16 : index
      %355 = arith.index_cast %6 : i32 to index
      %356 = vector.load %arg1[%c15_75, %c16_76, %355] : memref<25x32x256xf32, #tpu.memory_space<vmem>>, vector<1x16x128xf32>
      %357 = vector.shape_cast %356 : vector<1x16x128xf32> to vector<16x128xf32>
      %358 = arith.mulf %276, %351 : vector<16x128xf32>
      %359 = arith.mulf %279, %354 : vector<16x128xf32>
      %360 = arith.addf %358, %359 : vector<16x128xf32>
      %361 = arith.mulf %282, %357 : vector<16x128xf32>
      %362 = arith.addf %360, %361 : vector<16x128xf32>
      %363 = arith.mulf %285, %351 : vector<16x128xf32>
      %364 = arith.mulf %288, %354 : vector<16x128xf32>
      %365 = arith.addf %363, %364 : vector<16x128xf32>
      %366 = arith.mulf %291, %357 : vector<16x128xf32>
      %367 = arith.addf %365, %366 : vector<16x128xf32>
      %368 = arith.mulf %294, %351 : vector<16x128xf32>
      %369 = arith.mulf %297, %354 : vector<16x128xf32>
      %370 = arith.addf %368, %369 : vector<16x128xf32>
      %371 = arith.mulf %300, %357 : vector<16x128xf32>
      %372 = arith.addf %370, %371 : vector<16x128xf32>
      %373 = arith.mulf %233, %314 : vector<16x128xf32>
      %374 = arith.mulf %248, %319 : vector<16x128xf32>
      %375 = arith.addf %373, %374 : vector<16x128xf32>
      %376 = arith.mulf %263, %324 : vector<16x128xf32>
      %377 = arith.addf %375, %376 : vector<16x128xf32>
      %378 = arith.mulf %233, %338 : vector<16x128xf32>
      %379 = arith.mulf %248, %343 : vector<16x128xf32>
      %380 = arith.addf %378, %379 : vector<16x128xf32>
      %381 = arith.mulf %263, %348 : vector<16x128xf32>
      %382 = arith.addf %380, %381 : vector<16x128xf32>
      %383 = arith.mulf %233, %362 : vector<16x128xf32>
      %384 = arith.mulf %248, %367 : vector<16x128xf32>
      %385 = arith.addf %383, %384 : vector<16x128xf32>
      %386 = arith.mulf %263, %372 : vector<16x128xf32>
      %387 = arith.addf %385, %386 : vector<16x128xf32>
      %388 = arith.mulf %238, %314 : vector<16x128xf32>
      %389 = arith.mulf %253, %319 : vector<16x128xf32>
      %390 = arith.addf %388, %389 : vector<16x128xf32>
      %391 = arith.mulf %268, %324 : vector<16x128xf32>
      %392 = arith.addf %390, %391 : vector<16x128xf32>
      %393 = arith.mulf %238, %338 : vector<16x128xf32>
      %394 = arith.mulf %253, %343 : vector<16x128xf32>
      %395 = arith.addf %393, %394 : vector<16x128xf32>
      %396 = arith.mulf %268, %348 : vector<16x128xf32>
      %397 = arith.addf %395, %396 : vector<16x128xf32>
      %398 = arith.mulf %238, %362 : vector<16x128xf32>
      %399 = arith.mulf %253, %367 : vector<16x128xf32>
      %400 = arith.addf %398, %399 : vector<16x128xf32>
      %401 = arith.mulf %268, %372 : vector<16x128xf32>
      %402 = arith.addf %400, %401 : vector<16x128xf32>
      %403 = arith.mulf %243, %314 : vector<16x128xf32>
      %404 = arith.mulf %258, %319 : vector<16x128xf32>
      %405 = arith.addf %403, %404 : vector<16x128xf32>
      %406 = arith.mulf %273, %324 : vector<16x128xf32>
      %407 = arith.addf %405, %406 : vector<16x128xf32>
      %408 = arith.mulf %243, %338 : vector<16x128xf32>
      %409 = arith.mulf %258, %343 : vector<16x128xf32>
      %410 = arith.addf %408, %409 : vector<16x128xf32>
      %411 = arith.mulf %273, %348 : vector<16x128xf32>
      %412 = arith.addf %410, %411 : vector<16x128xf32>
      %413 = arith.mulf %243, %362 : vector<16x128xf32>
      %414 = arith.mulf %258, %367 : vector<16x128xf32>
      %415 = arith.addf %413, %414 : vector<16x128xf32>
      %416 = arith.mulf %273, %372 : vector<16x128xf32>
      %417 = arith.addf %415, %416 : vector<16x128xf32>
      %c0_77 = arith.constant 0 : index
      %c0_78 = arith.constant 0 : index
      %c0_79 = arith.constant 0 : index
      %418 = vector.load %arg3[%c0_77, %c0_78, %c0_79] : memref<9x32x128xf32, #tpu.memory_space<vmem>>, vector<1x16x128xf32>
      %419 = vector.shape_cast %418 : vector<1x16x128xf32> to vector<16x128xf32>
      %420 = vector.shape_cast %377 : vector<16x128xf32> to vector<1x16x128xf32>
      tpu.vector_store %arg3[%c0_77, %c0_78, %c0_79], %420 {strides = array<i32>} : memref<9x32x128xf32, #tpu.memory_space<vmem>>, vector<1x16x128xf32>,
      %c1_80 = arith.constant 1 : index
      %c0_81 = arith.constant 0 : index
      %c0_82 = arith.constant 0 : index
      %421 = vector.load %arg3[%c1_80, %c0_81, %c0_82] : memref<9x32x128xf32, #tpu.memory_space<vmem>>, vector<1x16x128xf32>
      %422 = vector.shape_cast %421 : vector<1x16x128xf32> to vector<16x128xf32>
      %423 = vector.shape_cast %382 : vector<16x128xf32> to vector<1x16x128xf32>
      tpu.vector_store %arg3[%c1_80, %c0_81, %c0_82], %423 {strides = array<i32>} : memref<9x32x128xf32, #tpu.memory_space<vmem>>, vector<1x16x128xf32>,
      %c2_83 = arith.constant 2 : index
      %c0_84 = arith.constant 0 : index
      %c0_85 = arith.constant 0 : index
      %424 = vector.load %arg3[%c2_83, %c0_84, %c0_85] : memref<9x32x128xf32, #tpu.memory_space<vmem>>, vector<1x16x128xf32>
      %425 = vector.shape_cast %424 : vector<1x16x128xf32> to vector<16x128xf32>
      %426 = vector.shape_cast %387 : vector<16x128xf32> to vector<1x16x128xf32>
      tpu.vector_store %arg3[%c2_83, %c0_84, %c0_85], %426 {strides = array<i32>} : memref<9x32x128xf32, #tpu.memory_space<vmem>>, vector<1x16x128xf32>,
      %c3_86 = arith.constant 3 : index
      %c0_87 = arith.constant 0 : index
      %c0_88 = arith.constant 0 : index
      %427 = vector.load %arg3[%c3_86, %c0_87, %c0_88] : memref<9x32x128xf32, #tpu.memory_space<vmem>>, vector<1x16x128xf32>
      %428 = vector.shape_cast %427 : vector<1x16x128xf32> to vector<16x128xf32>
      %429 = vector.shape_cast %392 : vector<16x128xf32> to vector<1x16x128xf32>
      tpu.vector_store %arg3[%c3_86, %c0_87, %c0_88], %429 {strides = array<i32>} : memref<9x32x128xf32, #tpu.memory_space<vmem>>, vector<1x16x128xf32>,
      %c4_89 = arith.constant 4 : index
      %c0_90 = arith.constant 0 : index
      %c0_91 = arith.constant 0 : index
      %430 = vector.load %arg3[%c4_89, %c0_90, %c0_91] : memref<9x32x128xf32, #tpu.memory_space<vmem>>, vector<1x16x128xf32>
      %431 = vector.shape_cast %430 : vector<1x16x128xf32> to vector<16x128xf32>
      %432 = vector.shape_cast %397 : vector<16x128xf32> to vector<1x16x128xf32>
      tpu.vector_store %arg3[%c4_89, %c0_90, %c0_91], %432 {strides = array<i32>} : memref<9x32x128xf32, #tpu.memory_space<vmem>>, vector<1x16x128xf32>,
      %c5_92 = arith.constant 5 : index
      %c0_93 = arith.constant 0 : index
      %c0_94 = arith.constant 0 : index
      %433 = vector.load %arg3[%c5_92, %c0_93, %c0_94] : memref<9x32x128xf32, #tpu.memory_space<vmem>>, vector<1x16x128xf32>
      %434 = vector.shape_cast %433 : vector<1x16x128xf32> to vector<16x128xf32>
      %435 = vector.shape_cast %402 : vector<16x128xf32> to vector<1x16x128xf32>
      tpu.vector_store %arg3[%c5_92, %c0_93, %c0_94], %435 {strides = array<i32>} : memref<9x32x128xf32, #tpu.memory_space<vmem>>, vector<1x16x128xf32>,
      %c6_95 = arith.constant 6 : index
      %c0_96 = arith.constant 0 : index
      %c0_97 = arith.constant 0 : index
      %436 = vector.load %arg3[%c6_95, %c0_96, %c0_97] : memref<9x32x128xf32, #tpu.memory_space<vmem>>, vector<1x16x128xf32>
      %437 = vector.shape_cast %436 : vector<1x16x128xf32> to vector<16x128xf32>
      %438 = vector.shape_cast %407 : vector<16x128xf32> to vector<1x16x128xf32>
      tpu.vector_store %arg3[%c6_95, %c0_96, %c0_97], %438 {strides = array<i32>} : memref<9x32x128xf32, #tpu.memory_space<vmem>>, vector<1x16x128xf32>,
      %c7_98 = arith.constant 7 : index
      %c0_99 = arith.constant 0 : index
      %c0_100 = arith.constant 0 : index
      %439 = vector.load %arg3[%c7_98, %c0_99, %c0_100] : memref<9x32x128xf32, #tpu.memory_space<vmem>>, vector<1x16x128xf32>
      %440 = vector.shape_cast %439 : vector<1x16x128xf32> to vector<16x128xf32>
      %441 = vector.shape_cast %412 : vector<16x128xf32> to vector<1x16x128xf32>
      tpu.vector_store %arg3[%c7_98, %c0_99, %c0_100], %441 {strides = array<i32>} : memref<9x32x128xf32, #tpu.memory_space<vmem>>, vector<1x16x128xf32>,
      %c8_101 = arith.constant 8 : index
      %c0_102 = arith.constant 0 : index
      %c0_103 = arith.constant 0 : index
      %442 = vector.load %arg3[%c8_101, %c0_102, %c0_103] : memref<9x32x128xf32, #tpu.memory_space<vmem>>, vector<1x16x128xf32>
      %443 = vector.shape_cast %442 : vector<1x16x128xf32> to vector<16x128xf32>
      %444 = vector.shape_cast %417 : vector<16x128xf32> to vector<1x16x128xf32>
      tpu.vector_store %arg3[%c8_101, %c0_102, %c0_103], %444 {strides = array<i32>} : memref<9x32x128xf32, #tpu.memory_space<vmem>>, vector<1x16x128xf32>,
      %445 = vector.extract_strided_slice %233 {offsets = [0, 0], sizes = [8, 128], strides = [1, 1]} : vector<16x128xf32> to vector<8x128xf32>
      %446 = vector.extract_strided_slice %238 {offsets = [0, 0], sizes = [8, 128], strides = [1, 1]} : vector<16x128xf32> to vector<8x128xf32>
      %447 = vector.extract_strided_slice %243 {offsets = [0, 0], sizes = [8, 128], strides = [1, 1]} : vector<16x128xf32> to vector<8x128xf32>
      %448 = vector.extract_strided_slice %248 {offsets = [0, 0], sizes = [8, 128], strides = [1, 1]} : vector<16x128xf32> to vector<8x128xf32>
      %449 = vector.extract_strided_slice %253 {offsets = [0, 0], sizes = [8, 128], strides = [1, 1]} : vector<16x128xf32> to vector<8x128xf32>
      %450 = vector.extract_strided_slice %258 {offsets = [0, 0], sizes = [8, 128], strides = [1, 1]} : vector<16x128xf32> to vector<8x128xf32>
      %451 = vector.extract_strided_slice %263 {offsets = [0, 0], sizes = [8, 128], strides = [1, 1]} : vector<16x128xf32> to vector<8x128xf32>
      %452 = vector.extract_strided_slice %268 {offsets = [0, 0], sizes = [8, 128], strides = [1, 1]} : vector<16x128xf32> to vector<8x128xf32>
      %453 = vector.extract_strided_slice %273 {offsets = [0, 0], sizes = [8, 128], strides = [1, 1]} : vector<16x128xf32> to vector<8x128xf32>
      %454 = vector.extract_strided_slice %233 {offsets = [8, 0], sizes = [8, 128], strides = [1, 1]} : vector<16x128xf32> to vector<8x128xf32>
      %455 = vector.extract_strided_slice %238 {offsets = [8, 0], sizes = [8, 128], strides = [1, 1]} : vector<16x128xf32> to vector<8x128xf32>
      %456 = vector.extract_strided_slice %243 {offsets = [8, 0], sizes = [8, 128], strides = [1, 1]} : vector<16x128xf32> to vector<8x128xf32>
      %457 = vector.extract_strided_slice %248 {offsets = [8, 0], sizes = [8, 128], strides = [1, 1]} : vector<16x128xf32> to vector<8x128xf32>
      %458 = vector.extract_strided_slice %253 {offsets = [8, 0], sizes = [8, 128], strides = [1, 1]} : vector<16x128xf32> to vector<8x128xf32>
      %459 = vector.extract_strided_slice %258 {offsets = [8, 0], sizes = [8, 128], strides = [1, 1]} : vector<16x128xf32> to vector<8x128xf32>
      %460 = vector.extract_strided_slice %263 {offsets = [8, 0], sizes = [8, 128], strides = [1, 1]} : vector<16x128xf32> to vector<8x128xf32>
      %461 = vector.extract_strided_slice %268 {offsets = [8, 0], sizes = [8, 128], strides = [1, 1]} : vector<16x128xf32> to vector<8x128xf32>
      %462 = vector.extract_strided_slice %273 {offsets = [8, 0], sizes = [8, 128], strides = [1, 1]} : vector<16x128xf32> to vector<8x128xf32>
      %463 = arith.mulf %445, %454 : vector<8x128xf32>
      %464 = arith.mulf %446, %457 : vector<8x128xf32>
      %465 = arith.addf %463, %464 : vector<8x128xf32>
      %466 = arith.mulf %447, %460 : vector<8x128xf32>
      %467 = arith.addf %465, %466 : vector<8x128xf32>
      %468 = arith.mulf %445, %455 : vector<8x128xf32>
      %469 = arith.mulf %446, %458 : vector<8x128xf32>
      %470 = arith.addf %468, %469 : vector<8x128xf32>
      %471 = arith.mulf %447, %461 : vector<8x128xf32>
      %472 = arith.addf %470, %471 : vector<8x128xf32>
      %473 = arith.mulf %445, %456 : vector<8x128xf32>
      %474 = arith.mulf %446, %459 : vector<8x128xf32>
      %475 = arith.addf %473, %474 : vector<8x128xf32>
      %476 = arith.mulf %447, %462 : vector<8x128xf32>
      %477 = arith.addf %475, %476 : vector<8x128xf32>
      %478 = arith.mulf %448, %454 : vector<8x128xf32>
      %479 = arith.mulf %449, %457 : vector<8x128xf32>
      %480 = arith.addf %478, %479 : vector<8x128xf32>
      %481 = arith.mulf %450, %460 : vector<8x128xf32>
      %482 = arith.addf %480, %481 : vector<8x128xf32>
      %483 = arith.mulf %448, %455 : vector<8x128xf32>
      %484 = arith.mulf %449, %458 : vector<8x128xf32>
      %485 = arith.addf %483, %484 : vector<8x128xf32>
      %486 = arith.mulf %450, %461 : vector<8x128xf32>
      %487 = arith.addf %485, %486 : vector<8x128xf32>
      %488 = arith.mulf %448, %456 : vector<8x128xf32>
      %489 = arith.mulf %449, %459 : vector<8x128xf32>
      %490 = arith.addf %488, %489 : vector<8x128xf32>
      %491 = arith.mulf %450, %462 : vector<8x128xf32>
      %492 = arith.addf %490, %491 : vector<8x128xf32>
      %493 = arith.mulf %451, %454 : vector<8x128xf32>
      %494 = arith.mulf %452, %457 : vector<8x128xf32>
      %495 = arith.addf %493, %494 : vector<8x128xf32>
      %496 = arith.mulf %453, %460 : vector<8x128xf32>
      %497 = arith.addf %495, %496 : vector<8x128xf32>
      %498 = arith.mulf %451, %455 : vector<8x128xf32>
      %499 = arith.mulf %452, %458 : vector<8x128xf32>
      %500 = arith.addf %498, %499 : vector<8x128xf32>
      %501 = arith.mulf %453, %461 : vector<8x128xf32>
      %502 = arith.addf %500, %501 : vector<8x128xf32>
      %503 = arith.mulf %451, %456 : vector<8x128xf32>
      %504 = arith.mulf %452, %459 : vector<8x128xf32>
      %505 = arith.addf %503, %504 : vector<8x128xf32>
      %506 = arith.mulf %453, %462 : vector<8x128xf32>
      %507 = arith.addf %505, %506 : vector<8x128xf32>
      %508 = vector.extract_strided_slice %314 {offsets = [0, 0], sizes = [8, 128], strides = [1, 1]} : vector<16x128xf32> to vector<8x128xf32>
      %509 = vector.extract_strided_slice %338 {offsets = [0, 0], sizes = [8, 128], strides = [1, 1]} : vector<16x128xf32> to vector<8x128xf32>
      %510 = vector.extract_strided_slice %362 {offsets = [0, 0], sizes = [8, 128], strides = [1, 1]} : vector<16x128xf32> to vector<8x128xf32>
      %511 = vector.extract_strided_slice %319 {offsets = [0, 0], sizes = [8, 128], strides = [1, 1]} : vector<16x128xf32> to vector<8x128xf32>
      %512 = vector.extract_strided_slice %343 {offsets = [0, 0], sizes = [8, 128], strides = [1, 1]} : vector<16x128xf32> to vector<8x128xf32>
      %513 = vector.extract_strided_slice %367 {offsets = [0, 0], sizes = [8, 128], strides = [1, 1]} : vector<16x128xf32> to vector<8x128xf32>
      %514 = vector.extract_strided_slice %324 {offsets = [0, 0], sizes = [8, 128], strides = [1, 1]} : vector<16x128xf32> to vector<8x128xf32>
      %515 = vector.extract_strided_slice %348 {offsets = [0, 0], sizes = [8, 128], strides = [1, 1]} : vector<16x128xf32> to vector<8x128xf32>
      %516 = vector.extract_strided_slice %372 {offsets = [0, 0], sizes = [8, 128], strides = [1, 1]} : vector<16x128xf32> to vector<8x128xf32>
      %517 = vector.extract_strided_slice %314 {offsets = [8, 0], sizes = [8, 128], strides = [1, 1]} : vector<16x128xf32> to vector<8x128xf32>
      %518 = vector.extract_strided_slice %338 {offsets = [8, 0], sizes = [8, 128], strides = [1, 1]} : vector<16x128xf32> to vector<8x128xf32>
      %519 = vector.extract_strided_slice %362 {offsets = [8, 0], sizes = [8, 128], strides = [1, 1]} : vector<16x128xf32> to vector<8x128xf32>
      %520 = vector.extract_strided_slice %319 {offsets = [8, 0], sizes = [8, 128], strides = [1, 1]} : vector<16x128xf32> to vector<8x128xf32>
      %521 = vector.extract_strided_slice %343 {offsets = [8, 0], sizes = [8, 128], strides = [1, 1]} : vector<16x128xf32> to vector<8x128xf32>
      %522 = vector.extract_strided_slice %367 {offsets = [8, 0], sizes = [8, 128], strides = [1, 1]} : vector<16x128xf32> to vector<8x128xf32>
      %523 = vector.extract_strided_slice %324 {offsets = [8, 0], sizes = [8, 128], strides = [1, 1]} : vector<16x128xf32> to vector<8x128xf32>
      %524 = vector.extract_strided_slice %348 {offsets = [8, 0], sizes = [8, 128], strides = [1, 1]} : vector<16x128xf32> to vector<8x128xf32>
      %525 = vector.extract_strided_slice %372 {offsets = [8, 0], sizes = [8, 128], strides = [1, 1]} : vector<16x128xf32> to vector<8x128xf32>
      %526 = arith.mulf %508, %517 : vector<8x128xf32>
      %527 = arith.mulf %509, %520 : vector<8x128xf32>
      %528 = arith.addf %526, %527 : vector<8x128xf32>
      %529 = arith.mulf %510, %523 : vector<8x128xf32>
      %530 = arith.addf %528, %529 : vector<8x128xf32>
      %531 = arith.mulf %508, %518 : vector<8x128xf32>
      %532 = arith.mulf %509, %521 : vector<8x128xf32>
      %533 = arith.addf %531, %532 : vector<8x128xf32>
      %534 = arith.mulf %510, %524 : vector<8x128xf32>
      %535 = arith.addf %533, %534 : vector<8x128xf32>
      %536 = arith.mulf %508, %519 : vector<8x128xf32>
      %537 = arith.mulf %509, %522 : vector<8x128xf32>
      %538 = arith.addf %536, %537 : vector<8x128xf32>
      %539 = arith.mulf %510, %525 : vector<8x128xf32>
      %540 = arith.addf %538, %539 : vector<8x128xf32>
      %541 = arith.mulf %511, %517 : vector<8x128xf32>
      %542 = arith.mulf %512, %520 : vector<8x128xf32>
      %543 = arith.addf %541, %542 : vector<8x128xf32>
      %544 = arith.mulf %513, %523 : vector<8x128xf32>
      %545 = arith.addf %543, %544 : vector<8x128xf32>
      %546 = arith.mulf %511, %518 : vector<8x128xf32>
      %547 = arith.mulf %512, %521 : vector<8x128xf32>
      %548 = arith.addf %546, %547 : vector<8x128xf32>
      %549 = arith.mulf %513, %524 : vector<8x128xf32>
      %550 = arith.addf %548, %549 : vector<8x128xf32>
      %551 = arith.mulf %511, %519 : vector<8x128xf32>
      %552 = arith.mulf %512, %522 : vector<8x128xf32>
      %553 = arith.addf %551, %552 : vector<8x128xf32>
      %554 = arith.mulf %513, %525 : vector<8x128xf32>
      %555 = arith.addf %553, %554 : vector<8x128xf32>
      %556 = arith.mulf %514, %517 : vector<8x128xf32>
      %557 = arith.mulf %515, %520 : vector<8x128xf32>
      %558 = arith.addf %556, %557 : vector<8x128xf32>
      %559 = arith.mulf %516, %523 : vector<8x128xf32>
      %560 = arith.addf %558, %559 : vector<8x128xf32>
      %561 = arith.mulf %514, %518 : vector<8x128xf32>
      %562 = arith.mulf %515, %521 : vector<8x128xf32>
      %563 = arith.addf %561, %562 : vector<8x128xf32>
      %564 = arith.mulf %516, %524 : vector<8x128xf32>
      %565 = arith.addf %563, %564 : vector<8x128xf32>
      %566 = arith.mulf %514, %519 : vector<8x128xf32>
      %567 = arith.mulf %515, %522 : vector<8x128xf32>
      %568 = arith.addf %566, %567 : vector<8x128xf32>
      %569 = arith.mulf %516, %525 : vector<8x128xf32>
      %570 = arith.addf %568, %569 : vector<8x128xf32>
      %571 = arith.mulf %467, %530 : vector<8x128xf32>
      %572 = arith.mulf %482, %545 : vector<8x128xf32>
      %573 = arith.addf %571, %572 : vector<8x128xf32>
      %574 = arith.mulf %497, %560 : vector<8x128xf32>
      %575 = arith.addf %573, %574 : vector<8x128xf32>
      %576 = arith.mulf %467, %535 : vector<8x128xf32>
      %577 = arith.mulf %482, %550 : vector<8x128xf32>
      %578 = arith.addf %576, %577 : vector<8x128xf32>
      %579 = arith.mulf %497, %565 : vector<8x128xf32>
      %580 = arith.addf %578, %579 : vector<8x128xf32>
      %581 = arith.mulf %467, %540 : vector<8x128xf32>
      %582 = arith.mulf %482, %555 : vector<8x128xf32>
      %583 = arith.addf %581, %582 : vector<8x128xf32>
      %584 = arith.mulf %497, %570 : vector<8x128xf32>
      %585 = arith.addf %583, %584 : vector<8x128xf32>
      %586 = arith.mulf %472, %530 : vector<8x128xf32>
      %587 = arith.mulf %487, %545 : vector<8x128xf32>
      %588 = arith.addf %586, %587 : vector<8x128xf32>
      %589 = arith.mulf %502, %560 : vector<8x128xf32>
      %590 = arith.addf %588, %589 : vector<8x128xf32>
      %591 = arith.mulf %472, %535 : vector<8x128xf32>
      %592 = arith.mulf %487, %550 : vector<8x128xf32>
      %593 = arith.addf %591, %592 : vector<8x128xf32>
      %594 = arith.mulf %502, %565 : vector<8x128xf32>
      %595 = arith.addf %593, %594 : vector<8x128xf32>
      %596 = arith.mulf %472, %540 : vector<8x128xf32>
      %597 = arith.mulf %487, %555 : vector<8x128xf32>
      %598 = arith.addf %596, %597 : vector<8x128xf32>
      %599 = arith.mulf %502, %570 : vector<8x128xf32>
      %600 = arith.addf %598, %599 : vector<8x128xf32>
      %601 = arith.mulf %477, %530 : vector<8x128xf32>
      %602 = arith.mulf %492, %545 : vector<8x128xf32>
      %603 = arith.addf %601, %602 : vector<8x128xf32>
      %604 = arith.mulf %507, %560 : vector<8x128xf32>
      %605 = arith.addf %603, %604 : vector<8x128xf32>
      %606 = arith.mulf %477, %535 : vector<8x128xf32>
      %607 = arith.mulf %492, %550 : vector<8x128xf32>
      %608 = arith.addf %606, %607 : vector<8x128xf32>
      %609 = arith.mulf %507, %565 : vector<8x128xf32>
      %610 = arith.addf %608, %609 : vector<8x128xf32>
      %611 = arith.mulf %477, %540 : vector<8x128xf32>
      %612 = arith.mulf %492, %555 : vector<8x128xf32>
      %613 = arith.addf %611, %612 : vector<8x128xf32>
      %614 = arith.mulf %507, %570 : vector<8x128xf32>
      %615 = arith.addf %613, %614 : vector<8x128xf32>
      %c0_104 = arith.constant 0 : index
      %c16_105 = arith.constant 16 : index
      %c0_106 = arith.constant 0 : index
      %616 = vector.load %arg3[%c0_104, %c16_105, %c0_106] : memref<9x32x128xf32, #tpu.memory_space<vmem>>, vector<1x8x128xf32>
      %617 = vector.shape_cast %616 : vector<1x8x128xf32> to vector<8x128xf32>
      %618 = vector.shape_cast %575 : vector<8x128xf32> to vector<1x8x128xf32>
      tpu.vector_store %arg3[%c0_104, %c16_105, %c0_106], %618 {strides = array<i32>} : memref<9x32x128xf32, #tpu.memory_space<vmem>>, vector<1x8x128xf32>,
      %c1_107 = arith.constant 1 : index
      %c16_108 = arith.constant 16 : index
      %c0_109 = arith.constant 0 : index
      %619 = vector.load %arg3[%c1_107, %c16_108, %c0_109] : memref<9x32x128xf32, #tpu.memory_space<vmem>>, vector<1x8x128xf32>
      %620 = vector.shape_cast %619 : vector<1x8x128xf32> to vector<8x128xf32>
      %621 = vector.shape_cast %580 : vector<8x128xf32> to vector<1x8x128xf32>
      tpu.vector_store %arg3[%c1_107, %c16_108, %c0_109], %621 {strides = array<i32>} : memref<9x32x128xf32, #tpu.memory_space<vmem>>, vector<1x8x128xf32>,
      %c2_110 = arith.constant 2 : index
      %c16_111 = arith.constant 16 : index
      %c0_112 = arith.constant 0 : index
      %622 = vector.load %arg3[%c2_110, %c16_111, %c0_112] : memref<9x32x128xf32, #tpu.memory_space<vmem>>, vector<1x8x128xf32>
      %623 = vector.shape_cast %622 : vector<1x8x128xf32> to vector<8x128xf32>
      %624 = vector.shape_cast %585 : vector<8x128xf32> to vector<1x8x128xf32>
      tpu.vector_store %arg3[%c2_110, %c16_111, %c0_112], %624 {strides = array<i32>} : memref<9x32x128xf32, #tpu.memory_space<vmem>>, vector<1x8x128xf32>,
      %c3_113 = arith.constant 3 : index
      %c16_114 = arith.constant 16 : index
      %c0_115 = arith.constant 0 : index
      %625 = vector.load %arg3[%c3_113, %c16_114, %c0_115] : memref<9x32x128xf32, #tpu.memory_space<vmem>>, vector<1x8x128xf32>
      %626 = vector.shape_cast %625 : vector<1x8x128xf32> to vector<8x128xf32>
      %627 = vector.shape_cast %590 : vector<8x128xf32> to vector<1x8x128xf32>
      tpu.vector_store %arg3[%c3_113, %c16_114, %c0_115], %627 {strides = array<i32>} : memref<9x32x128xf32, #tpu.memory_space<vmem>>, vector<1x8x128xf32>,
      %c4_116 = arith.constant 4 : index
      %c16_117 = arith.constant 16 : index
      %c0_118 = arith.constant 0 : index
      %628 = vector.load %arg3[%c4_116, %c16_117, %c0_118] : memref<9x32x128xf32, #tpu.memory_space<vmem>>, vector<1x8x128xf32>
      %629 = vector.shape_cast %628 : vector<1x8x128xf32> to vector<8x128xf32>
      %630 = vector.shape_cast %595 : vector<8x128xf32> to vector<1x8x128xf32>
      tpu.vector_store %arg3[%c4_116, %c16_117, %c0_118], %630 {strides = array<i32>} : memref<9x32x128xf32, #tpu.memory_space<vmem>>, vector<1x8x128xf32>,
      %c5_119 = arith.constant 5 : index
      %c16_120 = arith.constant 16 : index
      %c0_121 = arith.constant 0 : index
      %631 = vector.load %arg3[%c5_119, %c16_120, %c0_121] : memref<9x32x128xf32, #tpu.memory_space<vmem>>, vector<1x8x128xf32>
      %632 = vector.shape_cast %631 : vector<1x8x128xf32> to vector<8x128xf32>
      %633 = vector.shape_cast %600 : vector<8x128xf32> to vector<1x8x128xf32>
      tpu.vector_store %arg3[%c5_119, %c16_120, %c0_121], %633 {strides = array<i32>} : memref<9x32x128xf32, #tpu.memory_space<vmem>>, vector<1x8x128xf32>,
      %c6_122 = arith.constant 6 : index
      %c16_123 = arith.constant 16 : index
      %c0_124 = arith.constant 0 : index
      %634 = vector.load %arg3[%c6_122, %c16_123, %c0_124] : memref<9x32x128xf32, #tpu.memory_space<vmem>>, vector<1x8x128xf32>
      %635 = vector.shape_cast %634 : vector<1x8x128xf32> to vector<8x128xf32>
      %636 = vector.shape_cast %605 : vector<8x128xf32> to vector<1x8x128xf32>
      tpu.vector_store %arg3[%c6_122, %c16_123, %c0_124], %636 {strides = array<i32>} : memref<9x32x128xf32, #tpu.memory_space<vmem>>, vector<1x8x128xf32>,
      %c7_125 = arith.constant 7 : index
      %c16_126 = arith.constant 16 : index
      %c0_127 = arith.constant 0 : index
      %637 = vector.load %arg3[%c7_125, %c16_126, %c0_127] : memref<9x32x128xf32, #tpu.memory_space<vmem>>, vector<1x8x128xf32>
      %638 = vector.shape_cast %637 : vector<1x8x128xf32> to vector<8x128xf32>
      %639 = vector.shape_cast %610 : vector<8x128xf32> to vector<1x8x128xf32>
      tpu.vector_store %arg3[%c7_125, %c16_126, %c0_127], %639 {strides = array<i32>} : memref<9x32x128xf32, #tpu.memory_space<vmem>>, vector<1x8x128xf32>,
      %c8_128 = arith.constant 8 : index
      %c16_129 = arith.constant 16 : index
      %c0_130 = arith.constant 0 : index
      %640 = vector.load %arg3[%c8_128, %c16_129, %c0_130] : memref<9x32x128xf32, #tpu.memory_space<vmem>>, vector<1x8x128xf32>
      %641 = vector.shape_cast %640 : vector<1x8x128xf32> to vector<8x128xf32>
      %642 = vector.shape_cast %615 : vector<8x128xf32> to vector<1x8x128xf32>
      tpu.vector_store %arg3[%c8_128, %c16_129, %c0_130], %642 {strides = array<i32>} : memref<9x32x128xf32, #tpu.memory_space<vmem>>, vector<1x8x128xf32>,
      %643 = vector.extract_strided_slice %467 {offsets = [0, 0], sizes = [4, 128], strides = [1, 1]} : vector<8x128xf32> to vector<4x128xf32>
      %644 = vector.extract_strided_slice %472 {offsets = [0, 0], sizes = [4, 128], strides = [1, 1]} : vector<8x128xf32> to vector<4x128xf32>
      %645 = vector.extract_strided_slice %477 {offsets = [0, 0], sizes = [4, 128], strides = [1, 1]} : vector<8x128xf32> to vector<4x128xf32>
      %646 = vector.extract_strided_slice %482 {offsets = [0, 0], sizes = [4, 128], strides = [1, 1]} : vector<8x128xf32> to vector<4x128xf32>
      %647 = vector.extract_strided_slice %487 {offsets = [0, 0], sizes = [4, 128], strides = [1, 1]} : vector<8x128xf32> to vector<4x128xf32>
      %648 = vector.extract_strided_slice %492 {offsets = [0, 0], sizes = [4, 128], strides = [1, 1]} : vector<8x128xf32> to vector<4x128xf32>
      %649 = vector.extract_strided_slice %497 {offsets = [0, 0], sizes = [4, 128], strides = [1, 1]} : vector<8x128xf32> to vector<4x128xf32>
      %650 = vector.extract_strided_slice %502 {offsets = [0, 0], sizes = [4, 128], strides = [1, 1]} : vector<8x128xf32> to vector<4x128xf32>
      %651 = vector.extract_strided_slice %507 {offsets = [0, 0], sizes = [4, 128], strides = [1, 1]} : vector<8x128xf32> to vector<4x128xf32>
      %652 = vector.extract_strided_slice %467 {offsets = [4, 0], sizes = [4, 128], strides = [1, 1]} : vector<8x128xf32> to vector<4x128xf32>
      %653 = vector.extract_strided_slice %472 {offsets = [4, 0], sizes = [4, 128], strides = [1, 1]} : vector<8x128xf32> to vector<4x128xf32>
      %654 = vector.extract_strided_slice %477 {offsets = [4, 0], sizes = [4, 128], strides = [1, 1]} : vector<8x128xf32> to vector<4x128xf32>
      %655 = vector.extract_strided_slice %482 {offsets = [4, 0], sizes = [4, 128], strides = [1, 1]} : vector<8x128xf32> to vector<4x128xf32>
      %656 = vector.extract_strided_slice %487 {offsets = [4, 0], sizes = [4, 128], strides = [1, 1]} : vector<8x128xf32> to vector<4x128xf32>
      %657 = vector.extract_strided_slice %492 {offsets = [4, 0], sizes = [4, 128], strides = [1, 1]} : vector<8x128xf32> to vector<4x128xf32>
      %658 = vector.extract_strided_slice %497 {offsets = [4, 0], sizes = [4, 128], strides = [1, 1]} : vector<8x128xf32> to vector<4x128xf32>
      %659 = vector.extract_strided_slice %502 {offsets = [4, 0], sizes = [4, 128], strides = [1, 1]} : vector<8x128xf32> to vector<4x128xf32>
      %660 = vector.extract_strided_slice %507 {offsets = [4, 0], sizes = [4, 128], strides = [1, 1]} : vector<8x128xf32> to vector<4x128xf32>
      %661 = arith.mulf %643, %652 : vector<4x128xf32>
      %662 = arith.mulf %644, %655 : vector<4x128xf32>
      %663 = arith.addf %661, %662 : vector<4x128xf32>
      %664 = arith.mulf %645, %658 : vector<4x128xf32>
      %665 = arith.addf %663, %664 : vector<4x128xf32>
      %666 = arith.mulf %643, %653 : vector<4x128xf32>
      %667 = arith.mulf %644, %656 : vector<4x128xf32>
      %668 = arith.addf %666, %667 : vector<4x128xf32>
      %669 = arith.mulf %645, %659 : vector<4x128xf32>
      %670 = arith.addf %668, %669 : vector<4x128xf32>
      %671 = arith.mulf %643, %654 : vector<4x128xf32>
      %672 = arith.mulf %644, %657 : vector<4x128xf32>
      %673 = arith.addf %671, %672 : vector<4x128xf32>
      %674 = arith.mulf %645, %660 : vector<4x128xf32>
      %675 = arith.addf %673, %674 : vector<4x128xf32>
      %676 = arith.mulf %646, %652 : vector<4x128xf32>
      %677 = arith.mulf %647, %655 : vector<4x128xf32>
      %678 = arith.addf %676, %677 : vector<4x128xf32>
      %679 = arith.mulf %648, %658 : vector<4x128xf32>
      %680 = arith.addf %678, %679 : vector<4x128xf32>
      %681 = arith.mulf %646, %653 : vector<4x128xf32>
      %682 = arith.mulf %647, %656 : vector<4x128xf32>
      %683 = arith.addf %681, %682 : vector<4x128xf32>
      %684 = arith.mulf %648, %659 : vector<4x128xf32>
      %685 = arith.addf %683, %684 : vector<4x128xf32>
      %686 = arith.mulf %646, %654 : vector<4x128xf32>
      %687 = arith.mulf %647, %657 : vector<4x128xf32>
      %688 = arith.addf %686, %687 : vector<4x128xf32>
      %689 = arith.mulf %648, %660 : vector<4x128xf32>
      %690 = arith.addf %688, %689 : vector<4x128xf32>
      %691 = arith.mulf %649, %652 : vector<4x128xf32>
      %692 = arith.mulf %650, %655 : vector<4x128xf32>
      %693 = arith.addf %691, %692 : vector<4x128xf32>
      %694 = arith.mulf %651, %658 : vector<4x128xf32>
      %695 = arith.addf %693, %694 : vector<4x128xf32>
      %696 = arith.mulf %649, %653 : vector<4x128xf32>
      %697 = arith.mulf %650, %656 : vector<4x128xf32>
      %698 = arith.addf %696, %697 : vector<4x128xf32>
      %699 = arith.mulf %651, %659 : vector<4x128xf32>
      %700 = arith.addf %698, %699 : vector<4x128xf32>
      %701 = arith.mulf %649, %654 : vector<4x128xf32>
      %702 = arith.mulf %650, %657 : vector<4x128xf32>
      %703 = arith.addf %701, %702 : vector<4x128xf32>
      %704 = arith.mulf %651, %660 : vector<4x128xf32>
      %705 = arith.addf %703, %704 : vector<4x128xf32>
      %706 = vector.extract_strided_slice %530 {offsets = [0, 0], sizes = [4, 128], strides = [1, 1]} : vector<8x128xf32> to vector<4x128xf32>
      %707 = vector.extract_strided_slice %535 {offsets = [0, 0], sizes = [4, 128], strides = [1, 1]} : vector<8x128xf32> to vector<4x128xf32>
      %708 = vector.extract_strided_slice %540 {offsets = [0, 0], sizes = [4, 128], strides = [1, 1]} : vector<8x128xf32> to vector<4x128xf32>
      %709 = vector.extract_strided_slice %545 {offsets = [0, 0], sizes = [4, 128], strides = [1, 1]} : vector<8x128xf32> to vector<4x128xf32>
      %710 = vector.extract_strided_slice %550 {offsets = [0, 0], sizes = [4, 128], strides = [1, 1]} : vector<8x128xf32> to vector<4x128xf32>
      %711 = vector.extract_strided_slice %555 {offsets = [0, 0], sizes = [4, 128], strides = [1, 1]} : vector<8x128xf32> to vector<4x128xf32>
      %712 = vector.extract_strided_slice %560 {offsets = [0, 0], sizes = [4, 128], strides = [1, 1]} : vector<8x128xf32> to vector<4x128xf32>
      %713 = vector.extract_strided_slice %565 {offsets = [0, 0], sizes = [4, 128], strides = [1, 1]} : vector<8x128xf32> to vector<4x128xf32>
      %714 = vector.extract_strided_slice %570 {offsets = [0, 0], sizes = [4, 128], strides = [1, 1]} : vector<8x128xf32> to vector<4x128xf32>
      %715 = vector.extract_strided_slice %530 {offsets = [4, 0], sizes = [4, 128], strides = [1, 1]} : vector<8x128xf32> to vector<4x128xf32>
      %716 = vector.extract_strided_slice %535 {offsets = [4, 0], sizes = [4, 128], strides = [1, 1]} : vector<8x128xf32> to vector<4x128xf32>
      %717 = vector.extract_strided_slice %540 {offsets = [4, 0], sizes = [4, 128], strides = [1, 1]} : vector<8x128xf32> to vector<4x128xf32>
      %718 = vector.extract_strided_slice %545 {offsets = [4, 0], sizes = [4, 128], strides = [1, 1]} : vector<8x128xf32> to vector<4x128xf32>
      %719 = vector.extract_strided_slice %550 {offsets = [4, 0], sizes = [4, 128], strides = [1, 1]} : vector<8x128xf32> to vector<4x128xf32>
      %720 = vector.extract_strided_slice %555 {offsets = [4, 0], sizes = [4, 128], strides = [1, 1]} : vector<8x128xf32> to vector<4x128xf32>
      %721 = vector.extract_strided_slice %560 {offsets = [4, 0], sizes = [4, 128], strides = [1, 1]} : vector<8x128xf32> to vector<4x128xf32>
      %722 = vector.extract_strided_slice %565 {offsets = [4, 0], sizes = [4, 128], strides = [1, 1]} : vector<8x128xf32> to vector<4x128xf32>
      %723 = vector.extract_strided_slice %570 {offsets = [4, 0], sizes = [4, 128], strides = [1, 1]} : vector<8x128xf32> to vector<4x128xf32>
      %724 = arith.mulf %706, %715 : vector<4x128xf32>
      %725 = arith.mulf %707, %718 : vector<4x128xf32>
      %726 = arith.addf %724, %725 : vector<4x128xf32>
      %727 = arith.mulf %708, %721 : vector<4x128xf32>
      %728 = arith.addf %726, %727 : vector<4x128xf32>
      %729 = arith.mulf %706, %716 : vector<4x128xf32>
      %730 = arith.mulf %707, %719 : vector<4x128xf32>
      %731 = arith.addf %729, %730 : vector<4x128xf32>
      %732 = arith.mulf %708, %722 : vector<4x128xf32>
      %733 = arith.addf %731, %732 : vector<4x128xf32>
      %734 = arith.mulf %706, %717 : vector<4x128xf32>
      %735 = arith.mulf %707, %720 : vector<4x128xf32>
      %736 = arith.addf %734, %735 : vector<4x128xf32>
      %737 = arith.mulf %708, %723 : vector<4x128xf32>
      %738 = arith.addf %736, %737 : vector<4x128xf32>
      %739 = arith.mulf %709, %715 : vector<4x128xf32>
      %740 = arith.mulf %710, %718 : vector<4x128xf32>
      %741 = arith.addf %739, %740 : vector<4x128xf32>
      %742 = arith.mulf %711, %721 : vector<4x128xf32>
      %743 = arith.addf %741, %742 : vector<4x128xf32>
      %744 = arith.mulf %709, %716 : vector<4x128xf32>
      %745 = arith.mulf %710, %719 : vector<4x128xf32>
      %746 = arith.addf %744, %745 : vector<4x128xf32>
      %747 = arith.mulf %711, %722 : vector<4x128xf32>
      %748 = arith.addf %746, %747 : vector<4x128xf32>
      %749 = arith.mulf %709, %717 : vector<4x128xf32>
      %750 = arith.mulf %710, %720 : vector<4x128xf32>
      %751 = arith.addf %749, %750 : vector<4x128xf32>
      %752 = arith.mulf %711, %723 : vector<4x128xf32>
      %753 = arith.addf %751, %752 : vector<4x128xf32>
      %754 = arith.mulf %712, %715 : vector<4x128xf32>
      %755 = arith.mulf %713, %718 : vector<4x128xf32>
      %756 = arith.addf %754, %755 : vector<4x128xf32>
      %757 = arith.mulf %714, %721 : vector<4x128xf32>
      %758 = arith.addf %756, %757 : vector<4x128xf32>
      %759 = arith.mulf %712, %716 : vector<4x128xf32>
      %760 = arith.mulf %713, %719 : vector<4x128xf32>
      %761 = arith.addf %759, %760 : vector<4x128xf32>
      %762 = arith.mulf %714, %722 : vector<4x128xf32>
      %763 = arith.addf %761, %762 : vector<4x128xf32>
      %764 = arith.mulf %712, %717 : vector<4x128xf32>
      %765 = arith.mulf %713, %720 : vector<4x128xf32>
      %766 = arith.addf %764, %765 : vector<4x128xf32>
      %767 = arith.mulf %714, %723 : vector<4x128xf32>
      %768 = arith.addf %766, %767 : vector<4x128xf32>
      %769 = arith.mulf %665, %728 : vector<4x128xf32>
      %770 = arith.mulf %680, %743 : vector<4x128xf32>
      %771 = arith.addf %769, %770 : vector<4x128xf32>
      %772 = arith.mulf %695, %758 : vector<4x128xf32>
      %773 = arith.addf %771, %772 : vector<4x128xf32>
      %774 = arith.mulf %665, %733 : vector<4x128xf32>
      %775 = arith.mulf %680, %748 : vector<4x128xf32>
      %776 = arith.addf %774, %775 : vector<4x128xf32>
      %777 = arith.mulf %695, %763 : vector<4x128xf32>
      %778 = arith.addf %776, %777 : vector<4x128xf32>
      %779 = arith.mulf %665, %738 : vector<4x128xf32>
      %780 = arith.mulf %680, %753 : vector<4x128xf32>
      %781 = arith.addf %779, %780 : vector<4x128xf32>
      %782 = arith.mulf %695, %768 : vector<4x128xf32>
      %783 = arith.addf %781, %782 : vector<4x128xf32>
      %784 = arith.mulf %670, %728 : vector<4x128xf32>
      %785 = arith.mulf %685, %743 : vector<4x128xf32>
      %786 = arith.addf %784, %785 : vector<4x128xf32>
      %787 = arith.mulf %700, %758 : vector<4x128xf32>
      %788 = arith.addf %786, %787 : vector<4x128xf32>
      %789 = arith.mulf %670, %733 : vector<4x128xf32>
      %790 = arith.mulf %685, %748 : vector<4x128xf32>
      %791 = arith.addf %789, %790 : vector<4x128xf32>
      %792 = arith.mulf %700, %763 : vector<4x128xf32>
      %793 = arith.addf %791, %792 : vector<4x128xf32>
      %794 = arith.mulf %670, %738 : vector<4x128xf32>
      %795 = arith.mulf %685, %753 : vector<4x128xf32>
      %796 = arith.addf %794, %795 : vector<4x128xf32>
      %797 = arith.mulf %700, %768 : vector<4x128xf32>
      %798 = arith.addf %796, %797 : vector<4x128xf32>
      %799 = arith.mulf %675, %728 : vector<4x128xf32>
      %800 = arith.mulf %690, %743 : vector<4x128xf32>
      %801 = arith.addf %799, %800 : vector<4x128xf32>
      %802 = arith.mulf %705, %758 : vector<4x128xf32>
      %803 = arith.addf %801, %802 : vector<4x128xf32>
      %804 = arith.mulf %675, %733 : vector<4x128xf32>
      %805 = arith.mulf %690, %748 : vector<4x128xf32>
      %806 = arith.addf %804, %805 : vector<4x128xf32>
      %807 = arith.mulf %705, %763 : vector<4x128xf32>
      %808 = arith.addf %806, %807 : vector<4x128xf32>
      %809 = arith.mulf %675, %738 : vector<4x128xf32>
      %810 = arith.mulf %690, %753 : vector<4x128xf32>
      %811 = arith.addf %809, %810 : vector<4x128xf32>
      %812 = arith.mulf %705, %768 : vector<4x128xf32>
      %813 = arith.addf %811, %812 : vector<4x128xf32>
      %c0_131 = arith.constant 0 : index
      %c24 = arith.constant 24 : index
      %c0_132 = arith.constant 0 : index
      %814 = vector.load %arg3[%c0_131, %c24, %c0_132] : memref<9x32x128xf32, #tpu.memory_space<vmem>>, vector<1x4x128xf32>
      %815 = vector.shape_cast %814 : vector<1x4x128xf32> to vector<4x128xf32>
      %816 = vector.shape_cast %773 : vector<4x128xf32> to vector<1x4x128xf32>
      tpu.vector_store %arg3[%c0_131, %c24, %c0_132], %816 {strides = array<i32>} : memref<9x32x128xf32, #tpu.memory_space<vmem>>, vector<1x4x128xf32>,
      %c1_133 = arith.constant 1 : index
      %c24_134 = arith.constant 24 : index
      %c0_135 = arith.constant 0 : index
      %817 = vector.load %arg3[%c1_133, %c24_134, %c0_135] : memref<9x32x128xf32, #tpu.memory_space<vmem>>, vector<1x4x128xf32>
      %818 = vector.shape_cast %817 : vector<1x4x128xf32> to vector<4x128xf32>
      %819 = vector.shape_cast %778 : vector<4x128xf32> to vector<1x4x128xf32>
      tpu.vector_store %arg3[%c1_133, %c24_134, %c0_135], %819 {strides = array<i32>} : memref<9x32x128xf32, #tpu.memory_space<vmem>>, vector<1x4x128xf32>,
      %c2_136 = arith.constant 2 : index
      %c24_137 = arith.constant 24 : index
      %c0_138 = arith.constant 0 : index
      %820 = vector.load %arg3[%c2_136, %c24_137, %c0_138] : memref<9x32x128xf32, #tpu.memory_space<vmem>>, vector<1x4x128xf32>
      %821 = vector.shape_cast %820 : vector<1x4x128xf32> to vector<4x128xf32>
      %822 = vector.shape_cast %783 : vector<4x128xf32> to vector<1x4x128xf32>
      tpu.vector_store %arg3[%c2_136, %c24_137, %c0_138], %822 {strides = array<i32>} : memref<9x32x128xf32, #tpu.memory_space<vmem>>, vector<1x4x128xf32>,
      %c3_139 = arith.constant 3 : index
      %c24_140 = arith.constant 24 : index
      %c0_141 = arith.constant 0 : index
      %823 = vector.load %arg3[%c3_139, %c24_140, %c0_141] : memref<9x32x128xf32, #tpu.memory_space<vmem>>, vector<1x4x128xf32>
      %824 = vector.shape_cast %823 : vector<1x4x128xf32> to vector<4x128xf32>
      %825 = vector.shape_cast %788 : vector<4x128xf32> to vector<1x4x128xf32>
      tpu.vector_store %arg3[%c3_139, %c24_140, %c0_141], %825 {strides = array<i32>} : memref<9x32x128xf32, #tpu.memory_space<vmem>>, vector<1x4x128xf32>,
      %c4_142 = arith.constant 4 : index
      %c24_143 = arith.constant 24 : index
      %c0_144 = arith.constant 0 : index
      %826 = vector.load %arg3[%c4_142, %c24_143, %c0_144] : memref<9x32x128xf32, #tpu.memory_space<vmem>>, vector<1x4x128xf32>
      %827 = vector.shape_cast %826 : vector<1x4x128xf32> to vector<4x128xf32>
      %828 = vector.shape_cast %793 : vector<4x128xf32> to vector<1x4x128xf32>
      tpu.vector_store %arg3[%c4_142, %c24_143, %c0_144], %828 {strides = array<i32>} : memref<9x32x128xf32, #tpu.memory_space<vmem>>, vector<1x4x128xf32>,
      %c5_145 = arith.constant 5 : index
      %c24_146 = arith.constant 24 : index
      %c0_147 = arith.constant 0 : index
      %829 = vector.load %arg3[%c5_145, %c24_146, %c0_147] : memref<9x32x128xf32, #tpu.memory_space<vmem>>, vector<1x4x128xf32>
      %830 = vector.shape_cast %829 : vector<1x4x128xf32> to vector<4x128xf32>
      %831 = vector.shape_cast %798 : vector<4x128xf32> to vector<1x4x128xf32>
      tpu.vector_store %arg3[%c5_145, %c24_146, %c0_147], %831 {strides = array<i32>} : memref<9x32x128xf32, #tpu.memory_space<vmem>>, vector<1x4x128xf32>,
      %c6_148 = arith.constant 6 : index
      %c24_149 = arith.constant 24 : index
      %c0_150 = arith.constant 0 : index
      %832 = vector.load %arg3[%c6_148, %c24_149, %c0_150] : memref<9x32x128xf32, #tpu.memory_space<vmem>>, vector<1x4x128xf32>
      %833 = vector.shape_cast %832 : vector<1x4x128xf32> to vector<4x128xf32>
      %834 = vector.shape_cast %803 : vector<4x128xf32> to vector<1x4x128xf32>
      tpu.vector_store %arg3[%c6_148, %c24_149, %c0_150], %834 {strides = array<i32>} : memref<9x32x128xf32, #tpu.memory_space<vmem>>, vector<1x4x128xf32>,
      %c7_151 = arith.constant 7 : index
      %c24_152 = arith.constant 24 : index
      %c0_153 = arith.constant 0 : index
      %835 = vector.load %arg3[%c7_151, %c24_152, %c0_153] : memref<9x32x128xf32, #tpu.memory_space<vmem>>, vector<1x4x128xf32>
      %836 = vector.shape_cast %835 : vector<1x4x128xf32> to vector<4x128xf32>
      %837 = vector.shape_cast %808 : vector<4x128xf32> to vector<1x4x128xf32>
      tpu.vector_store %arg3[%c7_151, %c24_152, %c0_153], %837 {strides = array<i32>} : memref<9x32x128xf32, #tpu.memory_space<vmem>>, vector<1x4x128xf32>,
      %c8_154 = arith.constant 8 : index
      %c24_155 = arith.constant 24 : index
      %c0_156 = arith.constant 0 : index
      %838 = vector.load %arg3[%c8_154, %c24_155, %c0_156] : memref<9x32x128xf32, #tpu.memory_space<vmem>>, vector<1x4x128xf32>
      %839 = vector.shape_cast %838 : vector<1x4x128xf32> to vector<4x128xf32>
      %840 = vector.shape_cast %813 : vector<4x128xf32> to vector<1x4x128xf32>
      tpu.vector_store %arg3[%c8_154, %c24_155, %c0_156], %840 {strides = array<i32>} : memref<9x32x128xf32, #tpu.memory_space<vmem>>, vector<1x4x128xf32>,
      %841 = vector.extract_strided_slice %665 {offsets = [0, 0], sizes = [2, 128], strides = [1, 1]} : vector<4x128xf32> to vector<2x128xf32>
      %842 = vector.extract_strided_slice %670 {offsets = [0, 0], sizes = [2, 128], strides = [1, 1]} : vector<4x128xf32> to vector<2x128xf32>
      %843 = vector.extract_strided_slice %675 {offsets = [0, 0], sizes = [2, 128], strides = [1, 1]} : vector<4x128xf32> to vector<2x128xf32>
      %844 = vector.extract_strided_slice %680 {offsets = [0, 0], sizes = [2, 128], strides = [1, 1]} : vector<4x128xf32> to vector<2x128xf32>
      %845 = vector.extract_strided_slice %685 {offsets = [0, 0], sizes = [2, 128], strides = [1, 1]} : vector<4x128xf32> to vector<2x128xf32>
      %846 = vector.extract_strided_slice %690 {offsets = [0, 0], sizes = [2, 128], strides = [1, 1]} : vector<4x128xf32> to vector<2x128xf32>
      %847 = vector.extract_strided_slice %695 {offsets = [0, 0], sizes = [2, 128], strides = [1, 1]} : vector<4x128xf32> to vector<2x128xf32>
      %848 = vector.extract_strided_slice %700 {offsets = [0, 0], sizes = [2, 128], strides = [1, 1]} : vector<4x128xf32> to vector<2x128xf32>
      %849 = vector.extract_strided_slice %705 {offsets = [0, 0], sizes = [2, 128], strides = [1, 1]} : vector<4x128xf32> to vector<2x128xf32>
      %850 = vector.extract_strided_slice %665 {offsets = [2, 0], sizes = [2, 128], strides = [1, 1]} : vector<4x128xf32> to vector<2x128xf32>
      %851 = vector.extract_strided_slice %670 {offsets = [2, 0], sizes = [2, 128], strides = [1, 1]} : vector<4x128xf32> to vector<2x128xf32>
      %852 = vector.extract_strided_slice %675 {offsets = [2, 0], sizes = [2, 128], strides = [1, 1]} : vector<4x128xf32> to vector<2x128xf32>
      %853 = vector.extract_strided_slice %680 {offsets = [2, 0], sizes = [2, 128], strides = [1, 1]} : vector<4x128xf32> to vector<2x128xf32>
      %854 = vector.extract_strided_slice %685 {offsets = [2, 0], sizes = [2, 128], strides = [1, 1]} : vector<4x128xf32> to vector<2x128xf32>
      %855 = vector.extract_strided_slice %690 {offsets = [2, 0], sizes = [2, 128], strides = [1, 1]} : vector<4x128xf32> to vector<2x128xf32>
      %856 = vector.extract_strided_slice %695 {offsets = [2, 0], sizes = [2, 128], strides = [1, 1]} : vector<4x128xf32> to vector<2x128xf32>
      %857 = vector.extract_strided_slice %700 {offsets = [2, 0], sizes = [2, 128], strides = [1, 1]} : vector<4x128xf32> to vector<2x128xf32>
      %858 = vector.extract_strided_slice %705 {offsets = [2, 0], sizes = [2, 128], strides = [1, 1]} : vector<4x128xf32> to vector<2x128xf32>
      %859 = arith.mulf %841, %850 : vector<2x128xf32>
      %860 = arith.mulf %842, %853 : vector<2x128xf32>
      %861 = arith.addf %859, %860 : vector<2x128xf32>
      %862 = arith.mulf %843, %856 : vector<2x128xf32>
      %863 = arith.addf %861, %862 : vector<2x128xf32>
      %864 = arith.mulf %841, %851 : vector<2x128xf32>
      %865 = arith.mulf %842, %854 : vector<2x128xf32>
      %866 = arith.addf %864, %865 : vector<2x128xf32>
      %867 = arith.mulf %843, %857 : vector<2x128xf32>
      %868 = arith.addf %866, %867 : vector<2x128xf32>
      %869 = arith.mulf %841, %852 : vector<2x128xf32>
      %870 = arith.mulf %842, %855 : vector<2x128xf32>
      %871 = arith.addf %869, %870 : vector<2x128xf32>
      %872 = arith.mulf %843, %858 : vector<2x128xf32>
      %873 = arith.addf %871, %872 : vector<2x128xf32>
      %874 = arith.mulf %844, %850 : vector<2x128xf32>
      %875 = arith.mulf %845, %853 : vector<2x128xf32>
      %876 = arith.addf %874, %875 : vector<2x128xf32>
      %877 = arith.mulf %846, %856 : vector<2x128xf32>
      %878 = arith.addf %876, %877 : vector<2x128xf32>
      %879 = arith.mulf %844, %851 : vector<2x128xf32>
      %880 = arith.mulf %845, %854 : vector<2x128xf32>
      %881 = arith.addf %879, %880 : vector<2x128xf32>
      %882 = arith.mulf %846, %857 : vector<2x128xf32>
      %883 = arith.addf %881, %882 : vector<2x128xf32>
      %884 = arith.mulf %844, %852 : vector<2x128xf32>
      %885 = arith.mulf %845, %855 : vector<2x128xf32>
      %886 = arith.addf %884, %885 : vector<2x128xf32>
      %887 = arith.mulf %846, %858 : vector<2x128xf32>
      %888 = arith.addf %886, %887 : vector<2x128xf32>
      %889 = arith.mulf %847, %850 : vector<2x128xf32>
      %890 = arith.mulf %848, %853 : vector<2x128xf32>
      %891 = arith.addf %889, %890 : vector<2x128xf32>
      %892 = arith.mulf %849, %856 : vector<2x128xf32>
      %893 = arith.addf %891, %892 : vector<2x128xf32>
      %894 = arith.mulf %847, %851 : vector<2x128xf32>
      %895 = arith.mulf %848, %854 : vector<2x128xf32>
      %896 = arith.addf %894, %895 : vector<2x128xf32>
      %897 = arith.mulf %849, %857 : vector<2x128xf32>
      %898 = arith.addf %896, %897 : vector<2x128xf32>
      %899 = arith.mulf %847, %852 : vector<2x128xf32>
      %900 = arith.mulf %848, %855 : vector<2x128xf32>
      %901 = arith.addf %899, %900 : vector<2x128xf32>
      %902 = arith.mulf %849, %858 : vector<2x128xf32>
      %903 = arith.addf %901, %902 : vector<2x128xf32>
      %904 = vector.extract_strided_slice %728 {offsets = [0, 0], sizes = [2, 128], strides = [1, 1]} : vector<4x128xf32> to vector<2x128xf32>
      %905 = vector.extract_strided_slice %733 {offsets = [0, 0], sizes = [2, 128], strides = [1, 1]} : vector<4x128xf32> to vector<2x128xf32>
      %906 = vector.extract_strided_slice %738 {offsets = [0, 0], sizes = [2, 128], strides = [1, 1]} : vector<4x128xf32> to vector<2x128xf32>
      %907 = vector.extract_strided_slice %743 {offsets = [0, 0], sizes = [2, 128], strides = [1, 1]} : vector<4x128xf32> to vector<2x128xf32>
      %908 = vector.extract_strided_slice %748 {offsets = [0, 0], sizes = [2, 128], strides = [1, 1]} : vector<4x128xf32> to vector<2x128xf32>
      %909 = vector.extract_strided_slice %753 {offsets = [0, 0], sizes = [2, 128], strides = [1, 1]} : vector<4x128xf32> to vector<2x128xf32>
      %910 = vector.extract_strided_slice %758 {offsets = [0, 0], sizes = [2, 128], strides = [1, 1]} : vector<4x128xf32> to vector<2x128xf32>
      %911 = vector.extract_strided_slice %763 {offsets = [0, 0], sizes = [2, 128], strides = [1, 1]} : vector<4x128xf32> to vector<2x128xf32>
      %912 = vector.extract_strided_slice %768 {offsets = [0, 0], sizes = [2, 128], strides = [1, 1]} : vector<4x128xf32> to vector<2x128xf32>
      %913 = vector.extract_strided_slice %728 {offsets = [2, 0], sizes = [2, 128], strides = [1, 1]} : vector<4x128xf32> to vector<2x128xf32>
      %914 = vector.extract_strided_slice %733 {offsets = [2, 0], sizes = [2, 128], strides = [1, 1]} : vector<4x128xf32> to vector<2x128xf32>
      %915 = vector.extract_strided_slice %738 {offsets = [2, 0], sizes = [2, 128], strides = [1, 1]} : vector<4x128xf32> to vector<2x128xf32>
      %916 = vector.extract_strided_slice %743 {offsets = [2, 0], sizes = [2, 128], strides = [1, 1]} : vector<4x128xf32> to vector<2x128xf32>
      %917 = vector.extract_strided_slice %748 {offsets = [2, 0], sizes = [2, 128], strides = [1, 1]} : vector<4x128xf32> to vector<2x128xf32>
      %918 = vector.extract_strided_slice %753 {offsets = [2, 0], sizes = [2, 128], strides = [1, 1]} : vector<4x128xf32> to vector<2x128xf32>
      %919 = vector.extract_strided_slice %758 {offsets = [2, 0], sizes = [2, 128], strides = [1, 1]} : vector<4x128xf32> to vector<2x128xf32>
      %920 = vector.extract_strided_slice %763 {offsets = [2, 0], sizes = [2, 128], strides = [1, 1]} : vector<4x128xf32> to vector<2x128xf32>
      %921 = vector.extract_strided_slice %768 {offsets = [2, 0], sizes = [2, 128], strides = [1, 1]} : vector<4x128xf32> to vector<2x128xf32>
      %922 = arith.mulf %904, %913 : vector<2x128xf32>
      %923 = arith.mulf %905, %916 : vector<2x128xf32>
      %924 = arith.addf %922, %923 : vector<2x128xf32>
      %925 = arith.mulf %906, %919 : vector<2x128xf32>
      %926 = arith.addf %924, %925 : vector<2x128xf32>
      %927 = arith.mulf %904, %914 : vector<2x128xf32>
      %928 = arith.mulf %905, %917 : vector<2x128xf32>
      %929 = arith.addf %927, %928 : vector<2x128xf32>
      %930 = arith.mulf %906, %920 : vector<2x128xf32>
      %931 = arith.addf %929, %930 : vector<2x128xf32>
      %932 = arith.mulf %904, %915 : vector<2x128xf32>
      %933 = arith.mulf %905, %918 : vector<2x128xf32>
      %934 = arith.addf %932, %933 : vector<2x128xf32>
      %935 = arith.mulf %906, %921 : vector<2x128xf32>
      %936 = arith.addf %934, %935 : vector<2x128xf32>
      %937 = arith.mulf %907, %913 : vector<2x128xf32>
      %938 = arith.mulf %908, %916 : vector<2x128xf32>
      %939 = arith.addf %937, %938 : vector<2x128xf32>
      %940 = arith.mulf %909, %919 : vector<2x128xf32>
      %941 = arith.addf %939, %940 : vector<2x128xf32>
      %942 = arith.mulf %907, %914 : vector<2x128xf32>
      %943 = arith.mulf %908, %917 : vector<2x128xf32>
      %944 = arith.addf %942, %943 : vector<2x128xf32>
      %945 = arith.mulf %909, %920 : vector<2x128xf32>
      %946 = arith.addf %944, %945 : vector<2x128xf32>
      %947 = arith.mulf %907, %915 : vector<2x128xf32>
      %948 = arith.mulf %908, %918 : vector<2x128xf32>
      %949 = arith.addf %947, %948 : vector<2x128xf32>
      %950 = arith.mulf %909, %921 : vector<2x128xf32>
      %951 = arith.addf %949, %950 : vector<2x128xf32>
      %952 = arith.mulf %910, %913 : vector<2x128xf32>
      %953 = arith.mulf %911, %916 : vector<2x128xf32>
      %954 = arith.addf %952, %953 : vector<2x128xf32>
      %955 = arith.mulf %912, %919 : vector<2x128xf32>
      %956 = arith.addf %954, %955 : vector<2x128xf32>
      %957 = arith.mulf %910, %914 : vector<2x128xf32>
      %958 = arith.mulf %911, %917 : vector<2x128xf32>
      %959 = arith.addf %957, %958 : vector<2x128xf32>
      %960 = arith.mulf %912, %920 : vector<2x128xf32>
      %961 = arith.addf %959, %960 : vector<2x128xf32>
      %962 = arith.mulf %910, %915 : vector<2x128xf32>
      %963 = arith.mulf %911, %918 : vector<2x128xf32>
      %964 = arith.addf %962, %963 : vector<2x128xf32>
      %965 = arith.mulf %912, %921 : vector<2x128xf32>
      %966 = arith.addf %964, %965 : vector<2x128xf32>
      %967 = arith.mulf %863, %926 : vector<2x128xf32>
      %968 = arith.mulf %878, %941 : vector<2x128xf32>
      %969 = arith.addf %967, %968 : vector<2x128xf32>
      %970 = arith.mulf %893, %956 : vector<2x128xf32>
      %971 = arith.addf %969, %970 : vector<2x128xf32>
      %972 = arith.mulf %863, %931 : vector<2x128xf32>
      %973 = arith.mulf %878, %946 : vector<2x128xf32>
      %974 = arith.addf %972, %973 : vector<2x128xf32>
      %975 = arith.mulf %893, %961 : vector<2x128xf32>
      %976 = arith.addf %974, %975 : vector<2x128xf32>
      %977 = arith.mulf %863, %936 : vector<2x128xf32>
      %978 = arith.mulf %878, %951 : vector<2x128xf32>
      %979 = arith.addf %977, %978 : vector<2x128xf32>
      %980 = arith.mulf %893, %966 : vector<2x128xf32>
      %981 = arith.addf %979, %980 : vector<2x128xf32>
      %982 = arith.mulf %868, %926 : vector<2x128xf32>
      %983 = arith.mulf %883, %941 : vector<2x128xf32>
      %984 = arith.addf %982, %983 : vector<2x128xf32>
      %985 = arith.mulf %898, %956 : vector<2x128xf32>
      %986 = arith.addf %984, %985 : vector<2x128xf32>
      %987 = arith.mulf %868, %931 : vector<2x128xf32>
      %988 = arith.mulf %883, %946 : vector<2x128xf32>
      %989 = arith.addf %987, %988 : vector<2x128xf32>
      %990 = arith.mulf %898, %961 : vector<2x128xf32>
      %991 = arith.addf %989, %990 : vector<2x128xf32>
      %992 = arith.mulf %868, %936 : vector<2x128xf32>
      %993 = arith.mulf %883, %951 : vector<2x128xf32>
      %994 = arith.addf %992, %993 : vector<2x128xf32>
      %995 = arith.mulf %898, %966 : vector<2x128xf32>
      %996 = arith.addf %994, %995 : vector<2x128xf32>
      %997 = arith.mulf %873, %926 : vector<2x128xf32>
      %998 = arith.mulf %888, %941 : vector<2x128xf32>
      %999 = arith.addf %997, %998 : vector<2x128xf32>
      %1000 = arith.mulf %903, %956 : vector<2x128xf32>
      %1001 = arith.addf %999, %1000 : vector<2x128xf32>
      %1002 = arith.mulf %873, %931 : vector<2x128xf32>
      %1003 = arith.mulf %888, %946 : vector<2x128xf32>
      %1004 = arith.addf %1002, %1003 : vector<2x128xf32>
      %1005 = arith.mulf %903, %961 : vector<2x128xf32>
      %1006 = arith.addf %1004, %1005 : vector<2x128xf32>
      %1007 = arith.mulf %873, %936 : vector<2x128xf32>
      %1008 = arith.mulf %888, %951 : vector<2x128xf32>
      %1009 = arith.addf %1007, %1008 : vector<2x128xf32>
      %1010 = arith.mulf %903, %966 : vector<2x128xf32>
      %1011 = arith.addf %1009, %1010 : vector<2x128xf32>
      %c0_157 = arith.constant 0 : index
      %c28 = arith.constant 28 : index
      %c0_158 = arith.constant 0 : index
      %1012 = vector.load %arg3[%c0_157, %c28, %c0_158] : memref<9x32x128xf32, #tpu.memory_space<vmem>>, vector<1x2x128xf32>
      %1013 = vector.shape_cast %1012 : vector<1x2x128xf32> to vector<2x128xf32>
      %1014 = vector.shape_cast %971 : vector<2x128xf32> to vector<1x2x128xf32>
      tpu.vector_store %arg3[%c0_157, %c28, %c0_158], %1014 {strides = array<i32>} : memref<9x32x128xf32, #tpu.memory_space<vmem>>, vector<1x2x128xf32>,
      %c1_159 = arith.constant 1 : index
      %c28_160 = arith.constant 28 : index
      %c0_161 = arith.constant 0 : index
      %1015 = vector.load %arg3[%c1_159, %c28_160, %c0_161] : memref<9x32x128xf32, #tpu.memory_space<vmem>>, vector<1x2x128xf32>
      %1016 = vector.shape_cast %1015 : vector<1x2x128xf32> to vector<2x128xf32>
      %1017 = vector.shape_cast %976 : vector<2x128xf32> to vector<1x2x128xf32>
      tpu.vector_store %arg3[%c1_159, %c28_160, %c0_161], %1017 {strides = array<i32>} : memref<9x32x128xf32, #tpu.memory_space<vmem>>, vector<1x2x128xf32>,
      %c2_162 = arith.constant 2 : index
      %c28_163 = arith.constant 28 : index
      %c0_164 = arith.constant 0 : index
      %1018 = vector.load %arg3[%c2_162, %c28_163, %c0_164] : memref<9x32x128xf32, #tpu.memory_space<vmem>>, vector<1x2x128xf32>
      %1019 = vector.shape_cast %1018 : vector<1x2x128xf32> to vector<2x128xf32>
      %1020 = vector.shape_cast %981 : vector<2x128xf32> to vector<1x2x128xf32>
      tpu.vector_store %arg3[%c2_162, %c28_163, %c0_164], %1020 {strides = array<i32>} : memref<9x32x128xf32, #tpu.memory_space<vmem>>, vector<1x2x128xf32>,
      %c3_165 = arith.constant 3 : index
      %c28_166 = arith.constant 28 : index
      %c0_167 = arith.constant 0 : index
      %1021 = vector.load %arg3[%c3_165, %c28_166, %c0_167] : memref<9x32x128xf32, #tpu.memory_space<vmem>>, vector<1x2x128xf32>
      %1022 = vector.shape_cast %1021 : vector<1x2x128xf32> to vector<2x128xf32>
      %1023 = vector.shape_cast %986 : vector<2x128xf32> to vector<1x2x128xf32>
      tpu.vector_store %arg3[%c3_165, %c28_166, %c0_167], %1023 {strides = array<i32>} : memref<9x32x128xf32, #tpu.memory_space<vmem>>, vector<1x2x128xf32>,
      %c4_168 = arith.constant 4 : index
      %c28_169 = arith.constant 28 : index
      %c0_170 = arith.constant 0 : index
      %1024 = vector.load %arg3[%c4_168, %c28_169, %c0_170] : memref<9x32x128xf32, #tpu.memory_space<vmem>>, vector<1x2x128xf32>
      %1025 = vector.shape_cast %1024 : vector<1x2x128xf32> to vector<2x128xf32>
      %1026 = vector.shape_cast %991 : vector<2x128xf32> to vector<1x2x128xf32>
      tpu.vector_store %arg3[%c4_168, %c28_169, %c0_170], %1026 {strides = array<i32>} : memref<9x32x128xf32, #tpu.memory_space<vmem>>, vector<1x2x128xf32>,
      %c5_171 = arith.constant 5 : index
      %c28_172 = arith.constant 28 : index
      %c0_173 = arith.constant 0 : index
      %1027 = vector.load %arg3[%c5_171, %c28_172, %c0_173] : memref<9x32x128xf32, #tpu.memory_space<vmem>>, vector<1x2x128xf32>
      %1028 = vector.shape_cast %1027 : vector<1x2x128xf32> to vector<2x128xf32>
      %1029 = vector.shape_cast %996 : vector<2x128xf32> to vector<1x2x128xf32>
      tpu.vector_store %arg3[%c5_171, %c28_172, %c0_173], %1029 {strides = array<i32>} : memref<9x32x128xf32, #tpu.memory_space<vmem>>, vector<1x2x128xf32>,
      %c6_174 = arith.constant 6 : index
      %c28_175 = arith.constant 28 : index
      %c0_176 = arith.constant 0 : index
      %1030 = vector.load %arg3[%c6_174, %c28_175, %c0_176] : memref<9x32x128xf32, #tpu.memory_space<vmem>>, vector<1x2x128xf32>
      %1031 = vector.shape_cast %1030 : vector<1x2x128xf32> to vector<2x128xf32>
      %1032 = vector.shape_cast %1001 : vector<2x128xf32> to vector<1x2x128xf32>
      tpu.vector_store %arg3[%c6_174, %c28_175, %c0_176], %1032 {strides = array<i32>} : memref<9x32x128xf32, #tpu.memory_space<vmem>>, vector<1x2x128xf32>,
      %c7_177 = arith.constant 7 : index
      %c28_178 = arith.constant 28 : index
      %c0_179 = arith.constant 0 : index
      %1033 = vector.load %arg3[%c7_177, %c28_178, %c0_179] : memref<9x32x128xf32, #tpu.memory_space<vmem>>, vector<1x2x128xf32>
      %1034 = vector.shape_cast %1033 : vector<1x2x128xf32> to vector<2x128xf32>
      %1035 = vector.shape_cast %1006 : vector<2x128xf32> to vector<1x2x128xf32>
      tpu.vector_store %arg3[%c7_177, %c28_178, %c0_179], %1035 {strides = array<i32>} : memref<9x32x128xf32, #tpu.memory_space<vmem>>, vector<1x2x128xf32>,
      %c8_180 = arith.constant 8 : index
      %c28_181 = arith.constant 28 : index
      %c0_182 = arith.constant 0 : index
      %1036 = vector.load %arg3[%c8_180, %c28_181, %c0_182] : memref<9x32x128xf32, #tpu.memory_space<vmem>>, vector<1x2x128xf32>
      %1037 = vector.shape_cast %1036 : vector<1x2x128xf32> to vector<2x128xf32>
      %1038 = vector.shape_cast %1011 : vector<2x128xf32> to vector<1x2x128xf32>
      tpu.vector_store %arg3[%c8_180, %c28_181, %c0_182], %1038 {strides = array<i32>} : memref<9x32x128xf32, #tpu.memory_space<vmem>>, vector<1x2x128xf32>,
      %1039 = vector.extract_strided_slice %863 {offsets = [0, 0], sizes = [1, 128], strides = [1, 1]} : vector<2x128xf32> to vector<1x128xf32>
      %1040 = vector.extract_strided_slice %868 {offsets = [0, 0], sizes = [1, 128], strides = [1, 1]} : vector<2x128xf32> to vector<1x128xf32>
      %1041 = vector.extract_strided_slice %873 {offsets = [0, 0], sizes = [1, 128], strides = [1, 1]} : vector<2x128xf32> to vector<1x128xf32>
      %1042 = vector.extract_strided_slice %878 {offsets = [0, 0], sizes = [1, 128], strides = [1, 1]} : vector<2x128xf32> to vector<1x128xf32>
      %1043 = vector.extract_strided_slice %883 {offsets = [0, 0], sizes = [1, 128], strides = [1, 1]} : vector<2x128xf32> to vector<1x128xf32>
      %1044 = vector.extract_strided_slice %888 {offsets = [0, 0], sizes = [1, 128], strides = [1, 1]} : vector<2x128xf32> to vector<1x128xf32>
      %1045 = vector.extract_strided_slice %893 {offsets = [0, 0], sizes = [1, 128], strides = [1, 1]} : vector<2x128xf32> to vector<1x128xf32>
      %1046 = vector.extract_strided_slice %898 {offsets = [0, 0], sizes = [1, 128], strides = [1, 1]} : vector<2x128xf32> to vector<1x128xf32>
      %1047 = vector.extract_strided_slice %903 {offsets = [0, 0], sizes = [1, 128], strides = [1, 1]} : vector<2x128xf32> to vector<1x128xf32>
      %1048 = vector.extract_strided_slice %863 {offsets = [1, 0], sizes = [1, 128], strides = [1, 1]} : vector<2x128xf32> to vector<1x128xf32>
      %1049 = vector.extract_strided_slice %868 {offsets = [1, 0], sizes = [1, 128], strides = [1, 1]} : vector<2x128xf32> to vector<1x128xf32>
      %1050 = vector.extract_strided_slice %873 {offsets = [1, 0], sizes = [1, 128], strides = [1, 1]} : vector<2x128xf32> to vector<1x128xf32>
      %1051 = vector.extract_strided_slice %878 {offsets = [1, 0], sizes = [1, 128], strides = [1, 1]} : vector<2x128xf32> to vector<1x128xf32>
      %1052 = vector.extract_strided_slice %883 {offsets = [1, 0], sizes = [1, 128], strides = [1, 1]} : vector<2x128xf32> to vector<1x128xf32>
      %1053 = vector.extract_strided_slice %888 {offsets = [1, 0], sizes = [1, 128], strides = [1, 1]} : vector<2x128xf32> to vector<1x128xf32>
      %1054 = vector.extract_strided_slice %893 {offsets = [1, 0], sizes = [1, 128], strides = [1, 1]} : vector<2x128xf32> to vector<1x128xf32>
      %1055 = vector.extract_strided_slice %898 {offsets = [1, 0], sizes = [1, 128], strides = [1, 1]} : vector<2x128xf32> to vector<1x128xf32>
      %1056 = vector.extract_strided_slice %903 {offsets = [1, 0], sizes = [1, 128], strides = [1, 1]} : vector<2x128xf32> to vector<1x128xf32>
      %1057 = arith.mulf %1039, %1048 : vector<1x128xf32>
      %1058 = arith.mulf %1040, %1051 : vector<1x128xf32>
      %1059 = arith.addf %1057, %1058 : vector<1x128xf32>
      %1060 = arith.mulf %1041, %1054 : vector<1x128xf32>
      %1061 = arith.addf %1059, %1060 : vector<1x128xf32>
      %1062 = arith.mulf %1039, %1049 : vector<1x128xf32>
      %1063 = arith.mulf %1040, %1052 : vector<1x128xf32>
      %1064 = arith.addf %1062, %1063 : vector<1x128xf32>
      %1065 = arith.mulf %1041, %1055 : vector<1x128xf32>
      %1066 = arith.addf %1064, %1065 : vector<1x128xf32>
      %1067 = arith.mulf %1039, %1050 : vector<1x128xf32>
      %1068 = arith.mulf %1040, %1053 : vector<1x128xf32>
      %1069 = arith.addf %1067, %1068 : vector<1x128xf32>
      %1070 = arith.mulf %1041, %1056 : vector<1x128xf32>
      %1071 = arith.addf %1069, %1070 : vector<1x128xf32>
      %1072 = arith.mulf %1042, %1048 : vector<1x128xf32>
      %1073 = arith.mulf %1043, %1051 : vector<1x128xf32>
      %1074 = arith.addf %1072, %1073 : vector<1x128xf32>
      %1075 = arith.mulf %1044, %1054 : vector<1x128xf32>
      %1076 = arith.addf %1074, %1075 : vector<1x128xf32>
      %1077 = arith.mulf %1042, %1049 : vector<1x128xf32>
      %1078 = arith.mulf %1043, %1052 : vector<1x128xf32>
      %1079 = arith.addf %1077, %1078 : vector<1x128xf32>
      %1080 = arith.mulf %1044, %1055 : vector<1x128xf32>
      %1081 = arith.addf %1079, %1080 : vector<1x128xf32>
      %1082 = arith.mulf %1042, %1050 : vector<1x128xf32>
      %1083 = arith.mulf %1043, %1053 : vector<1x128xf32>
      %1084 = arith.addf %1082, %1083 : vector<1x128xf32>
      %1085 = arith.mulf %1044, %1056 : vector<1x128xf32>
      %1086 = arith.addf %1084, %1085 : vector<1x128xf32>
      %1087 = arith.mulf %1045, %1048 : vector<1x128xf32>
      %1088 = arith.mulf %1046, %1051 : vector<1x128xf32>
      %1089 = arith.addf %1087, %1088 : vector<1x128xf32>
      %1090 = arith.mulf %1047, %1054 : vector<1x128xf32>
      %1091 = arith.addf %1089, %1090 : vector<1x128xf32>
      %1092 = arith.mulf %1045, %1049 : vector<1x128xf32>
      %1093 = arith.mulf %1046, %1052 : vector<1x128xf32>
      %1094 = arith.addf %1092, %1093 : vector<1x128xf32>
      %1095 = arith.mulf %1047, %1055 : vector<1x128xf32>
      %1096 = arith.addf %1094, %1095 : vector<1x128xf32>
      %1097 = arith.mulf %1045, %1050 : vector<1x128xf32>
      %1098 = arith.mulf %1046, %1053 : vector<1x128xf32>
      %1099 = arith.addf %1097, %1098 : vector<1x128xf32>
      %1100 = arith.mulf %1047, %1056 : vector<1x128xf32>
      %1101 = arith.addf %1099, %1100 : vector<1x128xf32>
      %1102 = vector.extract_strided_slice %926 {offsets = [0, 0], sizes = [1, 128], strides = [1, 1]} : vector<2x128xf32> to vector<1x128xf32>
      %1103 = vector.extract_strided_slice %931 {offsets = [0, 0], sizes = [1, 128], strides = [1, 1]} : vector<2x128xf32> to vector<1x128xf32>
      %1104 = vector.extract_strided_slice %936 {offsets = [0, 0], sizes = [1, 128], strides = [1, 1]} : vector<2x128xf32> to vector<1x128xf32>
      %1105 = vector.extract_strided_slice %941 {offsets = [0, 0], sizes = [1, 128], strides = [1, 1]} : vector<2x128xf32> to vector<1x128xf32>
      %1106 = vector.extract_strided_slice %946 {offsets = [0, 0], sizes = [1, 128], strides = [1, 1]} : vector<2x128xf32> to vector<1x128xf32>
      %1107 = vector.extract_strided_slice %951 {offsets = [0, 0], sizes = [1, 128], strides = [1, 1]} : vector<2x128xf32> to vector<1x128xf32>
      %1108 = vector.extract_strided_slice %956 {offsets = [0, 0], sizes = [1, 128], strides = [1, 1]} : vector<2x128xf32> to vector<1x128xf32>
      %1109 = vector.extract_strided_slice %961 {offsets = [0, 0], sizes = [1, 128], strides = [1, 1]} : vector<2x128xf32> to vector<1x128xf32>
      %1110 = vector.extract_strided_slice %966 {offsets = [0, 0], sizes = [1, 128], strides = [1, 1]} : vector<2x128xf32> to vector<1x128xf32>
      %1111 = vector.extract_strided_slice %926 {offsets = [1, 0], sizes = [1, 128], strides = [1, 1]} : vector<2x128xf32> to vector<1x128xf32>
      %1112 = vector.extract_strided_slice %931 {offsets = [1, 0], sizes = [1, 128], strides = [1, 1]} : vector<2x128xf32> to vector<1x128xf32>
      %1113 = vector.extract_strided_slice %936 {offsets = [1, 0], sizes = [1, 128], strides = [1, 1]} : vector<2x128xf32> to vector<1x128xf32>
      %1114 = vector.extract_strided_slice %941 {offsets = [1, 0], sizes = [1, 128], strides = [1, 1]} : vector<2x128xf32> to vector<1x128xf32>
      %1115 = vector.extract_strided_slice %946 {offsets = [1, 0], sizes = [1, 128], strides = [1, 1]} : vector<2x128xf32> to vector<1x128xf32>
      %1116 = vector.extract_strided_slice %951 {offsets = [1, 0], sizes = [1, 128], strides = [1, 1]} : vector<2x128xf32> to vector<1x128xf32>
      %1117 = vector.extract_strided_slice %956 {offsets = [1, 0], sizes = [1, 128], strides = [1, 1]} : vector<2x128xf32> to vector<1x128xf32>
      %1118 = vector.extract_strided_slice %961 {offsets = [1, 0], sizes = [1, 128], strides = [1, 1]} : vector<2x128xf32> to vector<1x128xf32>
      %1119 = vector.extract_strided_slice %966 {offsets = [1, 0], sizes = [1, 128], strides = [1, 1]} : vector<2x128xf32> to vector<1x128xf32>
      %1120 = arith.mulf %1102, %1111 : vector<1x128xf32>
      %1121 = arith.mulf %1103, %1114 : vector<1x128xf32>
      %1122 = arith.addf %1120, %1121 : vector<1x128xf32>
      %1123 = arith.mulf %1104, %1117 : vector<1x128xf32>
      %1124 = arith.addf %1122, %1123 : vector<1x128xf32>
      %1125 = arith.mulf %1102, %1112 : vector<1x128xf32>
      %1126 = arith.mulf %1103, %1115 : vector<1x128xf32>
      %1127 = arith.addf %1125, %1126 : vector<1x128xf32>
      %1128 = arith.mulf %1104, %1118 : vector<1x128xf32>
      %1129 = arith.addf %1127, %1128 : vector<1x128xf32>
      %1130 = arith.mulf %1102, %1113 : vector<1x128xf32>
      %1131 = arith.mulf %1103, %1116 : vector<1x128xf32>
      %1132 = arith.addf %1130, %1131 : vector<1x128xf32>
      %1133 = arith.mulf %1104, %1119 : vector<1x128xf32>
      %1134 = arith.addf %1132, %1133 : vector<1x128xf32>
      %1135 = arith.mulf %1105, %1111 : vector<1x128xf32>
      %1136 = arith.mulf %1106, %1114 : vector<1x128xf32>
      %1137 = arith.addf %1135, %1136 : vector<1x128xf32>
      %1138 = arith.mulf %1107, %1117 : vector<1x128xf32>
      %1139 = arith.addf %1137, %1138 : vector<1x128xf32>
      %1140 = arith.mulf %1105, %1112 : vector<1x128xf32>
      %1141 = arith.mulf %1106, %1115 : vector<1x128xf32>
      %1142 = arith.addf %1140, %1141 : vector<1x128xf32>
      %1143 = arith.mulf %1107, %1118 : vector<1x128xf32>
      %1144 = arith.addf %1142, %1143 : vector<1x128xf32>
      %1145 = arith.mulf %1105, %1113 : vector<1x128xf32>
      %1146 = arith.mulf %1106, %1116 : vector<1x128xf32>
      %1147 = arith.addf %1145, %1146 : vector<1x128xf32>
      %1148 = arith.mulf %1107, %1119 : vector<1x128xf32>
      %1149 = arith.addf %1147, %1148 : vector<1x128xf32>
      %1150 = arith.mulf %1108, %1111 : vector<1x128xf32>
      %1151 = arith.mulf %1109, %1114 : vector<1x128xf32>
      %1152 = arith.addf %1150, %1151 : vector<1x128xf32>
      %1153 = arith.mulf %1110, %1117 : vector<1x128xf32>
      %1154 = arith.addf %1152, %1153 : vector<1x128xf32>
      %1155 = arith.mulf %1108, %1112 : vector<1x128xf32>
      %1156 = arith.mulf %1109, %1115 : vector<1x128xf32>
      %1157 = arith.addf %1155, %1156 : vector<1x128xf32>
      %1158 = arith.mulf %1110, %1118 : vector<1x128xf32>
      %1159 = arith.addf %1157, %1158 : vector<1x128xf32>
      %1160 = arith.mulf %1108, %1113 : vector<1x128xf32>
      %1161 = arith.mulf %1109, %1116 : vector<1x128xf32>
      %1162 = arith.addf %1160, %1161 : vector<1x128xf32>
      %1163 = arith.mulf %1110, %1119 : vector<1x128xf32>
      %1164 = arith.addf %1162, %1163 : vector<1x128xf32>
      %1165 = arith.mulf %1061, %1124 : vector<1x128xf32>
      %1166 = arith.mulf %1076, %1139 : vector<1x128xf32>
      %1167 = arith.addf %1165, %1166 : vector<1x128xf32>
      %1168 = arith.mulf %1091, %1154 : vector<1x128xf32>
      %1169 = arith.addf %1167, %1168 : vector<1x128xf32>
      %1170 = arith.mulf %1061, %1129 : vector<1x128xf32>
      %1171 = arith.mulf %1076, %1144 : vector<1x128xf32>
      %1172 = arith.addf %1170, %1171 : vector<1x128xf32>
      %1173 = arith.mulf %1091, %1159 : vector<1x128xf32>
      %1174 = arith.addf %1172, %1173 : vector<1x128xf32>
      %1175 = arith.mulf %1061, %1134 : vector<1x128xf32>
      %1176 = arith.mulf %1076, %1149 : vector<1x128xf32>
      %1177 = arith.addf %1175, %1176 : vector<1x128xf32>
      %1178 = arith.mulf %1091, %1164 : vector<1x128xf32>
      %1179 = arith.addf %1177, %1178 : vector<1x128xf32>
      %1180 = arith.mulf %1066, %1124 : vector<1x128xf32>
      %1181 = arith.mulf %1081, %1139 : vector<1x128xf32>
      %1182 = arith.addf %1180, %1181 : vector<1x128xf32>
      %1183 = arith.mulf %1096, %1154 : vector<1x128xf32>
      %1184 = arith.addf %1182, %1183 : vector<1x128xf32>
      %1185 = arith.mulf %1066, %1129 : vector<1x128xf32>
      %1186 = arith.mulf %1081, %1144 : vector<1x128xf32>
      %1187 = arith.addf %1185, %1186 : vector<1x128xf32>
      %1188 = arith.mulf %1096, %1159 : vector<1x128xf32>
      %1189 = arith.addf %1187, %1188 : vector<1x128xf32>
      %1190 = arith.mulf %1066, %1134 : vector<1x128xf32>
      %1191 = arith.mulf %1081, %1149 : vector<1x128xf32>
      %1192 = arith.addf %1190, %1191 : vector<1x128xf32>
      %1193 = arith.mulf %1096, %1164 : vector<1x128xf32>
      %1194 = arith.addf %1192, %1193 : vector<1x128xf32>
      %1195 = arith.mulf %1071, %1124 : vector<1x128xf32>
      %1196 = arith.mulf %1086, %1139 : vector<1x128xf32>
      %1197 = arith.addf %1195, %1196 : vector<1x128xf32>
      %1198 = arith.mulf %1101, %1154 : vector<1x128xf32>
      %1199 = arith.addf %1197, %1198 : vector<1x128xf32>
      %1200 = arith.mulf %1071, %1129 : vector<1x128xf32>
      %1201 = arith.mulf %1086, %1144 : vector<1x128xf32>
      %1202 = arith.addf %1200, %1201 : vector<1x128xf32>
      %1203 = arith.mulf %1101, %1159 : vector<1x128xf32>
      %1204 = arith.addf %1202, %1203 : vector<1x128xf32>
      %1205 = arith.mulf %1071, %1134 : vector<1x128xf32>
      %1206 = arith.mulf %1086, %1149 : vector<1x128xf32>
      %1207 = arith.addf %1205, %1206 : vector<1x128xf32>
      %1208 = arith.mulf %1101, %1164 : vector<1x128xf32>
      %1209 = arith.addf %1207, %1208 : vector<1x128xf32>
      %c0_183 = arith.constant 0 : index
      %c30 = arith.constant 30 : index
      %c0_184 = arith.constant 0 : index
      %1210 = vector.load %arg3[%c0_183, %c30, %c0_184] : memref<9x32x128xf32, #tpu.memory_space<vmem>>, vector<1x1x128xf32>
      %1211 = vector.shape_cast %1210 : vector<1x1x128xf32> to vector<1x128xf32>
      %1212 = vector.shape_cast %1169 : vector<1x128xf32> to vector<1x1x128xf32>
      tpu.vector_store %arg3[%c0_183, %c30, %c0_184], %1212 {strides = array<i32>} : memref<9x32x128xf32, #tpu.memory_space<vmem>>, vector<1x1x128xf32>,
      %c1_185 = arith.constant 1 : index
      %c30_186 = arith.constant 30 : index
      %c0_187 = arith.constant 0 : index
      %1213 = vector.load %arg3[%c1_185, %c30_186, %c0_187] : memref<9x32x128xf32, #tpu.memory_space<vmem>>, vector<1x1x128xf32>
      %1214 = vector.shape_cast %1213 : vector<1x1x128xf32> to vector<1x128xf32>
      %1215 = vector.shape_cast %1174 : vector<1x128xf32> to vector<1x1x128xf32>
      tpu.vector_store %arg3[%c1_185, %c30_186, %c0_187], %1215 {strides = array<i32>} : memref<9x32x128xf32, #tpu.memory_space<vmem>>, vector<1x1x128xf32>,
      %c2_188 = arith.constant 2 : index
      %c30_189 = arith.constant 30 : index
      %c0_190 = arith.constant 0 : index
      %1216 = vector.load %arg3[%c2_188, %c30_189, %c0_190] : memref<9x32x128xf32, #tpu.memory_space<vmem>>, vector<1x1x128xf32>
      %1217 = vector.shape_cast %1216 : vector<1x1x128xf32> to vector<1x128xf32>
      %1218 = vector.shape_cast %1179 : vector<1x128xf32> to vector<1x1x128xf32>
      tpu.vector_store %arg3[%c2_188, %c30_189, %c0_190], %1218 {strides = array<i32>} : memref<9x32x128xf32, #tpu.memory_space<vmem>>, vector<1x1x128xf32>,
      %c3_191 = arith.constant 3 : index
      %c30_192 = arith.constant 30 : index
      %c0_193 = arith.constant 0 : index
      %1219 = vector.load %arg3[%c3_191, %c30_192, %c0_193] : memref<9x32x128xf32, #tpu.memory_space<vmem>>, vector<1x1x128xf32>
      %1220 = vector.shape_cast %1219 : vector<1x1x128xf32> to vector<1x128xf32>
      %1221 = vector.shape_cast %1184 : vector<1x128xf32> to vector<1x1x128xf32>
      tpu.vector_store %arg3[%c3_191, %c30_192, %c0_193], %1221 {strides = array<i32>} : memref<9x32x128xf32, #tpu.memory_space<vmem>>, vector<1x1x128xf32>,
      %c4_194 = arith.constant 4 : index
      %c30_195 = arith.constant 30 : index
      %c0_196 = arith.constant 0 : index
      %1222 = vector.load %arg3[%c4_194, %c30_195, %c0_196] : memref<9x32x128xf32, #tpu.memory_space<vmem>>, vector<1x1x128xf32>
      %1223 = vector.shape_cast %1222 : vector<1x1x128xf32> to vector<1x128xf32>
      %1224 = vector.shape_cast %1189 : vector<1x128xf32> to vector<1x1x128xf32>
      tpu.vector_store %arg3[%c4_194, %c30_195, %c0_196], %1224 {strides = array<i32>} : memref<9x32x128xf32, #tpu.memory_space<vmem>>, vector<1x1x128xf32>,
      %c5_197 = arith.constant 5 : index
      %c30_198 = arith.constant 30 : index
      %c0_199 = arith.constant 0 : index
      %1225 = vector.load %arg3[%c5_197, %c30_198, %c0_199] : memref<9x32x128xf32, #tpu.memory_space<vmem>>, vector<1x1x128xf32>
      %1226 = vector.shape_cast %1225 : vector<1x1x128xf32> to vector<1x128xf32>
      %1227 = vector.shape_cast %1194 : vector<1x128xf32> to vector<1x1x128xf32>
      tpu.vector_store %arg3[%c5_197, %c30_198, %c0_199], %1227 {strides = array<i32>} : memref<9x32x128xf32, #tpu.memory_space<vmem>>, vector<1x1x128xf32>,
      %c6_200 = arith.constant 6 : index
      %c30_201 = arith.constant 30 : index
      %c0_202 = arith.constant 0 : index
      %1228 = vector.load %arg3[%c6_200, %c30_201, %c0_202] : memref<9x32x128xf32, #tpu.memory_space<vmem>>, vector<1x1x128xf32>
      %1229 = vector.shape_cast %1228 : vector<1x1x128xf32> to vector<1x128xf32>
      %1230 = vector.shape_cast %1199 : vector<1x128xf32> to vector<1x1x128xf32>
      tpu.vector_store %arg3[%c6_200, %c30_201, %c0_202], %1230 {strides = array<i32>} : memref<9x32x128xf32, #tpu.memory_space<vmem>>, vector<1x1x128xf32>,
      %c7_203 = arith.constant 7 : index
      %c30_204 = arith.constant 30 : index
      %c0_205 = arith.constant 0 : index
      %1231 = vector.load %arg3[%c7_203, %c30_204, %c0_205] : memref<9x32x128xf32, #tpu.memory_space<vmem>>, vector<1x1x128xf32>
      %1232 = vector.shape_cast %1231 : vector<1x1x128xf32> to vector<1x128xf32>
      %1233 = vector.shape_cast %1204 : vector<1x128xf32> to vector<1x1x128xf32>
      tpu.vector_store %arg3[%c7_203, %c30_204, %c0_205], %1233 {strides = array<i32>} : memref<9x32x128xf32, #tpu.memory_space<vmem>>, vector<1x1x128xf32>,
      %c8_206 = arith.constant 8 : index
      %c30_207 = arith.constant 30 : index
      %c0_208 = arith.constant 0 : index
      %1234 = vector.load %arg3[%c8_206, %c30_207, %c0_208] : memref<9x32x128xf32, #tpu.memory_space<vmem>>, vector<1x1x128xf32>
      %1235 = vector.shape_cast %1234 : vector<1x1x128xf32> to vector<1x128xf32>
      %1236 = vector.shape_cast %1209 : vector<1x128xf32> to vector<1x1x128xf32>
      tpu.vector_store %arg3[%c8_206, %c30_207, %c0_208], %1236 {strides = array<i32>} : memref<9x32x128xf32, #tpu.memory_space<vmem>>, vector<1x1x128xf32>,
      %cst_209 = arith.constant 0.000000e+00 : f32
      %1237 = vector.broadcast %cst_209 : f32 to vector<1x128xf32>
      %c0_210 = arith.constant 0 : index
      %c0_211 = arith.constant 0 : index
      %c0_212 = arith.constant 0 : index
      %1238 = vector.load %arg3[%c0_210, %c0_211, %c0_212] : memref<9x32x128xf32, #tpu.memory_space<vmem>>, vector<1x8x128xf32>
      %1239 = vector.shape_cast %1238 : vector<1x8x128xf32> to vector<8x128xf32>
      %c1_213 = arith.constant 1 : index
      %c0_214 = arith.constant 0 : index
      %c0_215 = arith.constant 0 : index
      %1240 = vector.load %arg3[%c1_213, %c0_214, %c0_215] : memref<9x32x128xf32, #tpu.memory_space<vmem>>, vector<1x8x128xf32>
      %1241 = vector.shape_cast %1240 : vector<1x8x128xf32> to vector<8x128xf32>
      %c2_216 = arith.constant 2 : index
      %c0_217 = arith.constant 0 : index
      %c0_218 = arith.constant 0 : index
      %1242 = vector.load %arg3[%c2_216, %c0_217, %c0_218] : memref<9x32x128xf32, #tpu.memory_space<vmem>>, vector<1x8x128xf32>
      %1243 = vector.shape_cast %1242 : vector<1x8x128xf32> to vector<8x128xf32>
      %c3_219 = arith.constant 3 : index
      %c0_220 = arith.constant 0 : index
      %c0_221 = arith.constant 0 : index
      %1244 = vector.load %arg3[%c3_219, %c0_220, %c0_221] : memref<9x32x128xf32, #tpu.memory_space<vmem>>, vector<1x8x128xf32>
      %1245 = vector.shape_cast %1244 : vector<1x8x128xf32> to vector<8x128xf32>
      %c4_222 = arith.constant 4 : index
      %c0_223 = arith.constant 0 : index
      %c0_224 = arith.constant 0 : index
      %1246 = vector.load %arg3[%c4_222, %c0_223, %c0_224] : memref<9x32x128xf32, #tpu.memory_space<vmem>>, vector<1x8x128xf32>
      %1247 = vector.shape_cast %1246 : vector<1x8x128xf32> to vector<8x128xf32>
      %c5_225 = arith.constant 5 : index
      %c0_226 = arith.constant 0 : index
      %c0_227 = arith.constant 0 : index
      %1248 = vector.load %arg3[%c5_225, %c0_226, %c0_227] : memref<9x32x128xf32, #tpu.memory_space<vmem>>, vector<1x8x128xf32>
      %1249 = vector.shape_cast %1248 : vector<1x8x128xf32> to vector<8x128xf32>
      %c6_228 = arith.constant 6 : index
      %c0_229 = arith.constant 0 : index
      %c0_230 = arith.constant 0 : index
      %1250 = vector.load %arg3[%c6_228, %c0_229, %c0_230] : memref<9x32x128xf32, #tpu.memory_space<vmem>>, vector<1x8x128xf32>
      %1251 = vector.shape_cast %1250 : vector<1x8x128xf32> to vector<8x128xf32>
      %c7_231 = arith.constant 7 : index
      %c0_232 = arith.constant 0 : index
      %c0_233 = arith.constant 0 : index
      %1252 = vector.load %arg3[%c7_231, %c0_232, %c0_233] : memref<9x32x128xf32, #tpu.memory_space<vmem>>, vector<1x8x128xf32>
      %1253 = vector.shape_cast %1252 : vector<1x8x128xf32> to vector<8x128xf32>
      %c8_234 = arith.constant 8 : index
      %c0_235 = arith.constant 0 : index
      %c0_236 = arith.constant 0 : index
      %1254 = vector.load %arg3[%c8_234, %c0_235, %c0_236] : memref<9x32x128xf32, #tpu.memory_space<vmem>>, vector<1x8x128xf32>
      %1255 = vector.shape_cast %1254 : vector<1x8x128xf32> to vector<8x128xf32>
      %1256 = arith.mulf %1239, %1239 : vector<8x128xf32>
      %1257 = arith.mulf %1245, %1245 : vector<8x128xf32>
      %1258 = arith.addf %1256, %1257 : vector<8x128xf32>
      %1259 = arith.mulf %1251, %1251 : vector<8x128xf32>
      %1260 = arith.addf %1258, %1259 : vector<8x128xf32>
      %1261 = arith.mulf %1239, %1241 : vector<8x128xf32>
      %1262 = arith.mulf %1245, %1247 : vector<8x128xf32>
      %1263 = arith.addf %1261, %1262 : vector<8x128xf32>
      %1264 = arith.mulf %1251, %1253 : vector<8x128xf32>
      %1265 = arith.addf %1263, %1264 : vector<8x128xf32>
      %1266 = arith.mulf %1239, %1243 : vector<8x128xf32>
      %1267 = arith.mulf %1245, %1249 : vector<8x128xf32>
      %1268 = arith.addf %1266, %1267 : vector<8x128xf32>
      %1269 = arith.mulf %1251, %1255 : vector<8x128xf32>
      %1270 = arith.addf %1268, %1269 : vector<8x128xf32>
      %1271 = arith.mulf %1241, %1241 : vector<8x128xf32>
      %1272 = arith.mulf %1247, %1247 : vector<8x128xf32>
      %1273 = arith.addf %1271, %1272 : vector<8x128xf32>
      %1274 = arith.mulf %1253, %1253 : vector<8x128xf32>
      %1275 = arith.addf %1273, %1274 : vector<8x128xf32>
      %1276 = arith.mulf %1241, %1243 : vector<8x128xf32>
      %1277 = arith.mulf %1247, %1249 : vector<8x128xf32>
      %1278 = arith.addf %1276, %1277 : vector<8x128xf32>
      %1279 = arith.mulf %1253, %1255 : vector<8x128xf32>
      %1280 = arith.addf %1278, %1279 : vector<8x128xf32>
      %1281 = arith.mulf %1243, %1243 : vector<8x128xf32>
      %1282 = arith.mulf %1249, %1249 : vector<8x128xf32>
      %1283 = arith.addf %1281, %1282 : vector<8x128xf32>
      %1284 = arith.mulf %1255, %1255 : vector<8x128xf32>
      %1285 = arith.addf %1283, %1284 : vector<8x128xf32>
      %cst_237 = arith.constant 5.000000e-01 : f32
      %1286 = vector.broadcast %cst_237 : f32 to vector<8x128xf32>
      %1287 = arith.mulf %1286, %1260 : vector<8x128xf32>
      %cst_238 = arith.constant 1.500000e+00 : f32
      %1288 = vector.broadcast %cst_238 : f32 to vector<8x128xf32>
      %1289 = arith.subf %1288, %1287 : vector<8x128xf32>
      %cst_239 = arith.constant 5.000000e-01 : f32
      %1290 = vector.broadcast %cst_239 : f32 to vector<8x128xf32>
      %1291 = arith.mulf %1290, %1275 : vector<8x128xf32>
      %cst_240 = arith.constant 1.500000e+00 : f32
      %1292 = vector.broadcast %cst_240 : f32 to vector<8x128xf32>
      %1293 = arith.subf %1292, %1291 : vector<8x128xf32>
      %cst_241 = arith.constant 5.000000e-01 : f32
      %1294 = vector.broadcast %cst_241 : f32 to vector<8x128xf32>
      %1295 = arith.mulf %1294, %1285 : vector<8x128xf32>
      %cst_242 = arith.constant 1.500000e+00 : f32
      %1296 = vector.broadcast %cst_242 : f32 to vector<8x128xf32>
      %1297 = arith.subf %1296, %1295 : vector<8x128xf32>
      %cst_243 = arith.constant -5.000000e-01 : f32
      %1298 = vector.broadcast %cst_243 : f32 to vector<8x128xf32>
      %1299 = arith.mulf %1298, %1265 : vector<8x128xf32>
      %cst_244 = arith.constant -5.000000e-01 : f32
      %1300 = vector.broadcast %cst_244 : f32 to vector<8x128xf32>
      %1301 = arith.mulf %1300, %1270 : vector<8x128xf32>
      %cst_245 = arith.constant -5.000000e-01 : f32
      %1302 = vector.broadcast %cst_245 : f32 to vector<8x128xf32>
      %1303 = arith.mulf %1302, %1280 : vector<8x128xf32>
      %1304 = arith.mulf %1239, %1289 : vector<8x128xf32>
      %1305 = arith.mulf %1241, %1299 : vector<8x128xf32>
      %1306 = arith.addf %1304, %1305 : vector<8x128xf32>
      %1307 = arith.mulf %1243, %1301 : vector<8x128xf32>
      %1308 = arith.addf %1306, %1307 : vector<8x128xf32>
      %1309 = arith.mulf %1239, %1299 : vector<8x128xf32>
      %1310 = arith.mulf %1241, %1293 : vector<8x128xf32>
      %1311 = arith.addf %1309, %1310 : vector<8x128xf32>
      %1312 = arith.mulf %1243, %1303 : vector<8x128xf32>
      %1313 = arith.addf %1311, %1312 : vector<8x128xf32>
      %1314 = arith.mulf %1239, %1301 : vector<8x128xf32>
      %1315 = arith.mulf %1241, %1303 : vector<8x128xf32>
      %1316 = arith.addf %1314, %1315 : vector<8x128xf32>
      %1317 = arith.mulf %1243, %1297 : vector<8x128xf32>
      %1318 = arith.addf %1316, %1317 : vector<8x128xf32>
      %1319 = arith.mulf %1245, %1289 : vector<8x128xf32>
      %1320 = arith.mulf %1247, %1299 : vector<8x128xf32>
      %1321 = arith.addf %1319, %1320 : vector<8x128xf32>
      %1322 = arith.mulf %1249, %1301 : vector<8x128xf32>
      %1323 = arith.addf %1321, %1322 : vector<8x128xf32>
      %1324 = arith.mulf %1245, %1299 : vector<8x128xf32>
      %1325 = arith.mulf %1247, %1293 : vector<8x128xf32>
      %1326 = arith.addf %1324, %1325 : vector<8x128xf32>
      %1327 = arith.mulf %1249, %1303 : vector<8x128xf32>
      %1328 = arith.addf %1326, %1327 : vector<8x128xf32>
      %1329 = arith.mulf %1245, %1301 : vector<8x128xf32>
      %1330 = arith.mulf %1247, %1303 : vector<8x128xf32>
      %1331 = arith.addf %1329, %1330 : vector<8x128xf32>
      %1332 = arith.mulf %1249, %1297 : vector<8x128xf32>
      %1333 = arith.addf %1331, %1332 : vector<8x128xf32>
      %1334 = arith.mulf %1251, %1289 : vector<8x128xf32>
      %1335 = arith.mulf %1253, %1299 : vector<8x128xf32>
      %1336 = arith.addf %1334, %1335 : vector<8x128xf32>
      %1337 = arith.mulf %1255, %1301 : vector<8x128xf32>
      %1338 = arith.addf %1336, %1337 : vector<8x128xf32>
      %1339 = arith.mulf %1251, %1299 : vector<8x128xf32>
      %1340 = arith.mulf %1253, %1293 : vector<8x128xf32>
      %1341 = arith.addf %1339, %1340 : vector<8x128xf32>
      %1342 = arith.mulf %1255, %1303 : vector<8x128xf32>
      %1343 = arith.addf %1341, %1342 : vector<8x128xf32>
      %1344 = arith.mulf %1251, %1301 : vector<8x128xf32>
      %1345 = arith.mulf %1253, %1303 : vector<8x128xf32>
      %1346 = arith.addf %1344, %1345 : vector<8x128xf32>
      %1347 = arith.mulf %1255, %1297 : vector<8x128xf32>
      %1348 = arith.addf %1346, %1347 : vector<8x128xf32>
      %1349 = arith.mulf %1308, %1308 : vector<8x128xf32>
      %1350 = arith.mulf %1323, %1323 : vector<8x128xf32>
      %1351 = arith.addf %1349, %1350 : vector<8x128xf32>
      %1352 = arith.mulf %1338, %1338 : vector<8x128xf32>
      %1353 = arith.addf %1351, %1352 : vector<8x128xf32>
      %1354 = arith.mulf %1308, %1313 : vector<8x128xf32>
      %1355 = arith.mulf %1323, %1328 : vector<8x128xf32>
      %1356 = arith.addf %1354, %1355 : vector<8x128xf32>
      %1357 = arith.mulf %1338, %1343 : vector<8x128xf32>
      %1358 = arith.addf %1356, %1357 : vector<8x128xf32>
      %1359 = arith.mulf %1308, %1318 : vector<8x128xf32>
      %1360 = arith.mulf %1323, %1333 : vector<8x128xf32>
      %1361 = arith.addf %1359, %1360 : vector<8x128xf32>
      %1362 = arith.mulf %1338, %1348 : vector<8x128xf32>
      %1363 = arith.addf %1361, %1362 : vector<8x128xf32>
      %1364 = arith.mulf %1313, %1313 : vector<8x128xf32>
      %1365 = arith.mulf %1328, %1328 : vector<8x128xf32>
      %1366 = arith.addf %1364, %1365 : vector<8x128xf32>
      %1367 = arith.mulf %1343, %1343 : vector<8x128xf32>
      %1368 = arith.addf %1366, %1367 : vector<8x128xf32>
      %1369 = arith.mulf %1313, %1318 : vector<8x128xf32>
      %1370 = arith.mulf %1328, %1333 : vector<8x128xf32>
      %1371 = arith.addf %1369, %1370 : vector<8x128xf32>
      %1372 = arith.mulf %1343, %1348 : vector<8x128xf32>
      %1373 = arith.addf %1371, %1372 : vector<8x128xf32>
      %1374 = arith.mulf %1318, %1318 : vector<8x128xf32>
      %1375 = arith.mulf %1333, %1333 : vector<8x128xf32>
      %1376 = arith.addf %1374, %1375 : vector<8x128xf32>
      %1377 = arith.mulf %1348, %1348 : vector<8x128xf32>
      %1378 = arith.addf %1376, %1377 : vector<8x128xf32>
      %cst_246 = arith.constant 5.000000e-01 : f32
      %1379 = vector.broadcast %cst_246 : f32 to vector<8x128xf32>
      %1380 = arith.mulf %1379, %1353 : vector<8x128xf32>
      %cst_247 = arith.constant 1.500000e+00 : f32
      %1381 = vector.broadcast %cst_247 : f32 to vector<8x128xf32>
      %1382 = arith.subf %1381, %1380 : vector<8x128xf32>
      %cst_248 = arith.constant 5.000000e-01 : f32
      %1383 = vector.broadcast %cst_248 : f32 to vector<8x128xf32>
      %1384 = arith.mulf %1383, %1368 : vector<8x128xf32>
      %cst_249 = arith.constant 1.500000e+00 : f32
      %1385 = vector.broadcast %cst_249 : f32 to vector<8x128xf32>
      %1386 = arith.subf %1385, %1384 : vector<8x128xf32>
      %cst_250 = arith.constant 5.000000e-01 : f32
      %1387 = vector.broadcast %cst_250 : f32 to vector<8x128xf32>
      %1388 = arith.mulf %1387, %1378 : vector<8x128xf32>
      %cst_251 = arith.constant 1.500000e+00 : f32
      %1389 = vector.broadcast %cst_251 : f32 to vector<8x128xf32>
      %1390 = arith.subf %1389, %1388 : vector<8x128xf32>
      %cst_252 = arith.constant -5.000000e-01 : f32
      %1391 = vector.broadcast %cst_252 : f32 to vector<8x128xf32>
      %1392 = arith.mulf %1391, %1358 : vector<8x128xf32>
      %cst_253 = arith.constant -5.000000e-01 : f32
      %1393 = vector.broadcast %cst_253 : f32 to vector<8x128xf32>
      %1394 = arith.mulf %1393, %1363 : vector<8x128xf32>
      %cst_254 = arith.constant -5.000000e-01 : f32
      %1395 = vector.broadcast %cst_254 : f32 to vector<8x128xf32>
      %1396 = arith.mulf %1395, %1373 : vector<8x128xf32>
      %1397 = arith.mulf %1308, %1382 : vector<8x128xf32>
      %1398 = arith.mulf %1313, %1392 : vector<8x128xf32>
      %1399 = arith.addf %1397, %1398 : vector<8x128xf32>
      %1400 = arith.mulf %1318, %1394 : vector<8x128xf32>
      %1401 = arith.addf %1399, %1400 : vector<8x128xf32>
      %1402 = arith.mulf %1308, %1392 : vector<8x128xf32>
      %1403 = arith.mulf %1313, %1386 : vector<8x128xf32>
      %1404 = arith.addf %1402, %1403 : vector<8x128xf32>
      %1405 = arith.mulf %1318, %1396 : vector<8x128xf32>
      %1406 = arith.addf %1404, %1405 : vector<8x128xf32>
      %1407 = arith.mulf %1308, %1394 : vector<8x128xf32>
      %1408 = arith.mulf %1313, %1396 : vector<8x128xf32>
      %1409 = arith.addf %1407, %1408 : vector<8x128xf32>
      %1410 = arith.mulf %1318, %1390 : vector<8x128xf32>
      %1411 = arith.addf %1409, %1410 : vector<8x128xf32>
      %1412 = arith.mulf %1323, %1382 : vector<8x128xf32>
      %1413 = arith.mulf %1328, %1392 : vector<8x128xf32>
      %1414 = arith.addf %1412, %1413 : vector<8x128xf32>
      %1415 = arith.mulf %1333, %1394 : vector<8x128xf32>
      %1416 = arith.addf %1414, %1415 : vector<8x128xf32>
      %1417 = arith.mulf %1323, %1392 : vector<8x128xf32>
      %1418 = arith.mulf %1328, %1386 : vector<8x128xf32>
      %1419 = arith.addf %1417, %1418 : vector<8x128xf32>
      %1420 = arith.mulf %1333, %1396 : vector<8x128xf32>
      %1421 = arith.addf %1419, %1420 : vector<8x128xf32>
      %1422 = arith.mulf %1323, %1394 : vector<8x128xf32>
      %1423 = arith.mulf %1328, %1396 : vector<8x128xf32>
      %1424 = arith.addf %1422, %1423 : vector<8x128xf32>
      %1425 = arith.mulf %1333, %1390 : vector<8x128xf32>
      %1426 = arith.addf %1424, %1425 : vector<8x128xf32>
      %1427 = arith.mulf %1338, %1382 : vector<8x128xf32>
      %1428 = arith.mulf %1343, %1392 : vector<8x128xf32>
      %1429 = arith.addf %1427, %1428 : vector<8x128xf32>
      %1430 = arith.mulf %1348, %1394 : vector<8x128xf32>
      %1431 = arith.addf %1429, %1430 : vector<8x128xf32>
      %1432 = arith.mulf %1338, %1392 : vector<8x128xf32>
      %1433 = arith.mulf %1343, %1386 : vector<8x128xf32>
      %1434 = arith.addf %1432, %1433 : vector<8x128xf32>
      %1435 = arith.mulf %1348, %1396 : vector<8x128xf32>
      %1436 = arith.addf %1434, %1435 : vector<8x128xf32>
      %1437 = arith.mulf %1338, %1394 : vector<8x128xf32>
      %1438 = arith.mulf %1343, %1396 : vector<8x128xf32>
      %1439 = arith.addf %1437, %1438 : vector<8x128xf32>
      %1440 = arith.mulf %1348, %1390 : vector<8x128xf32>
      %1441 = arith.addf %1439, %1440 : vector<8x128xf32>
      %1442 = arith.mulf %1401, %1401 : vector<8x128xf32>
      %1443 = arith.mulf %1416, %1416 : vector<8x128xf32>
      %1444 = arith.addf %1442, %1443 : vector<8x128xf32>
      %1445 = arith.mulf %1431, %1431 : vector<8x128xf32>
      %1446 = arith.addf %1444, %1445 : vector<8x128xf32>
      %1447 = arith.mulf %1401, %1406 : vector<8x128xf32>
      %1448 = arith.mulf %1416, %1421 : vector<8x128xf32>
      %1449 = arith.addf %1447, %1448 : vector<8x128xf32>
      %1450 = arith.mulf %1431, %1436 : vector<8x128xf32>
      %1451 = arith.addf %1449, %1450 : vector<8x128xf32>
      %1452 = arith.mulf %1401, %1411 : vector<8x128xf32>
      %1453 = arith.mulf %1416, %1426 : vector<8x128xf32>
      %1454 = arith.addf %1452, %1453 : vector<8x128xf32>
      %1455 = arith.mulf %1431, %1441 : vector<8x128xf32>
      %1456 = arith.addf %1454, %1455 : vector<8x128xf32>
      %1457 = arith.mulf %1406, %1406 : vector<8x128xf32>
      %1458 = arith.mulf %1421, %1421 : vector<8x128xf32>
      %1459 = arith.addf %1457, %1458 : vector<8x128xf32>
      %1460 = arith.mulf %1436, %1436 : vector<8x128xf32>
      %1461 = arith.addf %1459, %1460 : vector<8x128xf32>
      %1462 = arith.mulf %1406, %1411 : vector<8x128xf32>
      %1463 = arith.mulf %1421, %1426 : vector<8x128xf32>
      %1464 = arith.addf %1462, %1463 : vector<8x128xf32>
      %1465 = arith.mulf %1436, %1441 : vector<8x128xf32>
      %1466 = arith.addf %1464, %1465 : vector<8x128xf32>
      %1467 = arith.mulf %1411, %1411 : vector<8x128xf32>
      %1468 = arith.mulf %1426, %1426 : vector<8x128xf32>
      %1469 = arith.addf %1467, %1468 : vector<8x128xf32>
      %1470 = arith.mulf %1441, %1441 : vector<8x128xf32>
      %1471 = arith.addf %1469, %1470 : vector<8x128xf32>
      %cst_255 = arith.constant 5.000000e-01 : f32
      %1472 = vector.broadcast %cst_255 : f32 to vector<8x128xf32>
      %1473 = arith.mulf %1472, %1446 : vector<8x128xf32>
      %cst_256 = arith.constant 1.500000e+00 : f32
      %1474 = vector.broadcast %cst_256 : f32 to vector<8x128xf32>
      %1475 = arith.subf %1474, %1473 : vector<8x128xf32>
      %cst_257 = arith.constant 5.000000e-01 : f32
      %1476 = vector.broadcast %cst_257 : f32 to vector<8x128xf32>
      %1477 = arith.mulf %1476, %1461 : vector<8x128xf32>
      %cst_258 = arith.constant 1.500000e+00 : f32
      %1478 = vector.broadcast %cst_258 : f32 to vector<8x128xf32>
      %1479 = arith.subf %1478, %1477 : vector<8x128xf32>
      %cst_259 = arith.constant 5.000000e-01 : f32
      %1480 = vector.broadcast %cst_259 : f32 to vector<8x128xf32>
      %1481 = arith.mulf %1480, %1471 : vector<8x128xf32>
      %cst_260 = arith.constant 1.500000e+00 : f32
      %1482 = vector.broadcast %cst_260 : f32 to vector<8x128xf32>
      %1483 = arith.subf %1482, %1481 : vector<8x128xf32>
      %cst_261 = arith.constant -5.000000e-01 : f32
      %1484 = vector.broadcast %cst_261 : f32 to vector<8x128xf32>
      %1485 = arith.mulf %1484, %1451 : vector<8x128xf32>
      %cst_262 = arith.constant -5.000000e-01 : f32
      %1486 = vector.broadcast %cst_262 : f32 to vector<8x128xf32>
      %1487 = arith.mulf %1486, %1456 : vector<8x128xf32>
      %cst_263 = arith.constant -5.000000e-01 : f32
      %1488 = vector.broadcast %cst_263 : f32 to vector<8x128xf32>
      %1489 = arith.mulf %1488, %1466 : vector<8x128xf32>
      %1490 = arith.mulf %1401, %1475 : vector<8x128xf32>
      %1491 = arith.mulf %1406, %1485 : vector<8x128xf32>
      %1492 = arith.addf %1490, %1491 : vector<8x128xf32>
      %1493 = arith.mulf %1411, %1487 : vector<8x128xf32>
      %1494 = arith.addf %1492, %1493 : vector<8x128xf32>
      %1495 = arith.mulf %1401, %1485 : vector<8x128xf32>
      %1496 = arith.mulf %1406, %1479 : vector<8x128xf32>
      %1497 = arith.addf %1495, %1496 : vector<8x128xf32>
      %1498 = arith.mulf %1411, %1489 : vector<8x128xf32>
      %1499 = arith.addf %1497, %1498 : vector<8x128xf32>
      %1500 = arith.mulf %1401, %1487 : vector<8x128xf32>
      %1501 = arith.mulf %1406, %1489 : vector<8x128xf32>
      %1502 = arith.addf %1500, %1501 : vector<8x128xf32>
      %1503 = arith.mulf %1411, %1483 : vector<8x128xf32>
      %1504 = arith.addf %1502, %1503 : vector<8x128xf32>
      %1505 = arith.mulf %1416, %1475 : vector<8x128xf32>
      %1506 = arith.mulf %1421, %1485 : vector<8x128xf32>
      %1507 = arith.addf %1505, %1506 : vector<8x128xf32>
      %1508 = arith.mulf %1426, %1487 : vector<8x128xf32>
      %1509 = arith.addf %1507, %1508 : vector<8x128xf32>
      %1510 = arith.mulf %1416, %1485 : vector<8x128xf32>
      %1511 = arith.mulf %1421, %1479 : vector<8x128xf32>
      %1512 = arith.addf %1510, %1511 : vector<8x128xf32>
      %1513 = arith.mulf %1426, %1489 : vector<8x128xf32>
      %1514 = arith.addf %1512, %1513 : vector<8x128xf32>
      %1515 = arith.mulf %1416, %1487 : vector<8x128xf32>
      %1516 = arith.mulf %1421, %1489 : vector<8x128xf32>
      %1517 = arith.addf %1515, %1516 : vector<8x128xf32>
      %1518 = arith.mulf %1426, %1483 : vector<8x128xf32>
      %1519 = arith.addf %1517, %1518 : vector<8x128xf32>
      %1520 = arith.mulf %1431, %1475 : vector<8x128xf32>
      %1521 = arith.mulf %1436, %1485 : vector<8x128xf32>
      %1522 = arith.addf %1520, %1521 : vector<8x128xf32>
      %1523 = arith.mulf %1441, %1487 : vector<8x128xf32>
      %1524 = arith.addf %1522, %1523 : vector<8x128xf32>
      %1525 = arith.mulf %1431, %1485 : vector<8x128xf32>
      %1526 = arith.mulf %1436, %1479 : vector<8x128xf32>
      %1527 = arith.addf %1525, %1526 : vector<8x128xf32>
      %1528 = arith.mulf %1441, %1489 : vector<8x128xf32>
      %1529 = arith.addf %1527, %1528 : vector<8x128xf32>
      %1530 = arith.mulf %1431, %1487 : vector<8x128xf32>
      %1531 = arith.mulf %1436, %1489 : vector<8x128xf32>
      %1532 = arith.addf %1530, %1531 : vector<8x128xf32>
      %1533 = arith.mulf %1441, %1483 : vector<8x128xf32>
      %1534 = arith.addf %1532, %1533 : vector<8x128xf32>
      %1535 = arith.addf %1494, %1514 : vector<8x128xf32>
      %1536 = arith.addf %1535, %1534 : vector<8x128xf32>
      %cst_264 = arith.constant 5.000000e-01 : f32
      %1537 = vector.broadcast %cst_264 : f32 to vector<8x128xf32>
      %1538 = arith.mulf %1537, %1536 : vector<8x128xf32>
      %cst_265 = arith.constant 5.000000e-01 : f32
      %1539 = vector.broadcast %cst_265 : f32 to vector<8x128xf32>
      %1540 = arith.subf %1538, %1539 : vector<8x128xf32>
      %cst_266 = arith.constant -1.000000e+00 : f32
      %cst_267 = arith.constant 1.000000e+00 : f32
      %1541 = vector.broadcast %cst_266 : f32 to vector<8x128xf32>
      %1542 = arith.maximumf %1541, %1540 : vector<8x128xf32>
      %1543 = vector.broadcast %cst_267 : f32 to vector<8x128xf32>
      %1544 = arith.minimumf %1543, %1542 : vector<8x128xf32>
      %1545 = arith.mulf %1544, %1544 : vector<8x128xf32>
      %cst_268 = arith.constant 1.000000e+00 : f32
      %1546 = vector.broadcast %cst_268 : f32 to vector<8x128xf32>
      %1547 = arith.subf %1546, %1545 : vector<8x128xf32>
      %cst_269 = arith.constant 0.000000e+00 : f32
      %1548 = vector.broadcast %cst_269 : f32 to vector<8x128xf32>
      %1549 = arith.maximumf %1547, %1548 : vector<8x128xf32>
      %1550 = math.sqrt %1549 : vector<8x128xf32>
      %1551 = math.atan2 %1550, %1544 : vector<8x128xf32>
      %cst_270 = arith.constant 9.99999997E-7 : f32
      %1552 = vector.broadcast %cst_270 : f32 to vector<8x128xf32>
      %1553 = arith.cmpf olt, %1551, %1552 : vector<8x128xf32>
      %cst_271 = arith.constant 5.000000e-01 : f32
      %1554 = vector.broadcast %cst_271 : f32 to vector<8x128xf32>
      %1555 = arith.mulf %1554, %1551 : vector<8x128xf32>
      %cst_272 = arith.constant 1.000000e-07 : f32
      %1556 = vector.broadcast %cst_272 : f32 to vector<8x128xf32>
      %1557 = arith.cmpf olt, %1550, %1556 : vector<8x128xf32>
      %cst_273 = arith.constant 1.000000e+00 : f32
      %1558 = vector.broadcast %cst_273 : f32 to vector<8x128xf32>
      %1559 = arith.select %1557, %1558, %1550 : vector<8x128xi1>, vector<8x128xf32>
      %1560 = arith.divf %1555, %1559 : vector<8x128xf32>
      %1561 = arith.subf %1529, %1519 : vector<8x128xf32>
      %1562 = arith.mulf %1560, %1561 : vector<8x128xf32>
      %1563 = arith.select %1553, %1529, %1562 : vector<8x128xi1>, vector<8x128xf32>
      %1564 = arith.subf %1504, %1524 : vector<8x128xf32>
      %1565 = arith.mulf %1560, %1564 : vector<8x128xf32>
      %1566 = arith.select %1553, %1504, %1565 : vector<8x128xi1>, vector<8x128xf32>
      %1567 = arith.subf %1509, %1499 : vector<8x128xf32>
      %1568 = arith.mulf %1560, %1567 : vector<8x128xf32>
      %1569 = arith.select %1553, %1509, %1568 : vector<8x128xi1>, vector<8x128xf32>
      %1570 = math.absf %1563 : vector<8x128xf32>
      %cst_274 = arith.constant 1.000000e+00 : f32
      %1571 = vector.broadcast %cst_274 : f32 to vector<8x128xf32>
      %1572 = arith.cmpf ole, %1570, %1571 : vector<8x128xf32>
      %cst_275 = arith.constant 5.000000e-01 : f32
      %1573 = vector.broadcast %cst_275 : f32 to vector<8x128xf32>
      %1574 = arith.mulf %1573, %1563 : vector<8x128xf32>
      %1575 = arith.mulf %1574, %1563 : vector<8x128xf32>
      %cst_276 = arith.constant 5.000000e-01 : f32
      %1576 = vector.broadcast %cst_276 : f32 to vector<8x128xf32>
      %1577 = arith.subf %1570, %1576 : vector<8x128xf32>
      %1578 = arith.select %1572, %1575, %1577 : vector<8x128xi1>, vector<8x128xf32>
      %1579 = math.absf %1566 : vector<8x128xf32>
      %cst_277 = arith.constant 1.000000e+00 : f32
      %1580 = vector.broadcast %cst_277 : f32 to vector<8x128xf32>
      %1581 = arith.cmpf ole, %1579, %1580 : vector<8x128xf32>
      %cst_278 = arith.constant 5.000000e-01 : f32
      %1582 = vector.broadcast %cst_278 : f32 to vector<8x128xf32>
      %1583 = arith.mulf %1582, %1566 : vector<8x128xf32>
      %1584 = arith.mulf %1583, %1566 : vector<8x128xf32>
      %cst_279 = arith.constant 5.000000e-01 : f32
      %1585 = vector.broadcast %cst_279 : f32 to vector<8x128xf32>
      %1586 = arith.subf %1579, %1585 : vector<8x128xf32>
      %1587 = arith.select %1581, %1584, %1586 : vector<8x128xi1>, vector<8x128xf32>
      %1588 = arith.addf %1578, %1587 : vector<8x128xf32>
      %1589 = math.absf %1569 : vector<8x128xf32>
      %cst_280 = arith.constant 1.000000e+00 : f32
      %1590 = vector.broadcast %cst_280 : f32 to vector<8x128xf32>
      %1591 = arith.cmpf ole, %1589, %1590 : vector<8x128xf32>
      %cst_281 = arith.constant 5.000000e-01 : f32
      %1592 = vector.broadcast %cst_281 : f32 to vector<8x128xf32>
      %1593 = arith.mulf %1592, %1569 : vector<8x128xf32>
      %1594 = arith.mulf %1593, %1569 : vector<8x128xf32>
      %cst_282 = arith.constant 5.000000e-01 : f32
      %1595 = vector.broadcast %cst_282 : f32 to vector<8x128xf32>
      %1596 = arith.subf %1589, %1595 : vector<8x128xf32>
      %1597 = arith.select %1591, %1594, %1596 : vector<8x128xi1>, vector<8x128xf32>
      %1598 = arith.addf %1588, %1597 : vector<8x128xf32>
      %cst_283 = arith.constant dense<0.000000e+00> : vector<128xf32>
      %1599 = vector.multi_reduction <add>, %1598, %cst_283 [0] : vector<8x128xf32> to vector<128xf32>
      %1600 = vector.shape_cast %1599 : vector<128xf32> to vector<1x128xf32>
      %1601 = arith.addf %1237, %1600 : vector<1x128xf32>
      %c0_284 = arith.constant 0 : index
      %c8_285 = arith.constant 8 : index
      %c0_286 = arith.constant 0 : index
      %1602 = vector.load %arg3[%c0_284, %c8_285, %c0_286] : memref<9x32x128xf32, #tpu.memory_space<vmem>>, vector<1x8x128xf32>
      %1603 = vector.shape_cast %1602 : vector<1x8x128xf32> to vector<8x128xf32>
      %c1_287 = arith.constant 1 : index
      %c8_288 = arith.constant 8 : index
      %c0_289 = arith.constant 0 : index
      %1604 = vector.load %arg3[%c1_287, %c8_288, %c0_289] : memref<9x32x128xf32, #tpu.memory_space<vmem>>, vector<1x8x128xf32>
      %1605 = vector.shape_cast %1604 : vector<1x8x128xf32> to vector<8x128xf32>
      %c2_290 = arith.constant 2 : index
      %c8_291 = arith.constant 8 : index
      %c0_292 = arith.constant 0 : index
      %1606 = vector.load %arg3[%c2_290, %c8_291, %c0_292] : memref<9x32x128xf32, #tpu.memory_space<vmem>>, vector<1x8x128xf32>
      %1607 = vector.shape_cast %1606 : vector<1x8x128xf32> to vector<8x128xf32>
      %c3_293 = arith.constant 3 : index
      %c8_294 = arith.constant 8 : index
      %c0_295 = arith.constant 0 : index
      %1608 = vector.load %arg3[%c3_293, %c8_294, %c0_295] : memref<9x32x128xf32, #tpu.memory_space<vmem>>, vector<1x8x128xf32>
      %1609 = vector.shape_cast %1608 : vector<1x8x128xf32> to vector<8x128xf32>
      %c4_296 = arith.constant 4 : index
      %c8_297 = arith.constant 8 : index
      %c0_298 = arith.constant 0 : index
      %1610 = vector.load %arg3[%c4_296, %c8_297, %c0_298] : memref<9x32x128xf32, #tpu.memory_space<vmem>>, vector<1x8x128xf32>
      %1611 = vector.shape_cast %1610 : vector<1x8x128xf32> to vector<8x128xf32>
      %c5_299 = arith.constant 5 : index
      %c8_300 = arith.constant 8 : index
      %c0_301 = arith.constant 0 : index
      %1612 = vector.load %arg3[%c5_299, %c8_300, %c0_301] : memref<9x32x128xf32, #tpu.memory_space<vmem>>, vector<1x8x128xf32>
      %1613 = vector.shape_cast %1612 : vector<1x8x128xf32> to vector<8x128xf32>
      %c6_302 = arith.constant 6 : index
      %c8_303 = arith.constant 8 : index
      %c0_304 = arith.constant 0 : index
      %1614 = vector.load %arg3[%c6_302, %c8_303, %c0_304] : memref<9x32x128xf32, #tpu.memory_space<vmem>>, vector<1x8x128xf32>
      %1615 = vector.shape_cast %1614 : vector<1x8x128xf32> to vector<8x128xf32>
      %c7_305 = arith.constant 7 : index
      %c8_306 = arith.constant 8 : index
      %c0_307 = arith.constant 0 : index
      %1616 = vector.load %arg3[%c7_305, %c8_306, %c0_307] : memref<9x32x128xf32, #tpu.memory_space<vmem>>, vector<1x8x128xf32>
      %1617 = vector.shape_cast %1616 : vector<1x8x128xf32> to vector<8x128xf32>
      %c8_308 = arith.constant 8 : index
      %c8_309 = arith.constant 8 : index
      %c0_310 = arith.constant 0 : index
      %1618 = vector.load %arg3[%c8_308, %c8_309, %c0_310] : memref<9x32x128xf32, #tpu.memory_space<vmem>>, vector<1x8x128xf32>
      %1619 = vector.shape_cast %1618 : vector<1x8x128xf32> to vector<8x128xf32>
      %1620 = arith.mulf %1603, %1603 : vector<8x128xf32>
      %1621 = arith.mulf %1609, %1609 : vector<8x128xf32>
      %1622 = arith.addf %1620, %1621 : vector<8x128xf32>
      %1623 = arith.mulf %1615, %1615 : vector<8x128xf32>
      %1624 = arith.addf %1622, %1623 : vector<8x128xf32>
      %1625 = arith.mulf %1603, %1605 : vector<8x128xf32>
      %1626 = arith.mulf %1609, %1611 : vector<8x128xf32>
      %1627 = arith.addf %1625, %1626 : vector<8x128xf32>
      %1628 = arith.mulf %1615, %1617 : vector<8x128xf32>
      %1629 = arith.addf %1627, %1628 : vector<8x128xf32>
      %1630 = arith.mulf %1603, %1607 : vector<8x128xf32>
      %1631 = arith.mulf %1609, %1613 : vector<8x128xf32>
      %1632 = arith.addf %1630, %1631 : vector<8x128xf32>
      %1633 = arith.mulf %1615, %1619 : vector<8x128xf32>
      %1634 = arith.addf %1632, %1633 : vector<8x128xf32>
      %1635 = arith.mulf %1605, %1605 : vector<8x128xf32>
      %1636 = arith.mulf %1611, %1611 : vector<8x128xf32>
      %1637 = arith.addf %1635, %1636 : vector<8x128xf32>
      %1638 = arith.mulf %1617, %1617 : vector<8x128xf32>
      %1639 = arith.addf %1637, %1638 : vector<8x128xf32>
      %1640 = arith.mulf %1605, %1607 : vector<8x128xf32>
      %1641 = arith.mulf %1611, %1613 : vector<8x128xf32>
      %1642 = arith.addf %1640, %1641 : vector<8x128xf32>
      %1643 = arith.mulf %1617, %1619 : vector<8x128xf32>
      %1644 = arith.addf %1642, %1643 : vector<8x128xf32>
      %1645 = arith.mulf %1607, %1607 : vector<8x128xf32>
      %1646 = arith.mulf %1613, %1613 : vector<8x128xf32>
      %1647 = arith.addf %1645, %1646 : vector<8x128xf32>
      %1648 = arith.mulf %1619, %1619 : vector<8x128xf32>
      %1649 = arith.addf %1647, %1648 : vector<8x128xf32>
      %cst_311 = arith.constant 5.000000e-01 : f32
      %1650 = vector.broadcast %cst_311 : f32 to vector<8x128xf32>
      %1651 = arith.mulf %1650, %1624 : vector<8x128xf32>
      %cst_312 = arith.constant 1.500000e+00 : f32
      %1652 = vector.broadcast %cst_312 : f32 to vector<8x128xf32>
      %1653 = arith.subf %1652, %1651 : vector<8x128xf32>
      %cst_313 = arith.constant 5.000000e-01 : f32
      %1654 = vector.broadcast %cst_313 : f32 to vector<8x128xf32>
      %1655 = arith.mulf %1654, %1639 : vector<8x128xf32>
      %cst_314 = arith.constant 1.500000e+00 : f32
      %1656 = vector.broadcast %cst_314 : f32 to vector<8x128xf32>
      %1657 = arith.subf %1656, %1655 : vector<8x128xf32>
      %cst_315 = arith.constant 5.000000e-01 : f32
      %1658 = vector.broadcast %cst_315 : f32 to vector<8x128xf32>
      %1659 = arith.mulf %1658, %1649 : vector<8x128xf32>
      %cst_316 = arith.constant 1.500000e+00 : f32
      %1660 = vector.broadcast %cst_316 : f32 to vector<8x128xf32>
      %1661 = arith.subf %1660, %1659 : vector<8x128xf32>
      %cst_317 = arith.constant -5.000000e-01 : f32
      %1662 = vector.broadcast %cst_317 : f32 to vector<8x128xf32>
      %1663 = arith.mulf %1662, %1629 : vector<8x128xf32>
      %cst_318 = arith.constant -5.000000e-01 : f32
      %1664 = vector.broadcast %cst_318 : f32 to vector<8x128xf32>
      %1665 = arith.mulf %1664, %1634 : vector<8x128xf32>
      %cst_319 = arith.constant -5.000000e-01 : f32
      %1666 = vector.broadcast %cst_319 : f32 to vector<8x128xf32>
      %1667 = arith.mulf %1666, %1644 : vector<8x128xf32>
      %1668 = arith.mulf %1603, %1653 : vector<8x128xf32>
      %1669 = arith.mulf %1605, %1663 : vector<8x128xf32>
      %1670 = arith.addf %1668, %1669 : vector<8x128xf32>
      %1671 = arith.mulf %1607, %1665 : vector<8x128xf32>
      %1672 = arith.addf %1670, %1671 : vector<8x128xf32>
      %1673 = arith.mulf %1603, %1663 : vector<8x128xf32>
      %1674 = arith.mulf %1605, %1657 : vector<8x128xf32>
      %1675 = arith.addf %1673, %1674 : vector<8x128xf32>
      %1676 = arith.mulf %1607, %1667 : vector<8x128xf32>
      %1677 = arith.addf %1675, %1676 : vector<8x128xf32>
      %1678 = arith.mulf %1603, %1665 : vector<8x128xf32>
      %1679 = arith.mulf %1605, %1667 : vector<8x128xf32>
      %1680 = arith.addf %1678, %1679 : vector<8x128xf32>
      %1681 = arith.mulf %1607, %1661 : vector<8x128xf32>
      %1682 = arith.addf %1680, %1681 : vector<8x128xf32>
      %1683 = arith.mulf %1609, %1653 : vector<8x128xf32>
      %1684 = arith.mulf %1611, %1663 : vector<8x128xf32>
      %1685 = arith.addf %1683, %1684 : vector<8x128xf32>
      %1686 = arith.mulf %1613, %1665 : vector<8x128xf32>
      %1687 = arith.addf %1685, %1686 : vector<8x128xf32>
      %1688 = arith.mulf %1609, %1663 : vector<8x128xf32>
      %1689 = arith.mulf %1611, %1657 : vector<8x128xf32>
      %1690 = arith.addf %1688, %1689 : vector<8x128xf32>
      %1691 = arith.mulf %1613, %1667 : vector<8x128xf32>
      %1692 = arith.addf %1690, %1691 : vector<8x128xf32>
      %1693 = arith.mulf %1609, %1665 : vector<8x128xf32>
      %1694 = arith.mulf %1611, %1667 : vector<8x128xf32>
      %1695 = arith.addf %1693, %1694 : vector<8x128xf32>
      %1696 = arith.mulf %1613, %1661 : vector<8x128xf32>
      %1697 = arith.addf %1695, %1696 : vector<8x128xf32>
      %1698 = arith.mulf %1615, %1653 : vector<8x128xf32>
      %1699 = arith.mulf %1617, %1663 : vector<8x128xf32>
      %1700 = arith.addf %1698, %1699 : vector<8x128xf32>
      %1701 = arith.mulf %1619, %1665 : vector<8x128xf32>
      %1702 = arith.addf %1700, %1701 : vector<8x128xf32>
      %1703 = arith.mulf %1615, %1663 : vector<8x128xf32>
      %1704 = arith.mulf %1617, %1657 : vector<8x128xf32>
      %1705 = arith.addf %1703, %1704 : vector<8x128xf32>
      %1706 = arith.mulf %1619, %1667 : vector<8x128xf32>
      %1707 = arith.addf %1705, %1706 : vector<8x128xf32>
      %1708 = arith.mulf %1615, %1665 : vector<8x128xf32>
      %1709 = arith.mulf %1617, %1667 : vector<8x128xf32>
      %1710 = arith.addf %1708, %1709 : vector<8x128xf32>
      %1711 = arith.mulf %1619, %1661 : vector<8x128xf32>
      %1712 = arith.addf %1710, %1711 : vector<8x128xf32>
      %1713 = arith.mulf %1672, %1672 : vector<8x128xf32>
      %1714 = arith.mulf %1687, %1687 : vector<8x128xf32>
      %1715 = arith.addf %1713, %1714 : vector<8x128xf32>
      %1716 = arith.mulf %1702, %1702 : vector<8x128xf32>
      %1717 = arith.addf %1715, %1716 : vector<8x128xf32>
      %1718 = arith.mulf %1672, %1677 : vector<8x128xf32>
      %1719 = arith.mulf %1687, %1692 : vector<8x128xf32>
      %1720 = arith.addf %1718, %1719 : vector<8x128xf32>
      %1721 = arith.mulf %1702, %1707 : vector<8x128xf32>
      %1722 = arith.addf %1720, %1721 : vector<8x128xf32>
      %1723 = arith.mulf %1672, %1682 : vector<8x128xf32>
      %1724 = arith.mulf %1687, %1697 : vector<8x128xf32>
      %1725 = arith.addf %1723, %1724 : vector<8x128xf32>
      %1726 = arith.mulf %1702, %1712 : vector<8x128xf32>
      %1727 = arith.addf %1725, %1726 : vector<8x128xf32>
      %1728 = arith.mulf %1677, %1677 : vector<8x128xf32>
      %1729 = arith.mulf %1692, %1692 : vector<8x128xf32>
      %1730 = arith.addf %1728, %1729 : vector<8x128xf32>
      %1731 = arith.mulf %1707, %1707 : vector<8x128xf32>
      %1732 = arith.addf %1730, %1731 : vector<8x128xf32>
      %1733 = arith.mulf %1677, %1682 : vector<8x128xf32>
      %1734 = arith.mulf %1692, %1697 : vector<8x128xf32>
      %1735 = arith.addf %1733, %1734 : vector<8x128xf32>
      %1736 = arith.mulf %1707, %1712 : vector<8x128xf32>
      %1737 = arith.addf %1735, %1736 : vector<8x128xf32>
      %1738 = arith.mulf %1682, %1682 : vector<8x128xf32>
      %1739 = arith.mulf %1697, %1697 : vector<8x128xf32>
      %1740 = arith.addf %1738, %1739 : vector<8x128xf32>
      %1741 = arith.mulf %1712, %1712 : vector<8x128xf32>
      %1742 = arith.addf %1740, %1741 : vector<8x128xf32>
      %cst_320 = arith.constant 5.000000e-01 : f32
      %1743 = vector.broadcast %cst_320 : f32 to vector<8x128xf32>
      %1744 = arith.mulf %1743, %1717 : vector<8x128xf32>
      %cst_321 = arith.constant 1.500000e+00 : f32
      %1745 = vector.broadcast %cst_321 : f32 to vector<8x128xf32>
      %1746 = arith.subf %1745, %1744 : vector<8x128xf32>
      %cst_322 = arith.constant 5.000000e-01 : f32
      %1747 = vector.broadcast %cst_322 : f32 to vector<8x128xf32>
      %1748 = arith.mulf %1747, %1732 : vector<8x128xf32>
      %cst_323 = arith.constant 1.500000e+00 : f32
      %1749 = vector.broadcast %cst_323 : f32 to vector<8x128xf32>
      %1750 = arith.subf %1749, %1748 : vector<8x128xf32>
      %cst_324 = arith.constant 5.000000e-01 : f32
      %1751 = vector.broadcast %cst_324 : f32 to vector<8x128xf32>
      %1752 = arith.mulf %1751, %1742 : vector<8x128xf32>
      %cst_325 = arith.constant 1.500000e+00 : f32
      %1753 = vector.broadcast %cst_325 : f32 to vector<8x128xf32>
      %1754 = arith.subf %1753, %1752 : vector<8x128xf32>
      %cst_326 = arith.constant -5.000000e-01 : f32
      %1755 = vector.broadcast %cst_326 : f32 to vector<8x128xf32>
      %1756 = arith.mulf %1755, %1722 : vector<8x128xf32>
      %cst_327 = arith.constant -5.000000e-01 : f32
      %1757 = vector.broadcast %cst_327 : f32 to vector<8x128xf32>
      %1758 = arith.mulf %1757, %1727 : vector<8x128xf32>
      %cst_328 = arith.constant -5.000000e-01 : f32
      %1759 = vector.broadcast %cst_328 : f32 to vector<8x128xf32>
      %1760 = arith.mulf %1759, %1737 : vector<8x128xf32>
      %1761 = arith.mulf %1672, %1746 : vector<8x128xf32>
      %1762 = arith.mulf %1677, %1756 : vector<8x128xf32>
      %1763 = arith.addf %1761, %1762 : vector<8x128xf32>
      %1764 = arith.mulf %1682, %1758 : vector<8x128xf32>
      %1765 = arith.addf %1763, %1764 : vector<8x128xf32>
      %1766 = arith.mulf %1672, %1756 : vector<8x128xf32>
      %1767 = arith.mulf %1677, %1750 : vector<8x128xf32>
      %1768 = arith.addf %1766, %1767 : vector<8x128xf32>
      %1769 = arith.mulf %1682, %1760 : vector<8x128xf32>
      %1770 = arith.addf %1768, %1769 : vector<8x128xf32>
      %1771 = arith.mulf %1672, %1758 : vector<8x128xf32>
      %1772 = arith.mulf %1677, %1760 : vector<8x128xf32>
      %1773 = arith.addf %1771, %1772 : vector<8x128xf32>
      %1774 = arith.mulf %1682, %1754 : vector<8x128xf32>
      %1775 = arith.addf %1773, %1774 : vector<8x128xf32>
      %1776 = arith.mulf %1687, %1746 : vector<8x128xf32>
      %1777 = arith.mulf %1692, %1756 : vector<8x128xf32>
      %1778 = arith.addf %1776, %1777 : vector<8x128xf32>
      %1779 = arith.mulf %1697, %1758 : vector<8x128xf32>
      %1780 = arith.addf %1778, %1779 : vector<8x128xf32>
      %1781 = arith.mulf %1687, %1756 : vector<8x128xf32>
      %1782 = arith.mulf %1692, %1750 : vector<8x128xf32>
      %1783 = arith.addf %1781, %1782 : vector<8x128xf32>
      %1784 = arith.mulf %1697, %1760 : vector<8x128xf32>
      %1785 = arith.addf %1783, %1784 : vector<8x128xf32>
      %1786 = arith.mulf %1687, %1758 : vector<8x128xf32>
      %1787 = arith.mulf %1692, %1760 : vector<8x128xf32>
      %1788 = arith.addf %1786, %1787 : vector<8x128xf32>
      %1789 = arith.mulf %1697, %1754 : vector<8x128xf32>
      %1790 = arith.addf %1788, %1789 : vector<8x128xf32>
      %1791 = arith.mulf %1702, %1746 : vector<8x128xf32>
      %1792 = arith.mulf %1707, %1756 : vector<8x128xf32>
      %1793 = arith.addf %1791, %1792 : vector<8x128xf32>
      %1794 = arith.mulf %1712, %1758 : vector<8x128xf32>
      %1795 = arith.addf %1793, %1794 : vector<8x128xf32>
      %1796 = arith.mulf %1702, %1756 : vector<8x128xf32>
      %1797 = arith.mulf %1707, %1750 : vector<8x128xf32>
      %1798 = arith.addf %1796, %1797 : vector<8x128xf32>
      %1799 = arith.mulf %1712, %1760 : vector<8x128xf32>
      %1800 = arith.addf %1798, %1799 : vector<8x128xf32>
      %1801 = arith.mulf %1702, %1758 : vector<8x128xf32>
      %1802 = arith.mulf %1707, %1760 : vector<8x128xf32>
      %1803 = arith.addf %1801, %1802 : vector<8x128xf32>
      %1804 = arith.mulf %1712, %1754 : vector<8x128xf32>
      %1805 = arith.addf %1803, %1804 : vector<8x128xf32>
      %1806 = arith.mulf %1765, %1765 : vector<8x128xf32>
      %1807 = arith.mulf %1780, %1780 : vector<8x128xf32>
      %1808 = arith.addf %1806, %1807 : vector<8x128xf32>
      %1809 = arith.mulf %1795, %1795 : vector<8x128xf32>
      %1810 = arith.addf %1808, %1809 : vector<8x128xf32>
      %1811 = arith.mulf %1765, %1770 : vector<8x128xf32>
      %1812 = arith.mulf %1780, %1785 : vector<8x128xf32>
      %1813 = arith.addf %1811, %1812 : vector<8x128xf32>
      %1814 = arith.mulf %1795, %1800 : vector<8x128xf32>
      %1815 = arith.addf %1813, %1814 : vector<8x128xf32>
      %1816 = arith.mulf %1765, %1775 : vector<8x128xf32>
      %1817 = arith.mulf %1780, %1790 : vector<8x128xf32>
      %1818 = arith.addf %1816, %1817 : vector<8x128xf32>
      %1819 = arith.mulf %1795, %1805 : vector<8x128xf32>
      %1820 = arith.addf %1818, %1819 : vector<8x128xf32>
      %1821 = arith.mulf %1770, %1770 : vector<8x128xf32>
      %1822 = arith.mulf %1785, %1785 : vector<8x128xf32>
      %1823 = arith.addf %1821, %1822 : vector<8x128xf32>
      %1824 = arith.mulf %1800, %1800 : vector<8x128xf32>
      %1825 = arith.addf %1823, %1824 : vector<8x128xf32>
      %1826 = arith.mulf %1770, %1775 : vector<8x128xf32>
      %1827 = arith.mulf %1785, %1790 : vector<8x128xf32>
      %1828 = arith.addf %1826, %1827 : vector<8x128xf32>
      %1829 = arith.mulf %1800, %1805 : vector<8x128xf32>
      %1830 = arith.addf %1828, %1829 : vector<8x128xf32>
      %1831 = arith.mulf %1775, %1775 : vector<8x128xf32>
      %1832 = arith.mulf %1790, %1790 : vector<8x128xf32>
      %1833 = arith.addf %1831, %1832 : vector<8x128xf32>
      %1834 = arith.mulf %1805, %1805 : vector<8x128xf32>
      %1835 = arith.addf %1833, %1834 : vector<8x128xf32>
      %cst_329 = arith.constant 5.000000e-01 : f32
      %1836 = vector.broadcast %cst_329 : f32 to vector<8x128xf32>
      %1837 = arith.mulf %1836, %1810 : vector<8x128xf32>
      %cst_330 = arith.constant 1.500000e+00 : f32
      %1838 = vector.broadcast %cst_330 : f32 to vector<8x128xf32>
      %1839 = arith.subf %1838, %1837 : vector<8x128xf32>
      %cst_331 = arith.constant 5.000000e-01 : f32
      %1840 = vector.broadcast %cst_331 : f32 to vector<8x128xf32>
      %1841 = arith.mulf %1840, %1825 : vector<8x128xf32>
      %cst_332 = arith.constant 1.500000e+00 : f32
      %1842 = vector.broadcast %cst_332 : f32 to vector<8x128xf32>
      %1843 = arith.subf %1842, %1841 : vector<8x128xf32>
      %cst_333 = arith.constant 5.000000e-01 : f32
      %1844 = vector.broadcast %cst_333 : f32 to vector<8x128xf32>
      %1845 = arith.mulf %1844, %1835 : vector<8x128xf32>
      %cst_334 = arith.constant 1.500000e+00 : f32
      %1846 = vector.broadcast %cst_334 : f32 to vector<8x128xf32>
      %1847 = arith.subf %1846, %1845 : vector<8x128xf32>
      %cst_335 = arith.constant -5.000000e-01 : f32
      %1848 = vector.broadcast %cst_335 : f32 to vector<8x128xf32>
      %1849 = arith.mulf %1848, %1815 : vector<8x128xf32>
      %cst_336 = arith.constant -5.000000e-01 : f32
      %1850 = vector.broadcast %cst_336 : f32 to vector<8x128xf32>
      %1851 = arith.mulf %1850, %1820 : vector<8x128xf32>
      %cst_337 = arith.constant -5.000000e-01 : f32
      %1852 = vector.broadcast %cst_337 : f32 to vector<8x128xf32>
      %1853 = arith.mulf %1852, %1830 : vector<8x128xf32>
      %1854 = arith.mulf %1765, %1839 : vector<8x128xf32>
      %1855 = arith.mulf %1770, %1849 : vector<8x128xf32>
      %1856 = arith.addf %1854, %1855 : vector<8x128xf32>
      %1857 = arith.mulf %1775, %1851 : vector<8x128xf32>
      %1858 = arith.addf %1856, %1857 : vector<8x128xf32>
      %1859 = arith.mulf %1765, %1849 : vector<8x128xf32>
      %1860 = arith.mulf %1770, %1843 : vector<8x128xf32>
      %1861 = arith.addf %1859, %1860 : vector<8x128xf32>
      %1862 = arith.mulf %1775, %1853 : vector<8x128xf32>
      %1863 = arith.addf %1861, %1862 : vector<8x128xf32>
      %1864 = arith.mulf %1765, %1851 : vector<8x128xf32>
      %1865 = arith.mulf %1770, %1853 : vector<8x128xf32>
      %1866 = arith.addf %1864, %1865 : vector<8x128xf32>
      %1867 = arith.mulf %1775, %1847 : vector<8x128xf32>
      %1868 = arith.addf %1866, %1867 : vector<8x128xf32>
      %1869 = arith.mulf %1780, %1839 : vector<8x128xf32>
      %1870 = arith.mulf %1785, %1849 : vector<8x128xf32>
      %1871 = arith.addf %1869, %1870 : vector<8x128xf32>
      %1872 = arith.mulf %1790, %1851 : vector<8x128xf32>
      %1873 = arith.addf %1871, %1872 : vector<8x128xf32>
      %1874 = arith.mulf %1780, %1849 : vector<8x128xf32>
      %1875 = arith.mulf %1785, %1843 : vector<8x128xf32>
      %1876 = arith.addf %1874, %1875 : vector<8x128xf32>
      %1877 = arith.mulf %1790, %1853 : vector<8x128xf32>
      %1878 = arith.addf %1876, %1877 : vector<8x128xf32>
      %1879 = arith.mulf %1780, %1851 : vector<8x128xf32>
      %1880 = arith.mulf %1785, %1853 : vector<8x128xf32>
      %1881 = arith.addf %1879, %1880 : vector<8x128xf32>
      %1882 = arith.mulf %1790, %1847 : vector<8x128xf32>
      %1883 = arith.addf %1881, %1882 : vector<8x128xf32>
      %1884 = arith.mulf %1795, %1839 : vector<8x128xf32>
      %1885 = arith.mulf %1800, %1849 : vector<8x128xf32>
      %1886 = arith.addf %1884, %1885 : vector<8x128xf32>
      %1887 = arith.mulf %1805, %1851 : vector<8x128xf32>
      %1888 = arith.addf %1886, %1887 : vector<8x128xf32>
      %1889 = arith.mulf %1795, %1849 : vector<8x128xf32>
      %1890 = arith.mulf %1800, %1843 : vector<8x128xf32>
      %1891 = arith.addf %1889, %1890 : vector<8x128xf32>
      %1892 = arith.mulf %1805, %1853 : vector<8x128xf32>
      %1893 = arith.addf %1891, %1892 : vector<8x128xf32>
      %1894 = arith.mulf %1795, %1851 : vector<8x128xf32>
      %1895 = arith.mulf %1800, %1853 : vector<8x128xf32>
      %1896 = arith.addf %1894, %1895 : vector<8x128xf32>
      %1897 = arith.mulf %1805, %1847 : vector<8x128xf32>
      %1898 = arith.addf %1896, %1897 : vector<8x128xf32>
      %1899 = arith.addf %1858, %1878 : vector<8x128xf32>
      %1900 = arith.addf %1899, %1898 : vector<8x128xf32>
      %cst_338 = arith.constant 5.000000e-01 : f32
      %1901 = vector.broadcast %cst_338 : f32 to vector<8x128xf32>
      %1902 = arith.mulf %1901, %1900 : vector<8x128xf32>
      %cst_339 = arith.constant 5.000000e-01 : f32
      %1903 = vector.broadcast %cst_339 : f32 to vector<8x128xf32>
      %1904 = arith.subf %1902, %1903 : vector<8x128xf32>
      %cst_340 = arith.constant -1.000000e+00 : f32
      %cst_341 = arith.constant 1.000000e+00 : f32
      %1905 = vector.broadcast %cst_340 : f32 to vector<8x128xf32>
      %1906 = arith.maximumf %1905, %1904 : vector<8x128xf32>
      %1907 = vector.broadcast %cst_341 : f32 to vector<8x128xf32>
      %1908 = arith.minimumf %1907, %1906 : vector<8x128xf32>
      %1909 = arith.mulf %1908, %1908 : vector<8x128xf32>
      %cst_342 = arith.constant 1.000000e+00 : f32
      %1910 = vector.broadcast %cst_342 : f32 to vector<8x128xf32>
      %1911 = arith.subf %1910, %1909 : vector<8x128xf32>
      %cst_343 = arith.constant 0.000000e+00 : f32
      %1912 = vector.broadcast %cst_343 : f32 to vector<8x128xf32>
      %1913 = arith.maximumf %1911, %1912 : vector<8x128xf32>
      %1914 = math.sqrt %1913 : vector<8x128xf32>
      %1915 = math.atan2 %1914, %1908 : vector<8x128xf32>
      %cst_344 = arith.constant 9.99999997E-7 : f32
      %1916 = vector.broadcast %cst_344 : f32 to vector<8x128xf32>
      %1917 = arith.cmpf olt, %1915, %1916 : vector<8x128xf32>
      %cst_345 = arith.constant 5.000000e-01 : f32
      %1918 = vector.broadcast %cst_345 : f32 to vector<8x128xf32>
      %1919 = arith.mulf %1918, %1915 : vector<8x128xf32>
      %cst_346 = arith.constant 1.000000e-07 : f32
      %1920 = vector.broadcast %cst_346 : f32 to vector<8x128xf32>
      %1921 = arith.cmpf olt, %1914, %1920 : vector<8x128xf32>
      %cst_347 = arith.constant 1.000000e+00 : f32
      %1922 = vector.broadcast %cst_347 : f32 to vector<8x128xf32>
      %1923 = arith.select %1921, %1922, %1914 : vector<8x128xi1>, vector<8x128xf32>
      %1924 = arith.divf %1919, %1923 : vector<8x128xf32>
      %1925 = arith.subf %1893, %1883 : vector<8x128xf32>
      %1926 = arith.mulf %1924, %1925 : vector<8x128xf32>
      %1927 = arith.select %1917, %1893, %1926 : vector<8x128xi1>, vector<8x128xf32>
      %1928 = arith.subf %1868, %1888 : vector<8x128xf32>
      %1929 = arith.mulf %1924, %1928 : vector<8x128xf32>
      %1930 = arith.select %1917, %1868, %1929 : vector<8x128xi1>, vector<8x128xf32>
      %1931 = arith.subf %1873, %1863 : vector<8x128xf32>
      %1932 = arith.mulf %1924, %1931 : vector<8x128xf32>
      %1933 = arith.select %1917, %1873, %1932 : vector<8x128xi1>, vector<8x128xf32>
      %1934 = math.absf %1927 : vector<8x128xf32>
      %cst_348 = arith.constant 1.000000e+00 : f32
      %1935 = vector.broadcast %cst_348 : f32 to vector<8x128xf32>
      %1936 = arith.cmpf ole, %1934, %1935 : vector<8x128xf32>
      %cst_349 = arith.constant 5.000000e-01 : f32
      %1937 = vector.broadcast %cst_349 : f32 to vector<8x128xf32>
      %1938 = arith.mulf %1937, %1927 : vector<8x128xf32>
      %1939 = arith.mulf %1938, %1927 : vector<8x128xf32>
      %cst_350 = arith.constant 5.000000e-01 : f32
      %1940 = vector.broadcast %cst_350 : f32 to vector<8x128xf32>
      %1941 = arith.subf %1934, %1940 : vector<8x128xf32>
      %1942 = arith.select %1936, %1939, %1941 : vector<8x128xi1>, vector<8x128xf32>
      %1943 = math.absf %1930 : vector<8x128xf32>
      %cst_351 = arith.constant 1.000000e+00 : f32
      %1944 = vector.broadcast %cst_351 : f32 to vector<8x128xf32>
      %1945 = arith.cmpf ole, %1943, %1944 : vector<8x128xf32>
      %cst_352 = arith.constant 5.000000e-01 : f32
      %1946 = vector.broadcast %cst_352 : f32 to vector<8x128xf32>
      %1947 = arith.mulf %1946, %1930 : vector<8x128xf32>
      %1948 = arith.mulf %1947, %1930 : vector<8x128xf32>
      %cst_353 = arith.constant 5.000000e-01 : f32
      %1949 = vector.broadcast %cst_353 : f32 to vector<8x128xf32>
      %1950 = arith.subf %1943, %1949 : vector<8x128xf32>
      %1951 = arith.select %1945, %1948, %1950 : vector<8x128xi1>, vector<8x128xf32>
      %1952 = arith.addf %1942, %1951 : vector<8x128xf32>
      %1953 = math.absf %1933 : vector<8x128xf32>
      %cst_354 = arith.constant 1.000000e+00 : f32
      %1954 = vector.broadcast %cst_354 : f32 to vector<8x128xf32>
      %1955 = arith.cmpf ole, %1953, %1954 : vector<8x128xf32>
      %cst_355 = arith.constant 5.000000e-01 : f32
      %1956 = vector.broadcast %cst_355 : f32 to vector<8x128xf32>
      %1957 = arith.mulf %1956, %1933 : vector<8x128xf32>
      %1958 = arith.mulf %1957, %1933 : vector<8x128xf32>
      %cst_356 = arith.constant 5.000000e-01 : f32
      %1959 = vector.broadcast %cst_356 : f32 to vector<8x128xf32>
      %1960 = arith.subf %1953, %1959 : vector<8x128xf32>
      %1961 = arith.select %1955, %1958, %1960 : vector<8x128xi1>, vector<8x128xf32>
      %1962 = arith.addf %1952, %1961 : vector<8x128xf32>
      %cst_357 = arith.constant dense<0.000000e+00> : vector<128xf32>
      %1963 = vector.multi_reduction <add>, %1962, %cst_357 [0] : vector<8x128xf32> to vector<128xf32>
      %1964 = vector.shape_cast %1963 : vector<128xf32> to vector<1x128xf32>
      %1965 = arith.addf %1601, %1964 : vector<1x128xf32>
      %c0_358 = arith.constant 0 : index
      %c16_359 = arith.constant 16 : index
      %c0_360 = arith.constant 0 : index
      %1966 = vector.load %arg3[%c0_358, %c16_359, %c0_360] : memref<9x32x128xf32, #tpu.memory_space<vmem>>, vector<1x8x128xf32>
      %1967 = vector.shape_cast %1966 : vector<1x8x128xf32> to vector<8x128xf32>
      %c1_361 = arith.constant 1 : index
      %c16_362 = arith.constant 16 : index
      %c0_363 = arith.constant 0 : index
      %1968 = vector.load %arg3[%c1_361, %c16_362, %c0_363] : memref<9x32x128xf32, #tpu.memory_space<vmem>>, vector<1x8x128xf32>
      %1969 = vector.shape_cast %1968 : vector<1x8x128xf32> to vector<8x128xf32>
      %c2_364 = arith.constant 2 : index
      %c16_365 = arith.constant 16 : index
      %c0_366 = arith.constant 0 : index
      %1970 = vector.load %arg3[%c2_364, %c16_365, %c0_366] : memref<9x32x128xf32, #tpu.memory_space<vmem>>, vector<1x8x128xf32>
      %1971 = vector.shape_cast %1970 : vector<1x8x128xf32> to vector<8x128xf32>
      %c3_367 = arith.constant 3 : index
      %c16_368 = arith.constant 16 : index
      %c0_369 = arith.constant 0 : index
      %1972 = vector.load %arg3[%c3_367, %c16_368, %c0_369] : memref<9x32x128xf32, #tpu.memory_space<vmem>>, vector<1x8x128xf32>
      %1973 = vector.shape_cast %1972 : vector<1x8x128xf32> to vector<8x128xf32>
      %c4_370 = arith.constant 4 : index
      %c16_371 = arith.constant 16 : index
      %c0_372 = arith.constant 0 : index
      %1974 = vector.load %arg3[%c4_370, %c16_371, %c0_372] : memref<9x32x128xf32, #tpu.memory_space<vmem>>, vector<1x8x128xf32>
      %1975 = vector.shape_cast %1974 : vector<1x8x128xf32> to vector<8x128xf32>
      %c5_373 = arith.constant 5 : index
      %c16_374 = arith.constant 16 : index
      %c0_375 = arith.constant 0 : index
      %1976 = vector.load %arg3[%c5_373, %c16_374, %c0_375] : memref<9x32x128xf32, #tpu.memory_space<vmem>>, vector<1x8x128xf32>
      %1977 = vector.shape_cast %1976 : vector<1x8x128xf32> to vector<8x128xf32>
      %c6_376 = arith.constant 6 : index
      %c16_377 = arith.constant 16 : index
      %c0_378 = arith.constant 0 : index
      %1978 = vector.load %arg3[%c6_376, %c16_377, %c0_378] : memref<9x32x128xf32, #tpu.memory_space<vmem>>, vector<1x8x128xf32>
      %1979 = vector.shape_cast %1978 : vector<1x8x128xf32> to vector<8x128xf32>
      %c7_379 = arith.constant 7 : index
      %c16_380 = arith.constant 16 : index
      %c0_381 = arith.constant 0 : index
      %1980 = vector.load %arg3[%c7_379, %c16_380, %c0_381] : memref<9x32x128xf32, #tpu.memory_space<vmem>>, vector<1x8x128xf32>
      %1981 = vector.shape_cast %1980 : vector<1x8x128xf32> to vector<8x128xf32>
      %c8_382 = arith.constant 8 : index
      %c16_383 = arith.constant 16 : index
      %c0_384 = arith.constant 0 : index
      %1982 = vector.load %arg3[%c8_382, %c16_383, %c0_384] : memref<9x32x128xf32, #tpu.memory_space<vmem>>, vector<1x8x128xf32>
      %1983 = vector.shape_cast %1982 : vector<1x8x128xf32> to vector<8x128xf32>
      %1984 = arith.mulf %1967, %1967 : vector<8x128xf32>
      %1985 = arith.mulf %1973, %1973 : vector<8x128xf32>
      %1986 = arith.addf %1984, %1985 : vector<8x128xf32>
      %1987 = arith.mulf %1979, %1979 : vector<8x128xf32>
      %1988 = arith.addf %1986, %1987 : vector<8x128xf32>
      %1989 = arith.mulf %1967, %1969 : vector<8x128xf32>
      %1990 = arith.mulf %1973, %1975 : vector<8x128xf32>
      %1991 = arith.addf %1989, %1990 : vector<8x128xf32>
      %1992 = arith.mulf %1979, %1981 : vector<8x128xf32>
      %1993 = arith.addf %1991, %1992 : vector<8x128xf32>
      %1994 = arith.mulf %1967, %1971 : vector<8x128xf32>
      %1995 = arith.mulf %1973, %1977 : vector<8x128xf32>
      %1996 = arith.addf %1994, %1995 : vector<8x128xf32>
      %1997 = arith.mulf %1979, %1983 : vector<8x128xf32>
      %1998 = arith.addf %1996, %1997 : vector<8x128xf32>
      %1999 = arith.mulf %1969, %1969 : vector<8x128xf32>
      %2000 = arith.mulf %1975, %1975 : vector<8x128xf32>
      %2001 = arith.addf %1999, %2000 : vector<8x128xf32>
      %2002 = arith.mulf %1981, %1981 : vector<8x128xf32>
      %2003 = arith.addf %2001, %2002 : vector<8x128xf32>
      %2004 = arith.mulf %1969, %1971 : vector<8x128xf32>
      %2005 = arith.mulf %1975, %1977 : vector<8x128xf32>
      %2006 = arith.addf %2004, %2005 : vector<8x128xf32>
      %2007 = arith.mulf %1981, %1983 : vector<8x128xf32>
      %2008 = arith.addf %2006, %2007 : vector<8x128xf32>
      %2009 = arith.mulf %1971, %1971 : vector<8x128xf32>
      %2010 = arith.mulf %1977, %1977 : vector<8x128xf32>
      %2011 = arith.addf %2009, %2010 : vector<8x128xf32>
      %2012 = arith.mulf %1983, %1983 : vector<8x128xf32>
      %2013 = arith.addf %2011, %2012 : vector<8x128xf32>
      %cst_385 = arith.constant 5.000000e-01 : f32
      %2014 = vector.broadcast %cst_385 : f32 to vector<8x128xf32>
      %2015 = arith.mulf %2014, %1988 : vector<8x128xf32>
      %cst_386 = arith.constant 1.500000e+00 : f32
      %2016 = vector.broadcast %cst_386 : f32 to vector<8x128xf32>
      %2017 = arith.subf %2016, %2015 : vector<8x128xf32>
      %cst_387 = arith.constant 5.000000e-01 : f32
      %2018 = vector.broadcast %cst_387 : f32 to vector<8x128xf32>
      %2019 = arith.mulf %2018, %2003 : vector<8x128xf32>
      %cst_388 = arith.constant 1.500000e+00 : f32
      %2020 = vector.broadcast %cst_388 : f32 to vector<8x128xf32>
      %2021 = arith.subf %2020, %2019 : vector<8x128xf32>
      %cst_389 = arith.constant 5.000000e-01 : f32
      %2022 = vector.broadcast %cst_389 : f32 to vector<8x128xf32>
      %2023 = arith.mulf %2022, %2013 : vector<8x128xf32>
      %cst_390 = arith.constant 1.500000e+00 : f32
      %2024 = vector.broadcast %cst_390 : f32 to vector<8x128xf32>
      %2025 = arith.subf %2024, %2023 : vector<8x128xf32>
      %cst_391 = arith.constant -5.000000e-01 : f32
      %2026 = vector.broadcast %cst_391 : f32 to vector<8x128xf32>
      %2027 = arith.mulf %2026, %1993 : vector<8x128xf32>
      %cst_392 = arith.constant -5.000000e-01 : f32
      %2028 = vector.broadcast %cst_392 : f32 to vector<8x128xf32>
      %2029 = arith.mulf %2028, %1998 : vector<8x128xf32>
      %cst_393 = arith.constant -5.000000e-01 : f32
      %2030 = vector.broadcast %cst_393 : f32 to vector<8x128xf32>
      %2031 = arith.mulf %2030, %2008 : vector<8x128xf32>
      %2032 = arith.mulf %1967, %2017 : vector<8x128xf32>
      %2033 = arith.mulf %1969, %2027 : vector<8x128xf32>
      %2034 = arith.addf %2032, %2033 : vector<8x128xf32>
      %2035 = arith.mulf %1971, %2029 : vector<8x128xf32>
      %2036 = arith.addf %2034, %2035 : vector<8x128xf32>
      %2037 = arith.mulf %1967, %2027 : vector<8x128xf32>
      %2038 = arith.mulf %1969, %2021 : vector<8x128xf32>
      %2039 = arith.addf %2037, %2038 : vector<8x128xf32>
      %2040 = arith.mulf %1971, %2031 : vector<8x128xf32>
      %2041 = arith.addf %2039, %2040 : vector<8x128xf32>
      %2042 = arith.mulf %1967, %2029 : vector<8x128xf32>
      %2043 = arith.mulf %1969, %2031 : vector<8x128xf32>
      %2044 = arith.addf %2042, %2043 : vector<8x128xf32>
      %2045 = arith.mulf %1971, %2025 : vector<8x128xf32>
      %2046 = arith.addf %2044, %2045 : vector<8x128xf32>
      %2047 = arith.mulf %1973, %2017 : vector<8x128xf32>
      %2048 = arith.mulf %1975, %2027 : vector<8x128xf32>
      %2049 = arith.addf %2047, %2048 : vector<8x128xf32>
      %2050 = arith.mulf %1977, %2029 : vector<8x128xf32>
      %2051 = arith.addf %2049, %2050 : vector<8x128xf32>
      %2052 = arith.mulf %1973, %2027 : vector<8x128xf32>
      %2053 = arith.mulf %1975, %2021 : vector<8x128xf32>
      %2054 = arith.addf %2052, %2053 : vector<8x128xf32>
      %2055 = arith.mulf %1977, %2031 : vector<8x128xf32>
      %2056 = arith.addf %2054, %2055 : vector<8x128xf32>
      %2057 = arith.mulf %1973, %2029 : vector<8x128xf32>
      %2058 = arith.mulf %1975, %2031 : vector<8x128xf32>
      %2059 = arith.addf %2057, %2058 : vector<8x128xf32>
      %2060 = arith.mulf %1977, %2025 : vector<8x128xf32>
      %2061 = arith.addf %2059, %2060 : vector<8x128xf32>
      %2062 = arith.mulf %1979, %2017 : vector<8x128xf32>
      %2063 = arith.mulf %1981, %2027 : vector<8x128xf32>
      %2064 = arith.addf %2062, %2063 : vector<8x128xf32>
      %2065 = arith.mulf %1983, %2029 : vector<8x128xf32>
      %2066 = arith.addf %2064, %2065 : vector<8x128xf32>
      %2067 = arith.mulf %1979, %2027 : vector<8x128xf32>
      %2068 = arith.mulf %1981, %2021 : vector<8x128xf32>
      %2069 = arith.addf %2067, %2068 : vector<8x128xf32>
      %2070 = arith.mulf %1983, %2031 : vector<8x128xf32>
      %2071 = arith.addf %2069, %2070 : vector<8x128xf32>
      %2072 = arith.mulf %1979, %2029 : vector<8x128xf32>
      %2073 = arith.mulf %1981, %2031 : vector<8x128xf32>
      %2074 = arith.addf %2072, %2073 : vector<8x128xf32>
      %2075 = arith.mulf %1983, %2025 : vector<8x128xf32>
      %2076 = arith.addf %2074, %2075 : vector<8x128xf32>
      %2077 = arith.mulf %2036, %2036 : vector<8x128xf32>
      %2078 = arith.mulf %2051, %2051 : vector<8x128xf32>
      %2079 = arith.addf %2077, %2078 : vector<8x128xf32>
      %2080 = arith.mulf %2066, %2066 : vector<8x128xf32>
      %2081 = arith.addf %2079, %2080 : vector<8x128xf32>
      %2082 = arith.mulf %2036, %2041 : vector<8x128xf32>
      %2083 = arith.mulf %2051, %2056 : vector<8x128xf32>
      %2084 = arith.addf %2082, %2083 : vector<8x128xf32>
      %2085 = arith.mulf %2066, %2071 : vector<8x128xf32>
      %2086 = arith.addf %2084, %2085 : vector<8x128xf32>
      %2087 = arith.mulf %2036, %2046 : vector<8x128xf32>
      %2088 = arith.mulf %2051, %2061 : vector<8x128xf32>
      %2089 = arith.addf %2087, %2088 : vector<8x128xf32>
      %2090 = arith.mulf %2066, %2076 : vector<8x128xf32>
      %2091 = arith.addf %2089, %2090 : vector<8x128xf32>
      %2092 = arith.mulf %2041, %2041 : vector<8x128xf32>
      %2093 = arith.mulf %2056, %2056 : vector<8x128xf32>
      %2094 = arith.addf %2092, %2093 : vector<8x128xf32>
      %2095 = arith.mulf %2071, %2071 : vector<8x128xf32>
      %2096 = arith.addf %2094, %2095 : vector<8x128xf32>
      %2097 = arith.mulf %2041, %2046 : vector<8x128xf32>
      %2098 = arith.mulf %2056, %2061 : vector<8x128xf32>
      %2099 = arith.addf %2097, %2098 : vector<8x128xf32>
      %2100 = arith.mulf %2071, %2076 : vector<8x128xf32>
      %2101 = arith.addf %2099, %2100 : vector<8x128xf32>
      %2102 = arith.mulf %2046, %2046 : vector<8x128xf32>
      %2103 = arith.mulf %2061, %2061 : vector<8x128xf32>
      %2104 = arith.addf %2102, %2103 : vector<8x128xf32>
      %2105 = arith.mulf %2076, %2076 : vector<8x128xf32>
      %2106 = arith.addf %2104, %2105 : vector<8x128xf32>
      %cst_394 = arith.constant 5.000000e-01 : f32
      %2107 = vector.broadcast %cst_394 : f32 to vector<8x128xf32>
      %2108 = arith.mulf %2107, %2081 : vector<8x128xf32>
      %cst_395 = arith.constant 1.500000e+00 : f32
      %2109 = vector.broadcast %cst_395 : f32 to vector<8x128xf32>
      %2110 = arith.subf %2109, %2108 : vector<8x128xf32>
      %cst_396 = arith.constant 5.000000e-01 : f32
      %2111 = vector.broadcast %cst_396 : f32 to vector<8x128xf32>
      %2112 = arith.mulf %2111, %2096 : vector<8x128xf32>
      %cst_397 = arith.constant 1.500000e+00 : f32
      %2113 = vector.broadcast %cst_397 : f32 to vector<8x128xf32>
      %2114 = arith.subf %2113, %2112 : vector<8x128xf32>
      %cst_398 = arith.constant 5.000000e-01 : f32
      %2115 = vector.broadcast %cst_398 : f32 to vector<8x128xf32>
      %2116 = arith.mulf %2115, %2106 : vector<8x128xf32>
      %cst_399 = arith.constant 1.500000e+00 : f32
      %2117 = vector.broadcast %cst_399 : f32 to vector<8x128xf32>
      %2118 = arith.subf %2117, %2116 : vector<8x128xf32>
      %cst_400 = arith.constant -5.000000e-01 : f32
      %2119 = vector.broadcast %cst_400 : f32 to vector<8x128xf32>
      %2120 = arith.mulf %2119, %2086 : vector<8x128xf32>
      %cst_401 = arith.constant -5.000000e-01 : f32
      %2121 = vector.broadcast %cst_401 : f32 to vector<8x128xf32>
      %2122 = arith.mulf %2121, %2091 : vector<8x128xf32>
      %cst_402 = arith.constant -5.000000e-01 : f32
      %2123 = vector.broadcast %cst_402 : f32 to vector<8x128xf32>
      %2124 = arith.mulf %2123, %2101 : vector<8x128xf32>
      %2125 = arith.mulf %2036, %2110 : vector<8x128xf32>
      %2126 = arith.mulf %2041, %2120 : vector<8x128xf32>
      %2127 = arith.addf %2125, %2126 : vector<8x128xf32>
      %2128 = arith.mulf %2046, %2122 : vector<8x128xf32>
      %2129 = arith.addf %2127, %2128 : vector<8x128xf32>
      %2130 = arith.mulf %2036, %2120 : vector<8x128xf32>
      %2131 = arith.mulf %2041, %2114 : vector<8x128xf32>
      %2132 = arith.addf %2130, %2131 : vector<8x128xf32>
      %2133 = arith.mulf %2046, %2124 : vector<8x128xf32>
      %2134 = arith.addf %2132, %2133 : vector<8x128xf32>
      %2135 = arith.mulf %2036, %2122 : vector<8x128xf32>
      %2136 = arith.mulf %2041, %2124 : vector<8x128xf32>
      %2137 = arith.addf %2135, %2136 : vector<8x128xf32>
      %2138 = arith.mulf %2046, %2118 : vector<8x128xf32>
      %2139 = arith.addf %2137, %2138 : vector<8x128xf32>
      %2140 = arith.mulf %2051, %2110 : vector<8x128xf32>
      %2141 = arith.mulf %2056, %2120 : vector<8x128xf32>
      %2142 = arith.addf %2140, %2141 : vector<8x128xf32>
      %2143 = arith.mulf %2061, %2122 : vector<8x128xf32>
      %2144 = arith.addf %2142, %2143 : vector<8x128xf32>
      %2145 = arith.mulf %2051, %2120 : vector<8x128xf32>
      %2146 = arith.mulf %2056, %2114 : vector<8x128xf32>
      %2147 = arith.addf %2145, %2146 : vector<8x128xf32>
      %2148 = arith.mulf %2061, %2124 : vector<8x128xf32>
      %2149 = arith.addf %2147, %2148 : vector<8x128xf32>
      %2150 = arith.mulf %2051, %2122 : vector<8x128xf32>
      %2151 = arith.mulf %2056, %2124 : vector<8x128xf32>
      %2152 = arith.addf %2150, %2151 : vector<8x128xf32>
      %2153 = arith.mulf %2061, %2118 : vector<8x128xf32>
      %2154 = arith.addf %2152, %2153 : vector<8x128xf32>
      %2155 = arith.mulf %2066, %2110 : vector<8x128xf32>
      %2156 = arith.mulf %2071, %2120 : vector<8x128xf32>
      %2157 = arith.addf %2155, %2156 : vector<8x128xf32>
      %2158 = arith.mulf %2076, %2122 : vector<8x128xf32>
      %2159 = arith.addf %2157, %2158 : vector<8x128xf32>
      %2160 = arith.mulf %2066, %2120 : vector<8x128xf32>
      %2161 = arith.mulf %2071, %2114 : vector<8x128xf32>
      %2162 = arith.addf %2160, %2161 : vector<8x128xf32>
      %2163 = arith.mulf %2076, %2124 : vector<8x128xf32>
      %2164 = arith.addf %2162, %2163 : vector<8x128xf32>
      %2165 = arith.mulf %2066, %2122 : vector<8x128xf32>
      %2166 = arith.mulf %2071, %2124 : vector<8x128xf32>
      %2167 = arith.addf %2165, %2166 : vector<8x128xf32>
      %2168 = arith.mulf %2076, %2118 : vector<8x128xf32>
      %2169 = arith.addf %2167, %2168 : vector<8x128xf32>
      %2170 = arith.mulf %2129, %2129 : vector<8x128xf32>
      %2171 = arith.mulf %2144, %2144 : vector<8x128xf32>
      %2172 = arith.addf %2170, %2171 : vector<8x128xf32>
      %2173 = arith.mulf %2159, %2159 : vector<8x128xf32>
      %2174 = arith.addf %2172, %2173 : vector<8x128xf32>
      %2175 = arith.mulf %2129, %2134 : vector<8x128xf32>
      %2176 = arith.mulf %2144, %2149 : vector<8x128xf32>
      %2177 = arith.addf %2175, %2176 : vector<8x128xf32>
      %2178 = arith.mulf %2159, %2164 : vector<8x128xf32>
      %2179 = arith.addf %2177, %2178 : vector<8x128xf32>
      %2180 = arith.mulf %2129, %2139 : vector<8x128xf32>
      %2181 = arith.mulf %2144, %2154 : vector<8x128xf32>
      %2182 = arith.addf %2180, %2181 : vector<8x128xf32>
      %2183 = arith.mulf %2159, %2169 : vector<8x128xf32>
      %2184 = arith.addf %2182, %2183 : vector<8x128xf32>
      %2185 = arith.mulf %2134, %2134 : vector<8x128xf32>
      %2186 = arith.mulf %2149, %2149 : vector<8x128xf32>
      %2187 = arith.addf %2185, %2186 : vector<8x128xf32>
      %2188 = arith.mulf %2164, %2164 : vector<8x128xf32>
      %2189 = arith.addf %2187, %2188 : vector<8x128xf32>
      %2190 = arith.mulf %2134, %2139 : vector<8x128xf32>
      %2191 = arith.mulf %2149, %2154 : vector<8x128xf32>
      %2192 = arith.addf %2190, %2191 : vector<8x128xf32>
      %2193 = arith.mulf %2164, %2169 : vector<8x128xf32>
      %2194 = arith.addf %2192, %2193 : vector<8x128xf32>
      %2195 = arith.mulf %2139, %2139 : vector<8x128xf32>
      %2196 = arith.mulf %2154, %2154 : vector<8x128xf32>
      %2197 = arith.addf %2195, %2196 : vector<8x128xf32>
      %2198 = arith.mulf %2169, %2169 : vector<8x128xf32>
      %2199 = arith.addf %2197, %2198 : vector<8x128xf32>
      %cst_403 = arith.constant 5.000000e-01 : f32
      %2200 = vector.broadcast %cst_403 : f32 to vector<8x128xf32>
      %2201 = arith.mulf %2200, %2174 : vector<8x128xf32>
      %cst_404 = arith.constant 1.500000e+00 : f32
      %2202 = vector.broadcast %cst_404 : f32 to vector<8x128xf32>
      %2203 = arith.subf %2202, %2201 : vector<8x128xf32>
      %cst_405 = arith.constant 5.000000e-01 : f32
      %2204 = vector.broadcast %cst_405 : f32 to vector<8x128xf32>
      %2205 = arith.mulf %2204, %2189 : vector<8x128xf32>
      %cst_406 = arith.constant 1.500000e+00 : f32
      %2206 = vector.broadcast %cst_406 : f32 to vector<8x128xf32>
      %2207 = arith.subf %2206, %2205 : vector<8x128xf32>
      %cst_407 = arith.constant 5.000000e-01 : f32
      %2208 = vector.broadcast %cst_407 : f32 to vector<8x128xf32>
      %2209 = arith.mulf %2208, %2199 : vector<8x128xf32>
      %cst_408 = arith.constant 1.500000e+00 : f32
      %2210 = vector.broadcast %cst_408 : f32 to vector<8x128xf32>
      %2211 = arith.subf %2210, %2209 : vector<8x128xf32>
      %cst_409 = arith.constant -5.000000e-01 : f32
      %2212 = vector.broadcast %cst_409 : f32 to vector<8x128xf32>
      %2213 = arith.mulf %2212, %2179 : vector<8x128xf32>
      %cst_410 = arith.constant -5.000000e-01 : f32
      %2214 = vector.broadcast %cst_410 : f32 to vector<8x128xf32>
      %2215 = arith.mulf %2214, %2184 : vector<8x128xf32>
      %cst_411 = arith.constant -5.000000e-01 : f32
      %2216 = vector.broadcast %cst_411 : f32 to vector<8x128xf32>
      %2217 = arith.mulf %2216, %2194 : vector<8x128xf32>
      %2218 = arith.mulf %2129, %2203 : vector<8x128xf32>
      %2219 = arith.mulf %2134, %2213 : vector<8x128xf32>
      %2220 = arith.addf %2218, %2219 : vector<8x128xf32>
      %2221 = arith.mulf %2139, %2215 : vector<8x128xf32>
      %2222 = arith.addf %2220, %2221 : vector<8x128xf32>
      %2223 = arith.mulf %2129, %2213 : vector<8x128xf32>
      %2224 = arith.mulf %2134, %2207 : vector<8x128xf32>
      %2225 = arith.addf %2223, %2224 : vector<8x128xf32>
      %2226 = arith.mulf %2139, %2217 : vector<8x128xf32>
      %2227 = arith.addf %2225, %2226 : vector<8x128xf32>
      %2228 = arith.mulf %2129, %2215 : vector<8x128xf32>
      %2229 = arith.mulf %2134, %2217 : vector<8x128xf32>
      %2230 = arith.addf %2228, %2229 : vector<8x128xf32>
      %2231 = arith.mulf %2139, %2211 : vector<8x128xf32>
      %2232 = arith.addf %2230, %2231 : vector<8x128xf32>
      %2233 = arith.mulf %2144, %2203 : vector<8x128xf32>
      %2234 = arith.mulf %2149, %2213 : vector<8x128xf32>
      %2235 = arith.addf %2233, %2234 : vector<8x128xf32>
      %2236 = arith.mulf %2154, %2215 : vector<8x128xf32>
      %2237 = arith.addf %2235, %2236 : vector<8x128xf32>
      %2238 = arith.mulf %2144, %2213 : vector<8x128xf32>
      %2239 = arith.mulf %2149, %2207 : vector<8x128xf32>
      %2240 = arith.addf %2238, %2239 : vector<8x128xf32>
      %2241 = arith.mulf %2154, %2217 : vector<8x128xf32>
      %2242 = arith.addf %2240, %2241 : vector<8x128xf32>
      %2243 = arith.mulf %2144, %2215 : vector<8x128xf32>
      %2244 = arith.mulf %2149, %2217 : vector<8x128xf32>
      %2245 = arith.addf %2243, %2244 : vector<8x128xf32>
      %2246 = arith.mulf %2154, %2211 : vector<8x128xf32>
      %2247 = arith.addf %2245, %2246 : vector<8x128xf32>
      %2248 = arith.mulf %2159, %2203 : vector<8x128xf32>
      %2249 = arith.mulf %2164, %2213 : vector<8x128xf32>
      %2250 = arith.addf %2248, %2249 : vector<8x128xf32>
      %2251 = arith.mulf %2169, %2215 : vector<8x128xf32>
      %2252 = arith.addf %2250, %2251 : vector<8x128xf32>
      %2253 = arith.mulf %2159, %2213 : vector<8x128xf32>
      %2254 = arith.mulf %2164, %2207 : vector<8x128xf32>
      %2255 = arith.addf %2253, %2254 : vector<8x128xf32>
      %2256 = arith.mulf %2169, %2217 : vector<8x128xf32>
      %2257 = arith.addf %2255, %2256 : vector<8x128xf32>
      %2258 = arith.mulf %2159, %2215 : vector<8x128xf32>
      %2259 = arith.mulf %2164, %2217 : vector<8x128xf32>
      %2260 = arith.addf %2258, %2259 : vector<8x128xf32>
      %2261 = arith.mulf %2169, %2211 : vector<8x128xf32>
      %2262 = arith.addf %2260, %2261 : vector<8x128xf32>
      %2263 = arith.addf %2222, %2242 : vector<8x128xf32>
      %2264 = arith.addf %2263, %2262 : vector<8x128xf32>
      %cst_412 = arith.constant 5.000000e-01 : f32
      %2265 = vector.broadcast %cst_412 : f32 to vector<8x128xf32>
      %2266 = arith.mulf %2265, %2264 : vector<8x128xf32>
      %cst_413 = arith.constant 5.000000e-01 : f32
      %2267 = vector.broadcast %cst_413 : f32 to vector<8x128xf32>
      %2268 = arith.subf %2266, %2267 : vector<8x128xf32>
      %cst_414 = arith.constant -1.000000e+00 : f32
      %cst_415 = arith.constant 1.000000e+00 : f32
      %2269 = vector.broadcast %cst_414 : f32 to vector<8x128xf32>
      %2270 = arith.maximumf %2269, %2268 : vector<8x128xf32>
      %2271 = vector.broadcast %cst_415 : f32 to vector<8x128xf32>
      %2272 = arith.minimumf %2271, %2270 : vector<8x128xf32>
      %2273 = arith.mulf %2272, %2272 : vector<8x128xf32>
      %cst_416 = arith.constant 1.000000e+00 : f32
      %2274 = vector.broadcast %cst_416 : f32 to vector<8x128xf32>
      %2275 = arith.subf %2274, %2273 : vector<8x128xf32>
      %cst_417 = arith.constant 0.000000e+00 : f32
      %2276 = vector.broadcast %cst_417 : f32 to vector<8x128xf32>
      %2277 = arith.maximumf %2275, %2276 : vector<8x128xf32>
      %2278 = math.sqrt %2277 : vector<8x128xf32>
      %2279 = math.atan2 %2278, %2272 : vector<8x128xf32>
      %cst_418 = arith.constant 9.99999997E-7 : f32
      %2280 = vector.broadcast %cst_418 : f32 to vector<8x128xf32>
      %2281 = arith.cmpf olt, %2279, %2280 : vector<8x128xf32>
      %cst_419 = arith.constant 5.000000e-01 : f32
      %2282 = vector.broadcast %cst_419 : f32 to vector<8x128xf32>
      %2283 = arith.mulf %2282, %2279 : vector<8x128xf32>
      %cst_420 = arith.constant 1.000000e-07 : f32
      %2284 = vector.broadcast %cst_420 : f32 to vector<8x128xf32>
      %2285 = arith.cmpf olt, %2278, %2284 : vector<8x128xf32>
      %cst_421 = arith.constant 1.000000e+00 : f32
      %2286 = vector.broadcast %cst_421 : f32 to vector<8x128xf32>
      %2287 = arith.select %2285, %2286, %2278 : vector<8x128xi1>, vector<8x128xf32>
      %2288 = arith.divf %2283, %2287 : vector<8x128xf32>
      %2289 = arith.subf %2257, %2247 : vector<8x128xf32>
      %2290 = arith.mulf %2288, %2289 : vector<8x128xf32>
      %2291 = arith.select %2281, %2257, %2290 : vector<8x128xi1>, vector<8x128xf32>
      %2292 = arith.subf %2232, %2252 : vector<8x128xf32>
      %2293 = arith.mulf %2288, %2292 : vector<8x128xf32>
      %2294 = arith.select %2281, %2232, %2293 : vector<8x128xi1>, vector<8x128xf32>
      %2295 = arith.subf %2237, %2227 : vector<8x128xf32>
      %2296 = arith.mulf %2288, %2295 : vector<8x128xf32>
      %2297 = arith.select %2281, %2237, %2296 : vector<8x128xi1>, vector<8x128xf32>
      %2298 = math.absf %2291 : vector<8x128xf32>
      %cst_422 = arith.constant 1.000000e+00 : f32
      %2299 = vector.broadcast %cst_422 : f32 to vector<8x128xf32>
      %2300 = arith.cmpf ole, %2298, %2299 : vector<8x128xf32>
      %cst_423 = arith.constant 5.000000e-01 : f32
      %2301 = vector.broadcast %cst_423 : f32 to vector<8x128xf32>
      %2302 = arith.mulf %2301, %2291 : vector<8x128xf32>
      %2303 = arith.mulf %2302, %2291 : vector<8x128xf32>
      %cst_424 = arith.constant 5.000000e-01 : f32
      %2304 = vector.broadcast %cst_424 : f32 to vector<8x128xf32>
      %2305 = arith.subf %2298, %2304 : vector<8x128xf32>
      %2306 = arith.select %2300, %2303, %2305 : vector<8x128xi1>, vector<8x128xf32>
      %2307 = math.absf %2294 : vector<8x128xf32>
      %cst_425 = arith.constant 1.000000e+00 : f32
      %2308 = vector.broadcast %cst_425 : f32 to vector<8x128xf32>
      %2309 = arith.cmpf ole, %2307, %2308 : vector<8x128xf32>
      %cst_426 = arith.constant 5.000000e-01 : f32
      %2310 = vector.broadcast %cst_426 : f32 to vector<8x128xf32>
      %2311 = arith.mulf %2310, %2294 : vector<8x128xf32>
      %2312 = arith.mulf %2311, %2294 : vector<8x128xf32>
      %cst_427 = arith.constant 5.000000e-01 : f32
      %2313 = vector.broadcast %cst_427 : f32 to vector<8x128xf32>
      %2314 = arith.subf %2307, %2313 : vector<8x128xf32>
      %2315 = arith.select %2309, %2312, %2314 : vector<8x128xi1>, vector<8x128xf32>
      %2316 = arith.addf %2306, %2315 : vector<8x128xf32>
      %2317 = math.absf %2297 : vector<8x128xf32>
      %cst_428 = arith.constant 1.000000e+00 : f32
      %2318 = vector.broadcast %cst_428 : f32 to vector<8x128xf32>
      %2319 = arith.cmpf ole, %2317, %2318 : vector<8x128xf32>
      %cst_429 = arith.constant 5.000000e-01 : f32
      %2320 = vector.broadcast %cst_429 : f32 to vector<8x128xf32>
      %2321 = arith.mulf %2320, %2297 : vector<8x128xf32>
      %2322 = arith.mulf %2321, %2297 : vector<8x128xf32>
      %cst_430 = arith.constant 5.000000e-01 : f32
      %2323 = vector.broadcast %cst_430 : f32 to vector<8x128xf32>
      %2324 = arith.subf %2317, %2323 : vector<8x128xf32>
      %2325 = arith.select %2319, %2322, %2324 : vector<8x128xi1>, vector<8x128xf32>
      %2326 = arith.addf %2316, %2325 : vector<8x128xf32>
      %cst_431 = arith.constant dense<0.000000e+00> : vector<128xf32>
      %2327 = vector.multi_reduction <add>, %2326, %cst_431 [0] : vector<8x128xf32> to vector<128xf32>
      %2328 = vector.shape_cast %2327 : vector<128xf32> to vector<1x128xf32>
      %2329 = arith.addf %1965, %2328 : vector<1x128xf32>
      %c0_432 = arith.constant 0 : index
      %c24_433 = arith.constant 24 : index
      %c0_434 = arith.constant 0 : index
      %2330 = vector.load %arg3[%c0_432, %c24_433, %c0_434] : memref<9x32x128xf32, #tpu.memory_space<vmem>>, vector<1x7x128xf32>
      %2331 = vector.shape_cast %2330 : vector<1x7x128xf32> to vector<7x128xf32>
      %c1_435 = arith.constant 1 : index
      %c24_436 = arith.constant 24 : index
      %c0_437 = arith.constant 0 : index
      %2332 = vector.load %arg3[%c1_435, %c24_436, %c0_437] : memref<9x32x128xf32, #tpu.memory_space<vmem>>, vector<1x7x128xf32>
      %2333 = vector.shape_cast %2332 : vector<1x7x128xf32> to vector<7x128xf32>
      %c2_438 = arith.constant 2 : index
      %c24_439 = arith.constant 24 : index
      %c0_440 = arith.constant 0 : index
      %2334 = vector.load %arg3[%c2_438, %c24_439, %c0_440] : memref<9x32x128xf32, #tpu.memory_space<vmem>>, vector<1x7x128xf32>
      %2335 = vector.shape_cast %2334 : vector<1x7x128xf32> to vector<7x128xf32>
      %c3_441 = arith.constant 3 : index
      %c24_442 = arith.constant 24 : index
      %c0_443 = arith.constant 0 : index
      %2336 = vector.load %arg3[%c3_441, %c24_442, %c0_443] : memref<9x32x128xf32, #tpu.memory_space<vmem>>, vector<1x7x128xf32>
      %2337 = vector.shape_cast %2336 : vector<1x7x128xf32> to vector<7x128xf32>
      %c4_444 = arith.constant 4 : index
      %c24_445 = arith.constant 24 : index
      %c0_446 = arith.constant 0 : index
      %2338 = vector.load %arg3[%c4_444, %c24_445, %c0_446] : memref<9x32x128xf32, #tpu.memory_space<vmem>>, vector<1x7x128xf32>
      %2339 = vector.shape_cast %2338 : vector<1x7x128xf32> to vector<7x128xf32>
      %c5_447 = arith.constant 5 : index
      %c24_448 = arith.constant 24 : index
      %c0_449 = arith.constant 0 : index
      %2340 = vector.load %arg3[%c5_447, %c24_448, %c0_449] : memref<9x32x128xf32, #tpu.memory_space<vmem>>, vector<1x7x128xf32>
      %2341 = vector.shape_cast %2340 : vector<1x7x128xf32> to vector<7x128xf32>
      %c6_450 = arith.constant 6 : index
      %c24_451 = arith.constant 24 : index
      %c0_452 = arith.constant 0 : index
      %2342 = vector.load %arg3[%c6_450, %c24_451, %c0_452] : memref<9x32x128xf32, #tpu.memory_space<vmem>>, vector<1x7x128xf32>
      %2343 = vector.shape_cast %2342 : vector<1x7x128xf32> to vector<7x128xf32>
      %c7_453 = arith.constant 7 : index
      %c24_454 = arith.constant 24 : index
      %c0_455 = arith.constant 0 : index
      %2344 = vector.load %arg3[%c7_453, %c24_454, %c0_455] : memref<9x32x128xf32, #tpu.memory_space<vmem>>, vector<1x7x128xf32>
      %2345 = vector.shape_cast %2344 : vector<1x7x128xf32> to vector<7x128xf32>
      %c8_456 = arith.constant 8 : index
      %c24_457 = arith.constant 24 : index
      %c0_458 = arith.constant 0 : index
      %2346 = vector.load %arg3[%c8_456, %c24_457, %c0_458] : memref<9x32x128xf32, #tpu.memory_space<vmem>>, vector<1x7x128xf32>
      %2347 = vector.shape_cast %2346 : vector<1x7x128xf32> to vector<7x128xf32>
      %2348 = arith.mulf %2331, %2331 : vector<7x128xf32>
      %2349 = arith.mulf %2337, %2337 : vector<7x128xf32>
      %2350 = arith.addf %2348, %2349 : vector<7x128xf32>
      %2351 = arith.mulf %2343, %2343 : vector<7x128xf32>
      %2352 = arith.addf %2350, %2351 : vector<7x128xf32>
      %2353 = arith.mulf %2331, %2333 : vector<7x128xf32>
      %2354 = arith.mulf %2337, %2339 : vector<7x128xf32>
      %2355 = arith.addf %2353, %2354 : vector<7x128xf32>
      %2356 = arith.mulf %2343, %2345 : vector<7x128xf32>
      %2357 = arith.addf %2355, %2356 : vector<7x128xf32>
      %2358 = arith.mulf %2331, %2335 : vector<7x128xf32>
      %2359 = arith.mulf %2337, %2341 : vector<7x128xf32>
      %2360 = arith.addf %2358, %2359 : vector<7x128xf32>
      %2361 = arith.mulf %2343, %2347 : vector<7x128xf32>
      %2362 = arith.addf %2360, %2361 : vector<7x128xf32>
      %2363 = arith.mulf %2333, %2333 : vector<7x128xf32>
      %2364 = arith.mulf %2339, %2339 : vector<7x128xf32>
      %2365 = arith.addf %2363, %2364 : vector<7x128xf32>
      %2366 = arith.mulf %2345, %2345 : vector<7x128xf32>
      %2367 = arith.addf %2365, %2366 : vector<7x128xf32>
      %2368 = arith.mulf %2333, %2335 : vector<7x128xf32>
      %2369 = arith.mulf %2339, %2341 : vector<7x128xf32>
      %2370 = arith.addf %2368, %2369 : vector<7x128xf32>
      %2371 = arith.mulf %2345, %2347 : vector<7x128xf32>
      %2372 = arith.addf %2370, %2371 : vector<7x128xf32>
      %2373 = arith.mulf %2335, %2335 : vector<7x128xf32>
      %2374 = arith.mulf %2341, %2341 : vector<7x128xf32>
      %2375 = arith.addf %2373, %2374 : vector<7x128xf32>
      %2376 = arith.mulf %2347, %2347 : vector<7x128xf32>
      %2377 = arith.addf %2375, %2376 : vector<7x128xf32>
      %cst_459 = arith.constant 5.000000e-01 : f32
      %2378 = vector.broadcast %cst_459 : f32 to vector<7x128xf32>
      %2379 = arith.mulf %2378, %2352 : vector<7x128xf32>
      %cst_460 = arith.constant 1.500000e+00 : f32
      %2380 = vector.broadcast %cst_460 : f32 to vector<7x128xf32>
      %2381 = arith.subf %2380, %2379 : vector<7x128xf32>
      %cst_461 = arith.constant 5.000000e-01 : f32
      %2382 = vector.broadcast %cst_461 : f32 to vector<7x128xf32>
      %2383 = arith.mulf %2382, %2367 : vector<7x128xf32>
      %cst_462 = arith.constant 1.500000e+00 : f32
      %2384 = vector.broadcast %cst_462 : f32 to vector<7x128xf32>
      %2385 = arith.subf %2384, %2383 : vector<7x128xf32>
      %cst_463 = arith.constant 5.000000e-01 : f32
      %2386 = vector.broadcast %cst_463 : f32 to vector<7x128xf32>
      %2387 = arith.mulf %2386, %2377 : vector<7x128xf32>
      %cst_464 = arith.constant 1.500000e+00 : f32
      %2388 = vector.broadcast %cst_464 : f32 to vector<7x128xf32>
      %2389 = arith.subf %2388, %2387 : vector<7x128xf32>
      %cst_465 = arith.constant -5.000000e-01 : f32
      %2390 = vector.broadcast %cst_465 : f32 to vector<7x128xf32>
      %2391 = arith.mulf %2390, %2357 : vector<7x128xf32>
      %cst_466 = arith.constant -5.000000e-01 : f32
      %2392 = vector.broadcast %cst_466 : f32 to vector<7x128xf32>
      %2393 = arith.mulf %2392, %2362 : vector<7x128xf32>
      %cst_467 = arith.constant -5.000000e-01 : f32
      %2394 = vector.broadcast %cst_467 : f32 to vector<7x128xf32>
      %2395 = arith.mulf %2394, %2372 : vector<7x128xf32>
      %2396 = arith.mulf %2331, %2381 : vector<7x128xf32>
      %2397 = arith.mulf %2333, %2391 : vector<7x128xf32>
      %2398 = arith.addf %2396, %2397 : vector<7x128xf32>
      %2399 = arith.mulf %2335, %2393 : vector<7x128xf32>
      %2400 = arith.addf %2398, %2399 : vector<7x128xf32>
      %2401 = arith.mulf %2331, %2391 : vector<7x128xf32>
      %2402 = arith.mulf %2333, %2385 : vector<7x128xf32>
      %2403 = arith.addf %2401, %2402 : vector<7x128xf32>
      %2404 = arith.mulf %2335, %2395 : vector<7x128xf32>
      %2405 = arith.addf %2403, %2404 : vector<7x128xf32>
      %2406 = arith.mulf %2331, %2393 : vector<7x128xf32>
      %2407 = arith.mulf %2333, %2395 : vector<7x128xf32>
      %2408 = arith.addf %2406, %2407 : vector<7x128xf32>
      %2409 = arith.mulf %2335, %2389 : vector<7x128xf32>
      %2410 = arith.addf %2408, %2409 : vector<7x128xf32>
      %2411 = arith.mulf %2337, %2381 : vector<7x128xf32>
      %2412 = arith.mulf %2339, %2391 : vector<7x128xf32>
      %2413 = arith.addf %2411, %2412 : vector<7x128xf32>
      %2414 = arith.mulf %2341, %2393 : vector<7x128xf32>
      %2415 = arith.addf %2413, %2414 : vector<7x128xf32>
      %2416 = arith.mulf %2337, %2391 : vector<7x128xf32>
      %2417 = arith.mulf %2339, %2385 : vector<7x128xf32>
      %2418 = arith.addf %2416, %2417 : vector<7x128xf32>
      %2419 = arith.mulf %2341, %2395 : vector<7x128xf32>
      %2420 = arith.addf %2418, %2419 : vector<7x128xf32>
      %2421 = arith.mulf %2337, %2393 : vector<7x128xf32>
      %2422 = arith.mulf %2339, %2395 : vector<7x128xf32>
      %2423 = arith.addf %2421, %2422 : vector<7x128xf32>
      %2424 = arith.mulf %2341, %2389 : vector<7x128xf32>
      %2425 = arith.addf %2423, %2424 : vector<7x128xf32>
      %2426 = arith.mulf %2343, %2381 : vector<7x128xf32>
      %2427 = arith.mulf %2345, %2391 : vector<7x128xf32>
      %2428 = arith.addf %2426, %2427 : vector<7x128xf32>
      %2429 = arith.mulf %2347, %2393 : vector<7x128xf32>
      %2430 = arith.addf %2428, %2429 : vector<7x128xf32>
      %2431 = arith.mulf %2343, %2391 : vector<7x128xf32>
      %2432 = arith.mulf %2345, %2385 : vector<7x128xf32>
      %2433 = arith.addf %2431, %2432 : vector<7x128xf32>
      %2434 = arith.mulf %2347, %2395 : vector<7x128xf32>
      %2435 = arith.addf %2433, %2434 : vector<7x128xf32>
      %2436 = arith.mulf %2343, %2393 : vector<7x128xf32>
      %2437 = arith.mulf %2345, %2395 : vector<7x128xf32>
      %2438 = arith.addf %2436, %2437 : vector<7x128xf32>
      %2439 = arith.mulf %2347, %2389 : vector<7x128xf32>
      %2440 = arith.addf %2438, %2439 : vector<7x128xf32>
      %2441 = arith.mulf %2400, %2400 : vector<7x128xf32>
      %2442 = arith.mulf %2415, %2415 : vector<7x128xf32>
      %2443 = arith.addf %2441, %2442 : vector<7x128xf32>
      %2444 = arith.mulf %2430, %2430 : vector<7x128xf32>
      %2445 = arith.addf %2443, %2444 : vector<7x128xf32>
      %2446 = arith.mulf %2400, %2405 : vector<7x128xf32>
      %2447 = arith.mulf %2415, %2420 : vector<7x128xf32>
      %2448 = arith.addf %2446, %2447 : vector<7x128xf32>
      %2449 = arith.mulf %2430, %2435 : vector<7x128xf32>
      %2450 = arith.addf %2448, %2449 : vector<7x128xf32>
      %2451 = arith.mulf %2400, %2410 : vector<7x128xf32>
      %2452 = arith.mulf %2415, %2425 : vector<7x128xf32>
      %2453 = arith.addf %2451, %2452 : vector<7x128xf32>
      %2454 = arith.mulf %2430, %2440 : vector<7x128xf32>
      %2455 = arith.addf %2453, %2454 : vector<7x128xf32>
      %2456 = arith.mulf %2405, %2405 : vector<7x128xf32>
      %2457 = arith.mulf %2420, %2420 : vector<7x128xf32>
      %2458 = arith.addf %2456, %2457 : vector<7x128xf32>
      %2459 = arith.mulf %2435, %2435 : vector<7x128xf32>
      %2460 = arith.addf %2458, %2459 : vector<7x128xf32>
      %2461 = arith.mulf %2405, %2410 : vector<7x128xf32>
      %2462 = arith.mulf %2420, %2425 : vector<7x128xf32>
      %2463 = arith.addf %2461, %2462 : vector<7x128xf32>
      %2464 = arith.mulf %2435, %2440 : vector<7x128xf32>
      %2465 = arith.addf %2463, %2464 : vector<7x128xf32>
      %2466 = arith.mulf %2410, %2410 : vector<7x128xf32>
      %2467 = arith.mulf %2425, %2425 : vector<7x128xf32>
      %2468 = arith.addf %2466, %2467 : vector<7x128xf32>
      %2469 = arith.mulf %2440, %2440 : vector<7x128xf32>
      %2470 = arith.addf %2468, %2469 : vector<7x128xf32>
      %cst_468 = arith.constant 5.000000e-01 : f32
      %2471 = vector.broadcast %cst_468 : f32 to vector<7x128xf32>
      %2472 = arith.mulf %2471, %2445 : vector<7x128xf32>
      %cst_469 = arith.constant 1.500000e+00 : f32
      %2473 = vector.broadcast %cst_469 : f32 to vector<7x128xf32>
      %2474 = arith.subf %2473, %2472 : vector<7x128xf32>
      %cst_470 = arith.constant 5.000000e-01 : f32
      %2475 = vector.broadcast %cst_470 : f32 to vector<7x128xf32>
      %2476 = arith.mulf %2475, %2460 : vector<7x128xf32>
      %cst_471 = arith.constant 1.500000e+00 : f32
      %2477 = vector.broadcast %cst_471 : f32 to vector<7x128xf32>
      %2478 = arith.subf %2477, %2476 : vector<7x128xf32>
      %cst_472 = arith.constant 5.000000e-01 : f32
      %2479 = vector.broadcast %cst_472 : f32 to vector<7x128xf32>
      %2480 = arith.mulf %2479, %2470 : vector<7x128xf32>
      %cst_473 = arith.constant 1.500000e+00 : f32
      %2481 = vector.broadcast %cst_473 : f32 to vector<7x128xf32>
      %2482 = arith.subf %2481, %2480 : vector<7x128xf32>
      %cst_474 = arith.constant -5.000000e-01 : f32
      %2483 = vector.broadcast %cst_474 : f32 to vector<7x128xf32>
      %2484 = arith.mulf %2483, %2450 : vector<7x128xf32>
      %cst_475 = arith.constant -5.000000e-01 : f32
      %2485 = vector.broadcast %cst_475 : f32 to vector<7x128xf32>
      %2486 = arith.mulf %2485, %2455 : vector<7x128xf32>
      %cst_476 = arith.constant -5.000000e-01 : f32
      %2487 = vector.broadcast %cst_476 : f32 to vector<7x128xf32>
      %2488 = arith.mulf %2487, %2465 : vector<7x128xf32>
      %2489 = arith.mulf %2400, %2474 : vector<7x128xf32>
      %2490 = arith.mulf %2405, %2484 : vector<7x128xf32>
      %2491 = arith.addf %2489, %2490 : vector<7x128xf32>
      %2492 = arith.mulf %2410, %2486 : vector<7x128xf32>
      %2493 = arith.addf %2491, %2492 : vector<7x128xf32>
      %2494 = arith.mulf %2400, %2484 : vector<7x128xf32>
      %2495 = arith.mulf %2405, %2478 : vector<7x128xf32>
      %2496 = arith.addf %2494, %2495 : vector<7x128xf32>
      %2497 = arith.mulf %2410, %2488 : vector<7x128xf32>
      %2498 = arith.addf %2496, %2497 : vector<7x128xf32>
      %2499 = arith.mulf %2400, %2486 : vector<7x128xf32>
      %2500 = arith.mulf %2405, %2488 : vector<7x128xf32>
      %2501 = arith.addf %2499, %2500 : vector<7x128xf32>
      %2502 = arith.mulf %2410, %2482 : vector<7x128xf32>
      %2503 = arith.addf %2501, %2502 : vector<7x128xf32>
      %2504 = arith.mulf %2415, %2474 : vector<7x128xf32>
      %2505 = arith.mulf %2420, %2484 : vector<7x128xf32>
      %2506 = arith.addf %2504, %2505 : vector<7x128xf32>
      %2507 = arith.mulf %2425, %2486 : vector<7x128xf32>
      %2508 = arith.addf %2506, %2507 : vector<7x128xf32>
      %2509 = arith.mulf %2415, %2484 : vector<7x128xf32>
      %2510 = arith.mulf %2420, %2478 : vector<7x128xf32>
      %2511 = arith.addf %2509, %2510 : vector<7x128xf32>
      %2512 = arith.mulf %2425, %2488 : vector<7x128xf32>
      %2513 = arith.addf %2511, %2512 : vector<7x128xf32>
      %2514 = arith.mulf %2415, %2486 : vector<7x128xf32>
      %2515 = arith.mulf %2420, %2488 : vector<7x128xf32>
      %2516 = arith.addf %2514, %2515 : vector<7x128xf32>
      %2517 = arith.mulf %2425, %2482 : vector<7x128xf32>
      %2518 = arith.addf %2516, %2517 : vector<7x128xf32>
      %2519 = arith.mulf %2430, %2474 : vector<7x128xf32>
      %2520 = arith.mulf %2435, %2484 : vector<7x128xf32>
      %2521 = arith.addf %2519, %2520 : vector<7x128xf32>
      %2522 = arith.mulf %2440, %2486 : vector<7x128xf32>
      %2523 = arith.addf %2521, %2522 : vector<7x128xf32>
      %2524 = arith.mulf %2430, %2484 : vector<7x128xf32>
      %2525 = arith.mulf %2435, %2478 : vector<7x128xf32>
      %2526 = arith.addf %2524, %2525 : vector<7x128xf32>
      %2527 = arith.mulf %2440, %2488 : vector<7x128xf32>
      %2528 = arith.addf %2526, %2527 : vector<7x128xf32>
      %2529 = arith.mulf %2430, %2486 : vector<7x128xf32>
      %2530 = arith.mulf %2435, %2488 : vector<7x128xf32>
      %2531 = arith.addf %2529, %2530 : vector<7x128xf32>
      %2532 = arith.mulf %2440, %2482 : vector<7x128xf32>
      %2533 = arith.addf %2531, %2532 : vector<7x128xf32>
      %2534 = arith.mulf %2493, %2493 : vector<7x128xf32>
      %2535 = arith.mulf %2508, %2508 : vector<7x128xf32>
      %2536 = arith.addf %2534, %2535 : vector<7x128xf32>
      %2537 = arith.mulf %2523, %2523 : vector<7x128xf32>
      %2538 = arith.addf %2536, %2537 : vector<7x128xf32>
      %2539 = arith.mulf %2493, %2498 : vector<7x128xf32>
      %2540 = arith.mulf %2508, %2513 : vector<7x128xf32>
      %2541 = arith.addf %2539, %2540 : vector<7x128xf32>
      %2542 = arith.mulf %2523, %2528 : vector<7x128xf32>
      %2543 = arith.addf %2541, %2542 : vector<7x128xf32>
      %2544 = arith.mulf %2493, %2503 : vector<7x128xf32>
      %2545 = arith.mulf %2508, %2518 : vector<7x128xf32>
      %2546 = arith.addf %2544, %2545 : vector<7x128xf32>
      %2547 = arith.mulf %2523, %2533 : vector<7x128xf32>
      %2548 = arith.addf %2546, %2547 : vector<7x128xf32>
      %2549 = arith.mulf %2498, %2498 : vector<7x128xf32>
      %2550 = arith.mulf %2513, %2513 : vector<7x128xf32>
      %2551 = arith.addf %2549, %2550 : vector<7x128xf32>
      %2552 = arith.mulf %2528, %2528 : vector<7x128xf32>
      %2553 = arith.addf %2551, %2552 : vector<7x128xf32>
      %2554 = arith.mulf %2498, %2503 : vector<7x128xf32>
      %2555 = arith.mulf %2513, %2518 : vector<7x128xf32>
      %2556 = arith.addf %2554, %2555 : vector<7x128xf32>
      %2557 = arith.mulf %2528, %2533 : vector<7x128xf32>
      %2558 = arith.addf %2556, %2557 : vector<7x128xf32>
      %2559 = arith.mulf %2503, %2503 : vector<7x128xf32>
      %2560 = arith.mulf %2518, %2518 : vector<7x128xf32>
      %2561 = arith.addf %2559, %2560 : vector<7x128xf32>
      %2562 = arith.mulf %2533, %2533 : vector<7x128xf32>
      %2563 = arith.addf %2561, %2562 : vector<7x128xf32>
      %cst_477 = arith.constant 5.000000e-01 : f32
      %2564 = vector.broadcast %cst_477 : f32 to vector<7x128xf32>
      %2565 = arith.mulf %2564, %2538 : vector<7x128xf32>
      %cst_478 = arith.constant 1.500000e+00 : f32
      %2566 = vector.broadcast %cst_478 : f32 to vector<7x128xf32>
      %2567 = arith.subf %2566, %2565 : vector<7x128xf32>
      %cst_479 = arith.constant 5.000000e-01 : f32
      %2568 = vector.broadcast %cst_479 : f32 to vector<7x128xf32>
      %2569 = arith.mulf %2568, %2553 : vector<7x128xf32>
      %cst_480 = arith.constant 1.500000e+00 : f32
      %2570 = vector.broadcast %cst_480 : f32 to vector<7x128xf32>
      %2571 = arith.subf %2570, %2569 : vector<7x128xf32>
      %cst_481 = arith.constant 5.000000e-01 : f32
      %2572 = vector.broadcast %cst_481 : f32 to vector<7x128xf32>
      %2573 = arith.mulf %2572, %2563 : vector<7x128xf32>
      %cst_482 = arith.constant 1.500000e+00 : f32
      %2574 = vector.broadcast %cst_482 : f32 to vector<7x128xf32>
      %2575 = arith.subf %2574, %2573 : vector<7x128xf32>
      %cst_483 = arith.constant -5.000000e-01 : f32
      %2576 = vector.broadcast %cst_483 : f32 to vector<7x128xf32>
      %2577 = arith.mulf %2576, %2543 : vector<7x128xf32>
      %cst_484 = arith.constant -5.000000e-01 : f32
      %2578 = vector.broadcast %cst_484 : f32 to vector<7x128xf32>
      %2579 = arith.mulf %2578, %2548 : vector<7x128xf32>
      %cst_485 = arith.constant -5.000000e-01 : f32
      %2580 = vector.broadcast %cst_485 : f32 to vector<7x128xf32>
      %2581 = arith.mulf %2580, %2558 : vector<7x128xf32>
      %2582 = arith.mulf %2493, %2567 : vector<7x128xf32>
      %2583 = arith.mulf %2498, %2577 : vector<7x128xf32>
      %2584 = arith.addf %2582, %2583 : vector<7x128xf32>
      %2585 = arith.mulf %2503, %2579 : vector<7x128xf32>
      %2586 = arith.addf %2584, %2585 : vector<7x128xf32>
      %2587 = arith.mulf %2493, %2577 : vector<7x128xf32>
      %2588 = arith.mulf %2498, %2571 : vector<7x128xf32>
      %2589 = arith.addf %2587, %2588 : vector<7x128xf32>
      %2590 = arith.mulf %2503, %2581 : vector<7x128xf32>
      %2591 = arith.addf %2589, %2590 : vector<7x128xf32>
      %2592 = arith.mulf %2493, %2579 : vector<7x128xf32>
      %2593 = arith.mulf %2498, %2581 : vector<7x128xf32>
      %2594 = arith.addf %2592, %2593 : vector<7x128xf32>
      %2595 = arith.mulf %2503, %2575 : vector<7x128xf32>
      %2596 = arith.addf %2594, %2595 : vector<7x128xf32>
      %2597 = arith.mulf %2508, %2567 : vector<7x128xf32>
      %2598 = arith.mulf %2513, %2577 : vector<7x128xf32>
      %2599 = arith.addf %2597, %2598 : vector<7x128xf32>
      %2600 = arith.mulf %2518, %2579 : vector<7x128xf32>
      %2601 = arith.addf %2599, %2600 : vector<7x128xf32>
      %2602 = arith.mulf %2508, %2577 : vector<7x128xf32>
      %2603 = arith.mulf %2513, %2571 : vector<7x128xf32>
      %2604 = arith.addf %2602, %2603 : vector<7x128xf32>
      %2605 = arith.mulf %2518, %2581 : vector<7x128xf32>
      %2606 = arith.addf %2604, %2605 : vector<7x128xf32>
      %2607 = arith.mulf %2508, %2579 : vector<7x128xf32>
      %2608 = arith.mulf %2513, %2581 : vector<7x128xf32>
      %2609 = arith.addf %2607, %2608 : vector<7x128xf32>
      %2610 = arith.mulf %2518, %2575 : vector<7x128xf32>
      %2611 = arith.addf %2609, %2610 : vector<7x128xf32>
      %2612 = arith.mulf %2523, %2567 : vector<7x128xf32>
      %2613 = arith.mulf %2528, %2577 : vector<7x128xf32>
      %2614 = arith.addf %2612, %2613 : vector<7x128xf32>
      %2615 = arith.mulf %2533, %2579 : vector<7x128xf32>
      %2616 = arith.addf %2614, %2615 : vector<7x128xf32>
      %2617 = arith.mulf %2523, %2577 : vector<7x128xf32>
      %2618 = arith.mulf %2528, %2571 : vector<7x128xf32>
      %2619 = arith.addf %2617, %2618 : vector<7x128xf32>
      %2620 = arith.mulf %2533, %2581 : vector<7x128xf32>
      %2621 = arith.addf %2619, %2620 : vector<7x128xf32>
      %2622 = arith.mulf %2523, %2579 : vector<7x128xf32>
      %2623 = arith.mulf %2528, %2581 : vector<7x128xf32>
      %2624 = arith.addf %2622, %2623 : vector<7x128xf32>
      %2625 = arith.mulf %2533, %2575 : vector<7x128xf32>
      %2626 = arith.addf %2624, %2625 : vector<7x128xf32>
      %2627 = arith.addf %2586, %2606 : vector<7x128xf32>
      %2628 = arith.addf %2627, %2626 : vector<7x128xf32>
      %cst_486 = arith.constant 5.000000e-01 : f32
      %2629 = vector.broadcast %cst_486 : f32 to vector<7x128xf32>
      %2630 = arith.mulf %2629, %2628 : vector<7x128xf32>
      %cst_487 = arith.constant 5.000000e-01 : f32
      %2631 = vector.broadcast %cst_487 : f32 to vector<7x128xf32>
      %2632 = arith.subf %2630, %2631 : vector<7x128xf32>
      %cst_488 = arith.constant -1.000000e+00 : f32
      %cst_489 = arith.constant 1.000000e+00 : f32
      %2633 = vector.broadcast %cst_488 : f32 to vector<7x128xf32>
      %2634 = arith.maximumf %2633, %2632 : vector<7x128xf32>
      %2635 = vector.broadcast %cst_489 : f32 to vector<7x128xf32>
      %2636 = arith.minimumf %2635, %2634 : vector<7x128xf32>
      %2637 = arith.mulf %2636, %2636 : vector<7x128xf32>
      %cst_490 = arith.constant 1.000000e+00 : f32
      %2638 = vector.broadcast %cst_490 : f32 to vector<7x128xf32>
      %2639 = arith.subf %2638, %2637 : vector<7x128xf32>
      %cst_491 = arith.constant 0.000000e+00 : f32
      %2640 = vector.broadcast %cst_491 : f32 to vector<7x128xf32>
      %2641 = arith.maximumf %2639, %2640 : vector<7x128xf32>
      %2642 = math.sqrt %2641 : vector<7x128xf32>
      %2643 = math.atan2 %2642, %2636 : vector<7x128xf32>
      %cst_492 = arith.constant 9.99999997E-7 : f32
      %2644 = vector.broadcast %cst_492 : f32 to vector<7x128xf32>
      %2645 = arith.cmpf olt, %2643, %2644 : vector<7x128xf32>
      %cst_493 = arith.constant 5.000000e-01 : f32
      %2646 = vector.broadcast %cst_493 : f32 to vector<7x128xf32>
      %2647 = arith.mulf %2646, %2643 : vector<7x128xf32>
      %cst_494 = arith.constant 1.000000e-07 : f32
      %2648 = vector.broadcast %cst_494 : f32 to vector<7x128xf32>
      %2649 = arith.cmpf olt, %2642, %2648 : vector<7x128xf32>
      %cst_495 = arith.constant 1.000000e+00 : f32
      %2650 = vector.broadcast %cst_495 : f32 to vector<7x128xf32>
      %2651 = arith.select %2649, %2650, %2642 : vector<7x128xi1>, vector<7x128xf32>
      %2652 = arith.divf %2647, %2651 : vector<7x128xf32>
      %2653 = arith.subf %2621, %2611 : vector<7x128xf32>
      %2654 = arith.mulf %2652, %2653 : vector<7x128xf32>
      %2655 = arith.select %2645, %2621, %2654 : vector<7x128xi1>, vector<7x128xf32>
      %2656 = arith.subf %2596, %2616 : vector<7x128xf32>
      %2657 = arith.mulf %2652, %2656 : vector<7x128xf32>
      %2658 = arith.select %2645, %2596, %2657 : vector<7x128xi1>, vector<7x128xf32>
      %2659 = arith.subf %2601, %2591 : vector<7x128xf32>
      %2660 = arith.mulf %2652, %2659 : vector<7x128xf32>
      %2661 = arith.select %2645, %2601, %2660 : vector<7x128xi1>, vector<7x128xf32>
      %2662 = math.absf %2655 : vector<7x128xf32>
      %cst_496 = arith.constant 1.000000e+00 : f32
      %2663 = vector.broadcast %cst_496 : f32 to vector<7x128xf32>
      %2664 = arith.cmpf ole, %2662, %2663 : vector<7x128xf32>
      %cst_497 = arith.constant 5.000000e-01 : f32
      %2665 = vector.broadcast %cst_497 : f32 to vector<7x128xf32>
      %2666 = arith.mulf %2665, %2655 : vector<7x128xf32>
      %2667 = arith.mulf %2666, %2655 : vector<7x128xf32>
      %cst_498 = arith.constant 5.000000e-01 : f32
      %2668 = vector.broadcast %cst_498 : f32 to vector<7x128xf32>
      %2669 = arith.subf %2662, %2668 : vector<7x128xf32>
      %2670 = arith.select %2664, %2667, %2669 : vector<7x128xi1>, vector<7x128xf32>
      %2671 = math.absf %2658 : vector<7x128xf32>
      %cst_499 = arith.constant 1.000000e+00 : f32
      %2672 = vector.broadcast %cst_499 : f32 to vector<7x128xf32>
      %2673 = arith.cmpf ole, %2671, %2672 : vector<7x128xf32>
      %cst_500 = arith.constant 5.000000e-01 : f32
      %2674 = vector.broadcast %cst_500 : f32 to vector<7x128xf32>
      %2675 = arith.mulf %2674, %2658 : vector<7x128xf32>
      %2676 = arith.mulf %2675, %2658 : vector<7x128xf32>
      %cst_501 = arith.constant 5.000000e-01 : f32
      %2677 = vector.broadcast %cst_501 : f32 to vector<7x128xf32>
      %2678 = arith.subf %2671, %2677 : vector<7x128xf32>
      %2679 = arith.select %2673, %2676, %2678 : vector<7x128xi1>, vector<7x128xf32>
      %2680 = arith.addf %2670, %2679 : vector<7x128xf32>
      %2681 = math.absf %2661 : vector<7x128xf32>
      %cst_502 = arith.constant 1.000000e+00 : f32
      %2682 = vector.broadcast %cst_502 : f32 to vector<7x128xf32>
      %2683 = arith.cmpf ole, %2681, %2682 : vector<7x128xf32>
      %cst_503 = arith.constant 5.000000e-01 : f32
      %2684 = vector.broadcast %cst_503 : f32 to vector<7x128xf32>
      %2685 = arith.mulf %2684, %2661 : vector<7x128xf32>
      %2686 = arith.mulf %2685, %2661 : vector<7x128xf32>
      %cst_504 = arith.constant 5.000000e-01 : f32
      %2687 = vector.broadcast %cst_504 : f32 to vector<7x128xf32>
      %2688 = arith.subf %2681, %2687 : vector<7x128xf32>
      %2689 = arith.select %2683, %2686, %2688 : vector<7x128xi1>, vector<7x128xf32>
      %2690 = arith.addf %2680, %2689 : vector<7x128xf32>
      %cst_505 = arith.constant dense<0.000000e+00> : vector<128xf32>
      %2691 = vector.multi_reduction <add>, %2690, %cst_505 [0] : vector<7x128xf32> to vector<128xf32>
      %2692 = vector.shape_cast %2691 : vector<128xf32> to vector<1x128xf32>
      %2693 = arith.addf %2329, %2692 : vector<1x128xf32>
      %cst_506 = arith.constant 1.500000e+03 : f32
      %2694 = vector.broadcast %cst_506 : f32 to vector<1x128xf32>
      %2695 = arith.mulf %2694, %127 : vector<1x128xf32>
      %2696 = arith.addf %arg5, %2695 : vector<1x128xf32>
      %cst_507 = arith.constant 2.000000e+03 : f32
      %2697 = vector.broadcast %cst_507 : f32 to vector<1x128xf32>
      %2698 = arith.mulf %2697, %2693 : vector<1x128xf32>
      %2699 = arith.addf %2696, %2698 : vector<1x128xf32>
      scf.yield %2699 : vector<1x128xf32>
    }
    %c2_i32_0 = arith.constant 2 : i32
    %3 = vector.shape_cast %2 : vector<1x128xf32> to vector<1x1x128xf32>
    %c0 = arith.constant 0 : index
    %c0_1 = arith.constant 0 : index
    %c0_2 = arith.constant 0 : index
    %4 = vector.load %arg2[%c0, %c0_1, %c0_2] : memref<1x1x128xf32, #tpu.memory_space<vmem>>, vector<1x1x128xf32>
    tpu.vector_store %arg2[%c0, %c0_1, %c0_2], %3 {strides = array<i32>} : memref<1x1x128xf32, #tpu.memory_space<vmem>>, vector<1x1x128xf32>,
    return
  }
  func.func @transform_0(%arg0: i32) -> (i32, i32, i32) {
    %c0_i32 = arith.constant 0 : i32
    %c0_i32_0 = arith.constant 0 : i32
    %c0_i32_1 = arith.constant 0 : i32
    return %c0_i32, %c0_i32_0, %arg0 : i32, i32, i32
  }
  func.func @transform_1(%arg0: i32) -> (i32, i32, i32) {
    %c0_i32 = arith.constant 0 : i32
    %c0_i32_0 = arith.constant 0 : i32
    %c0_i32_1 = arith.constant 0 : i32
    return %arg0, %c0_i32, %c0_i32_0 : i32, i32, i32
  }
}

</mosaic_0001>

<llo_original>
// kernel: triple_loss.1
$region0: #{triple_loss.1}
  #allocation0 [shape = 'u32[]', space=smem, size = 0x4, offset = 0x4, fixed_abs, tag = 'smem constant byte address 0x4 - core index']
  #allocation1 [shape = 'u32[144,128]{1,0:T(1,128)}', space=vmem, size = 0x12000, scoped, tag = 'internal scratch']
  #allocation2 [shape = 'f32[9,32,128]{2,1,0:T(8,128)}', space=vmem, size = 0x24000, scoped, tag = 'scratch operand']
  %s0 = inlined_call_operand.vmem [shape: f32[25,32,512], index: 0, kind: input, shape index: {}]
  %s1 = inlined_call_operand.vmem [shape: f32[2,1,128], index: 1, kind: output, shape index: {}]
  %s2 = sld [smem:[#allocation0]]
  $region67: #{triple_loss.1} parent=0
    _
  %s4 = ssub.s32 1, %s2
  %s5 = scalar_select 0, %s4, %s2
  $region1: #{triple_loss.1} parent=0
    #allocation3 [shape = 'u8[1638400]{0}', space=vmem, size = 0x190000, scoped, tag = 'input window, operand 0']
    loop: start=0, step=1, limit=4
    $region2: #{triple_loss.1} parent=1 // loop_pre_header
      _
    $region3: #{triple_loss.1} parent=1 // loop_header
      %s7 = sphi 0, %s11
      %p8 = scmp.ge.s32.totalorder %s7, 4
      %s17 = sphi 0, %s19
      %s20 = sphi 0, %s17
      %s21 = sphi 0, %s20
      %s37 = sphi 0, %s21
      %s43 = sphi 0, %s45
      %s46 = sphi 0, %s43
      %s47 = sphi 0, %s46
      %s63 = sphi 0, %s47
    $region4: #{triple_loss.1} parent=1 // loop_header_branch
      %10 = sbr.rel (%p8) target = $region8
    $region5: #{triple_loss.1} parent=1 // loop_body
      %s12 = ssub.s32 %s7, 1
      %s13 = ssub.s32 %s7, 2
      %s14 = sadd.s32 %s7, 1
      %s15 = ssub.s32 %s7, %s14
      %p16 = scmp.eq.s32.totalorder %s15, 0
      %s18 = sadd.s32 %s17, 1
      %s19 = scalar_select %p16, %s17, %s18
      %p22 = pneg %p16
      %p23 = scmp.eq.s32.totalorder %s7, 1
      %p24 = por %p22, %p23
      %p25 = scmp.ne.s32.totalorder %s17, %s20
      %p26 = scmp.eq.s32.totalorder %s7, 0
      %p27 = por %p25, %p26
      %p28 = scmp.ne.s32.totalorder %s17, %s20
      %p29 = scmp.eq.s32.totalorder %s12, 1
      %p30 = por %p28, %p29
      %p31 = scmp.ne.s32.totalorder %s20, %s21
      %p32 = scmp.eq.s32.totalorder %s12, 0
      %p33 = por %p31, %p32
      %p34 = scmp.ne.s32.totalorder %s20, %s21
      %p35 = scmp.eq.s32.totalorder %s13, 1
      %p36 = por %p34, %p35
      %p38 = scmp.ne.s32.totalorder %s21, %s37
      %p39 = scmp.eq.s32.totalorder %s13, 0
      %p40 = por %p38, %p39
      %s41 = ssub.s32 %s7, %s14
      %p42 = scmp.eq.s32.totalorder %s41, 0
      %s44 = sadd.s32 %s43, 1
      %s45 = scalar_select %p42, %s43, %s44
      %p48 = pneg %p42
      %p49 = scmp.eq.s32.totalorder %s7, 1
      %p50 = por %p48, %p49
      %p51 = scmp.ne.s32.totalorder %s43, %s46
      %p52 = scmp.eq.s32.totalorder %s7, 0
      %p53 = por %p51, %p52
      %p54 = scmp.ne.s32.totalorder %s43, %s46
      %p55 = scmp.eq.s32.totalorder %s12, 1
      %p56 = por %p54, %p55
      %p57 = scmp.ne.s32.totalorder %s46, %s47
      %p58 = scmp.eq.s32.totalorder %s12, 0
      %p59 = por %p57, %p58
      %p60 = scmp.ne.s32.totalorder %s46, %s47
      %p61 = scmp.eq.s32.totalorder %s13, 1
      %p62 = por %p60, %p61
      %p64 = scmp.ne.s32.totalorder %s47, %s63
      %p65 = scmp.eq.s32.totalorder %s13, 0
      %p66 = por %p64, %p65
      %p67 = scmp.le.s32.totalorder 1, %s7
      %p68 = scmp.lt.s32.totalorder %s7, 3
      %p69 = pnand %p67, %p68
      %p70 = pneg %p69
      // Predicated region
      $region9: #{triple_loss.1} parent=5 // pred_check
        _
      $region10: #{triple_loss.1} parent=5 // pred_check_branch
        %72 = sbr.rel (%p69) target = $region12
      $region11: #{triple_loss.1} parent=5 // pred_region
        %s73 = ssub.s32 %s7, 1
      $region12: #{triple_loss.1} parent=5 // pred_fallthru
        _
      %p74 = scmp.lt.s32.totalorder %s7, 2
      // Predicated region
      $region13: #{triple_loss.1} parent=5 // pred_check
        %p75 = pneg %p74
      $region14: #{triple_loss.1} parent=5 // pred_check_branch
        %77 = sbr.rel (%p75) target = $region16
      $region15: #{triple_loss.1} parent=5 // pred_region
        // Predicated region
        $region17: #{triple_loss.1} parent=15 // pred_check
          %p78 = pneg %p27
        $region18: #{triple_loss.1} parent=15 // pred_check_branch
          %80 = sbr.rel (%p78) target = $region20
        $region19: #{triple_loss.1} parent=15 // pred_region
          %s81 = sand.u32 %s17, 1
          %s82 = sand.u32 %s17, 1
          %s83 = smul.addr %s82, 1600
          %s84 = scalar_lea.vmem [#allocation3], %s83
          %s85 = smul.u32 2, %s7
          %s86 = smul.addr %s85, 8
          %s87 = scalar_lea.vmem %s0, %s86
          // Predicated region
          $region21: #{triple_loss.1} parent=19 // pred_check
            _
          $region22: #{triple_loss.1} parent=19 // pred_check_branch
            %89 = sbr.rel (0) target = $region24
          $region23: #{triple_loss.1} parent=19 // pred_region
            // Predicated region
            $region25: #{triple_loss.1} parent=23 // pred_check
              _
            $region26: #{triple_loss.1} parent=23 // pred_check_branch
              %91 = sbr.rel (0) target = $region28
            $region27: #{triple_loss.1} parent=23 // pred_region
              loop: start=0, step=1, limit=1
              $region29: #{triple_loss.1} parent=27 // loop_pre_header
                _
              $region30: #{triple_loss.1} parent=27 // loop_header
                %s93 = sphi 0, %s97
                %p94 = scmp.ge.s32.totalorder %s93, 1
                %s98 = sphi %s87, %s87
                %s99 = sphi %s84, %s84
              $region31: #{triple_loss.1} parent=27 // loop_header_branch
                %96 = sbr.rel (%p94) target = $region35
              $region32: #{triple_loss.1} parent=27 // loop_body
                %v100 = vld [vmem:[%s98] sm:$0xff]
                %101 = vst [vmem:[%s99] sm:$0xff] %v100
                %v102 = vld [vmem:[%s98 + $0x8] sm:$0xff]
                %103 = vst [vmem:[%s99 + $0x8] sm:$0xff] %v102
                %v104 = vld [vmem:[%s98 + $0x20] sm:$0xff]
                %105 = vst [vmem:[%s99 + $0x10] sm:$0xff] %v104
                %v106 = vld [vmem:[%s98 + $0x28] sm:$0xff]
                %107 = vst [vmem:[%s99 + $0x18] sm:$0xff] %v106
                %v108 = vld [vmem:[%s98 + $0x40] sm:$0xff]
                %109 = vst [vmem:[%s99 + $0x20] sm:$0xff] %v108
                %v110 = vld [vmem:[%s98 + $0x48] sm:$0xff]
                %111 = vst [vmem:[%s99 + $0x28] sm:$0xff] %v110
                %v112 = vld [vmem:[%s98 + $0x60] sm:$0xff]
                %113 = vst [vmem:[%s99 + $0x30] sm:$0xff] %v112
                %v114 = vld [vmem:[%s98 + $0x68] sm:$0xff]
                %115 = vst [vmem:[%s99 + $0x38] sm:$0xff] %v114
                %v116 = vld [vmem:[%s98 + $0x80] sm:$0xff]
                %117 = vst [vmem:[%s99 + $0x40] sm:$0xff] %v116
                %v118 = vld [vmem:[%s98 + $0x88] sm:$0xff]
                %119 = vst [vmem:[%s99 + $0x48] sm:$0xff] %v118
                %v120 = vld [vmem:[%s98 + $0xa0] sm:$0xff]
                %121 = vst [vmem:[%s99 + $0x50] sm:$0xff] %v120
                %v122 = vld [vmem:[%s98 + $0xa8] sm:$0xff]
                %123 = vst [vmem:[%s99 + $0x58] sm:$0xff] %v122
                %v124 = vld [vmem:[%s98 + $0xc0] sm:$0xff]
                %125 = vst [vmem:[%s99 + $0x60] sm:$0xff] %v124
                %v126 = vld [vmem:[%s98 + $0xc8] sm:$0xff]
                %127 = vst [vmem:[%s99 + $0x68] sm:$0xff] %v126
                %v128 = vld [vmem:[%s98 + $0xe0] sm:$0xff]
                %129 = vst [vmem:[%s99 + $0x70] sm:$0xff] %v128
                %v130 = vld [vmem:[%s98 + $0xe8] sm:$0xff]
                %131 = vst [vmem:[%s99 + $0x78] sm:$0xff] %v130
                %v132 = vld [vmem:[%s98 + $0x100] sm:$0xff]
                %133 = vst [vmem:[%s99 + $0x80] sm:$0xff] %v132
                %v134 = vld [vmem:[%s98 + $0x108] sm:$0xff]
                %135 = vst [vmem:[%s99 + $0x88] sm:$0xff] %v134
                %v136 = vld [vmem:[%s98 + $0x120] sm:$0xff]
                %137 = vst [vmem:[%s99 + $0x90] sm:$0xff] %v136
                %v138 = vld [vmem:[%s98 + $0x128] sm:$0xff]
                %139 = vst [vmem:[%s99 + $0x98] sm:$0xff] %v138
                %v140 = vld [vmem:[%s98 + $0x140] sm:$0xff]
                %141 = vst [vmem:[%s99 + $0xa0] sm:$0xff] %v140
                %v142 = vld [vmem:[%s98 + $0x148] sm:$0xff]
                %143 = vst [vmem:[%s99 + $0xa8] sm:$0xff] %v142
                %v144 = vld [vmem:[%s98 + $0x160] sm:$0xff]
                %145 = vst [vmem:[%s99 + $0xb0] sm:$0xff] %v144
                %v146 = vld [vmem:[%s98 + $0x168] sm:$0xff]
                %147 = vst [vmem:[%s99 + $0xb8] sm:$0xff] %v146
                %v148 = vld [vmem:[%s98 + $0x180] sm:$0xff]
                %149 = vst [vmem:[%s99 + $0xc0] sm:$0xff] %v148
                %v150 = vld [vmem:[%s98 + $0x188] sm:$0xff]
                %151 = vst [vmem:[%s99 + $0xc8] sm:$0xff] %v150
                %v152 = vld [vmem:[%s98 + $0x1a0] sm:$0xff]
                %153 = vst [vmem:[%s99 + $0xd0] sm:$0xff] %v152
                %v154 = vld [vmem:[%s98 + $0x1a8] sm:$0xff]
                %155 = vst [vmem:[%s99 + $0xd8] sm:$0xff] %v154
                %v156 = vld [vmem:[%s98 + $0x1c0] sm:$0xff]
                %157 = vst [vmem:[%s99 + $0xe0] sm:$0xff] %v156
                %v158 = vld [vmem:[%s98 + $0x1c8] sm:$0xff]
                %159 = vst [vmem:[%s99 + $0xe8] sm:$0xff] %v158
                %v160 = vld [vmem:[%s98 + $0x1e0] sm:$0xff]
                %161 = vst [vmem:[%s99 + $0xf0] sm:$0xff] %v160
                %v162 = vld [vmem:[%s98 + $0x1e8] sm:$0xff]
                %163 = vst [vmem:[%s99 + $0xf8] sm:$0xff] %v162
                %v164 = vld [vmem:[%s98 + $0x200] sm:$0xff]
                %165 = vst [vmem:[%s99 + $0x100] sm:$0xff] %v164
                %v166 = vld [vmem:[%s98 + $0x208] sm:$0xff]
                %167 = vst [vmem:[%s99 + $0x108] sm:$0xff] %v166
                %v168 = vld [vmem:[%s98 + $0x220] sm:$0xff]
                %169 = vst [vmem:[%s99 + $0x110] sm:$0xff] %v168
                %v170 = vld [vmem:[%s98 + $0x228] sm:$0xff]
                %171 = vst [vmem:[%s99 + $0x118] sm:$0xff] %v170
                %v172 = vld [vmem:[%s98 + $0x240] sm:$0xff]
                %173 = vst [vmem:[%s99 + $0x120] sm:$0xff] %v172
                %v174 = vld [vmem:[%s98 + $0x248] sm:$0xff]
                %175 = vst [vmem:[%s99 + $0x128] sm:$0xff] %v174
                %v176 = vld [vmem:[%s98 + $0x260] sm:$0xff]
                %177 = vst [vmem:[%s99 + $0x130] sm:$0xff] %v176
                %v178 = vld [vmem:[%s98 + $0x268] sm:$0xff]
                %179 = vst [vmem:[%s99 + $0x138] sm:$0xff] %v178
                %v180 = vld [vmem:[%s98 + $0x280] sm:$0xff]
                %181 = vst [vmem:[%s99 + $0x140] sm:$0xff] %v180
                %v182 = vld [vmem:[%s98 + $0x288] sm:$0xff]
                %183 = vst [vmem:[%s99 + $0x148] sm:$0xff] %v182
                %v184 = vld [vmem:[%s98 + $0x2a0] sm:$0xff]
                %185 = vst [vmem:[%s99 + $0x150] sm:$0xff] %v184
                %v186 = vld [vmem:[%s98 + $0x2a8] sm:$0xff]
                %187 = vst [vmem:[%s99 + $0x158] sm:$0xff] %v186
                %v188 = vld [vmem:[%s98 + $0x2c0] sm:$0xff]
                %189 = vst [vmem:[%s99 + $0x160] sm:$0xff] %v188
                %v190 = vld [vmem:[%s98 + $0x2c8] sm:$0xff]
                %191 = vst [vmem:[%s99 + $0x168] sm:$0xff] %v190
                %v192 = vld [vmem:[%s98 + $0x2e0] sm:$0xff]
                %193 = vst [vmem:[%s99 + $0x170] sm:$0xff] %v192
                %v194 = vld [vmem:[%s98 + $0x2e8] sm:$0xff]
                %195 = vst [vmem:[%s99 + $0x178] sm:$0xff] %v194
                %v196 = vld [vmem:[%s98 + $0x300] sm:$0xff]
                %197 = vst [vmem:[%s99 + $0x180] sm:$0xff] %v196
                %v198 = vld [vmem:[%s98 + $0x308] sm:$0xff]
                %199 = vst [vmem:[%s99 + $0x188] sm:$0xff] %v198
                %v200 = vld [vmem:[%s98 + $0x320] sm:$0xff]
                %201 = vst [vmem:[%s99 + $0x190] sm:$0xff] %v200
                %v202 = vld [vmem:[%s98 + $0x328] sm:$0xff]
                %203 = vst [vmem:[%s99 + $0x198] sm:$0xff] %v202
                %v204 = vld [vmem:[%s98 + $0x340] sm:$0xff]
                %205 = vst [vmem:[%s99 + $0x1a0] sm:$0xff] %v204
                %v206 = vld [vmem:[%s98 + $0x348] sm:$0xff]
                %207 = vst [vmem:[%s99 + $0x1a8] sm:$0xff] %v206
                %v208 = vld [vmem:[%s98 + $0x360] sm:$0xff]
                %209 = vst [vmem:[%s99 + $0x1b0] sm:$0xff] %v208
                %v210 = vld [vmem:[%s98 + $0x368] sm:$0xff]
                %211 = vst [vmem:[%s99 + $0x1b8] sm:$0xff] %v210
                %v212 = vld [vmem:[%s98 + $0x380] sm:$0xff]
                %213 = vst [vmem:[%s99 + $0x1c0] sm:$0xff] %v212
                %v214 = vld [vmem:[%s98 + $0x388] sm:$0xff]
                %215 = vst [vmem:[%s99 + $0x1c8] sm:$0xff] %v214
                %v216 = vld [vmem:[%s98 + $0x3a0] sm:$0xff]
                %217 = vst [vmem:[%s99 + $0x1d0] sm:$0xff] %v216
                %v218 = vld [vmem:[%s98 + $0x3a8] sm:$0xff]
                %219 = vst [vmem:[%s99 + $0x1d8] sm:$0xff] %v218
                %v220 = vld [vmem:[%s98 + $0x3c0] sm:$0xff]
                %221 = vst [vmem:[%s99 + $0x1e0] sm:$0xff] %v220
                %v222 = vld [vmem:[%s98 + $0x3c8] sm:$0xff]
                %223 = vst [vmem:[%s99 + $0x1e8] sm:$0xff] %v222
                %v224 = vld [vmem:[%s98 + $0x3e0] sm:$0xff]
                %225 = vst [vmem:[%s99 + $0x1f0] sm:$0xff] %v224
                %v226 = vld [vmem:[%s98 + $0x3e8] sm:$0xff]
                %227 = vst [vmem:[%s99 + $0x1f8] sm:$0xff] %v226
                %v228 = vld [vmem:[%s98 + $0x400] sm:$0xff]
                %229 = vst [vmem:[%s99 + $0x200] sm:$0xff] %v228
                %v230 = vld [vmem:[%s98 + $0x408] sm:$0xff]
                %231 = vst [vmem:[%s99 + $0x208] sm:$0xff] %v230
                %v232 = vld [vmem:[%s98 + $0x420] sm:$0xff]
                %233 = vst [vmem:[%s99 + $0x210] sm:$0xff] %v232
                %v234 = vld [vmem:[%s98 + $0x428] sm:$0xff]
                %235 = vst [vmem:[%s99 + $0x218] sm:$0xff] %v234
                %v236 = vld [vmem:[%s98 + $0x440] sm:$0xff]
                %237 = vst [vmem:[%s99 + $0x220] sm:$0xff] %v236
                %v238 = vld [vmem:[%s98 + $0x448] sm:$0xff]
                %239 = vst [vmem:[%s99 + $0x228] sm:$0xff] %v238
                %v240 = vld [vmem:[%s98 + $0x460] sm:$0xff]
                %241 = vst [vmem:[%s99 + $0x230] sm:$0xff] %v240
                %v242 = vld [vmem:[%s98 + $0x468] sm:$0xff]
                %243 = vst [vmem:[%s99 + $0x238] sm:$0xff] %v242
                %v244 = vld [vmem:[%s98 + $0x480] sm:$0xff]
                %245 = vst [vmem:[%s99 + $0x240] sm:$0xff] %v244
                %v246 = vld [vmem:[%s98 + $0x488] sm:$0xff]
                %247 = vst [vmem:[%s99 + $0x248] sm:$0xff] %v246
                %v248 = vld [vmem:[%s98 + $0x4a0] sm:$0xff]
                %249 = vst [vmem:[%s99 + $0x250] sm:$0xff] %v248
                %v250 = vld [vmem:[%s98 + $0x4a8] sm:$0xff]
                %251 = vst [vmem:[%s99 + $0x258] sm:$0xff] %v250
                %v252 = vld [vmem:[%s98 + $0x4c0] sm:$0xff]
                %253 = vst [vmem:[%s99 + $0x260] sm:$0xff] %v252
                %v254 = vld [vmem:[%s98 + $0x4c8] sm:$0xff]
                %255 = vst [vmem:[%s99 + $0x268] sm:$0xff] %v254
                %v256 = vld [vmem:[%s98 + $0x4e0] sm:$0xff]
                %257 = vst [vmem:[%s99 + $0x270] sm:$0xff] %v256
                %v258 = vld [vmem:[%s98 + $0x4e8] sm:$0xff]
                %259 = vst [vmem:[%s99 + $0x278] sm:$0xff] %v258
                %v260 = vld [vmem:[%s98 + $0x500] sm:$0xff]
                %261 = vst [vmem:[%s99 + $0x280] sm:$0xff] %v260
                %v262 = vld [vmem:[%s98 + $0x508] sm:$0xff]
                %263 = vst [vmem:[%s99 + $0x288] sm:$0xff] %v262
                %v264 = vld [vmem:[%s98 + $0x520] sm:$0xff]
                %265 = vst [vmem:[%s99 + $0x290] sm:$0xff] %v264
                %v266 = vld [vmem:[%s98 + $0x528] sm:$0xff]
                %267 = vst [vmem:[%s99 + $0x298] sm:$0xff] %v266
                %v268 = vld [vmem:[%s98 + $0x540] sm:$0xff]
                %269 = vst [vmem:[%s99 + $0x2a0] sm:$0xff] %v268
                %v270 = vld [vmem:[%s98 + $0x548] sm:$0xff]
                %271 = vst [vmem:[%s99 + $0x2a8] sm:$0xff] %v270
                %v272 = vld [vmem:[%s98 + $0x560] sm:$0xff]
                %273 = vst [vmem:[%s99 + $0x2b0] sm:$0xff] %v272
                %v274 = vld [vmem:[%s98 + $0x568] sm:$0xff]
                %275 = vst [vmem:[%s99 + $0x2b8] sm:$0xff] %v274
                %v276 = vld [vmem:[%s98 + $0x580] sm:$0xff]
                %277 = vst [vmem:[%s99 + $0x2c0] sm:$0xff] %v276
                %v278 = vld [vmem:[%s98 + $0x588] sm:$0xff]
                %279 = vst [vmem:[%s99 + $0x2c8] sm:$0xff] %v278
                %v280 = vld [vmem:[%s98 + $0x5a0] sm:$0xff]
                %281 = vst [vmem:[%s99 + $0x2d0] sm:$0xff] %v280
                %v282 = vld [vmem:[%s98 + $0x5a8] sm:$0xff]
                %283 = vst [vmem:[%s99 + $0x2d8] sm:$0xff] %v282
                %v284 = vld [vmem:[%s98 + $0x5c0] sm:$0xff]
                %285 = vst [vmem:[%s99 + $0x2e0] sm:$0xff] %v284
                %v286 = vld [vmem:[%s98 + $0x5c8] sm:$0xff]
                %287 = vst [vmem:[%s99 + $0x2e8] sm:$0xff] %v286
                %v288 = vld [vmem:[%s98 + $0x5e0] sm:$0xff]
                %289 = vst [vmem:[%s99 + $0x2f0] sm:$0xff] %v288
                %v290 = vld [vmem:[%s98 + $0x5e8] sm:$0xff]
                %291 = vst [vmem:[%s99 + $0x2f8] sm:$0xff] %v290
                %v292 = vld [vmem:[%s98 + $0x600] sm:$0xff]
                %293 = vst [vmem:[%s99 + $0x300] sm:$0xff] %v292
                %v294 = vld [vmem:[%s98 + $0x608] sm:$0xff]
                %295 = vst [vmem:[%s99 + $0x308] sm:$0xff] %v294
                %v296 = vld [vmem:[%s98 + $0x620] sm:$0xff]
                %297 = vst [vmem:[%s99 + $0x310] sm:$0xff] %v296
                %v298 = vld [vmem:[%s98 + $0x628] sm:$0xff]
                %299 = vst [vmem:[%s99 + $0x318] sm:$0xff] %v298
                %v300 = vld [vmem:[%s98 + $0x640] sm:$0xff]
                %301 = vst [vmem:[%s99 + $0x320] sm:$0xff] %v300
                %v302 = vld [vmem:[%s98 + $0x648] sm:$0xff]
                %303 = vst [vmem:[%s99 + $0x328] sm:$0xff] %v302
                %v304 = vld [vmem:[%s98 + $0x660] sm:$0xff]
                %305 = vst [vmem:[%s99 + $0x330] sm:$0xff] %v304
                %v306 = vld [vmem:[%s98 + $0x668] sm:$0xff]
                %307 = vst [vmem:[%s99 + $0x338] sm:$0xff] %v306
                %v308 = vld [vmem:[%s98 + $0x680] sm:$0xff]
                %309 = vst [vmem:[%s99 + $0x340] sm:$0xff] %v308
                %v310 = vld [vmem:[%s98 + $0x688] sm:$0xff]
                %311 = vst [vmem:[%s99 + $0x348] sm:$0xff] %v310
                %v312 = vld [vmem:[%s98 + $0x6a0] sm:$0xff]
                %313 = vst [vmem:[%s99 + $0x350] sm:$0xff] %v312
                %v314 = vld [vmem:[%s98 + $0x6a8] sm:$0xff]
                %315 = vst [vmem:[%s99 + $0x358] sm:$0xff] %v314
                %v316 = vld [vmem:[%s98 + $0x6c0] sm:$0xff]
                %317 = vst [vmem:[%s99 + $0x360] sm:$0xff] %v316
                %v318 = vld [vmem:[%s98 + $0x6c8] sm:$0xff]
                %319 = vst [vmem:[%s99 + $0x368] sm:$0xff] %v318
                %v320 = vld [vmem:[%s98 + $0x6e0] sm:$0xff]
                %321 = vst [vmem:[%s99 + $0x370] sm:$0xff] %v320
                %v322 = vld [vmem:[%s98 + $0x6e8] sm:$0xff]
                %323 = vst [vmem:[%s99 + $0x378] sm:$0xff] %v322
                %v324 = vld [vmem:[%s98 + $0x700] sm:$0xff]
                %325 = vst [vmem:[%s99 + $0x380] sm:$0xff] %v324
                %v326 = vld [vmem:[%s98 + $0x708] sm:$0xff]
                %327 = vst [vmem:[%s99 + $0x388] sm:$0xff] %v326
                %v328 = vld [vmem:[%s98 + $0x720] sm:$0xff]
                %329 = vst [vmem:[%s99 + $0x390] sm:$0xff] %v328
                %v330 = vld [vmem:[%s98 + $0x728] sm:$0xff]
                %331 = vst [vmem:[%s99 + $0x398] sm:$0xff] %v330
                %v332 = vld [vmem:[%s98 + $0x740] sm:$0xff]
                %333 = vst [vmem:[%s99 + $0x3a0] sm:$0xff] %v332
                %v334 = vld [vmem:[%s98 + $0x748] sm:$0xff]
                %335 = vst [vmem:[%s99 + $0x3a8] sm:$0xff] %v334
                %v336 = vld [vmem:[%s98 + $0x760] sm:$0xff]
                %337 = vst [vmem:[%s99 + $0x3b0] sm:$0xff] %v336
                %v338 = vld [vmem:[%s98 + $0x768] sm:$0xff]
                %339 = vst [vmem:[%s99 + $0x3b8] sm:$0xff] %v338
                %v340 = vld [vmem:[%s98 + $0x780] sm:$0xff]
                %341 = vst [vmem:[%s99 + $0x3c0] sm:$0xff] %v340
                %v342 = vld [vmem:[%s98 + $0x788] sm:$0xff]
                %343 = vst [vmem:[%s99 + $0x3c8] sm:$0xff] %v342
                %v344 = vld [vmem:[%s98 + $0x7a0] sm:$0xff]
                %345 = vst [vmem:[%s99 + $0x3d0] sm:$0xff] %v344
                %v346 = vld [vmem:[%s98 + $0x7a8] sm:$0xff]
                %347 = vst [vmem:[%s99 + $0x3d8] sm:$0xff] %v346
                %v348 = vld [vmem:[%s98 + $0x7c0] sm:$0xff]
                %349 = vst [vmem:[%s99 + $0x3e0] sm:$0xff] %v348
                %v350 = vld [vmem:[%s98 + $0x7c8] sm:$0xff]
                %351 = vst [vmem:[%s99 + $0x3e8] sm:$0xff] %v350
                %v352 = vld [vmem:[%s98 + $0x7e0] sm:$0xff]
                %353 = vst [vmem:[%s99 + $0x3f0] sm:$0xff] %v352
                %v354 = vld [vmem:[%s98 + $0x7e8] sm:$0xff]
                %355 = vst [vmem:[%s99 + $0x3f8] sm:$0xff] %v354
                %v356 = vld [vmem:[%s98 + $0x800] sm:$0xff]
                %357 = vst [vmem:[%s99 + $0x400] sm:$0xff] %v356
                %v358 = vld [vmem:[%s98 + $0x808] sm:$0xff]
                %359 = vst [vmem:[%s99 + $0x408] sm:$0xff] %v358
                %v360 = vld [vmem:[%s98 + $0x820] sm:$0xff]
                %361 = vst [vmem:[%s99 + $0x410] sm:$0xff] %v360
                %v362 = vld [vmem:[%s98 + $0x828] sm:$0xff]
                %363 = vst [vmem:[%s99 + $0x418] sm:$0xff] %v362
                %v364 = vld [vmem:[%s98 + $0x840] sm:$0xff]
                %365 = vst [vmem:[%s99 + $0x420] sm:$0xff] %v364
                %v366 = vld [vmem:[%s98 + $0x848] sm:$0xff]
                %367 = vst [vmem:[%s99 + $0x428] sm:$0xff] %v366
                %v368 = vld [vmem:[%s98 + $0x860] sm:$0xff]
                %369 = vst [vmem:[%s99 + $0x430] sm:$0xff] %v368
                %v370 = vld [vmem:[%s98 + $0x868] sm:$0xff]
                %371 = vst [vmem:[%s99 + $0x438] sm:$0xff] %v370
                %v372 = vld [vmem:[%s98 + $0x880] sm:$0xff]
                %373 = vst [vmem:[%s99 + $0x440] sm:$0xff] %v372
                %v374 = vld [vmem:[%s98 + $0x888] sm:$0xff]
                %375 = vst [vmem:[%s99 + $0x448] sm:$0xff] %v374
                %v376 = vld [vmem:[%s98 + $0x8a0] sm:$0xff]
                %377 = vst [vmem:[%s99 + $0x450] sm:$0xff] %v376
                %v378 = vld [vmem:[%s98 + $0x8a8] sm:$0xff]
                %379 = vst [vmem:[%s99 + $0x458] sm:$0xff] %v378
                %v380 = vld [vmem:[%s98 + $0x8c0] sm:$0xff]
                %381 = vst [vmem:[%s99 + $0x460] sm:$0xff] %v380
                %v382 = vld [vmem:[%s98 + $0x8c8] sm:$0xff]
                %383 = vst [vmem:[%s99 + $0x468] sm:$0xff] %v382
                %v384 = vld [vmem:[%s98 + $0x8e0] sm:$0xff]
                %385 = vst [vmem:[%s99 + $0x470] sm:$0xff] %v384
                %v386 = vld [vmem:[%s98 + $0x8e8] sm:$0xff]
                %387 = vst [vmem:[%s99 + $0x478] sm:$0xff] %v386
                %v388 = vld [vmem:[%s98 + $0x900] sm:$0xff]
                %389 = vst [vmem:[%s99 + $0x480] sm:$0xff] %v388
                %v390 = vld [vmem:[%s98 + $0x908] sm:$0xff]
                %391 = vst [vmem:[%s99 + $0x488] sm:$0xff] %v390
                %v392 = vld [vmem:[%s98 + $0x920] sm:$0xff]
                %393 = vst [vmem:[%s99 + $0x490] sm:$0xff] %v392
                %v394 = vld [vmem:[%s98 + $0x928] sm:$0xff]
                %395 = vst [vmem:[%s99 + $0x498] sm:$0xff] %v394
                %v396 = vld [vmem:[%s98 + $0x940] sm:$0xff]
                %397 = vst [vmem:[%s99 + $0x4a0] sm:$0xff] %v396
                %v398 = vld [vmem:[%s98 + $0x948] sm:$0xff]
                %399 = vst [vmem:[%s99 + $0x4a8] sm:$0xff] %v398
                %v400 = vld [vmem:[%s98 + $0x960] sm:$0xff]
                %401 = vst [vmem:[%s99 + $0x4b0] sm:$0xff] %v400
                %v402 = vld [vmem:[%s98 + $0x968] sm:$0xff]
                %403 = vst [vmem:[%s99 + $0x4b8] sm:$0xff] %v402
                %v404 = vld [vmem:[%s98 + $0x980] sm:$0xff]
                %405 = vst [vmem:[%s99 + $0x4c0] sm:$0xff] %v404
                %v406 = vld [vmem:[%s98 + $0x988] sm:$0xff]
                %407 = vst [vmem:[%s99 + $0x4c8] sm:$0xff] %v406
                %v408 = vld [vmem:[%s98 + $0x9a0] sm:$0xff]
                %409 = vst [vmem:[%s99 + $0x4d0] sm:$0xff] %v408
                %v410 = vld [vmem:[%s98 + $0x9a8] sm:$0xff]
                %411 = vst [vmem:[%s99 + $0x4d8] sm:$0xff] %v410
                %v412 = vld [vmem:[%s98 + $0x9c0] sm:$0xff]
                %413 = vst [vmem:[%s99 + $0x4e0] sm:$0xff] %v412
                %v414 = vld [vmem:[%s98 + $0x9c8] sm:$0xff]
                %415 = vst [vmem:[%s99 + $0x4e8] sm:$0xff] %v414
                %v416 = vld [vmem:[%s98 + $0x9e0] sm:$0xff]
                %417 = vst [vmem:[%s99 + $0x4f0] sm:$0xff] %v416
                %v418 = vld [vmem:[%s98 + $0x9e8] sm:$0xff]
                %419 = vst [vmem:[%s99 + $0x4f8] sm:$0xff] %v418
                %v420 = vld [vmem:[%s98 + $0xa00] sm:$0xff]
                %421 = vst [vmem:[%s99 + $0x500] sm:$0xff] %v420
                %v422 = vld [vmem:[%s98 + $0xa08] sm:$0xff]
                %423 = vst [vmem:[%s99 + $0x508] sm:$0xff] %v422
                %v424 = vld [vmem:[%s98 + $0xa20] sm:$0xff]
                %425 = vst [vmem:[%s99 + $0x510] sm:$0xff] %v424
                %v426 = vld [vmem:[%s98 + $0xa28] sm:$0xff]
                %427 = vst [vmem:[%s99 + $0x518] sm:$0xff] %v426
                %v428 = vld [vmem:[%s98 + $0xa40] sm:$0xff]
                %429 = vst [vmem:[%s99 + $0x520] sm:$0xff] %v428
                %v430 = vld [vmem:[%s98 + $0xa48] sm:$0xff]
                %431 = vst [vmem:[%s99 + $0x528] sm:$0xff] %v430
                %v432 = vld [vmem:[%s98 + $0xa60] sm:$0xff]
                %433 = vst [vmem:[%s99 + $0x530] sm:$0xff] %v432
                %v434 = vld [vmem:[%s98 + $0xa68] sm:$0xff]
                %435 = vst [vmem:[%s99 + $0x538] sm:$0xff] %v434
                %v436 = vld [vmem:[%s98 + $0xa80] sm:$0xff]
                %437 = vst [vmem:[%s99 + $0x540] sm:$0xff] %v436
                %v438 = vld [vmem:[%s98 + $0xa88] sm:$0xff]
                %439 = vst [vmem:[%s99 + $0x548] sm:$0xff] %v438
                %v440 = vld [vmem:[%s98 + $0xaa0] sm:$0xff]
                %441 = vst [vmem:[%s99 + $0x550] sm:$0xff] %v440
                %v442 = vld [vmem:[%s98 + $0xaa8] sm:$0xff]
                %443 = vst [vmem:[%s99 + $0x558] sm:$0xff] %v442
                %v444 = vld [vmem:[%s98 + $0xac0] sm:$0xff]
                %445 = vst [vmem:[%s99 + $0x560] sm:$0xff] %v444
                %v446 = vld [vmem:[%s98 + $0xac8] sm:$0xff]
                %447 = vst [vmem:[%s99 + $0x568] sm:$0xff] %v446
                %v448 = vld [vmem:[%s98 + $0xae0] sm:$0xff]
                %449 = vst [vmem:[%s99 + $0x570] sm:$0xff] %v448
                %v450 = vld [vmem:[%s98 + $0xae8] sm:$0xff]
                %451 = vst [vmem:[%s99 + $0x578] sm:$0xff] %v450
                %v452 = vld [vmem:[%s98 + $0xb00] sm:$0xff]
                %453 = vst [vmem:[%s99 + $0x580] sm:$0xff] %v452
                %v454 = vld [vmem:[%s98 + $0xb08] sm:$0xff]
                %455 = vst [vmem:[%s99 + $0x588] sm:$0xff] %v454
                %v456 = vld [vmem:[%s98 + $0xb20] sm:$0xff]
                %457 = vst [vmem:[%s99 + $0x590] sm:$0xff] %v456
                %v458 = vld [vmem:[%s98 + $0xb28] sm:$0xff]
                %459 = vst [vmem:[%s99 + $0x598] sm:$0xff] %v458
                %v460 = vld [vmem:[%s98 + $0xb40] sm:$0xff]
                %461 = vst [vmem:[%s99 + $0x5a0] sm:$0xff] %v460
                %v462 = vld [vmem:[%s98 + $0xb48] sm:$0xff]
                %463 = vst [vmem:[%s99 + $0x5a8] sm:$0xff] %v462
                %v464 = vld [vmem:[%s98 + $0xb60] sm:$0xff]
                %465 = vst [vmem:[%s99 + $0x5b0] sm:$0xff] %v464
                %v466 = vld [vmem:[%s98 + $0xb68] sm:$0xff]
                %467 = vst [vmem:[%s99 + $0x5b8] sm:$0xff] %v466
                %v468 = vld [vmem:[%s98 + $0xb80] sm:$0xff]
                %469 = vst [vmem:[%s99 + $0x5c0] sm:$0xff] %v468
                %v470 = vld [vmem:[%s98 + $0xb88] sm:$0xff]
                %471 = vst [vmem:[%s99 + $0x5c8] sm:$0xff] %v470
                %v472 = vld [vmem:[%s98 + $0xba0] sm:$0xff]
                %473 = vst [vmem:[%s99 + $0x5d0] sm:$0xff] %v472
                %v474 = vld [vmem:[%s98 + $0xba8] sm:$0xff]
                %475 = vst [vmem:[%s99 + $0x5d8] sm:$0xff] %v474
                %v476 = vld [vmem:[%s98 + $0xbc0] sm:$0xff]
                %477 = vst [vmem:[%s99 + $0x5e0] sm:$0xff] %v476
                %v478 = vld [vmem:[%s98 + $0xbc8] sm:$0xff]
                %479 = vst [vmem:[%s99 + $0x5e8] sm:$0xff] %v478
                %v480 = vld [vmem:[%s98 + $0xbe0] sm:$0xff]
                %481 = vst [vmem:[%s99 + $0x5f0] sm:$0xff] %v480
                %v482 = vld [vmem:[%s98 + $0xbe8] sm:$0xff]
                %483 = vst [vmem:[%s99 + $0x5f8] sm:$0xff] %v482
                %v484 = vld [vmem:[%s98 + $0xc00] sm:$0xff]
                %485 = vst [vmem:[%s99 + $0x600] sm:$0xff] %v484
                %v486 = vld [vmem:[%s98 + $0xc08] sm:$0xff]
                %487 = vst [vmem:[%s99 + $0x608] sm:$0xff] %v486
                %v488 = vld [vmem:[%s98 + $0xc20] sm:$0xff]
                %489 = vst [vmem:[%s99 + $0x610] sm:$0xff] %v488
                %v490 = vld [vmem:[%s98 + $0xc28] sm:$0xff]
                %491 = vst [vmem:[%s99 + $0x618] sm:$0xff] %v490
                %v492 = vld [vmem:[%s98 + $0xc40] sm:$0xff]
                %493 = vst [vmem:[%s99 + $0x620] sm:$0xff] %v492
                %v494 = vld [vmem:[%s98 + $0xc48] sm:$0xff]
                %495 = vst [vmem:[%s99 + $0x628] sm:$0xff] %v494
                %v496 = vld [vmem:[%s98 + $0xc60] sm:$0xff]
                %497 = vst [vmem:[%s99 + $0x630] sm:$0xff] %v496
                %v498 = vld [vmem:[%s98 + $0xc68] sm:$0xff]
                %499 = vst [vmem:[%s99 + $0x638] sm:$0xff] %v498
              $region33: #{triple_loss.1} parent=27 // loop_footer
                %s97 = sadd.s32 1, %s93
              $region34: #{triple_loss.1} parent=27 // loop_footer_branch
                %92 = sbr.rel target = $region30
              $region35: #{triple_loss.1} parent=27 // loop_exit
                _
            $region28: #{triple_loss.1} parent=23 // pred_fallthru
              _
            // Predicated region
            $region36: #{triple_loss.1} parent=23 // pred_check
              _
            $region37: #{triple_loss.1} parent=23 // pred_check_branch
              %501 = sbr.rel target = $region39
            $region38: #{triple_loss.1} parent=23 // pred_region
              _
            $region39: #{triple_loss.1} parent=23 // pred_fallthru
              _
          $region24: #{triple_loss.1} parent=19 // pred_fallthru
            _
          %502 = vnop
        $region20: #{triple_loss.1} parent=15 // pred_fallthru
          _
      $region16: #{triple_loss.1} parent=5 // pred_fallthru
        _
      %p503 = scmp.le.s32.totalorder 1, %s7
      %p504 = scmp.lt.s32.totalorder %s7, 3
      %p505 = pnand %p503, %p504
      %p506 = pneg %p505
      // Predicated region
      $region40: #{triple_loss.1} parent=5 // pred_check
        _
      $region41: #{triple_loss.1} parent=5 // pred_check_branch
        %508 = sbr.rel (%p505) target = $region43
      $region42: #{triple_loss.1} parent=5 // pred_region
        %s509 = ssub.s32 %s7, 1
        %s510 = sand.u32 %s20, 1
        %s511 = sand.u32 %s20, 1
        %s512 = smul.addr %s511, 1600
        %s513 = scalar_lea.vmem [#allocation3], %s512
        // Predicated region
        $region44: #{triple_loss.1} parent=42 // pred_check
          %p514 = pneg %p33
        $region45: #{triple_loss.1} parent=42 // pred_check_branch
          %516 = sbr.rel (%p514) target = $region47
        $region46: #{triple_loss.1} parent=42 // pred_region
          _
        $region47: #{triple_loss.1} parent=42 // pred_fallthru
          _
        %s517 = sand.u32 %s20, 1
        %s518 = sand.u32 %s20, 1
        %s519 = smul.addr %s518, 1600
        %s520 = scalar_lea.vmem [#allocation3], %s519
        %p521 = pneg %p33
        %p522 = pneg %p30
        %p523 = pneg %p59
        %p524 = pneg %p56
        %p525 = scmp.lt.s32.totalorder %s12, 1
        %s526 = scalar_select %p525, %s12, 1
        %s527 = scalar_lea.vmem %s1, %s526
        %s528 = smul.u32 2, %s12
        %p529 = scmp.lt.s32.totalorder %s12, 1
        %s530 = scalar_select %p529, %s12, 1
        %s531 = scalar_lea.vmem %s1, %s530
        loop: start=0, step=1, limit=2
        $region48: #{triple_loss.1} parent=42 // loop_pre_header
          _
        $region49: #{triple_loss.1} parent=42 // loop_header
          %s533 = sphi 0, %s537
          %p534 = scmp.ge.s32.totalorder %s533, 2
          %v538 = vphi 0.0, %v4378
        $region50: #{triple_loss.1} parent=42 // loop_header_branch
          %536 = sbr.rel (%p534) target = $region54
        $region51: #{triple_loss.1} parent=42 // loop_body
          %s539 = smul.u32 %s533, 128
          %s540 = sshra.s32 %s539, 7
          %s541 = sand.u32 %s539, 127
          %s542 = smul.addr %s540, 8
          %s543 = scalar_lea.vmem %s513, %s542 [#allocation3]
          %v544 = vld [vmem:[%s543] sm:$0xff]
          %v545 = vld [vmem:[%s543 + $0x10] sm:$0xff]
          %v546 = vld [vmem:[%s543 + $0x20] sm:$0xff]
          %v547 = vld [vmem:[%s543 + $0x30] sm:$0xff]
          %s548 = sadd.s32 %s540, 40
          %s549 = smul.addr %s548, 8
          %s550 = scalar_lea.vmem %s513, %s549 [#allocation3]
          %v551 = vld [vmem:[%s550] sm:$0xff]
          %v552 = vld [vmem:[%s550 + $0x10] sm:$0xff]
          %v553 = vld [vmem:[%s550 + $0x20] sm:$0xff]
          %v554 = vld [vmem:[%s550 + $0x30] sm:$0xff]
          %v555 = vsub.f32 %v544, %v551
          %v556 = vsub.f32 %v545, %v552
          %v557 = vsub.f32 %v546, %v553
          %v558 = vsub.f32 %v547, %v554
          %v559 = vmul.f32 %v555, 0.05
          %v560 = vmul.f32 %v556, 0.05
          %v561 = vmul.f32 %v557, 0.05
          %v562 = vmul.f32 %v558, 0.05
          %s563 = sadd.s32 %s540, 8
          %s564 = smul.addr %s563, 8
          %s565 = scalar_lea.vmem %s513, %s564 [#allocation3]
          %v566 = vld [vmem:[%s565] sm:$0xff]
          %v567 = vld [vmem:[%s565 + $0x10] sm:$0xff]
          %v568 = vld [vmem:[%s565 + $0x20] sm:$0xff]
          %v569 = vld [vmem:[%s565 + $0x30] sm:$0xff]
          %s570 = sadd.s32 %s540, 48
          %s571 = smul.addr %s570, 8
          %s572 = scalar_lea.vmem %s513, %s571 [#allocation3]
          %v573 = vld [vmem:[%s572] sm:$0xff]
          %v574 = vld [vmem:[%s572 + $0x10] sm:$0xff]
          %v575 = vld [vmem:[%s572 + $0x20] sm:$0xff]
          %v576 = vld [vmem:[%s572 + $0x30] sm:$0xff]
          %v577 = vsub.f32 %v566, %v573
          %v578 = vsub.f32 %v567, %v574
          %v579 = vsub.f32 %v568, %v575
          %v580 = vsub.f32 %v569, %v576
          %v581 = vmul.f32 %v577, 0.05
          %v582 = vmul.f32 %v578, 0.05
          %v583 = vmul.f32 %v579, 0.05
          %v584 = vmul.f32 %v580, 0.05
          %s585 = sadd.s32 %s540, 128
          %s586 = smul.addr %s585, 8
          %s587 = scalar_lea.vmem %s513, %s586 [#allocation3]
          %v588 = vld [vmem:[%s587] sm:$0xff]
          %v589 = vld [vmem:[%s587 + $0x10] sm:$0xff]
          %v590 = vld [vmem:[%s587 + $0x20] sm:$0xff]
          %v591 = vld [vmem:[%s587 + $0x30] sm:$0xff]
          %v592 = vmul.f32 %v588, %v559
          %v593 = vmul.f32 %v589, %v560
          %v594 = vmul.f32 %v590, %v561
          %v595 = vmul.f32 %v591, %v562
          %s596 = sadd.s32 %s540, 136
          %s597 = smul.addr %s596, 8
          %s598 = scalar_lea.vmem %s513, %s597 [#allocation3]
          %v599 = vld [vmem:[%s598] sm:$0xff]
          %v600 = vld [vmem:[%s598 + $0x10] sm:$0xff]
          %v601 = vld [vmem:[%s598 + $0x20] sm:$0xff]
          %v602 = vld [vmem:[%s598 + $0x30] sm:$0xff]
          %v603 = vmul.f32 %v599, %v581
          %v604 = vmul.f32 %v600, %v582
          %v605 = vmul.f32 %v601, %v583
          %v606 = vmul.f32 %v602, %v584
          %v607 = vadd.f32 %v592, %v603
          %v608 = vadd.f32 %v593, %v604
          %v609 = vadd.f32 %v594, %v605
          %v610 = vadd.f32 %v595, %v606
          %s611 = sadd.s32 %s540, 152
          %s612 = smul.addr %s611, 8
          %s613 = scalar_lea.vmem %s513, %s612 [#allocation3]
          %v614 = vld [vmem:[%s613] sm:$0xff]
          %v615 = vld [vmem:[%s613 + $0x10] sm:$0xff]
          %v616 = vld [vmem:[%s613 + $0x20] sm:$0xff]
          %v617 = vld [vmem:[%s613 + $0x30] sm:$0xff]
          %v618 = vmul.f32 %v614, %v559
          %v619 = vmul.f32 %v615, %v560
          %v620 = vmul.f32 %v616, %v561
          %v621 = vmul.f32 %v617, %v562
          %s622 = sadd.s32 %s540, 160
          %s623 = smul.addr %s622, 8
          %s624 = scalar_lea.vmem %s513, %s623 [#allocation3]
          %v625 = vld [vmem:[%s624] sm:$0xff]
          %v626 = vld [vmem:[%s624 + $0x10] sm:$0xff]
          %v627 = vld [vmem:[%s624 + $0x20] sm:$0xff]
          %v628 = vld [vmem:[%s624 + $0x30] sm:$0xff]
          %v629 = vmul.f32 %v625, %v581
          %v630 = vmul.f32 %v626, %v582
          %v631 = vmul.f32 %v627, %v583
          %v632 = vmul.f32 %v628, %v584
          %v633 = vadd.f32 %v618, %v629
          %v634 = vadd.f32 %v619, %v630
          %v635 = vadd.f32 %v620, %v631
          %v636 = vadd.f32 %v621, %v632
          %v637 = vadd.f32 %v607, %v609
          %v638 = vadd.f32 %v608, %v610
          %v639 = vadd.f32 %v633, %v635
          %v640 = vadd.f32 %v634, %v636
          %v641 = vand.u32 2147483647, %v637
          %v642 = vand.u32 2147483647, %v638
          %vm643 = vcmp.le.f32.partialorder %v641, 1.0
          %vm644 = vcmp.le.f32.partialorder %v642, 1.0
          %v645 = vmul.f32 %v637, 0.5
          %v646 = vmul.f32 %v638, 0.5
          %v647 = vmul.f32 %v645, %v637
          %v648 = vmul.f32 %v646, %v638
          %v649 = vsub.f32 %v641, 0.5
          %v650 = vsub.f32 %v642, 0.5
          %v651 = vsel %vm643, %v647, %v649
          %v652 = vsel %vm644, %v648, %v650
          %v653 = vand.u32 2147483647, %v639
          %v654 = vand.u32 2147483647, %v640
          %vm655 = vcmp.le.f32.partialorder %v653, 1.0
          %vm656 = vcmp.le.f32.partialorder %v654, 1.0
          %v657 = vmul.f32 %v639, 0.5
          %v658 = vmul.f32 %v640, 0.5
          %v659 = vmul.f32 %v657, %v639
          %v660 = vmul.f32 %v658, %v640
          %v661 = vsub.f32 %v653, 0.5
          %v662 = vsub.f32 %v654, 0.5
          %v663 = vsel %vm655, %v659, %v661
          %v664 = vsel %vm656, %v660, %v662
          %v665 = vadd.f32 %v651, %v663
          %v666 = vadd.f32 %v652, %v664
          %v667 = vadd.f32 %v665, %v666
          %v668 = vrot.slane %v667, 4
          %v669 = vadd.f32 %v667, %v668
          %v670 = vrot.slane %v669, 2
          %v671 = vadd.f32 %v669, %v670
          %v672 = vrot.slane %v671, 1
          %v673 = vadd.f32 %v671, %v672
          %v674 = vadd.f32 %v673, 0.0
          %v675 = vadd.f32 %v637, %v638
          %v676 = vadd.f32 %v639, %v640
          %v677 = vand.u32 2147483647, %v675
          %vm678 = vcmp.le.f32.partialorder %v677, 1.0
          %v679 = vmul.f32 %v675, 0.5
          %v680 = vmul.f32 %v679, %v675
          %v681 = vsub.f32 %v677, 0.5
          %v682 = vsel %vm678, %v680, %v681
          %v683 = vand.u32 2147483647, %v676
          %vm684 = vcmp.le.f32.partialorder %v683, 1.0
          %v685 = vmul.f32 %v676, 0.5
          %v686 = vmul.f32 %v685, %v676
          %v687 = vsub.f32 %v683, 0.5
          %v688 = vsel %vm684, %v686, %v687
          %v689 = vadd.f32 %v682, %v688
          %v690 = vrot.slane %v689, 4
          %v691 = vadd.f32 %v689, %v690
          %v692 = vrot.slane %v691, 2
          %v693 = vadd.f32 %v691, %v692
          %v694 = vrot.slane %v693, 1
          %v695 = vadd.f32 %v693, %v694
          %v696 = vadd.f32 %v674, %v695
          %v698 = vrot.slane %v675, 4
          %v700 = vadd.f32 %v675, %v698
          %v702 = vrot.slane %v676, 4
          %v704 = vadd.f32 %v676, %v702
          %v705 = vand.u32 2147483647, %v700
          %vm706 = vcmp.le.f32.partialorder %v705, 1.0
          %v707 = vmul.f32 %v700, 0.5
          %v708 = vmul.f32 %v707, %v700
          %v709 = vsub.f32 %v705, 0.5
          %v710 = vsel %vm706, %v708, %v709
          %v711 = vand.u32 2147483647, %v704
          %vm712 = vcmp.le.f32.partialorder %v711, 1.0
          %v713 = vmul.f32 %v704, 0.5
          %v714 = vmul.f32 %v713, %v704
          %v715 = vsub.f32 %v711, 0.5
          %v716 = vsel %vm712, %v714, %v715
          %v717 = vadd.f32 %v710, %v716
          %vm718 = vcmask 1043456
          %v719 = vsel %vm718, %v717, 0.0
          %v720 = vrot.slane %v719, 4
          %v721 = vadd.f32 %v719, %v720
          %v722 = vrot.slane %v721, 2
          %v723 = vadd.f32 %v721, %v722
          %v724 = vrot.slane %v723, 1
          %v725 = vadd.f32 %v723, %v724
          %v726 = vadd.f32 %v696, %v725
          %s727 = sadd.s32 %s540, 16
          %s728 = smul.addr %s727, 8
          %s729 = scalar_lea.vmem %s513, %s728 [#allocation3]
          %v730 = vld [vmem:[%s729] sm:$0xff]
          %v731 = vld [vmem:[%s729 + $0x10] sm:$0xff]
          %v732 = vld [vmem:[%s729 + $0x20] sm:$0xff]
          %v733 = vld [vmem:[%s729 + $0x30] sm:$0xff]
          %v734 = vmul.f32 %v730, 0.05
          %v735 = vmul.f32 %v731, 0.05
          %v736 = vmul.f32 %v732, 0.05
          %v737 = vmul.f32 %v733, 0.05
          %s738 = sadd.s32 %s540, 24
          %s739 = smul.addr %s738, 8
          %s740 = scalar_lea.vmem %s513, %s739 [#allocation3]
          %v741 = vld [vmem:[%s740] sm:$0xff]
          %v742 = vld [vmem:[%s740 + $0x10] sm:$0xff]
          %v743 = vld [vmem:[%s740 + $0x20] sm:$0xff]
          %v744 = vld [vmem:[%s740 + $0x30] sm:$0xff]
          %v745 = vmul.f32 %v741, 0.05
          %v746 = vmul.f32 %v742, 0.05
          %v747 = vmul.f32 %v743, 0.05
          %v748 = vmul.f32 %v744, 0.05
          %s749 = sadd.s32 %s540, 32
          %s750 = smul.addr %s749, 8
          %s751 = scalar_lea.vmem %s513, %s750 [#allocation3]
          %v752 = vld [vmem:[%s751] sm:$0xff]
          %v753 = vld [vmem:[%s751 + $0x10] sm:$0xff]
          %v754 = vld [vmem:[%s751 + $0x20] sm:$0xff]
          %v755 = vld [vmem:[%s751 + $0x30] sm:$0xff]
          %v756 = vmul.f32 %v752, 0.05
          %v757 = vmul.f32 %v753, 0.05
          %v758 = vmul.f32 %v754, 0.05
          %v759 = vmul.f32 %v755, 0.05
          %v760 = vmul.f32 %v734, %v734
          %v761 = vmul.f32 %v735, %v735
          %v762 = vmul.f32 %v736, %v736
          %v763 = vmul.f32 %v737, %v737
          %v764 = vmul.f32 %v745, %v745
          %v765 = vmul.f32 %v746, %v746
          %v766 = vmul.f32 %v747, %v747
          %v767 = vmul.f32 %v748, %v748
          %v768 = vadd.f32 %v760, %v764
          %v769 = vadd.f32 %v761, %v765
          %v770 = vadd.f32 %v762, %v766
          %v771 = vadd.f32 %v763, %v767
          %v772 = vmul.f32 %v756, %v756
          %v773 = vmul.f32 %v757, %v757
          %v774 = vmul.f32 %v758, %v758
          %v775 = vmul.f32 %v759, %v759
          %v776 = vadd.f32 %v768, %v772
          %v777 = vadd.f32 %v769, %v773
          %v778 = vadd.f32 %v770, %v774
          %v779 = vadd.f32 %v771, %v775
          %v780 = vrsqrt.pop %v776
          %v781 = vmul.f32 %v776, %v780
          %vm782 = vcmp.eq.f32.partialorder %v776, inf
          %v783 = vsel %vm782, %v776, %v781
          %vm784 = vcmp.eq.f32.partialorder %v776, 0.0
          %v785 = vand.u32 %v776, 2147483648
          %v786 = vsel %vm784, %v785, %v783
          %v787 = vrsqrt.pop %v777
          %v788 = vmul.f32 %v777, %v787
          %vm789 = vcmp.eq.f32.partialorder %v777, inf
          %v790 = vsel %vm789, %v777, %v788
          %vm791 = vcmp.eq.f32.partialorder %v777, 0.0
          %v792 = vand.u32 %v777, 2147483648
          %v793 = vsel %vm791, %v792, %v790
          %v794 = vrsqrt.pop %v778
          %v795 = vmul.f32 %v778, %v794
          %vm796 = vcmp.eq.f32.partialorder %v778, inf
          %v797 = vsel %vm796, %v778, %v795
          %vm798 = vcmp.eq.f32.partialorder %v778, 0.0
          %v799 = vand.u32 %v778, 2147483648
          %v800 = vsel %vm798, %v799, %v797
          %v801 = vrsqrt.pop %v779
          %v802 = vmul.f32 %v779, %v801
          %vm803 = vcmp.eq.f32.partialorder %v779, inf
          %v804 = vsel %vm803, %v779, %v802
          %vm805 = vcmp.eq.f32.partialorder %v779, 0.0
          %v806 = vand.u32 %v779, 2147483648
          %v807 = vsel %vm805, %v806, %v804
          %vm808 = vcmp.lt.f32.partialorder %v786, 1e-07
          %vm809 = vcmp.lt.f32.partialorder %v793, 1e-07
          %vm810 = vcmp.lt.f32.partialorder %v800, 1e-07
          %vm811 = vcmp.lt.f32.partialorder %v807, 1e-07
          %v812 = vsel %vm808, 1.0, %v786
          %v813 = vsel %vm809, 1.0, %v793
          %v814 = vsel %vm810, 1.0, %v800
          %v815 = vsel %vm811, 1.0, %v807
          %v816 = vrcp.pop %v812
          %v817 = vmul.f32 1.0, %v816
          %v818 = vrcp.pop %v813
          %v819 = vmul.f32 1.0, %v818
          %v820 = vrcp.pop %v814
          %v821 = vmul.f32 1.0, %v820
          %v822 = vrcp.pop %v815
          %v823 = vmul.f32 1.0, %v822
          %v824 = vmul.f32 %v734, %v817
          %v825 = vmul.f32 %v735, %v819
          %v826 = vmul.f32 %v736, %v821
          %v827 = vmul.f32 %v737, %v823
          %v828 = vmul.f32 %v745, %v817
          %v829 = vmul.f32 %v746, %v819
          %v830 = vmul.f32 %v747, %v821
          %v831 = vmul.f32 %v748, %v823
          %v832 = vmul.f32 %v756, %v817
          %v833 = vmul.f32 %v757, %v819
          %v834 = vmul.f32 %v758, %v821
          %v835 = vmul.f32 %v759, %v823
          %v836 = vand.u32 2147483647, %v786
          %vm837 = vcmp.le.f32.partialorder %v836, 0.7853982
          %vm838 = vcmp.lt.s32.totalorder %v786, 0
          %v839 = vand.u32 %v786, 2139095040
          %v840 = vshrl.u32 %v839, 23
          %v841 = vsub.s32 %v840, 127
          %v842 = vand.u32 2147483647, %v786
          %v843 = vand.u32 %v842, 8388607
          %v844 = vor.u32 %v843, 8388608
          %v845 = vsub.s32 0, %v844
          %v846 = vadd.s32 %v841, 1
          %vm847 = vcmp.gt.s32.totalorder %v846, 0
          %v848 = vsel %vm847, %v846, 0
          %v849 = vshrl.u32 %v848, 5
          %v850 = vand.u32 %v848, 31
          %v851 = vsub.s32 32, %v850
          %v852 = vshrl.u32 683565275, %v851
          %v853 = vshll.u32 683565275, %v850
          %v854 = vshrl.u32 2475754826, %v851
          %v855 = vor.u32 %v853, %v854
          %v856 = vshll.u32 2475754826, %v850
          %v857 = vshrl.u32 2131351028, %v851
          %v858 = vor.u32 %v856, %v857
          %v859 = vshll.u32 2131351028, %v850
          %v860 = vshrl.u32 2102212464, %v851
          %v861 = vor.u32 %v859, %v860
          %v862 = vshll.u32 2102212464, %v850
          %v863 = vshrl.u32 920167782, %v851
          %v864 = vor.u32 %v862, %v863
          %v865 = vshll.u32 920167782, %v850
          %v866 = vshrl.u32 1326507024, %v851
          %v867 = vor.u32 %v865, %v866
          %vm868 = vcmp.lt.s32.totalorder %v849, 1
          %vm869 = vcmp.lt.s32.totalorder %v849, 2
          %vm870 = vcmp.lt.s32.totalorder %v849, 3
          %vm871 = vcmp.lt.s32.totalorder %v849, 4
          %v872 = vsel %vm868, %v852, %v855
          %v873 = vsel %vm871, %v861, 2102212464
          %v874 = vsel %vm870, %v858, %v873
          %v875 = vsel %vm869, %v872, %v874
          %v876 = vsel %vm868, %v855, %v858
          %v877 = vsel %vm871, %v864, 920167782
          %v878 = vsel %vm870, %v861, %v877
          %v879 = vsel %vm869, %v876, %v878
          %v880 = vsel %vm868, %v858, %v861
          %v881 = vsel %vm871, %v867, 1326507024
          %v882 = vsel %vm870, %v864, %v881
          %v883 = vsel %vm869, %v880, %v882
          %v884 = vshll.u32 %v844, 8
          %v885 = vmul.u32.u64.compose %v884, %v883
          %v886 = vextract.low.u32 %v885
          %v887 = vextract.high.u32 %v885
          %v888 = vmul.u32.u64.compose %v884, %v879
          %v889 = vextract.low.u32 %v888
          %v890 = vextract.high.u32 %v888
          %v891 = vmul.u32 %v884, %v875
          %v892 = vadd.s32 %v887, %v889
          %vm893 = vc.u32 %v887, %v889
          %v894 = vadd.s32 %v890, 1
          %v895 = vsel %vm893, %v894, %v890
          %v896 = vadd.s32 %v891, %v895
          %v897 = vadd.s32 %v896, 536870912
          %v898 = vshrl.u32 %v897, 30
          %v899 = vshll.u32 %v898, 30
          %v900 = vsub.s32 %v896, %v899
          %vm901 = vcmp.lt.s32.totalorder %v900, 0
          %v902 = vsub.s32 0, %v900
          %v903 = vsel %vm901, %v902, %v900
          %v904 = vclz %v903
          %v905 = vsub.s32 %v904, 2
          %vm906 = vcmp.gt.s32.totalorder 0, %v905
          %v907 = vsel %vm906, 0, %v905
          %v908 = vsub.s32 32, %v907
          %v909 = vshll.u32 %v900, %v907
          %v910 = vshrl.u32 %v892, %v908
          %v911 = vor.u32 %v909, %v910
          %v912 = vsub.s32 4294967266, %v907
          %v913 = vadd.s32 %v912, 127
          %v914 = vshll.u32 %v913, 23
          %v915 = vor.u32 4788187, %v914
          %v916 = vand.u32 2147483647, %v915
          %v918 = vcvt.s32.f32 %v911
          %v919 = vmul.f32 %v918, %v916
          %v920 = vxor.u32 %v919, 2147483648
          %v921 = vsel %vm838, %v920, %v919
          %v922 = vsub.s32 4, %v898
          %v923 = vsel %vm838, %v922, %v898
          %v924 = vsel %vm837, %v786, %v921
          %v925 = vsel %vm837, 0, %v923
          %v926 = vcosq.f32.pop %v924
          %v927 = vsinq.f32.pop %v924
          %vm928 = vweird.f32 %v786
          %v929 = vand.u32 %v925, 3
          %vm930 = vcmp.lt.s32.totalorder %v929, 2
          %vm931 = vcmp.eq.s32.totalorder %v929, 0
          %v932 = vxor.u32 %v927, 2147483648
          %v933 = vsel %vm931, %v926, %v932
          %vm934 = vcmp.eq.s32.totalorder %v929, 2
          %v935 = vxor.u32 %v926, 2147483648
          %v936 = vsel %vm934, %v935, %v927
          %v937 = vsel %vm930, %v933, %v936
          %v938 = vsel %vm928, nan, %v937
          %v939 = vand.u32 2147483647, %v793
          %vm940 = vcmp.le.f32.partialorder %v939, 0.7853982
          %vm941 = vcmp.lt.s32.totalorder %v793, 0
          %v942 = vand.u32 %v793, 2139095040
          %v943 = vshrl.u32 %v942, 23
          %v944 = vsub.s32 %v943, 127
          %v945 = vand.u32 2147483647, %v793
          %v946 = vand.u32 %v945, 8388607
          %v947 = vor.u32 %v946, 8388608
          %v948 = vsub.s32 0, %v947
          %v949 = vadd.s32 %v944, 1
          %vm950 = vcmp.gt.s32.totalorder %v949, 0
          %v951 = vsel %vm950, %v949, 0
          %v952 = vshrl.u32 %v951, 5
          %v953 = vand.u32 %v951, 31
          %v954 = vsub.s32 32, %v953
          %v955 = vshrl.u32 683565275, %v954
          %v956 = vshll.u32 683565275, %v953
          %v957 = vshrl.u32 2475754826, %v954
          %v958 = vor.u32 %v956, %v957
          %v959 = vshll.u32 2475754826, %v953
          %v960 = vshrl.u32 2131351028, %v954
          %v961 = vor.u32 %v959, %v960
          %v962 = vshll.u32 2131351028, %v953
          %v963 = vshrl.u32 2102212464, %v954
          %v964 = vor.u32 %v962, %v963
          %v965 = vshll.u32 2102212464, %v953
          %v966 = vshrl.u32 920167782, %v954
          %v967 = vor.u32 %v965, %v966
          %v968 = vshll.u32 920167782, %v953
          %v969 = vshrl.u32 1326507024, %v954
          %v970 = vor.u32 %v968, %v969
          %vm971 = vcmp.lt.s32.totalorder %v952, 1
          %vm972 = vcmp.lt.s32.totalorder %v952, 2
          %vm973 = vcmp.lt.s32.totalorder %v952, 3
          %vm974 = vcmp.lt.s32.totalorder %v952, 4
          %v975 = vsel %vm971, %v955, %v958
          %v976 = vsel %vm974, %v964, 2102212464
          %v977 = vsel %vm973, %v961, %v976
          %v978 = vsel %vm972, %v975, %v977
          %v979 = vsel %vm971, %v958, %v961
          %v980 = vsel %vm974, %v967, 920167782
          %v981 = vsel %vm973, %v964, %v980
          %v982 = vsel %vm972, %v979, %v981
          %v983 = vsel %vm971, %v961, %v964
          %v984 = vsel %vm974, %v970, 1326507024
          %v985 = vsel %vm973, %v967, %v984
          %v986 = vsel %vm972, %v983, %v985
          %v987 = vshll.u32 %v947, 8
          %v988 = vmul.u32.u64.compose %v987, %v986
          %v989 = vextract.low.u32 %v988
          %v990 = vextract.high.u32 %v988
          %v991 = vmul.u32.u64.compose %v987, %v982
          %v992 = vextract.low.u32 %v991
          %v993 = vextract.high.u32 %v991
          %v994 = vmul.u32 %v987, %v978
          %v995 = vadd.s32 %v990, %v992
          %vm996 = vc.u32 %v990, %v992
          %v997 = vadd.s32 %v993, 1
          %v998 = vsel %vm996, %v997, %v993
          %v999 = vadd.s32 %v994, %v998
          %v1000 = vadd.s32 %v999, 536870912
          %v1001 = vshrl.u32 %v1000, 30
          %v1002 = vshll.u32 %v1001, 30
          %v1003 = vsub.s32 %v999, %v1002
          %vm1004 = vcmp.lt.s32.totalorder %v1003, 0
          %v1005 = vsub.s32 0, %v1003
          %v1006 = vsel %vm1004, %v1005, %v1003
          %v1007 = vclz %v1006
          %v1008 = vsub.s32 %v1007, 2
          %vm1009 = vcmp.gt.s32.totalorder 0, %v1008
          %v1010 = vsel %vm1009, 0, %v1008
          %v1011 = vsub.s32 32, %v1010
          %v1012 = vshll.u32 %v1003, %v1010
          %v1013 = vshrl.u32 %v995, %v1011
          %v1014 = vor.u32 %v1012, %v1013
          %v1015 = vsub.s32 4294967266, %v1010
          %v1016 = vadd.s32 %v1015, 127
          %v1017 = vshll.u32 %v1016, 23
          %v1018 = vor.u32 4788187, %v1017
          %v1019 = vand.u32 2147483647, %v1018
          %v1021 = vcvt.s32.f32 %v1014
          %v1022 = vmul.f32 %v1021, %v1019
          %v1023 = vxor.u32 %v1022, 2147483648
          %v1024 = vsel %vm941, %v1023, %v1022
          %v1025 = vsub.s32 4, %v1001
          %v1026 = vsel %vm941, %v1025, %v1001
          %v1027 = vsel %vm940, %v793, %v1024
          %v1028 = vsel %vm940, 0, %v1026
          %v1029 = vcosq.f32.pop %v1027
          %v1030 = vsinq.f32.pop %v1027
          %vm1031 = vweird.f32 %v793
          %v1032 = vand.u32 %v1028, 3
          %vm1033 = vcmp.lt.s32.totalorder %v1032, 2
          %vm1034 = vcmp.eq.s32.totalorder %v1032, 0
          %v1035 = vxor.u32 %v1030, 2147483648
          %v1036 = vsel %vm1034, %v1029, %v1035
          %vm1037 = vcmp.eq.s32.totalorder %v1032, 2
          %v1038 = vxor.u32 %v1029, 2147483648
          %v1039 = vsel %vm1037, %v1038, %v1030
          %v1040 = vsel %vm1033, %v1036, %v1039
          %v1041 = vsel %vm1031, nan, %v1040
          %v1042 = vand.u32 2147483647, %v800
          %vm1043 = vcmp.le.f32.partialorder %v1042, 0.7853982
          %vm1044 = vcmp.lt.s32.totalorder %v800, 0
          %v1045 = vand.u32 %v800, 2139095040
          %v1046 = vshrl.u32 %v1045, 23
          %v1047 = vsub.s32 %v1046, 127
          %v1048 = vand.u32 2147483647, %v800
          %v1049 = vand.u32 %v1048, 8388607
          %v1050 = vor.u32 %v1049, 8388608
          %v1051 = vsub.s32 0, %v1050
          %v1052 = vadd.s32 %v1047, 1
          %vm1053 = vcmp.gt.s32.totalorder %v1052, 0
          %v1054 = vsel %vm1053, %v1052, 0
          %v1055 = vshrl.u32 %v1054, 5
          %v1056 = vand.u32 %v1054, 31
          %v1057 = vsub.s32 32, %v1056
          %v1058 = vshrl.u32 683565275, %v1057
          %v1059 = vshll.u32 683565275, %v1056
          %v1060 = vshrl.u32 2475754826, %v1057
          %v1061 = vor.u32 %v1059, %v1060
          %v1062 = vshll.u32 2475754826, %v1056
          %v1063 = vshrl.u32 2131351028, %v1057
          %v1064 = vor.u32 %v1062, %v1063
          %v1065 = vshll.u32 2131351028, %v1056
          %v1066 = vshrl.u32 2102212464, %v1057
          %v1067 = vor.u32 %v1065, %v1066
          %v1068 = vshll.u32 2102212464, %v1056
          %v1069 = vshrl.u32 920167782, %v1057
          %v1070 = vor.u32 %v1068, %v1069
          %v1071 = vshll.u32 920167782, %v1056
          %v1072 = vshrl.u32 1326507024, %v1057
          %v1073 = vor.u32 %v1071, %v1072
          %vm1074 = vcmp.lt.s32.totalorder %v1055, 1
          %vm1075 = vcmp.lt.s32.totalorder %v1055, 2
          %vm1076 = vcmp.lt.s32.totalorder %v1055, 3
          %vm1077 = vcmp.lt.s32.totalorder %v1055, 4
          %v1078 = vsel %vm1074, %v1058, %v1061
          %v1079 = vsel %vm1077, %v1067, 2102212464
          %v1080 = vsel %vm1076, %v1064, %v1079
          %v1081 = vsel %vm1075, %v1078, %v1080
          %v1082 = vsel %vm1074, %v1061, %v1064
          %v1083 = vsel %vm1077, %v1070, 920167782
          %v1084 = vsel %vm1076, %v1067, %v1083
          %v1085 = vsel %vm1075, %v1082, %v1084
          %v1086 = vsel %vm1074, %v1064, %v1067
          %v1087 = vsel %vm1077, %v1073, 1326507024
          %v1088 = vsel %vm1076, %v1070, %v1087
          %v1089 = vsel %vm1075, %v1086, %v1088
          %v1090 = vshll.u32 %v1050, 8
          %v1091 = vmul.u32.u64.compose %v1090, %v1089
          %v1092 = vextract.low.u32 %v1091
          %v1093 = vextract.high.u32 %v1091
          %v1094 = vmul.u32.u64.compose %v1090, %v1085
          %v1095 = vextract.low.u32 %v1094
          %v1096 = vextract.high.u32 %v1094
          %v1097 = vmul.u32 %v1090, %v1081
          %v1098 = vadd.s32 %v1093, %v1095
          %vm1099 = vc.u32 %v1093, %v1095
          %v1100 = vadd.s32 %v1096, 1
          %v1101 = vsel %vm1099, %v1100, %v1096
          %v1102 = vadd.s32 %v1097, %v1101
          %v1103 = vadd.s32 %v1102, 536870912
          %v1104 = vshrl.u32 %v1103, 30
          %v1105 = vshll.u32 %v1104, 30
          %v1106 = vsub.s32 %v1102, %v1105
          %vm1107 = vcmp.lt.s32.totalorder %v1106, 0
          %v1108 = vsub.s32 0, %v1106
          %v1109 = vsel %vm1107, %v1108, %v1106
          %v1110 = vclz %v1109
          %v1111 = vsub.s32 %v1110, 2
          %vm1112 = vcmp.gt.s32.totalorder 0, %v1111
          %v1113 = vsel %vm1112, 0, %v1111
          %v1114 = vsub.s32 32, %v1113
          %v1115 = vshll.u32 %v1106, %v1113
          %v1116 = vshrl.u32 %v1098, %v1114
          %v1117 = vor.u32 %v1115, %v1116
          %v1118 = vsub.s32 4294967266, %v1113
          %v1119 = vadd.s32 %v1118, 127
          %v1120 = vshll.u32 %v1119, 23
          %v1121 = vor.u32 4788187, %v1120
          %v1122 = vand.u32 2147483647, %v1121
          %v1124 = vcvt.s32.f32 %v1117
          %v1125 = vmul.f32 %v1124, %v1122
          %v1126 = vxor.u32 %v1125, 2147483648
          %v1127 = vsel %vm1044, %v1126, %v1125
          %v1128 = vsub.s32 4, %v1104
          %v1129 = vsel %vm1044, %v1128, %v1104
          %v1130 = vsel %vm1043, %v800, %v1127
          %v1131 = vsel %vm1043, 0, %v1129
          %v1132 = vcosq.f32.pop %v1130
          %v1133 = vsinq.f32.pop %v1130
          %vm1134 = vweird.f32 %v800
          %v1135 = vand.u32 %v1131, 3
          %vm1136 = vcmp.lt.s32.totalorder %v1135, 2
          %vm1137 = vcmp.eq.s32.totalorder %v1135, 0
          %v1138 = vxor.u32 %v1133, 2147483648
          %v1139 = vsel %vm1137, %v1132, %v1138
          %vm1140 = vcmp.eq.s32.totalorder %v1135, 2
          %v1141 = vxor.u32 %v1132, 2147483648
          %v1142 = vsel %vm1140, %v1141, %v1133
          %v1143 = vsel %vm1136, %v1139, %v1142
          %v1144 = vsel %vm1134, nan, %v1143
          %v1145 = vand.u32 2147483647, %v807
          %vm1146 = vcmp.le.f32.partialorder %v1145, 0.7853982
          %vm1147 = vcmp.lt.s32.totalorder %v807, 0
          %v1148 = vand.u32 %v807, 2139095040
          %v1149 = vshrl.u32 %v1148, 23
          %v1150 = vsub.s32 %v1149, 127
          %v1151 = vand.u32 2147483647, %v807
          %v1152 = vand.u32 %v1151, 8388607
          %v1153 = vor.u32 %v1152, 8388608
          %v1154 = vsub.s32 0, %v1153
          %v1155 = vadd.s32 %v1150, 1
          %vm1156 = vcmp.gt.s32.totalorder %v1155, 0
          %v1157 = vsel %vm1156, %v1155, 0
          %v1158 = vshrl.u32 %v1157, 5
          %v1159 = vand.u32 %v1157, 31
          %v1160 = vsub.s32 32, %v1159
          %v1161 = vshrl.u32 683565275, %v1160
          %v1162 = vshll.u32 683565275, %v1159
          %v1163 = vshrl.u32 2475754826, %v1160
          %v1164 = vor.u32 %v1162, %v1163
          %v1165 = vshll.u32 2475754826, %v1159
          %v1166 = vshrl.u32 2131351028, %v1160
          %v1167 = vor.u32 %v1165, %v1166
          %v1168 = vshll.u32 2131351028, %v1159
          %v1169 = vshrl.u32 2102212464, %v1160
          %v1170 = vor.u32 %v1168, %v1169
          %v1171 = vshll.u32 2102212464, %v1159
          %v1172 = vshrl.u32 920167782, %v1160
          %v1173 = vor.u32 %v1171, %v1172
          %v1174 = vshll.u32 920167782, %v1159
          %v1175 = vshrl.u32 1326507024, %v1160
          %v1176 = vor.u32 %v1174, %v1175
          %vm1177 = vcmp.lt.s32.totalorder %v1158, 1
          %vm1178 = vcmp.lt.s32.totalorder %v1158, 2
          %vm1179 = vcmp.lt.s32.totalorder %v1158, 3
          %vm1180 = vcmp.lt.s32.totalorder %v1158, 4
          %v1181 = vsel %vm1177, %v1161, %v1164
          %v1182 = vsel %vm1180, %v1170, 2102212464
          %v1183 = vsel %vm1179, %v1167, %v1182
          %v1184 = vsel %vm1178, %v1181, %v1183
          %v1185 = vsel %vm1177, %v1164, %v1167
          %v1186 = vsel %vm1180, %v1173, 920167782
          %v1187 = vsel %vm1179, %v1170, %v1186
          %v1188 = vsel %vm1178, %v1185, %v1187
          %v1189 = vsel %vm1177, %v1167, %v1170
          %v1190 = vsel %vm1180, %v1176, 1326507024
          %v1191 = vsel %vm1179, %v1173, %v1190
          %v1192 = vsel %vm1178, %v1189, %v1191
          %v1193 = vshll.u32 %v1153, 8
          %v1194 = vmul.u32.u64.compose %v1193, %v1192
          %v1195 = vextract.low.u32 %v1194
          %v1196 = vextract.high.u32 %v1194
          %v1197 = vmul.u32.u64.compose %v1193, %v1188
          %v1198 = vextract.low.u32 %v1197
          %v1199 = vextract.high.u32 %v1197
          %v1200 = vmul.u32 %v1193, %v1184
          %v1201 = vadd.s32 %v1196, %v1198
          %vm1202 = vc.u32 %v1196, %v1198
          %v1203 = vadd.s32 %v1199, 1
          %v1204 = vsel %vm1202, %v1203, %v1199
          %v1205 = vadd.s32 %v1200, %v1204
          %v1206 = vadd.s32 %v1205, 536870912
          %v1207 = vshrl.u32 %v1206, 30
          %v1208 = vshll.u32 %v1207, 30
          %v1209 = vsub.s32 %v1205, %v1208
          %vm1210 = vcmp.lt.s32.totalorder %v1209, 0
          %v1211 = vsub.s32 0, %v1209
          %v1212 = vsel %vm1210, %v1211, %v1209
          %v1213 = vclz %v1212
          %v1214 = vsub.s32 %v1213, 2
          %vm1215 = vcmp.gt.s32.totalorder 0, %v1214
          %v1216 = vsel %vm1215, 0, %v1214
          %v1217 = vsub.s32 32, %v1216
          %v1218 = vshll.u32 %v1209, %v1216
          %v1219 = vshrl.u32 %v1201, %v1217
          %v1220 = vor.u32 %v1218, %v1219
          %v1221 = vsub.s32 4294967266, %v1216
          %v1222 = vadd.s32 %v1221, 127
          %v1223 = vshll.u32 %v1222, 23
          %v1224 = vor.u32 4788187, %v1223
          %v1225 = vand.u32 2147483647, %v1224
          %v1227 = vcvt.s32.f32 %v1220
          %v1228 = vmul.f32 %v1227, %v1225
          %v1229 = vxor.u32 %v1228, 2147483648
          %v1230 = vsel %vm1147, %v1229, %v1228
          %v1231 = vsub.s32 4, %v1207
          %v1232 = vsel %vm1147, %v1231, %v1207
          %v1233 = vsel %vm1146, %v807, %v1230
          %v1234 = vsel %vm1146, 0, %v1232
          %v1235 = vcosq.f32.pop %v1233
          %v1236 = vsinq.f32.pop %v1233
          %vm1237 = vweird.f32 %v807
          %v1238 = vand.u32 %v1234, 3
          %vm1239 = vcmp.lt.s32.totalorder %v1238, 2
          %vm1240 = vcmp.eq.s32.totalorder %v1238, 0
          %v1241 = vxor.u32 %v1236, 2147483648
          %v1242 = vsel %vm1240, %v1235, %v1241
          %vm1243 = vcmp.eq.s32.totalorder %v1238, 2
          %v1244 = vxor.u32 %v1235, 2147483648
          %v1245 = vsel %vm1243, %v1244, %v1236
          %v1246 = vsel %vm1239, %v1242, %v1245
          %v1247 = vsel %vm1237, nan, %v1246
          %v1248 = vand.u32 2147483647, %v786
          %vm1249 = vcmp.le.f32.partialorder %v1248, 0.7853982
          %vm1250 = vcmp.lt.s32.totalorder %v786, 0
          %v1251 = vand.u32 %v786, 2139095040
          %v1252 = vshrl.u32 %v1251, 23
          %v1253 = vsub.s32 %v1252, 127
          %v1254 = vand.u32 2147483647, %v786
          %v1255 = vand.u32 %v1254, 8388607
          %v1256 = vor.u32 %v1255, 8388608
          %v1257 = vsub.s32 0, %v1256
          %v1258 = vadd.s32 %v1253, 1
          %vm1259 = vcmp.gt.s32.totalorder %v1258, 0
          %v1260 = vsel %vm1259, %v1258, 0
          %v1261 = vshrl.u32 %v1260, 5
          %v1262 = vand.u32 %v1260, 31
          %v1263 = vsub.s32 32, %v1262
          %v1264 = vshrl.u32 683565275, %v1263
          %v1265 = vshll.u32 683565275, %v1262
          %v1266 = vshrl.u32 2475754826, %v1263
          %v1267 = vor.u32 %v1265, %v1266
          %v1268 = vshll.u32 2475754826, %v1262
          %v1269 = vshrl.u32 2131351028, %v1263
          %v1270 = vor.u32 %v1268, %v1269
          %v1271 = vshll.u32 2131351028, %v1262
          %v1272 = vshrl.u32 2102212464, %v1263
          %v1273 = vor.u32 %v1271, %v1272
          %v1274 = vshll.u32 2102212464, %v1262
          %v1275 = vshrl.u32 920167782, %v1263
          %v1276 = vor.u32 %v1274, %v1275
          %v1277 = vshll.u32 920167782, %v1262
          %v1278 = vshrl.u32 1326507024, %v1263
          %v1279 = vor.u32 %v1277, %v1278
          %vm1280 = vcmp.lt.s32.totalorder %v1261, 1
          %vm1281 = vcmp.lt.s32.totalorder %v1261, 2
          %vm1282 = vcmp.lt.s32.totalorder %v1261, 3
          %vm1283 = vcmp.lt.s32.totalorder %v1261, 4
          %v1284 = vsel %vm1280, %v1264, %v1267
          %v1285 = vsel %vm1283, %v1273, 2102212464
          %v1286 = vsel %vm1282, %v1270, %v1285
          %v1287 = vsel %vm1281, %v1284, %v1286
          %v1288 = vsel %vm1280, %v1267, %v1270
          %v1289 = vsel %vm1283, %v1276, 920167782
          %v1290 = vsel %vm1282, %v1273, %v1289
          %v1291 = vsel %vm1281, %v1288, %v1290
          %v1292 = vsel %vm1280, %v1270, %v1273
          %v1293 = vsel %vm1283, %v1279, 1326507024
          %v1294 = vsel %vm1282, %v1276, %v1293
          %v1295 = vsel %vm1281, %v1292, %v1294
          %v1296 = vshll.u32 %v1256, 8
          %v1297 = vmul.u32.u64.compose %v1296, %v1295
          %v1298 = vextract.low.u32 %v1297
          %v1299 = vextract.high.u32 %v1297
          %v1300 = vmul.u32.u64.compose %v1296, %v1291
          %v1301 = vextract.low.u32 %v1300
          %v1302 = vextract.high.u32 %v1300
          %v1303 = vmul.u32 %v1296, %v1287
          %v1304 = vadd.s32 %v1299, %v1301
          %vm1305 = vc.u32 %v1299, %v1301
          %v1306 = vadd.s32 %v1302, 1
          %v1307 = vsel %vm1305, %v1306, %v1302
          %v1308 = vadd.s32 %v1303, %v1307
          %v1309 = vadd.s32 %v1308, 536870912
          %v1310 = vshrl.u32 %v1309, 30
          %v1311 = vshll.u32 %v1310, 30
          %v1312 = vsub.s32 %v1308, %v1311
          %vm1313 = vcmp.lt.s32.totalorder %v1312, 0
          %v1314 = vsub.s32 0, %v1312
          %v1315 = vsel %vm1313, %v1314, %v1312
          %v1316 = vclz %v1315
          %v1317 = vsub.s32 %v1316, 2
          %vm1318 = vcmp.gt.s32.totalorder 0, %v1317
          %v1319 = vsel %vm1318, 0, %v1317
          %v1320 = vsub.s32 32, %v1319
          %v1321 = vshll.u32 %v1312, %v1319
          %v1322 = vshrl.u32 %v1304, %v1320
          %v1323 = vor.u32 %v1321, %v1322
          %v1324 = vsub.s32 4294967266, %v1319
          %v1325 = vadd.s32 %v1324, 127
          %v1326 = vshll.u32 %v1325, 23
          %v1327 = vor.u32 4788187, %v1326
          %v1328 = vand.u32 2147483647, %v1327
          %v1330 = vcvt.s32.f32 %v1323
          %v1331 = vmul.f32 %v1330, %v1328
          %v1332 = vxor.u32 %v1331, 2147483648
          %v1333 = vsel %vm1250, %v1332, %v1331
          %v1334 = vsub.s32 4, %v1310
          %v1335 = vsel %vm1250, %v1334, %v1310
          %v1336 = vsel %vm1249, %v786, %v1333
          %v1337 = vsel %vm1249, 0, %v1335
          %v1338 = vcosq.f32.pop %v1336
          %v1339 = vsinq.f32.pop %v1336
          %vm1340 = vweird.f32 %v786
          %v1341 = vadd.s32 %v1337, 3
          %v1342 = vand.u32 %v1341, 3
          %vm1343 = vcmp.lt.s32.totalorder %v1342, 2
          %vm1344 = vcmp.eq.s32.totalorder %v1342, 0
          %v1345 = vxor.u32 %v1339, 2147483648
          %v1346 = vsel %vm1344, %v1338, %v1345
          %vm1347 = vcmp.eq.s32.totalorder %v1342, 2
          %v1348 = vxor.u32 %v1338, 2147483648
          %v1349 = vsel %vm1347, %v1348, %v1339
          %v1350 = vsel %vm1343, %v1346, %v1349
          %v1351 = vsel %vm1340, nan, %v1350
          %v1352 = vand.u32 2147483647, %v793
          %vm1353 = vcmp.le.f32.partialorder %v1352, 0.7853982
          %vm1354 = vcmp.lt.s32.totalorder %v793, 0
          %v1355 = vand.u32 %v793, 2139095040
          %v1356 = vshrl.u32 %v1355, 23
          %v1357 = vsub.s32 %v1356, 127
          %v1358 = vand.u32 2147483647, %v793
          %v1359 = vand.u32 %v1358, 8388607
          %v1360 = vor.u32 %v1359, 8388608
          %v1361 = vsub.s32 0, %v1360
          %v1362 = vadd.s32 %v1357, 1
          %vm1363 = vcmp.gt.s32.totalorder %v1362, 0
          %v1364 = vsel %vm1363, %v1362, 0
          %v1365 = vshrl.u32 %v1364, 5
          %v1366 = vand.u32 %v1364, 31
          %v1367 = vsub.s32 32, %v1366
          %v1368 = vshrl.u32 683565275, %v1367
          %v1369 = vshll.u32 683565275, %v1366
          %v1370 = vshrl.u32 2475754826, %v1367
          %v1371 = vor.u32 %v1369, %v1370
          %v1372 = vshll.u32 2475754826, %v1366
          %v1373 = vshrl.u32 2131351028, %v1367
          %v1374 = vor.u32 %v1372, %v1373
          %v1375 = vshll.u32 2131351028, %v1366
          %v1376 = vshrl.u32 2102212464, %v1367
          %v1377 = vor.u32 %v1375, %v1376
          %v1378 = vshll.u32 2102212464, %v1366
          %v1379 = vshrl.u32 920167782, %v1367
          %v1380 = vor.u32 %v1378, %v1379
          %v1381 = vshll.u32 920167782, %v1366
          %v1382 = vshrl.u32 1326507024, %v1367
          %v1383 = vor.u32 %v1381, %v1382
          %vm1384 = vcmp.lt.s32.totalorder %v1365, 1
          %vm1385 = vcmp.lt.s32.totalorder %v1365, 2
          %vm1386 = vcmp.lt.s32.totalorder %v1365, 3
          %vm1387 = vcmp.lt.s32.totalorder %v1365, 4
          %v1388 = vsel %vm1384, %v1368, %v1371
          %v1389 = vsel %vm1387, %v1377, 2102212464
          %v1390 = vsel %vm1386, %v1374, %v1389
          %v1391 = vsel %vm1385, %v1388, %v1390
          %v1392 = vsel %vm1384, %v1371, %v1374
          %v1393 = vsel %vm1387, %v1380, 920167782
          %v1394 = vsel %vm1386, %v1377, %v1393
          %v1395 = vsel %vm1385, %v1392, %v1394
          %v1396 = vsel %vm1384, %v1374, %v1377
          %v1397 = vsel %vm1387, %v1383, 1326507024
          %v1398 = vsel %vm1386, %v1380, %v1397
          %v1399 = vsel %vm1385, %v1396, %v1398
          %v1400 = vshll.u32 %v1360, 8
          %v1401 = vmul.u32.u64.compose %v1400, %v1399
          %v1402 = vextract.low.u32 %v1401
          %v1403 = vextract.high.u32 %v1401
          %v1404 = vmul.u32.u64.compose %v1400, %v1395
          %v1405 = vextract.low.u32 %v1404
          %v1406 = vextract.high.u32 %v1404
          %v1407 = vmul.u32 %v1400, %v1391
          %v1408 = vadd.s32 %v1403, %v1405
          %vm1409 = vc.u32 %v1403, %v1405
          %v1410 = vadd.s32 %v1406, 1
          %v1411 = vsel %vm1409, %v1410, %v1406
          %v1412 = vadd.s32 %v1407, %v1411
          %v1413 = vadd.s32 %v1412, 536870912
          %v1414 = vshrl.u32 %v1413, 30
          %v1415 = vshll.u32 %v1414, 30
          %v1416 = vsub.s32 %v1412, %v1415
          %vm1417 = vcmp.lt.s32.totalorder %v1416, 0
          %v1418 = vsub.s32 0, %v1416
          %v1419 = vsel %vm1417, %v1418, %v1416
          %v1420 = vclz %v1419
          %v1421 = vsub.s32 %v1420, 2
          %vm1422 = vcmp.gt.s32.totalorder 0, %v1421
          %v1423 = vsel %vm1422, 0, %v1421
          %v1424 = vsub.s32 32, %v1423
          %v1425 = vshll.u32 %v1416, %v1423
          %v1426 = vshrl.u32 %v1408, %v1424
          %v1427 = vor.u32 %v1425, %v1426
          %v1428 = vsub.s32 4294967266, %v1423
          %v1429 = vadd.s32 %v1428, 127
          %v1430 = vshll.u32 %v1429, 23
          %v1431 = vor.u32 4788187, %v1430
          %v1432 = vand.u32 2147483647, %v1431
          %v1434 = vcvt.s32.f32 %v1427
          %v1435 = vmul.f32 %v1434, %v1432
          %v1436 = vxor.u32 %v1435, 2147483648
          %v1437 = vsel %vm1354, %v1436, %v1435
          %v1438 = vsub.s32 4, %v1414
          %v1439 = vsel %vm1354, %v1438, %v1414
          %v1440 = vsel %vm1353, %v793, %v1437
          %v1441 = vsel %vm1353, 0, %v1439
          %v1442 = vcosq.f32.pop %v1440
          %v1443 = vsinq.f32.pop %v1440
          %vm1444 = vweird.f32 %v793
          %v1445 = vadd.s32 %v1441, 3
          %v1446 = vand.u32 %v1445, 3
          %vm1447 = vcmp.lt.s32.totalorder %v1446, 2
          %vm1448 = vcmp.eq.s32.totalorder %v1446, 0
          %v1449 = vxor.u32 %v1443, 2147483648
          %v1450 = vsel %vm1448, %v1442, %v1449
          %vm1451 = vcmp.eq.s32.totalorder %v1446, 2
          %v1452 = vxor.u32 %v1442, 2147483648
          %v1453 = vsel %vm1451, %v1452, %v1443
          %v1454 = vsel %vm1447, %v1450, %v1453
          %v1455 = vsel %vm1444, nan, %v1454
          %v1456 = vand.u32 2147483647, %v800
          %vm1457 = vcmp.le.f32.partialorder %v1456, 0.7853982
          %vm1458 = vcmp.lt.s32.totalorder %v800, 0
          %v1459 = vand.u32 %v800, 2139095040
          %v1460 = vshrl.u32 %v1459, 23
          %v1461 = vsub.s32 %v1460, 127
          %v1462 = vand.u32 2147483647, %v800
          %v1463 = vand.u32 %v1462, 8388607
          %v1464 = vor.u32 %v1463, 8388608
          %v1465 = vsub.s32 0, %v1464
          %v1466 = vadd.s32 %v1461, 1
          %vm1467 = vcmp.gt.s32.totalorder %v1466, 0
          %v1468 = vsel %vm1467, %v1466, 0
          %v1469 = vshrl.u32 %v1468, 5
          %v1470 = vand.u32 %v1468, 31
          %v1471 = vsub.s32 32, %v1470
          %v1472 = vshrl.u32 683565275, %v1471
          %v1473 = vshll.u32 683565275, %v1470
          %v1474 = vshrl.u32 2475754826, %v1471
          %v1475 = vor.u32 %v1473, %v1474
          %v1476 = vshll.u32 2475754826, %v1470
          %v1477 = vshrl.u32 2131351028, %v1471
          %v1478 = vor.u32 %v1476, %v1477
          %v1479 = vshll.u32 2131351028, %v1470
          %v1480 = vshrl.u32 2102212464, %v1471
          %v1481 = vor.u32 %v1479, %v1480
          %v1482 = vshll.u32 2102212464, %v1470
          %v1483 = vshrl.u32 920167782, %v1471
          %v1484 = vor.u32 %v1482, %v1483
          %v1485 = vshll.u32 920167782, %v1470
          %v1486 = vshrl.u32 1326507024, %v1471
          %v1487 = vor.u32 %v1485, %v1486
          %vm1488 = vcmp.lt.s32.totalorder %v1469, 1
          %vm1489 = vcmp.lt.s32.totalorder %v1469, 2
          %vm1490 = vcmp.lt.s32.totalorder %v1469, 3
          %vm1491 = vcmp.lt.s32.totalorder %v1469, 4
          %v1492 = vsel %vm1488, %v1472, %v1475
          %v1493 = vsel %vm1491, %v1481, 2102212464
          %v1494 = vsel %vm1490, %v1478, %v1493
          %v1495 = vsel %vm1489, %v1492, %v1494
          %v1496 = vsel %vm1488, %v1475, %v1478
          %v1497 = vsel %vm1491, %v1484, 920167782
          %v1498 = vsel %vm1490, %v1481, %v1497
          %v1499 = vsel %vm1489, %v1496, %v1498
          %v1500 = vsel %vm1488, %v1478, %v1481
          %v1501 = vsel %vm1491, %v1487, 1326507024
          %v1502 = vsel %vm1490, %v1484, %v1501
          %v1503 = vsel %vm1489, %v1500, %v1502
          %v1504 = vshll.u32 %v1464, 8
          %v1505 = vmul.u32.u64.compose %v1504, %v1503
          %v1506 = vextract.low.u32 %v1505
          %v1507 = vextract.high.u32 %v1505
          %v1508 = vmul.u32.u64.compose %v1504, %v1499
          %v1509 = vextract.low.u32 %v1508
          %v1510 = vextract.high.u32 %v1508
          %v1511 = vmul.u32 %v1504, %v1495
          %v1512 = vadd.s32 %v1507, %v1509
          %vm1513 = vc.u32 %v1507, %v1509
          %v1514 = vadd.s32 %v1510, 1
          %v1515 = vsel %vm1513, %v1514, %v1510
          %v1516 = vadd.s32 %v1511, %v1515
          %v1517 = vadd.s32 %v1516, 536870912
          %v1518 = vshrl.u32 %v1517, 30
          %v1519 = vshll.u32 %v1518, 30
          %v1520 = vsub.s32 %v1516, %v1519
          %vm1521 = vcmp.lt.s32.totalorder %v1520, 0
          %v1522 = vsub.s32 0, %v1520
          %v1523 = vsel %vm1521, %v1522, %v1520
          %v1524 = vclz %v1523
          %v1525 = vsub.s32 %v1524, 2
          %vm1526 = vcmp.gt.s32.totalorder 0, %v1525
          %v1527 = vsel %vm1526, 0, %v1525
          %v1528 = vsub.s32 32, %v1527
          %v1529 = vshll.u32 %v1520, %v1527
          %v1530 = vshrl.u32 %v1512, %v1528
          %v1531 = vor.u32 %v1529, %v1530
          %v1532 = vsub.s32 4294967266, %v1527
          %v1533 = vadd.s32 %v1532, 127
          %v1534 = vshll.u32 %v1533, 23
          %v1535 = vor.u32 4788187, %v1534
          %v1536 = vand.u32 2147483647, %v1535
          %v1538 = vcvt.s32.f32 %v1531
          %v1539 = vmul.f32 %v1538, %v1536
          %v1540 = vxor.u32 %v1539, 2147483648
          %v1541 = vsel %vm1458, %v1540, %v1539
          %v1542 = vsub.s32 4, %v1518
          %v1543 = vsel %vm1458, %v1542, %v1518
          %v1544 = vsel %vm1457, %v800, %v1541
          %v1545 = vsel %vm1457, 0, %v1543
          %v1546 = vcosq.f32.pop %v1544
          %v1547 = vsinq.f32.pop %v1544
          %vm1548 = vweird.f32 %v800
          %v1549 = vadd.s32 %v1545, 3
          %v1550 = vand.u32 %v1549, 3
          %vm1551 = vcmp.lt.s32.totalorder %v1550, 2
          %vm1552 = vcmp.eq.s32.totalorder %v1550, 0
          %v1553 = vxor.u32 %v1547, 2147483648
          %v1554 = vsel %vm1552, %v1546, %v1553
          %vm1555 = vcmp.eq.s32.totalorder %v1550, 2
          %v1556 = vxor.u32 %v1546, 2147483648
          %v1557 = vsel %vm1555, %v1556, %v1547
          %v1558 = vsel %vm1551, %v1554, %v1557
          %v1559 = vsel %vm1548, nan, %v1558
          %v1560 = vand.u32 2147483647, %v807
          %vm1561 = vcmp.le.f32.partialorder %v1560, 0.7853982
          %vm1562 = vcmp.lt.s32.totalorder %v807, 0
          %v1563 = vand.u32 %v807, 2139095040
          %v1564 = vshrl.u32 %v1563, 23
          %v1565 = vsub.s32 %v1564, 127
          %v1566 = vand.u32 2147483647, %v807
          %v1567 = vand.u32 %v1566, 8388607
          %v1568 = vor.u32 %v1567, 8388608
          %v1569 = vsub.s32 0, %v1568
          %v1570 = vadd.s32 %v1565, 1
          %vm1571 = vcmp.gt.s32.totalorder %v1570, 0
          %v1572 = vsel %vm1571, %v1570, 0
          %v1573 = vshrl.u32 %v1572, 5
          %v1574 = vand.u32 %v1572, 31
          %v1575 = vsub.s32 32, %v1574
          %v1576 = vshrl.u32 683565275, %v1575
          %v1577 = vshll.u32 683565275, %v1574
          %v1578 = vshrl.u32 2475754826, %v1575
          %v1579 = vor.u32 %v1577, %v1578
          %v1580 = vshll.u32 2475754826, %v1574
          %v1581 = vshrl.u32 2131351028, %v1575
          %v1582 = vor.u32 %v1580, %v1581
          %v1583 = vshll.u32 2131351028, %v1574
          %v1584 = vshrl.u32 2102212464, %v1575
          %v1585 = vor.u32 %v1583, %v1584
          %v1586 = vshll.u32 2102212464, %v1574
          %v1587 = vshrl.u32 920167782, %v1575
          %v1588 = vor.u32 %v1586, %v1587
          %v1589 = vshll.u32 920167782, %v1574
          %v1590 = vshrl.u32 1326507024, %v1575
          %v1591 = vor.u32 %v1589, %v1590
          %vm1592 = vcmp.lt.s32.totalorder %v1573, 1
          %vm1593 = vcmp.lt.s32.totalorder %v1573, 2
          %vm1594 = vcmp.lt.s32.totalorder %v1573, 3
          %vm1595 = vcmp.lt.s32.totalorder %v1573, 4
          %v1596 = vsel %vm1592, %v1576, %v1579
          %v1597 = vsel %vm1595, %v1585, 2102212464
          %v1598 = vsel %vm1594, %v1582, %v1597
          %v1599 = vsel %vm1593, %v1596, %v1598
          %v1600 = vsel %vm1592, %v1579, %v1582
          %v1601 = vsel %vm1595, %v1588, 920167782
          %v1602 = vsel %vm1594, %v1585, %v1601
          %v1603 = vsel %vm1593, %v1600, %v1602
          %v1604 = vsel %vm1592, %v1582, %v1585
          %v1605 = vsel %vm1595, %v1591, 1326507024
          %v1606 = vsel %vm1594, %v1588, %v1605
          %v1607 = vsel %vm1593, %v1604, %v1606
          %v1608 = vshll.u32 %v1568, 8
          %v1609 = vmul.u32.u64.compose %v1608, %v1607
          %v1610 = vextract.low.u32 %v1609
          %v1611 = vextract.high.u32 %v1609
          %v1612 = vmul.u32.u64.compose %v1608, %v1603
          %v1613 = vextract.low.u32 %v1612
          %v1614 = vextract.high.u32 %v1612
          %v1615 = vmul.u32 %v1608, %v1599
          %v1616 = vadd.s32 %v1611, %v1613
          %vm1617 = vc.u32 %v1611, %v1613
          %v1618 = vadd.s32 %v1614, 1
          %v1619 = vsel %vm1617, %v1618, %v1614
          %v1620 = vadd.s32 %v1615, %v1619
          %v1621 = vadd.s32 %v1620, 536870912
          %v1622 = vshrl.u32 %v1621, 30
          %v1623 = vshll.u32 %v1622, 30
          %v1624 = vsub.s32 %v1620, %v1623
          %vm1625 = vcmp.lt.s32.totalorder %v1624, 0
          %v1626 = vsub.s32 0, %v1624
          %v1627 = vsel %vm1625, %v1626, %v1624
          %v1628 = vclz %v1627
          %v1629 = vsub.s32 %v1628, 2
          %vm1630 = vcmp.gt.s32.totalorder 0, %v1629
          %v1631 = vsel %vm1630, 0, %v1629
          %v1632 = vsub.s32 32, %v1631
          %v1633 = vshll.u32 %v1624, %v1631
          %v1634 = vshrl.u32 %v1616, %v1632
          %v1635 = vor.u32 %v1633, %v1634
          %v1636 = vsub.s32 4294967266, %v1631
          %v1637 = vadd.s32 %v1636, 127
          %v1638 = vshll.u32 %v1637, 23
          %v1639 = vor.u32 4788187, %v1638
          %v1640 = vand.u32 2147483647, %v1639
          %v1642 = vcvt.s32.f32 %v1635
          %v1643 = vmul.f32 %v1642, %v1640
          %v1644 = vxor.u32 %v1643, 2147483648
          %v1645 = vsel %vm1562, %v1644, %v1643
          %v1646 = vsub.s32 4, %v1622
          %v1647 = vsel %vm1562, %v1646, %v1622
          %v1648 = vsel %vm1561, %v807, %v1645
          %v1649 = vsel %vm1561, 0, %v1647
          %v1650 = vcosq.f32.pop %v1648
          %v1651 = vsinq.f32.pop %v1648
          %vm1652 = vweird.f32 %v807
          %v1653 = vadd.s32 %v1649, 3
          %v1654 = vand.u32 %v1653, 3
          %vm1655 = vcmp.lt.s32.totalorder %v1654, 2
          %vm1656 = vcmp.eq.s32.totalorder %v1654, 0
          %v1657 = vxor.u32 %v1651, 2147483648
          %v1658 = vsel %vm1656, %v1650, %v1657
          %vm1659 = vcmp.eq.s32.totalorder %v1654, 2
          %v1660 = vxor.u32 %v1650, 2147483648
          %v1661 = vsel %vm1659, %v1660, %v1651
          %v1662 = vsel %vm1655, %v1658, %v1661
          %v1663 = vsel %vm1652, nan, %v1662
          %v1664 = vsub.f32 1.0, %v938
          %v1665 = vsub.f32 1.0, %v1041
          %v1666 = vsub.f32 1.0, %v1144
          %v1667 = vsub.f32 1.0, %v1247
          %v1668 = vmul.f32 %v1664, %v824
          %v1669 = vmul.f32 %v1665, %v825
          %v1670 = vmul.f32 %v1666, %v826
          %v1671 = vmul.f32 %v1667, %v827
          %v1672 = vmul.f32 %v1668, %v824
          %v1673 = vmul.f32 %v1669, %v825
          %v1674 = vmul.f32 %v1670, %v826
          %v1675 = vmul.f32 %v1671, %v827
          %v1676 = vadd.f32 %v938, %v1672
          %v1677 = vadd.f32 %v1041, %v1673
          %v1678 = vadd.f32 %v1144, %v1674
          %v1679 = vadd.f32 %v1247, %v1675
          %v1680 = vmul.f32 %v1668, %v828
          %v1681 = vmul.f32 %v1669, %v829
          %v1682 = vmul.f32 %v1670, %v830
          %v1683 = vmul.f32 %v1671, %v831
          %v1684 = vmul.f32 %v1351, %v832
          %v1685 = vmul.f32 %v1455, %v833
          %v1686 = vmul.f32 %v1559, %v834
          %v1687 = vmul.f32 %v1663, %v835
          %v1688 = vsub.f32 %v1680, %v1684
          %v1689 = vsub.f32 %v1681, %v1685
          %v1690 = vsub.f32 %v1682, %v1686
          %v1691 = vsub.f32 %v1683, %v1687
          %v1692 = vmul.f32 %v1668, %v832
          %v1693 = vmul.f32 %v1669, %v833
          %v1694 = vmul.f32 %v1670, %v834
          %v1695 = vmul.f32 %v1671, %v835
          %v1696 = vmul.f32 %v1351, %v828
          %v1697 = vmul.f32 %v1455, %v829
          %v1698 = vmul.f32 %v1559, %v830
          %v1699 = vmul.f32 %v1663, %v831
          %v1700 = vadd.f32 %v1692, %v1696
          %v1701 = vadd.f32 %v1693, %v1697
          %v1702 = vadd.f32 %v1694, %v1698
          %v1703 = vadd.f32 %v1695, %v1699
          %v1704 = vmul.f32 %v1664, %v828
          %v1705 = vmul.f32 %v1665, %v829
          %v1706 = vmul.f32 %v1666, %v830
          %v1707 = vmul.f32 %v1667, %v831
          %v1708 = vmul.f32 %v1704, %v824
          %v1709 = vmul.f32 %v1705, %v825
          %v1710 = vmul.f32 %v1706, %v826
          %v1711 = vmul.f32 %v1707, %v827
          %v1712 = vadd.f32 %v1708, %v1684
          %v1713 = vadd.f32 %v1709, %v1685
          %v1714 = vadd.f32 %v1710, %v1686
          %v1715 = vadd.f32 %v1711, %v1687
          %v1716 = vmul.f32 %v1704, %v828
          %v1717 = vmul.f32 %v1705, %v829
          %v1718 = vmul.f32 %v1706, %v830
          %v1719 = vmul.f32 %v1707, %v831
          %v1720 = vadd.f32 %v938, %v1716
          %v1721 = vadd.f32 %v1041, %v1717
          %v1722 = vadd.f32 %v1144, %v1718
          %v1723 = vadd.f32 %v1247, %v1719
          %v1724 = vmul.f32 %v1704, %v832
          %v1725 = vmul.f32 %v1705, %v833
          %v1726 = vmul.f32 %v1706, %v834
          %v1727 = vmul.f32 %v1707, %v835
          %v1728 = vmul.f32 %v1351, %v824
          %v1729 = vmul.f32 %v1455, %v825
          %v1730 = vmul.f32 %v1559, %v826
          %v1731 = vmul.f32 %v1663, %v827
          %v1732 = vsub.f32 %v1724, %v1728
          %v1733 = vsub.f32 %v1725, %v1729
          %v1734 = vsub.f32 %v1726, %v1730
          %v1735 = vsub.f32 %v1727, %v1731
          %v1736 = vmul.f32 %v1664, %v832
          %v1737 = vmul.f32 %v1665, %v833
          %v1738 = vmul.f32 %v1666, %v834
          %v1739 = vmul.f32 %v1667, %v835
          %v1740 = vmul.f32 %v1736, %v824
          %v1741 = vmul.f32 %v1737, %v825
          %v1742 = vmul.f32 %v1738, %v826
          %v1743 = vmul.f32 %v1739, %v827
          %v1744 = vsub.f32 %v1740, %v1696
          %v1745 = vsub.f32 %v1741, %v1697
          %v1746 = vsub.f32 %v1742, %v1698
          %v1747 = vsub.f32 %v1743, %v1699
          %v1748 = vmul.f32 %v1736, %v828
          %v1749 = vmul.f32 %v1737, %v829
          %v1750 = vmul.f32 %v1738, %v830
          %v1751 = vmul.f32 %v1739, %v831
          %v1752 = vadd.f32 %v1748, %v1728
          %v1753 = vadd.f32 %v1749, %v1729
          %v1754 = vadd.f32 %v1750, %v1730
          %v1755 = vadd.f32 %v1751, %v1731
          %v1756 = vmul.f32 %v1736, %v832
          %v1757 = vmul.f32 %v1737, %v833
          %v1758 = vmul.f32 %v1738, %v834
          %v1759 = vmul.f32 %v1739, %v835
          %v1760 = vadd.f32 %v938, %v1756
          %v1761 = vadd.f32 %v1041, %v1757
          %v1762 = vadd.f32 %v1144, %v1758
          %v1763 = vadd.f32 %v1247, %v1759
          %v1764 = vsub.f32 0.0, %v756
          %v1765 = vsub.f32 0.0, %v757
          %v1766 = vsub.f32 0.0, %v758
          %v1767 = vsub.f32 0.0, %v759
          %v1768 = vsub.f32 0.0, %v734
          %v1769 = vsub.f32 0.0, %v735
          %v1770 = vsub.f32 0.0, %v736
          %v1771 = vsub.f32 0.0, %v737
          %v1772 = vsub.f32 0.0, %v745
          %v1773 = vsub.f32 0.0, %v746
          %v1774 = vsub.f32 0.0, %v747
          %v1775 = vsub.f32 0.0, %v748
          %v1776 = vsel %vm808, 1.0, %v1676
          %v1777 = vsel %vm809, 1.0, %v1677
          %v1778 = vsel %vm810, 1.0, %v1678
          %v1779 = vsel %vm811, 1.0, %v1679
          %v1780 = vsel %vm808, %v1764, %v1688
          %v1781 = vsel %vm809, %v1765, %v1689
          %v1782 = vsel %vm810, %v1766, %v1690
          %v1783 = vsel %vm811, %v1767, %v1691
          %v1784 = vsel %vm808, %v745, %v1700
          %v1785 = vsel %vm809, %v746, %v1701
          %v1786 = vsel %vm810, %v747, %v1702
          %v1787 = vsel %vm811, %v748, %v1703
          %v1788 = vsel %vm808, %v756, %v1712
          %v1789 = vsel %vm809, %v757, %v1713
          %v1790 = vsel %vm810, %v758, %v1714
          %v1791 = vsel %vm811, %v759, %v1715
          %v1792 = vsel %vm808, 1.0, %v1720
          %v1793 = vsel %vm809, 1.0, %v1721
          %v1794 = vsel %vm810, 1.0, %v1722
          %v1795 = vsel %vm811, 1.0, %v1723
          %v1796 = vsel %vm808, %v1768, %v1732
          %v1797 = vsel %vm809, %v1769, %v1733
          %v1798 = vsel %vm810, %v1770, %v1734
          %v1799 = vsel %vm811, %v1771, %v1735
          %v1800 = vsel %vm808, %v1772, %v1744
          %v1801 = vsel %vm809, %v1773, %v1745
          %v1802 = vsel %vm810, %v1774, %v1746
          %v1803 = vsel %vm811, %v1775, %v1747
          %v1804 = vsel %vm808, %v734, %v1752
          %v1805 = vsel %vm809, %v735, %v1753
          %v1806 = vsel %vm810, %v736, %v1754
          %v1807 = vsel %vm811, %v737, %v1755
          %v1808 = vsel %vm808, 1.0, %v1760
          %v1809 = vsel %vm809, 1.0, %v1761
          %v1810 = vsel %vm810, 1.0, %v1762
          %v1811 = vsel %vm811, 1.0, %v1763
          %v1812 = vmul.f32 %v1776, %v1778
          %v1813 = vmul.f32 %v1777, %v1779
          %v1814 = vmul.f32 %v1780, %v1790
          %v1815 = vmul.f32 %v1781, %v1791
          %v1816 = vadd.f32 %v1812, %v1814
          %v1817 = vadd.f32 %v1813, %v1815
          %v1818 = vmul.f32 %v1784, %v1802
          %v1819 = vmul.f32 %v1785, %v1803
          %v1820 = vadd.f32 %v1816, %v1818
          %v1821 = vadd.f32 %v1817, %v1819
          %v1822 = vmul.f32 %v1776, %v1782
          %v1823 = vmul.f32 %v1777, %v1783
          %v1824 = vmul.f32 %v1780, %v1794
          %v1825 = vmul.f32 %v1781, %v1795
          %v1826 = vadd.f32 %v1822, %v1824
          %v1827 = vadd.f32 %v1823, %v1825
          %v1828 = vmul.f32 %v1784, %v1806
          %v1829 = vmul.f32 %v1785, %v1807
          %v1830 = vadd.f32 %v1826, %v1828
          %v1831 = vadd.f32 %v1827, %v1829
          %v1832 = vmul.f32 %v1776, %v1786
          %v1833 = vmul.f32 %v1777, %v1787
          %v1834 = vmul.f32 %v1780, %v1798
          %v1835 = vmul.f32 %v1781, %v1799
          %v1836 = vadd.f32 %v1832, %v1834
          %v1837 = vadd.f32 %v1833, %v1835
          %v1838 = vmul.f32 %v1784, %v1810
          %v1839 = vmul.f32 %v1785, %v1811
          %v1840 = vadd.f32 %v1836, %v1838
          %v1841 = vadd.f32 %v1837, %v1839
          %v1842 = vmul.f32 %v1788, %v1778
          %v1843 = vmul.f32 %v1789, %v1779
          %v1844 = vmul.f32 %v1792, %v1790
          %v1845 = vmul.f32 %v1793, %v1791
          %v1846 = vadd.f32 %v1842, %v1844
          %v1847 = vadd.f32 %v1843, %v1845
          %v1848 = vmul.f32 %v1796, %v1802
          %v1849 = vmul.f32 %v1797, %v1803
          %v1850 = vadd.f32 %v1846, %v1848
          %v1851 = vadd.f32 %v1847, %v1849
          %v1852 = vmul.f32 %v1788, %v1782
          %v1853 = vmul.f32 %v1789, %v1783
          %v1854 = vmul.f32 %v1792, %v1794
          %v1855 = vmul.f32 %v1793, %v1795
          %v1856 = vadd.f32 %v1852, %v1854
          %v1857 = vadd.f32 %v1853, %v1855
          %v1858 = vmul.f32 %v1796, %v1806
          %v1859 = vmul.f32 %v1797, %v1807
          %v1860 = vadd.f32 %v1856, %v1858
          %v1861 = vadd.f32 %v1857, %v1859
          %v1862 = vmul.f32 %v1788, %v1786
          %v1863 = vmul.f32 %v1789, %v1787
          %v1864 = vmul.f32 %v1792, %v1798
          %v1865 = vmul.f32 %v1793, %v1799
          %v1866 = vadd.f32 %v1862, %v1864
          %v1867 = vadd.f32 %v1863, %v1865
          %v1868 = vmul.f32 %v1796, %v1810
          %v1869 = vmul.f32 %v1797, %v1811
          %v1870 = vadd.f32 %v1866, %v1868
          %v1871 = vadd.f32 %v1867, %v1869
          %v1872 = vmul.f32 %v1800, %v1778
          %v1873 = vmul.f32 %v1801, %v1779
          %v1874 = vmul.f32 %v1804, %v1790
          %v1875 = vmul.f32 %v1805, %v1791
          %v1876 = vadd.f32 %v1872, %v1874
          %v1877 = vadd.f32 %v1873, %v1875
          %v1878 = vmul.f32 %v1808, %v1802
          %v1879 = vmul.f32 %v1809, %v1803
          %v1880 = vadd.f32 %v1876, %v1878
          %v1881 = vadd.f32 %v1877, %v1879
          %v1882 = vmul.f32 %v1800, %v1782
          %v1883 = vmul.f32 %v1801, %v1783
          %v1884 = vmul.f32 %v1804, %v1794
          %v1885 = vmul.f32 %v1805, %v1795
          %v1886 = vadd.f32 %v1882, %v1884
          %v1887 = vadd.f32 %v1883, %v1885
          %v1888 = vmul.f32 %v1808, %v1806
          %v1889 = vmul.f32 %v1809, %v1807
          %v1890 = vadd.f32 %v1886, %v1888
          %v1891 = vadd.f32 %v1887, %v1889
          %v1892 = vmul.f32 %v1800, %v1786
          %v1893 = vmul.f32 %v1801, %v1787
          %v1894 = vmul.f32 %v1804, %v1798
          %v1895 = vmul.f32 %v1805, %v1799
          %v1896 = vadd.f32 %v1892, %v1894
          %v1897 = vadd.f32 %v1893, %v1895
          %v1898 = vmul.f32 %v1808, %v1810
          %v1899 = vmul.f32 %v1809, %v1811
          %v1900 = vadd.f32 %v1896, %v1898
          %v1901 = vadd.f32 %v1897, %v1899
          %s1902 = sadd.s32 %s540, 56
          %s1903 = smul.addr %s1902, 8
          %s1904 = scalar_lea.vmem %s513, %s1903 [#allocation3]
          %v1905 = vld [vmem:[%s1904] sm:$0xff]
          %v1906 = vld [vmem:[%s1904 + $0x10] sm:$0xff]
          %s1907 = sadd.s32 %s540, 64
          %s1908 = smul.addr %s1907, 8
          %s1909 = scalar_lea.vmem %s513, %s1908 [#allocation3]
          %v1910 = vld [vmem:[%s1909] sm:$0xff]
          %v1911 = vld [vmem:[%s1909 + $0x10] sm:$0xff]
          %s1912 = sadd.s32 %s540, 72
          %s1913 = smul.addr %s1912, 8
          %s1914 = scalar_lea.vmem %s513, %s1913 [#allocation3]
          %v1915 = vld [vmem:[%s1914] sm:$0xff]
          %v1916 = vld [vmem:[%s1914 + $0x10] sm:$0xff]
          %s1917 = sadd.s32 %s540, 80
          %s1918 = smul.addr %s1917, 8
          %s1919 = scalar_lea.vmem %s513, %s1918 [#allocation3]
          %v1920 = vld [vmem:[%s1919] sm:$0xff]
          %v1921 = vld [vmem:[%s1919 + $0x10] sm:$0xff]
          %s1922 = sadd.s32 %s540, 88
          %s1923 = smul.addr %s1922, 8
          %s1924 = scalar_lea.vmem %s513, %s1923 [#allocation3]
          %v1925 = vld [vmem:[%s1924] sm:$0xff]
          %v1926 = vld [vmem:[%s1924 + $0x10] sm:$0xff]
          %s1927 = sadd.s32 %s540, 96
          %s1928 = smul.addr %s1927, 8
          %s1929 = scalar_lea.vmem %s513, %s1928 [#allocation3]
          %v1930 = vld [vmem:[%s1929] sm:$0xff]
          %v1931 = vld [vmem:[%s1929 + $0x10] sm:$0xff]
          %s1932 = sadd.s32 %s540, 104
          %s1933 = smul.addr %s1932, 8
          %s1934 = scalar_lea.vmem %s513, %s1933 [#allocation3]
          %v1935 = vld [vmem:[%s1934] sm:$0xff]
          %v1936 = vld [vmem:[%s1934 + $0x10] sm:$0xff]
          %s1937 = sadd.s32 %s540, 112
          %s1938 = smul.addr %s1937, 8
          %s1939 = scalar_lea.vmem %s513, %s1938 [#allocation3]
          %v1940 = vld [vmem:[%s1939] sm:$0xff]
          %v1941 = vld [vmem:[%s1939 + $0x10] sm:$0xff]
          %s1942 = sadd.s32 %s540, 120
          %s1943 = smul.addr %s1942, 8
          %s1944 = scalar_lea.vmem %s513, %s1943 [#allocation3]
          %v1945 = vld [vmem:[%s1944] sm:$0xff]
          %v1946 = vld [vmem:[%s1944 + $0x10] sm:$0xff]
          %v1947 = vld [vmem:[%s1904 + $0x20] sm:$0xff]
          %v1948 = vld [vmem:[%s1904 + $0x30] sm:$0xff]
          %v1949 = vld [vmem:[%s1919 + $0x20] sm:$0xff]
          %v1950 = vld [vmem:[%s1919 + $0x30] sm:$0xff]
          %v1951 = vld [vmem:[%s1934 + $0x20] sm:$0xff]
          %v1952 = vld [vmem:[%s1934 + $0x30] sm:$0xff]
          %v1953 = vmul.f32 %v1905, %v1947
          %v1954 = vmul.f32 %v1906, %v1948
          %v1955 = vmul.f32 %v1910, %v1949
          %v1956 = vmul.f32 %v1911, %v1950
          %v1957 = vadd.f32 %v1953, %v1955
          %v1958 = vadd.f32 %v1954, %v1956
          %v1959 = vmul.f32 %v1915, %v1951
          %v1960 = vmul.f32 %v1916, %v1952
          %v1961 = vadd.f32 %v1957, %v1959
          %v1962 = vadd.f32 %v1958, %v1960
          %v1963 = vmul.f32 %v1920, %v1947
          %v1964 = vmul.f32 %v1921, %v1948
          %v1965 = vmul.f32 %v1925, %v1949
          %v1966 = vmul.f32 %v1926, %v1950
          %v1967 = vadd.f32 %v1963, %v1965
          %v1968 = vadd.f32 %v1964, %v1966
          %v1969 = vmul.f32 %v1930, %v1951
          %v1970 = vmul.f32 %v1931, %v1952
          %v1971 = vadd.f32 %v1967, %v1969
          %v1972 = vadd.f32 %v1968, %v1970
          %v1973 = vmul.f32 %v1935, %v1947
          %v1974 = vmul.f32 %v1936, %v1948
          %v1975 = vmul.f32 %v1940, %v1949
          %v1976 = vmul.f32 %v1941, %v1950
          %v1977 = vadd.f32 %v1973, %v1975
          %v1978 = vadd.f32 %v1974, %v1976
          %v1979 = vmul.f32 %v1945, %v1951
          %v1980 = vmul.f32 %v1946, %v1952
          %v1981 = vadd.f32 %v1977, %v1979
          %v1982 = vadd.f32 %v1978, %v1980
          %v1983 = vld [vmem:[%s1909 + $0x20] sm:$0xff]
          %v1984 = vld [vmem:[%s1909 + $0x30] sm:$0xff]
          %v1985 = vld [vmem:[%s1924 + $0x20] sm:$0xff]
          %v1986 = vld [vmem:[%s1924 + $0x30] sm:$0xff]
          %v1987 = vld [vmem:[%s1939 + $0x20] sm:$0xff]
          %v1988 = vld [vmem:[%s1939 + $0x30] sm:$0xff]
          %v1989 = vmul.f32 %v1905, %v1983
          %v1990 = vmul.f32 %v1906, %v1984
          %v1991 = vmul.f32 %v1910, %v1985
          %v1992 = vmul.f32 %v1911, %v1986
          %v1993 = vadd.f32 %v1989, %v1991
          %v1994 = vadd.f32 %v1990, %v1992
          %v1995 = vmul.f32 %v1915, %v1987
          %v1996 = vmul.f32 %v1916, %v1988
          %v1997 = vadd.f32 %v1993, %v1995
          %v1998 = vadd.f32 %v1994, %v1996
          %v1999 = vmul.f32 %v1920, %v1983
          %v2000 = vmul.f32 %v1921, %v1984
          %v2001 = vmul.f32 %v1925, %v1985
          %v2002 = vmul.f32 %v1926, %v1986
          %v2003 = vadd.f32 %v1999, %v2001
          %v2004 = vadd.f32 %v2000, %v2002
          %v2005 = vmul.f32 %v1930, %v1987
          %v2006 = vmul.f32 %v1931, %v1988
          %v2007 = vadd.f32 %v2003, %v2005
          %v2008 = vadd.f32 %v2004, %v2006
          %v2009 = vmul.f32 %v1935, %v1983
          %v2010 = vmul.f32 %v1936, %v1984
          %v2011 = vmul.f32 %v1940, %v1985
          %v2012 = vmul.f32 %v1941, %v1986
          %v2013 = vadd.f32 %v2009, %v2011
          %v2014 = vadd.f32 %v2010, %v2012
          %v2015 = vmul.f32 %v1945, %v1987
          %v2016 = vmul.f32 %v1946, %v1988
          %v2017 = vadd.f32 %v2013, %v2015
          %v2018 = vadd.f32 %v2014, %v2016
          %v2019 = vld [vmem:[%s1914 + $0x20] sm:$0xff]
          %v2020 = vld [vmem:[%s1914 + $0x30] sm:$0xff]
          %v2021 = vld [vmem:[%s1929 + $0x20] sm:$0xff]
          %v2022 = vld [vmem:[%s1929 + $0x30] sm:$0xff]
          %v2023 = vld [vmem:[%s1944 + $0x20] sm:$0xff]
          %v2024 = vld [vmem:[%s1944 + $0x30] sm:$0xff]
          %v2025 = vmul.f32 %v1905, %v2019
          %v2026 = vmul.f32 %v1906, %v2020
          %v2027 = vmul.f32 %v1910, %v2021
          %v2028 = vmul.f32 %v1911, %v2022
          %v2029 = vadd.f32 %v2025, %v2027
          %v2030 = vadd.f32 %v2026, %v2028
          %v2031 = vmul.f32 %v1915, %v2023
          %v2032 = vmul.f32 %v1916, %v2024
          %v2033 = vadd.f32 %v2029, %v2031
          %v2034 = vadd.f32 %v2030, %v2032
          %v2035 = vmul.f32 %v1920, %v2019
          %v2036 = vmul.f32 %v1921, %v2020
          %v2037 = vmul.f32 %v1925, %v2021
          %v2038 = vmul.f32 %v1926, %v2022
          %v2039 = vadd.f32 %v2035, %v2037
          %v2040 = vadd.f32 %v2036, %v2038
          %v2041 = vmul.f32 %v1930, %v2023
          %v2042 = vmul.f32 %v1931, %v2024
          %v2043 = vadd.f32 %v2039, %v2041
          %v2044 = vadd.f32 %v2040, %v2042
          %v2045 = vmul.f32 %v1935, %v2019
          %v2046 = vmul.f32 %v1936, %v2020
          %v2047 = vmul.f32 %v1940, %v2021
          %v2048 = vmul.f32 %v1941, %v2022
          %v2049 = vadd.f32 %v2045, %v2047
          %v2050 = vadd.f32 %v2046, %v2048
          %v2051 = vmul.f32 %v1945, %v2023
          %v2052 = vmul.f32 %v1946, %v2024
          %v2053 = vadd.f32 %v2049, %v2051
          %v2054 = vadd.f32 %v2050, %v2052
          %v2055 = vmul.f32 %v1820, %v1961
          %v2056 = vmul.f32 %v1821, %v1962
          %v2057 = vmul.f32 %v1850, %v1971
          %v2058 = vmul.f32 %v1851, %v1972
          %v2059 = vadd.f32 %v2055, %v2057
          %v2060 = vadd.f32 %v2056, %v2058
          %v2061 = vmul.f32 %v1880, %v1981
          %v2062 = vmul.f32 %v1881, %v1982
          %v2063 = vadd.f32 %v2059, %v2061
          %v2064 = vadd.f32 %v2060, %v2062
          %v2065 = vmul.f32 %v1820, %v1997
          %v2066 = vmul.f32 %v1821, %v1998
          %v2067 = vmul.f32 %v1850, %v2007
          %v2068 = vmul.f32 %v1851, %v2008
          %v2069 = vadd.f32 %v2065, %v2067
          %v2070 = vadd.f32 %v2066, %v2068
          %v2071 = vmul.f32 %v1880, %v2017
          %v2072 = vmul.f32 %v1881, %v2018
          %v2073 = vadd.f32 %v2069, %v2071
          %v2074 = vadd.f32 %v2070, %v2072
          %v2075 = vmul.f32 %v1820, %v2033
          %v2076 = vmul.f32 %v1821, %v2034
          %v2077 = vmul.f32 %v1850, %v2043
          %v2078 = vmul.f32 %v1851, %v2044
          %v2079 = vadd.f32 %v2075, %v2077
          %v2080 = vadd.f32 %v2076, %v2078
          %v2081 = vmul.f32 %v1880, %v2053
          %v2082 = vmul.f32 %v1881, %v2054
          %v2083 = vadd.f32 %v2079, %v2081
          %v2084 = vadd.f32 %v2080, %v2082
          %v2085 = vmul.f32 %v1830, %v1961
          %v2086 = vmul.f32 %v1831, %v1962
          %v2087 = vmul.f32 %v1860, %v1971
          %v2088 = vmul.f32 %v1861, %v1972
          %v2089 = vadd.f32 %v2085, %v2087
          %v2090 = vadd.f32 %v2086, %v2088
          %v2091 = vmul.f32 %v1890, %v1981
          %v2092 = vmul.f32 %v1891, %v1982
          %v2093 = vadd.f32 %v2089, %v2091
          %v2094 = vadd.f32 %v2090, %v2092
          %v2095 = vmul.f32 %v1830, %v1997
          %v2096 = vmul.f32 %v1831, %v1998
          %v2097 = vmul.f32 %v1860, %v2007
          %v2098 = vmul.f32 %v1861, %v2008
          %v2099 = vadd.f32 %v2095, %v2097
          %v2100 = vadd.f32 %v2096, %v2098
          %v2101 = vmul.f32 %v1890, %v2017
          %v2102 = vmul.f32 %v1891, %v2018
          %v2103 = vadd.f32 %v2099, %v2101
          %v2104 = vadd.f32 %v2100, %v2102
          %v2105 = vmul.f32 %v1830, %v2033
          %v2106 = vmul.f32 %v1831, %v2034
          %v2107 = vmul.f32 %v1860, %v2043
          %v2108 = vmul.f32 %v1861, %v2044
          %v2109 = vadd.f32 %v2105, %v2107
          %v2110 = vadd.f32 %v2106, %v2108
          %v2111 = vmul.f32 %v1890, %v2053
          %v2112 = vmul.f32 %v1891, %v2054
          %v2113 = vadd.f32 %v2109, %v2111
          %v2114 = vadd.f32 %v2110, %v2112
          %v2115 = vmul.f32 %v1840, %v1961
          %v2116 = vmul.f32 %v1841, %v1962
          %v2117 = vmul.f32 %v1870, %v1971
          %v2118 = vmul.f32 %v1871, %v1972
          %v2119 = vadd.f32 %v2115, %v2117
          %v2120 = vadd.f32 %v2116, %v2118
          %v2121 = vmul.f32 %v1900, %v1981
          %v2122 = vmul.f32 %v1901, %v1982
          %v2123 = vadd.f32 %v2119, %v2121
          %v2124 = vadd.f32 %v2120, %v2122
          %v2125 = vmul.f32 %v1840, %v1997
          %v2126 = vmul.f32 %v1841, %v1998
          %v2127 = vmul.f32 %v1870, %v2007
          %v2128 = vmul.f32 %v1871, %v2008
          %v2129 = vadd.f32 %v2125, %v2127
          %v2130 = vadd.f32 %v2126, %v2128
          %v2131 = vmul.f32 %v1900, %v2017
          %v2132 = vmul.f32 %v1901, %v2018
          %v2133 = vadd.f32 %v2129, %v2131
          %v2134 = vadd.f32 %v2130, %v2132
          %v2135 = vmul.f32 %v1840, %v2033
          %v2136 = vmul.f32 %v1841, %v2034
          %v2137 = vmul.f32 %v1870, %v2043
          %v2138 = vmul.f32 %v1871, %v2044
          %v2139 = vadd.f32 %v2135, %v2137
          %v2140 = vadd.f32 %v2136, %v2138
          %v2141 = vmul.f32 %v1900, %v2053
          %v2142 = vmul.f32 %v1901, %v2054
          %v2143 = vadd.f32 %v2139, %v2141
          %v2144 = vadd.f32 %v2140, %v2142
          %2145 = vst [vmem:[#allocation2] sm:$0xff] %v2063
          %2146 = vst [vmem:[#allocation2 + $0x8] sm:$0xff] %v2064
          %s2147 = scalar_lea.vmem [#allocation2], 32
          %2148 = vst [vmem:[%s2147] sm:$0xff] %v2073
          %2149 = vst [vmem:[%s2147 + $0x8] sm:$0xff] %v2074
          %s2150 = scalar_lea.vmem [#allocation2], 64
          %2151 = vst [vmem:[%s2150] sm:$0xff] %v2083
          %2152 = vst [vmem:[%s2150 + $0x8] sm:$0xff] %v2084
          %s2153 = scalar_lea.vmem [#allocation2], 96
          %2154 = vst [vmem:[%s2153] sm:$0xff] %v2093
          %2155 = vst [vmem:[%s2153 + $0x8] sm:$0xff] %v2094
          %s2156 = scalar_lea.vmem [#allocation2], 128
          %2157 = vst [vmem:[%s2156] sm:$0xff] %v2103
          %2158 = vst [vmem:[%s2156 + $0x8] sm:$0xff] %v2104
          %s2159 = scalar_lea.vmem [#allocation2], 160
          %2160 = vst [vmem:[%s2159] sm:$0xff] %v2113
          %2161 = vst [vmem:[%s2159 + $0x8] sm:$0xff] %v2114
          %s2162 = scalar_lea.vmem [#allocation2], 192
          %2163 = vst [vmem:[%s2162] sm:$0xff] %v2123
          %2164 = vst [vmem:[%s2162 + $0x8] sm:$0xff] %v2124
          %s2165 = scalar_lea.vmem [#allocation2], 224
          %2166 = vst [vmem:[%s2165] sm:$0xff] %v2133
          %2167 = vst [vmem:[%s2165 + $0x8] sm:$0xff] %v2134
          %s2168 = scalar_lea.vmem [#allocation2], 256
          %2169 = vst [vmem:[%s2168] sm:$0xff] %v2143
          %2170 = vst [vmem:[%s2168 + $0x8] sm:$0xff] %v2144
          %v2171 = vmul.f32 %v1820, %v1821
          %v2172 = vmul.f32 %v1830, %v1851
          %v2173 = vadd.f32 %v2171, %v2172
          %v2174 = vmul.f32 %v1840, %v1881
          %v2175 = vadd.f32 %v2173, %v2174
          %v2176 = vmul.f32 %v1820, %v1831
          %v2177 = vmul.f32 %v1830, %v1861
          %v2178 = vadd.f32 %v2176, %v2177
          %v2179 = vmul.f32 %v1840, %v1891
          %v2180 = vadd.f32 %v2178, %v2179
          %v2181 = vmul.f32 %v1820, %v1841
          %v2182 = vmul.f32 %v1830, %v1871
          %v2183 = vadd.f32 %v2181, %v2182
          %v2184 = vmul.f32 %v1840, %v1901
          %v2185 = vadd.f32 %v2183, %v2184
          %v2186 = vmul.f32 %v1850, %v1821
          %v2187 = vmul.f32 %v1860, %v1851
          %v2188 = vadd.f32 %v2186, %v2187
          %v2189 = vmul.f32 %v1870, %v1881
          %v2190 = vadd.f32 %v2188, %v2189
          %v2191 = vmul.f32 %v1850, %v1831
          %v2192 = vmul.f32 %v1860, %v1861
          %v2193 = vadd.f32 %v2191, %v2192
          %v2194 = vmul.f32 %v1870, %v1891
          %v2195 = vadd.f32 %v2193, %v2194
          %v2196 = vmul.f32 %v1850, %v1841
          %v2197 = vmul.f32 %v1860, %v1871
          %v2198 = vadd.f32 %v2196, %v2197
          %v2199 = vmul.f32 %v1870, %v1901
          %v2200 = vadd.f32 %v2198, %v2199
          %v2201 = vmul.f32 %v1880, %v1821
          %v2202 = vmul.f32 %v1890, %v1851
          %v2203 = vadd.f32 %v2201, %v2202
          %v2204 = vmul.f32 %v1900, %v1881
          %v2205 = vadd.f32 %v2203, %v2204
          %v2206 = vmul.f32 %v1880, %v1831
          %v2207 = vmul.f32 %v1890, %v1861
          %v2208 = vadd.f32 %v2206, %v2207
          %v2209 = vmul.f32 %v1900, %v1891
          %v2210 = vadd.f32 %v2208, %v2209
          %v2211 = vmul.f32 %v1880, %v1841
          %v2212 = vmul.f32 %v1890, %v1871
          %v2213 = vadd.f32 %v2211, %v2212
          %v2214 = vmul.f32 %v1900, %v1901
          %v2215 = vadd.f32 %v2213, %v2214
          %v2216 = vmul.f32 %v1961, %v1962
          %v2217 = vmul.f32 %v1997, %v1972
          %v2218 = vadd.f32 %v2216, %v2217
          %v2219 = vmul.f32 %v2033, %v1982
          %v2220 = vadd.f32 %v2218, %v2219
          %v2221 = vmul.f32 %v1961, %v1998
          %v2222 = vmul.f32 %v1997, %v2008
          %v2223 = vadd.f32 %v2221, %v2222
          %v2224 = vmul.f32 %v2033, %v2018
          %v2225 = vadd.f32 %v2223, %v2224
          %v2226 = vmul.f32 %v1961, %v2034
          %v2227 = vmul.f32 %v1997, %v2044
          %v2228 = vadd.f32 %v2226, %v2227
          %v2229 = vmul.f32 %v2033, %v2054
          %v2230 = vadd.f32 %v2228, %v2229
          %v2231 = vmul.f32 %v1971, %v1962
          %v2232 = vmul.f32 %v2007, %v1972
          %v2233 = vadd.f32 %v2231, %v2232
          %v2234 = vmul.f32 %v2043, %v1982
          %v2235 = vadd.f32 %v2233, %v2234
          %v2236 = vmul.f32 %v1971, %v1998
          %v2237 = vmul.f32 %v2007, %v2008
          %v2238 = vadd.f32 %v2236, %v2237
          %v2239 = vmul.f32 %v2043, %v2018
          %v2240 = vadd.f32 %v2238, %v2239
          %v2241 = vmul.f32 %v1971, %v2034
          %v2242 = vmul.f32 %v2007, %v2044
          %v2243 = vadd.f32 %v2241, %v2242
          %v2244 = vmul.f32 %v2043, %v2054
          %v2245 = vadd.f32 %v2243, %v2244
          %v2246 = vmul.f32 %v1981, %v1962
          %v2247 = vmul.f32 %v2017, %v1972
          %v2248 = vadd.f32 %v2246, %v2247
          %v2249 = vmul.f32 %v2053, %v1982
          %v2250 = vadd.f32 %v2248, %v2249
          %v2251 = vmul.f32 %v1981, %v1998
          %v2252 = vmul.f32 %v2017, %v2008
          %v2253 = vadd.f32 %v2251, %v2252
          %v2254 = vmul.f32 %v2053, %v2018
          %v2255 = vadd.f32 %v2253, %v2254
          %v2256 = vmul.f32 %v1981, %v2034
          %v2257 = vmul.f32 %v2017, %v2044
          %v2258 = vadd.f32 %v2256, %v2257
          %v2259 = vmul.f32 %v2053, %v2054
          %v2260 = vadd.f32 %v2258, %v2259
          %v2261 = vmul.f32 %v2175, %v2220
          %v2262 = vmul.f32 %v2190, %v2235
          %v2263 = vadd.f32 %v2261, %v2262
          %v2264 = vmul.f32 %v2205, %v2250
          %v2265 = vadd.f32 %v2263, %v2264
          %v2266 = vmul.f32 %v2175, %v2225
          %v2267 = vmul.f32 %v2190, %v2240
          %v2268 = vadd.f32 %v2266, %v2267
          %v2269 = vmul.f32 %v2205, %v2255
          %v2270 = vadd.f32 %v2268, %v2269
          %v2271 = vmul.f32 %v2175, %v2230
          %v2272 = vmul.f32 %v2190, %v2245
          %v2273 = vadd.f32 %v2271, %v2272
          %v2274 = vmul.f32 %v2205, %v2260
          %v2275 = vadd.f32 %v2273, %v2274
          %v2276 = vmul.f32 %v2180, %v2220
          %v2277 = vmul.f32 %v2195, %v2235
          %v2278 = vadd.f32 %v2276, %v2277
          %v2279 = vmul.f32 %v2210, %v2250
          %v2280 = vadd.f32 %v2278, %v2279
          %v2281 = vmul.f32 %v2180, %v2225
          %v2282 = vmul.f32 %v2195, %v2240
          %v2283 = vadd.f32 %v2281, %v2282
          %v2284 = vmul.f32 %v2210, %v2255
          %v2285 = vadd.f32 %v2283, %v2284
          %v2286 = vmul.f32 %v2180, %v2230
          %v2287 = vmul.f32 %v2195, %v2245
          %v2288 = vadd.f32 %v2286, %v2287
          %v2289 = vmul.f32 %v2210, %v2260
          %v2290 = vadd.f32 %v2288, %v2289
          %v2291 = vmul.f32 %v2185, %v2220
          %v2292 = vmul.f32 %v2200, %v2235
          %v2293 = vadd.f32 %v2291, %v2292
          %v2294 = vmul.f32 %v2215, %v2250
          %v2295 = vadd.f32 %v2293, %v2294
          %v2296 = vmul.f32 %v2185, %v2225
          %v2297 = vmul.f32 %v2200, %v2240
          %v2298 = vadd.f32 %v2296, %v2297
          %v2299 = vmul.f32 %v2215, %v2255
          %v2300 = vadd.f32 %v2298, %v2299
          %v2301 = vmul.f32 %v2185, %v2230
          %v2302 = vmul.f32 %v2200, %v2245
          %v2303 = vadd.f32 %v2301, %v2302
          %v2304 = vmul.f32 %v2215, %v2260
          %v2305 = vadd.f32 %v2303, %v2304
          %2306 = vst [vmem:[#allocation2 + $0x10] sm:$0xff] %v2265
          %2307 = vst [vmem:[%s2147 + $0x10] sm:$0xff] %v2270
          %2308 = vst [vmem:[%s2150 + $0x10] sm:$0xff] %v2275
          %2309 = vst [vmem:[%s2153 + $0x10] sm:$0xff] %v2280
          %2310 = vst [vmem:[%s2156 + $0x10] sm:$0xff] %v2285
          %2311 = vst [vmem:[%s2159 + $0x10] sm:$0xff] %v2290
          %2312 = vst [vmem:[%s2162 + $0x10] sm:$0xff] %v2295
          %2313 = vst [vmem:[%s2165 + $0x10] sm:$0xff] %v2300
          %2314 = vst [vmem:[%s2168 + $0x10] sm:$0xff] %v2305
          %v2316 = vrot.slane %v2175, 4
          %v2318 = vmul.f32 %v2175, %v2316
          %v2320 = vrot.slane %v2190, 4
          %v2322 = vmul.f32 %v2180, %v2320
          %v2323 = vadd.f32 %v2318, %v2322
          %v2325 = vrot.slane %v2205, 4
          %v2327 = vmul.f32 %v2185, %v2325
          %v2328 = vadd.f32 %v2323, %v2327
          %v2330 = vrot.slane %v2180, 4
          %v2332 = vmul.f32 %v2175, %v2330
          %v2334 = vrot.slane %v2195, 4
          %v2336 = vmul.f32 %v2180, %v2334
          %v2337 = vadd.f32 %v2332, %v2336
          %v2339 = vrot.slane %v2210, 4
          %v2341 = vmul.f32 %v2185, %v2339
          %v2342 = vadd.f32 %v2337, %v2341
          %v2344 = vrot.slane %v2185, 4
          %v2346 = vmul.f32 %v2175, %v2344
          %v2348 = vrot.slane %v2200, 4
          %v2350 = vmul.f32 %v2180, %v2348
          %v2351 = vadd.f32 %v2346, %v2350
          %v2353 = vrot.slane %v2215, 4
          %v2355 = vmul.f32 %v2185, %v2353
          %v2356 = vadd.f32 %v2351, %v2355
          %v2357 = vmul.f32 %v2190, %v2316
          %v2358 = vmul.f32 %v2195, %v2320
          %v2359 = vadd.f32 %v2357, %v2358
          %v2360 = vmul.f32 %v2200, %v2325
          %v2361 = vadd.f32 %v2359, %v2360
          %v2362 = vmul.f32 %v2190, %v2330
          %v2363 = vmul.f32 %v2195, %v2334
          %v2364 = vadd.f32 %v2362, %v2363
          %v2365 = vmul.f32 %v2200, %v2339
          %v2366 = vadd.f32 %v2364, %v2365
          %v2367 = vmul.f32 %v2190, %v2344
          %v2368 = vmul.f32 %v2195, %v2348
          %v2369 = vadd.f32 %v2367, %v2368
          %v2370 = vmul.f32 %v2200, %v2353
          %v2371 = vadd.f32 %v2369, %v2370
          %v2372 = vmul.f32 %v2205, %v2316
          %v2373 = vmul.f32 %v2210, %v2320
          %v2374 = vadd.f32 %v2372, %v2373
          %v2375 = vmul.f32 %v2215, %v2325
          %v2376 = vadd.f32 %v2374, %v2375
          %v2377 = vmul.f32 %v2205, %v2330
          %v2378 = vmul.f32 %v2210, %v2334
          %v2379 = vadd.f32 %v2377, %v2378
          %v2380 = vmul.f32 %v2215, %v2339
          %v2381 = vadd.f32 %v2379, %v2380
          %v2382 = vmul.f32 %v2205, %v2344
          %v2383 = vmul.f32 %v2210, %v2348
          %v2384 = vadd.f32 %v2382, %v2383
          %v2385 = vmul.f32 %v2215, %v2353
          %v2386 = vadd.f32 %v2384, %v2385
          %v2388 = vrot.slane %v2220, 4
          %v2390 = vmul.f32 %v2220, %v2388
          %v2392 = vrot.slane %v2235, 4
          %v2394 = vmul.f32 %v2225, %v2392
          %v2395 = vadd.f32 %v2390, %v2394
          %v2397 = vrot.slane %v2250, 4
          %v2399 = vmul.f32 %v2230, %v2397
          %v2400 = vadd.f32 %v2395, %v2399
          %v2402 = vrot.slane %v2225, 4
          %v2404 = vmul.f32 %v2220, %v2402
          %v2406 = vrot.slane %v2240, 4
          %v2408 = vmul.f32 %v2225, %v2406
          %v2409 = vadd.f32 %v2404, %v2408
          %v2411 = vrot.slane %v2255, 4
          %v2413 = vmul.f32 %v2230, %v2411
          %v2414 = vadd.f32 %v2409, %v2413
          %v2416 = vrot.slane %v2230, 4
          %v2418 = vmul.f32 %v2220, %v2416
          %v2420 = vrot.slane %v2245, 4
          %v2422 = vmul.f32 %v2225, %v2420
          %v2423 = vadd.f32 %v2418, %v2422
          %v2425 = vrot.slane %v2260, 4
          %v2427 = vmul.f32 %v2230, %v2425
          %v2428 = vadd.f32 %v2423, %v2427
          %v2429 = vmul.f32 %v2235, %v2388
          %v2430 = vmul.f32 %v2240, %v2392
          %v2431 = vadd.f32 %v2429, %v2430
          %v2432 = vmul.f32 %v2245, %v2397
          %v2433 = vadd.f32 %v2431, %v2432
          %v2434 = vmul.f32 %v2235, %v2402
          %v2435 = vmul.f32 %v2240, %v2406
          %v2436 = vadd.f32 %v2434, %v2435
          %v2437 = vmul.f32 %v2245, %v2411
          %v2438 = vadd.f32 %v2436, %v2437
          %v2439 = vmul.f32 %v2235, %v2416
          %v2440 = vmul.f32 %v2240, %v2420
          %v2441 = vadd.f32 %v2439, %v2440
          %v2442 = vmul.f32 %v2245, %v2425
          %v2443 = vadd.f32 %v2441, %v2442
          %v2444 = vmul.f32 %v2250, %v2388
          %v2445 = vmul.f32 %v2255, %v2392
          %v2446 = vadd.f32 %v2444, %v2445
          %v2447 = vmul.f32 %v2260, %v2397
          %v2448 = vadd.f32 %v2446, %v2447
          %v2449 = vmul.f32 %v2250, %v2402
          %v2450 = vmul.f32 %v2255, %v2406
          %v2451 = vadd.f32 %v2449, %v2450
          %v2452 = vmul.f32 %v2260, %v2411
          %v2453 = vadd.f32 %v2451, %v2452
          %v2454 = vmul.f32 %v2250, %v2416
          %v2455 = vmul.f32 %v2255, %v2420
          %v2456 = vadd.f32 %v2454, %v2455
          %v2457 = vmul.f32 %v2260, %v2425
          %v2458 = vadd.f32 %v2456, %v2457
          %v2459 = vmul.f32 %v2328, %v2400
          %v2460 = vmul.f32 %v2361, %v2433
          %v2461 = vadd.f32 %v2459, %v2460
          %v2462 = vmul.f32 %v2376, %v2448
          %v2463 = vadd.f32 %v2461, %v2462
          %v2464 = vmul.f32 %v2328, %v2414
          %v2465 = vmul.f32 %v2361, %v2438
          %v2466 = vadd.f32 %v2464, %v2465
          %v2467 = vmul.f32 %v2376, %v2453
          %v2468 = vadd.f32 %v2466, %v2467
          %v2469 = vmul.f32 %v2328, %v2428
          %v2470 = vmul.f32 %v2361, %v2443
          %v2471 = vadd.f32 %v2469, %v2470
          %v2472 = vmul.f32 %v2376, %v2458
          %v2473 = vadd.f32 %v2471, %v2472
          %v2474 = vmul.f32 %v2342, %v2400
          %v2475 = vmul.f32 %v2366, %v2433
          %v2476 = vadd.f32 %v2474, %v2475
          %v2477 = vmul.f32 %v2381, %v2448
          %v2478 = vadd.f32 %v2476, %v2477
          %v2479 = vmul.f32 %v2342, %v2414
          %v2480 = vmul.f32 %v2366, %v2438
          %v2481 = vadd.f32 %v2479, %v2480
          %v2482 = vmul.f32 %v2381, %v2453
          %v2483 = vadd.f32 %v2481, %v2482
          %v2484 = vmul.f32 %v2342, %v2428
          %v2485 = vmul.f32 %v2366, %v2443
          %v2486 = vadd.f32 %v2484, %v2485
          %v2487 = vmul.f32 %v2381, %v2458
          %v2488 = vadd.f32 %v2486, %v2487
          %v2489 = vmul.f32 %v2356, %v2400
          %v2490 = vmul.f32 %v2371, %v2433
          %v2491 = vadd.f32 %v2489, %v2490
          %v2492 = vmul.f32 %v2386, %v2448
          %v2493 = vadd.f32 %v2491, %v2492
          %v2494 = vmul.f32 %v2356, %v2414
          %v2495 = vmul.f32 %v2371, %v2438
          %v2496 = vadd.f32 %v2494, %v2495
          %v2497 = vmul.f32 %v2386, %v2453
          %v2498 = vadd.f32 %v2496, %v2497
          %v2499 = vmul.f32 %v2356, %v2428
          %v2500 = vmul.f32 %v2371, %v2443
          %v2501 = vadd.f32 %v2499, %v2500
          %v2502 = vmul.f32 %v2386, %v2458
          %v2503 = vadd.f32 %v2501, %v2502
          %2504 = vst [vmem:[#allocation2 + $0x18] sm:$0xf] %v2463
          %2505 = vst [vmem:[%s2147 + $0x18] sm:$0xf] %v2468
          %2506 = vst [vmem:[%s2150 + $0x18] sm:$0xf] %v2473
          %2507 = vst [vmem:[%s2153 + $0x18] sm:$0xf] %v2478
          %2508 = vst [vmem:[%s2156 + $0x18] sm:$0xf] %v2483
          %2509 = vst [vmem:[%s2159 + $0x18] sm:$0xf] %v2488
          %2510 = vst [vmem:[%s2162 + $0x18] sm:$0xf] %v2493
          %2511 = vst [vmem:[%s2165 + $0x18] sm:$0xf] %v2498
          %2512 = vst [vmem:[%s2168 + $0x18] sm:$0xf] %v2503
          %v2514 = vrot.slane %v2328, 2
          %v2516 = vmul.f32 %v2328, %v2514
          %v2518 = vrot.slane %v2361, 2
          %v2520 = vmul.f32 %v2342, %v2518
          %v2521 = vadd.f32 %v2516, %v2520
          %v2523 = vrot.slane %v2376, 2
          %v2525 = vmul.f32 %v2356, %v2523
          %v2526 = vadd.f32 %v2521, %v2525
          %v2528 = vrot.slane %v2342, 2
          %v2530 = vmul.f32 %v2328, %v2528
          %v2532 = vrot.slane %v2366, 2
          %v2534 = vmul.f32 %v2342, %v2532
          %v2535 = vadd.f32 %v2530, %v2534
          %v2537 = vrot.slane %v2381, 2
          %v2539 = vmul.f32 %v2356, %v2537
          %v2540 = vadd.f32 %v2535, %v2539
          %v2542 = vrot.slane %v2356, 2
          %v2544 = vmul.f32 %v2328, %v2542
          %v2546 = vrot.slane %v2371, 2
          %v2548 = vmul.f32 %v2342, %v2546
          %v2549 = vadd.f32 %v2544, %v2548
          %v2551 = vrot.slane %v2386, 2
          %v2553 = vmul.f32 %v2356, %v2551
          %v2554 = vadd.f32 %v2549, %v2553
          %v2555 = vmul.f32 %v2361, %v2514
          %v2556 = vmul.f32 %v2366, %v2518
          %v2557 = vadd.f32 %v2555, %v2556
          %v2558 = vmul.f32 %v2371, %v2523
          %v2559 = vadd.f32 %v2557, %v2558
          %v2560 = vmul.f32 %v2361, %v2528
          %v2561 = vmul.f32 %v2366, %v2532
          %v2562 = vadd.f32 %v2560, %v2561
          %v2563 = vmul.f32 %v2371, %v2537
          %v2564 = vadd.f32 %v2562, %v2563
          %v2565 = vmul.f32 %v2361, %v2542
          %v2566 = vmul.f32 %v2366, %v2546
          %v2567 = vadd.f32 %v2565, %v2566
          %v2568 = vmul.f32 %v2371, %v2551
          %v2569 = vadd.f32 %v2567, %v2568
          %v2570 = vmul.f32 %v2376, %v2514
          %v2571 = vmul.f32 %v2381, %v2518
          %v2572 = vadd.f32 %v2570, %v2571
          %v2573 = vmul.f32 %v2386, %v2523
          %v2574 = vadd.f32 %v2572, %v2573
          %v2575 = vmul.f32 %v2376, %v2528
          %v2576 = vmul.f32 %v2381, %v2532
          %v2577 = vadd.f32 %v2575, %v2576
          %v2578 = vmul.f32 %v2386, %v2537
          %v2579 = vadd.f32 %v2577, %v2578
          %v2580 = vmul.f32 %v2376, %v2542
          %v2581 = vmul.f32 %v2381, %v2546
          %v2582 = vadd.f32 %v2580, %v2581
          %v2583 = vmul.f32 %v2386, %v2551
          %v2584 = vadd.f32 %v2582, %v2583
          %v2586 = vrot.slane %v2400, 2
          %v2588 = vmul.f32 %v2400, %v2586
          %v2590 = vrot.slane %v2433, 2
          %v2592 = vmul.f32 %v2414, %v2590
          %v2593 = vadd.f32 %v2588, %v2592
          %v2595 = vrot.slane %v2448, 2
          %v2597 = vmul.f32 %v2428, %v2595
          %v2598 = vadd.f32 %v2593, %v2597
          %v2600 = vrot.slane %v2414, 2
          %v2602 = vmul.f32 %v2400, %v2600
          %v2604 = vrot.slane %v2438, 2
          %v2606 = vmul.f32 %v2414, %v2604
          %v2607 = vadd.f32 %v2602, %v2606
          %v2609 = vrot.slane %v2453, 2
          %v2611 = vmul.f32 %v2428, %v2609
          %v2612 = vadd.f32 %v2607, %v2611
          %v2614 = vrot.slane %v2428, 2
          %v2616 = vmul.f32 %v2400, %v2614
          %v2618 = vrot.slane %v2443, 2
          %v2620 = vmul.f32 %v2414, %v2618
          %v2621 = vadd.f32 %v2616, %v2620
          %v2623 = vrot.slane %v2458, 2
          %v2625 = vmul.f32 %v2428, %v2623
          %v2626 = vadd.f32 %v2621, %v2625
          %v2627 = vmul.f32 %v2433, %v2586
          %v2628 = vmul.f32 %v2438, %v2590
          %v2629 = vadd.f32 %v2627, %v2628
          %v2630 = vmul.f32 %v2443, %v2595
          %v2631 = vadd.f32 %v2629, %v2630
          %v2632 = vmul.f32 %v2433, %v2600
          %v2633 = vmul.f32 %v2438, %v2604
          %v2634 = vadd.f32 %v2632, %v2633
          %v2635 = vmul.f32 %v2443, %v2609
          %v2636 = vadd.f32 %v2634, %v2635
          %v2637 = vmul.f32 %v2433, %v2614
          %v2638 = vmul.f32 %v2438, %v2618
          %v2639 = vadd.f32 %v2637, %v2638
          %v2640 = vmul.f32 %v2443, %v2623
          %v2641 = vadd.f32 %v2639, %v2640
          %v2642 = vmul.f32 %v2448, %v2586
          %v2643 = vmul.f32 %v2453, %v2590
          %v2644 = vadd.f32 %v2642, %v2643
          %v2645 = vmul.f32 %v2458, %v2595
          %v2646 = vadd.f32 %v2644, %v2645
          %v2647 = vmul.f32 %v2448, %v2600
          %v2648 = vmul.f32 %v2453, %v2604
          %v2649 = vadd.f32 %v2647, %v2648
          %v2650 = vmul.f32 %v2458, %v2609
          %v2651 = vadd.f32 %v2649, %v2650
          %v2652 = vmul.f32 %v2448, %v2614
          %v2653 = vmul.f32 %v2453, %v2618
          %v2654 = vadd.f32 %v2652, %v2653
          %v2655 = vmul.f32 %v2458, %v2623
          %v2656 = vadd.f32 %v2654, %v2655
          %v2657 = vmul.f32 %v2526, %v2598
          %v2658 = vmul.f32 %v2559, %v2631
          %v2659 = vadd.f32 %v2657, %v2658
          %v2660 = vmul.f32 %v2574, %v2646
          %v2661 = vadd.f32 %v2659, %v2660
          %v2662 = vmul.f32 %v2526, %v2612
          %v2663 = vmul.f32 %v2559, %v2636
          %v2664 = vadd.f32 %v2662, %v2663
          %v2665 = vmul.f32 %v2574, %v2651
          %v2666 = vadd.f32 %v2664, %v2665
          %v2667 = vmul.f32 %v2526, %v2626
          %v2668 = vmul.f32 %v2559, %v2641
          %v2669 = vadd.f32 %v2667, %v2668
          %v2670 = vmul.f32 %v2574, %v2656
          %v2671 = vadd.f32 %v2669, %v2670
          %v2672 = vmul.f32 %v2540, %v2598
          %v2673 = vmul.f32 %v2564, %v2631
          %v2674 = vadd.f32 %v2672, %v2673
          %v2675 = vmul.f32 %v2579, %v2646
          %v2676 = vadd.f32 %v2674, %v2675
          %v2677 = vmul.f32 %v2540, %v2612
          %v2678 = vmul.f32 %v2564, %v2636
          %v2679 = vadd.f32 %v2677, %v2678
          %v2680 = vmul.f32 %v2579, %v2651
          %v2681 = vadd.f32 %v2679, %v2680
          %v2682 = vmul.f32 %v2540, %v2626
          %v2683 = vmul.f32 %v2564, %v2641
          %v2684 = vadd.f32 %v2682, %v2683
          %v2685 = vmul.f32 %v2579, %v2656
          %v2686 = vadd.f32 %v2684, %v2685
          %v2687 = vmul.f32 %v2554, %v2598
          %v2688 = vmul.f32 %v2569, %v2631
          %v2689 = vadd.f32 %v2687, %v2688
          %v2690 = vmul.f32 %v2584, %v2646
          %v2691 = vadd.f32 %v2689, %v2690
          %v2692 = vmul.f32 %v2554, %v2612
          %v2693 = vmul.f32 %v2569, %v2636
          %v2694 = vadd.f32 %v2692, %v2693
          %v2695 = vmul.f32 %v2584, %v2651
          %v2696 = vadd.f32 %v2694, %v2695
          %v2697 = vmul.f32 %v2554, %v2626
          %v2698 = vmul.f32 %v2569, %v2641
          %v2699 = vadd.f32 %v2697, %v2698
          %v2700 = vmul.f32 %v2584, %v2656
          %v2701 = vadd.f32 %v2699, %v2700
          %2702 = vst [vmem:[#allocation2 + $0x1c] sm:$0x3] %v2661
          %2703 = vst [vmem:[%s2147 + $0x1c] sm:$0x3] %v2666
          %2704 = vst [vmem:[%s2150 + $0x1c] sm:$0x3] %v2671
          %2705 = vst [vmem:[%s2153 + $0x1c] sm:$0x3] %v2676
          %2706 = vst [vmem:[%s2156 + $0x1c] sm:$0x3] %v2681
          %2707 = vst [vmem:[%s2159 + $0x1c] sm:$0x3] %v2686
          %2708 = vst [vmem:[%s2162 + $0x1c] sm:$0x3] %v2691
          %2709 = vst [vmem:[%s2165 + $0x1c] sm:$0x3] %v2696
          %2710 = vst [vmem:[%s2168 + $0x1c] sm:$0x3] %v2701
          %v2712 = vrot.slane %v2526, 1
          %v2714 = vmul.f32 %v2526, %v2712
          %v2716 = vrot.slane %v2559, 1
          %v2718 = vmul.f32 %v2540, %v2716
          %v2719 = vadd.f32 %v2714, %v2718
          %v2721 = vrot.slane %v2574, 1
          %v2723 = vmul.f32 %v2554, %v2721
          %v2724 = vadd.f32 %v2719, %v2723
          %v2726 = vrot.slane %v2540, 1
          %v2728 = vmul.f32 %v2526, %v2726
          %v2730 = vrot.slane %v2564, 1
          %v2732 = vmul.f32 %v2540, %v2730
          %v2733 = vadd.f32 %v2728, %v2732
          %v2735 = vrot.slane %v2579, 1
          %v2737 = vmul.f32 %v2554, %v2735
          %v2738 = vadd.f32 %v2733, %v2737
          %v2740 = vrot.slane %v2554, 1
          %v2742 = vmul.f32 %v2526, %v2740
          %v2744 = vrot.slane %v2569, 1
          %v2746 = vmul.f32 %v2540, %v2744
          %v2747 = vadd.f32 %v2742, %v2746
          %v2749 = vrot.slane %v2584, 1
          %v2751 = vmul.f32 %v2554, %v2749
          %v2752 = vadd.f32 %v2747, %v2751
          %v2753 = vmul.f32 %v2559, %v2712
          %v2754 = vmul.f32 %v2564, %v2716
          %v2755 = vadd.f32 %v2753, %v2754
          %v2756 = vmul.f32 %v2569, %v2721
          %v2757 = vadd.f32 %v2755, %v2756
          %v2758 = vmul.f32 %v2559, %v2726
          %v2759 = vmul.f32 %v2564, %v2730
          %v2760 = vadd.f32 %v2758, %v2759
          %v2761 = vmul.f32 %v2569, %v2735
          %v2762 = vadd.f32 %v2760, %v2761
          %v2763 = vmul.f32 %v2559, %v2740
          %v2764 = vmul.f32 %v2564, %v2744
          %v2765 = vadd.f32 %v2763, %v2764
          %v2766 = vmul.f32 %v2569, %v2749
          %v2767 = vadd.f32 %v2765, %v2766
          %v2768 = vmul.f32 %v2574, %v2712
          %v2769 = vmul.f32 %v2579, %v2716
          %v2770 = vadd.f32 %v2768, %v2769
          %v2771 = vmul.f32 %v2584, %v2721
          %v2772 = vadd.f32 %v2770, %v2771
          %v2773 = vmul.f32 %v2574, %v2726
          %v2774 = vmul.f32 %v2579, %v2730
          %v2775 = vadd.f32 %v2773, %v2774
          %v2776 = vmul.f32 %v2584, %v2735
          %v2777 = vadd.f32 %v2775, %v2776
          %v2778 = vmul.f32 %v2574, %v2740
          %v2779 = vmul.f32 %v2579, %v2744
          %v2780 = vadd.f32 %v2778, %v2779
          %v2781 = vmul.f32 %v2584, %v2749
          %v2782 = vadd.f32 %v2780, %v2781
          %v2784 = vrot.slane %v2598, 1
          %v2786 = vmul.f32 %v2598, %v2784
          %v2788 = vrot.slane %v2631, 1
          %v2790 = vmul.f32 %v2612, %v2788
          %v2791 = vadd.f32 %v2786, %v2790
          %v2793 = vrot.slane %v2646, 1
          %v2795 = vmul.f32 %v2626, %v2793
          %v2796 = vadd.f32 %v2791, %v2795
          %v2798 = vrot.slane %v2612, 1
          %v2800 = vmul.f32 %v2598, %v2798
          %v2802 = vrot.slane %v2636, 1
          %v2804 = vmul.f32 %v2612, %v2802
          %v2805 = vadd.f32 %v2800, %v2804
          %v2807 = vrot.slane %v2651, 1
          %v2809 = vmul.f32 %v2626, %v2807
          %v2810 = vadd.f32 %v2805, %v2809
          %v2812 = vrot.slane %v2626, 1
          %v2814 = vmul.f32 %v2598, %v2812
          %v2816 = vrot.slane %v2641, 1
          %v2818 = vmul.f32 %v2612, %v2816
          %v2819 = vadd.f32 %v2814, %v2818
          %v2821 = vrot.slane %v2656, 1
          %v2823 = vmul.f32 %v2626, %v2821
          %v2824 = vadd.f32 %v2819, %v2823
          %v2825 = vmul.f32 %v2631, %v2784
          %v2826 = vmul.f32 %v2636, %v2788
          %v2827 = vadd.f32 %v2825, %v2826
          %v2828 = vmul.f32 %v2641, %v2793
          %v2829 = vadd.f32 %v2827, %v2828
          %v2830 = vmul.f32 %v2631, %v2798
          %v2831 = vmul.f32 %v2636, %v2802
          %v2832 = vadd.f32 %v2830, %v2831
          %v2833 = vmul.f32 %v2641, %v2807
          %v2834 = vadd.f32 %v2832, %v2833
          %v2835 = vmul.f32 %v2631, %v2812
          %v2836 = vmul.f32 %v2636, %v2816
          %v2837 = vadd.f32 %v2835, %v2836
          %v2838 = vmul.f32 %v2641, %v2821
          %v2839 = vadd.f32 %v2837, %v2838
          %v2840 = vmul.f32 %v2646, %v2784
          %v2841 = vmul.f32 %v2651, %v2788
          %v2842 = vadd.f32 %v2840, %v2841
          %v2843 = vmul.f32 %v2656, %v2793
          %v2844 = vadd.f32 %v2842, %v2843
          %v2845 = vmul.f32 %v2646, %v2798
          %v2846 = vmul.f32 %v2651, %v2802
          %v2847 = vadd.f32 %v2845, %v2846
          %v2848 = vmul.f32 %v2656, %v2807
          %v2849 = vadd.f32 %v2847, %v2848
          %v2850 = vmul.f32 %v2646, %v2812
          %v2851 = vmul.f32 %v2651, %v2816
          %v2852 = vadd.f32 %v2850, %v2851
          %v2853 = vmul.f32 %v2656, %v2821
          %v2854 = vadd.f32 %v2852, %v2853
          %v2855 = vmul.f32 %v2724, %v2796
          %v2856 = vmul.f32 %v2757, %v2829
          %v2857 = vadd.f32 %v2855, %v2856
          %v2858 = vmul.f32 %v2772, %v2844
          %v2859 = vadd.f32 %v2857, %v2858
          %v2860 = vmul.f32 %v2724, %v2810
          %v2861 = vmul.f32 %v2757, %v2834
          %v2862 = vadd.f32 %v2860, %v2861
          %v2863 = vmul.f32 %v2772, %v2849
          %v2864 = vadd.f32 %v2862, %v2863
          %v2865 = vmul.f32 %v2724, %v2824
          %v2866 = vmul.f32 %v2757, %v2839
          %v2867 = vadd.f32 %v2865, %v2866
          %v2868 = vmul.f32 %v2772, %v2854
          %v2869 = vadd.f32 %v2867, %v2868
          %v2870 = vmul.f32 %v2738, %v2796
          %v2871 = vmul.f32 %v2762, %v2829
          %v2872 = vadd.f32 %v2870, %v2871
          %v2873 = vmul.f32 %v2777, %v2844
          %v2874 = vadd.f32 %v2872, %v2873
          %v2875 = vmul.f32 %v2738, %v2810
          %v2876 = vmul.f32 %v2762, %v2834
          %v2877 = vadd.f32 %v2875, %v2876
          %v2878 = vmul.f32 %v2777, %v2849
          %v2879 = vadd.f32 %v2877, %v2878
          %v2880 = vmul.f32 %v2738, %v2824
          %v2881 = vmul.f32 %v2762, %v2839
          %v2882 = vadd.f32 %v2880, %v2881
          %v2883 = vmul.f32 %v2777, %v2854
          %v2884 = vadd.f32 %v2882, %v2883
          %v2885 = vmul.f32 %v2752, %v2796
          %v2886 = vmul.f32 %v2767, %v2829
          %v2887 = vadd.f32 %v2885, %v2886
          %v2888 = vmul.f32 %v2782, %v2844
          %v2889 = vadd.f32 %v2887, %v2888
          %v2890 = vmul.f32 %v2752, %v2810
          %v2891 = vmul.f32 %v2767, %v2834
          %v2892 = vadd.f32 %v2890, %v2891
          %v2893 = vmul.f32 %v2782, %v2849
          %v2894 = vadd.f32 %v2892, %v2893
          %v2895 = vmul.f32 %v2752, %v2824
          %v2896 = vmul.f32 %v2767, %v2839
          %v2897 = vadd.f32 %v2895, %v2896
          %v2898 = vmul.f32 %v2782, %v2854
          %v2899 = vadd.f32 %v2897, %v2898
          %2900 = vst [vmem:[#allocation2 + $0x1e] sm:$0x1] %v2859
          %2901 = vst [vmem:[%s2147 + $0x1e] sm:$0x1] %v2864
          %2902 = vst [vmem:[%s2150 + $0x1e] sm:$0x1] %v2869
          %2903 = vst [vmem:[%s2153 + $0x1e] sm:$0x1] %v2874
          %2904 = vst [vmem:[%s2156 + $0x1e] sm:$0x1] %v2879
          %2905 = vst [vmem:[%s2159 + $0x1e] sm:$0x1] %v2884
          %2906 = vst [vmem:[%s2162 + $0x1e] sm:$0x1] %v2889
          %2907 = vst [vmem:[%s2165 + $0x1e] sm:$0x1] %v2894
          %2908 = vst [vmem:[%s2168 + $0x1e] sm:$0x1] %v2899
          %v2909 = vld [vmem:[#allocation2] sm:$0xff]
          %v2910 = vld [vmem:[%s2147] sm:$0xff]
          %v2911 = vld [vmem:[%s2150] sm:$0xff]
          %v2912 = vld [vmem:[%s2153] sm:$0xff]
          %v2913 = vld [vmem:[%s2156] sm:$0xff]
          %v2914 = vld [vmem:[%s2159] sm:$0xff]
          %v2915 = vld [vmem:[%s2162] sm:$0xff]
          %v2916 = vld [vmem:[%s2165] sm:$0xff]
          %v2917 = vld [vmem:[%s2168] sm:$0xff]
          %v2918 = vmul.f32 %v2909, %v2909
          %v2919 = vmul.f32 %v2912, %v2912
          %v2920 = vadd.f32 %v2918, %v2919
          %v2921 = vmul.f32 %v2915, %v2915
          %v2922 = vadd.f32 %v2920, %v2921
          %v2923 = vmul.f32 %v2909, %v2910
          %v2924 = vmul.f32 %v2912, %v2913
          %v2925 = vadd.f32 %v2923, %v2924
          %v2926 = vmul.f32 %v2915, %v2916
          %v2927 = vadd.f32 %v2925, %v2926
          %v2928 = vmul.f32 %v2909, %v2911
          %v2929 = vmul.f32 %v2912, %v2914
          %v2930 = vadd.f32 %v2928, %v2929
          %v2931 = vmul.f32 %v2915, %v2917
          %v2932 = vadd.f32 %v2930, %v2931
          %v2933 = vmul.f32 %v2910, %v2910
          %v2934 = vmul.f32 %v2913, %v2913
          %v2935 = vadd.f32 %v2933, %v2934
          %v2936 = vmul.f32 %v2916, %v2916
          %v2937 = vadd.f32 %v2935, %v2936
          %v2938 = vmul.f32 %v2910, %v2911
          %v2939 = vmul.f32 %v2913, %v2914
          %v2940 = vadd.f32 %v2938, %v2939
          %v2941 = vmul.f32 %v2916, %v2917
          %v2942 = vadd.f32 %v2940, %v2941
          %v2943 = vmul.f32 %v2911, %v2911
          %v2944 = vmul.f32 %v2914, %v2914
          %v2945 = vadd.f32 %v2943, %v2944
          %v2946 = vmul.f32 %v2917, %v2917
          %v2947 = vadd.f32 %v2945, %v2946
          %v2948 = vmul.f32 %v2922, 0.5
          %v2949 = vsub.f32 1.5, %v2948
          %v2950 = vmul.f32 %v2937, 0.5
          %v2951 = vsub.f32 1.5, %v2950
          %v2952 = vmul.f32 %v2947, 0.5
          %v2953 = vsub.f32 1.5, %v2952
          %v2954 = vmul.f32 %v2927, -0.5
          %v2955 = vmul.f32 %v2932, -0.5
          %v2956 = vmul.f32 %v2942, -0.5
          %v2957 = vmul.f32 %v2909, %v2949
          %v2958 = vmul.f32 %v2910, %v2954
          %v2959 = vadd.f32 %v2957, %v2958
          %v2960 = vmul.f32 %v2911, %v2955
          %v2961 = vadd.f32 %v2959, %v2960
          %v2962 = vmul.f32 %v2909, %v2954
          %v2963 = vmul.f32 %v2910, %v2951
          %v2964 = vadd.f32 %v2962, %v2963
          %v2965 = vmul.f32 %v2911, %v2956
          %v2966 = vadd.f32 %v2964, %v2965
          %v2967 = vmul.f32 %v2909, %v2955
          %v2968 = vmul.f32 %v2910, %v2956
          %v2969 = vadd.f32 %v2967, %v2968
          %v2970 = vmul.f32 %v2911, %v2953
          %v2971 = vadd.f32 %v2969, %v2970
          %v2972 = vmul.f32 %v2912, %v2949
          %v2973 = vmul.f32 %v2913, %v2954
          %v2974 = vadd.f32 %v2972, %v2973
          %v2975 = vmul.f32 %v2914, %v2955
          %v2976 = vadd.f32 %v2974, %v2975
          %v2977 = vmul.f32 %v2912, %v2954
          %v2978 = vmul.f32 %v2913, %v2951
          %v2979 = vadd.f32 %v2977, %v2978
          %v2980 = vmul.f32 %v2914, %v2956
          %v2981 = vadd.f32 %v2979, %v2980
          %v2982 = vmul.f32 %v2912, %v2955
          %v2983 = vmul.f32 %v2913, %v2956
          %v2984 = vadd.f32 %v2982, %v2983
          %v2985 = vmul.f32 %v2914, %v2953
          %v2986 = vadd.f32 %v2984, %v2985
          %v2987 = vmul.f32 %v2915, %v2949
          %v2988 = vmul.f32 %v2916, %v2954
          %v2989 = vadd.f32 %v2987, %v2988
          %v2990 = vmul.f32 %v2917, %v2955
          %v2991 = vadd.f32 %v2989, %v2990
          %v2992 = vmul.f32 %v2915, %v2954
          %v2993 = vmul.f32 %v2916, %v2951
          %v2994 = vadd.f32 %v2992, %v2993
          %v2995 = vmul.f32 %v2917, %v2956
          %v2996 = vadd.f32 %v2994, %v2995
          %v2997 = vmul.f32 %v2915, %v2955
          %v2998 = vmul.f32 %v2916, %v2956
          %v2999 = vadd.f32 %v2997, %v2998
          %v3000 = vmul.f32 %v2917, %v2953
          %v3001 = vadd.f32 %v2999, %v3000
          %v3002 = vmul.f32 %v2961, %v2961
          %v3003 = vmul.f32 %v2976, %v2976
          %v3004 = vadd.f32 %v3002, %v3003
          %v3005 = vmul.f32 %v2991, %v2991
          %v3006 = vadd.f32 %v3004, %v3005
          %v3007 = vmul.f32 %v2961, %v2966
          %v3008 = vmul.f32 %v2976, %v2981
          %v3009 = vadd.f32 %v3007, %v3008
          %v3010 = vmul.f32 %v2991, %v2996
          %v3011 = vadd.f32 %v3009, %v3010
          %v3012 = vmul.f32 %v2961, %v2971
          %v3013 = vmul.f32 %v2976, %v2986
          %v3014 = vadd.f32 %v3012, %v3013
          %v3015 = vmul.f32 %v2991, %v3001
          %v3016 = vadd.f32 %v3014, %v3015
          %v3017 = vmul.f32 %v2966, %v2966
          %v3018 = vmul.f32 %v2981, %v2981
          %v3019 = vadd.f32 %v3017, %v3018
          %v3020 = vmul.f32 %v2996, %v2996
          %v3021 = vadd.f32 %v3019, %v3020
          %v3022 = vmul.f32 %v2966, %v2971
          %v3023 = vmul.f32 %v2981, %v2986
          %v3024 = vadd.f32 %v3022, %v3023
          %v3025 = vmul.f32 %v2996, %v3001
          %v3026 = vadd.f32 %v3024, %v3025
          %v3027 = vmul.f32 %v2971, %v2971
          %v3028 = vmul.f32 %v2986, %v2986
          %v3029 = vadd.f32 %v3027, %v3028
          %v3030 = vmul.f32 %v3001, %v3001
          %v3031 = vadd.f32 %v3029, %v3030
          %v3032 = vmul.f32 %v3006, 0.5
          %v3033 = vsub.f32 1.5, %v3032
          %v3034 = vmul.f32 %v3021, 0.5
          %v3035 = vsub.f32 1.5, %v3034
          %v3036 = vmul.f32 %v3031, 0.5
          %v3037 = vsub.f32 1.5, %v3036
          %v3038 = vmul.f32 %v3011, -0.5
          %v3039 = vmul.f32 %v3016, -0.5
          %v3040 = vmul.f32 %v3026, -0.5
          %v3041 = vmul.f32 %v2961, %v3033
          %v3042 = vmul.f32 %v2966, %v3038
          %v3043 = vadd.f32 %v3041, %v3042
          %v3044 = vmul.f32 %v2971, %v3039
          %v3045 = vadd.f32 %v3043, %v3044
          %v3046 = vmul.f32 %v2961, %v3038
          %v3047 = vmul.f32 %v2966, %v3035
          %v3048 = vadd.f32 %v3046, %v3047
          %v3049 = vmul.f32 %v2971, %v3040
          %v3050 = vadd.f32 %v3048, %v3049
          %v3051 = vmul.f32 %v2961, %v3039
          %v3052 = vmul.f32 %v2966, %v3040
          %v3053 = vadd.f32 %v3051, %v3052
          %v3054 = vmul.f32 %v2971, %v3037
          %v3055 = vadd.f32 %v3053, %v3054
          %v3056 = vmul.f32 %v2976, %v3033
          %v3057 = vmul.f32 %v2981, %v3038
          %v3058 = vadd.f32 %v3056, %v3057
          %v3059 = vmul.f32 %v2986, %v3039
          %v3060 = vadd.f32 %v3058, %v3059
          %v3061 = vmul.f32 %v2976, %v3038
          %v3062 = vmul.f32 %v2981, %v3035
          %v3063 = vadd.f32 %v3061, %v3062
          %v3064 = vmul.f32 %v2986, %v3040
          %v3065 = vadd.f32 %v3063, %v3064
          %v3066 = vmul.f32 %v2976, %v3039
          %v3067 = vmul.f32 %v2981, %v3040
          %v3068 = vadd.f32 %v3066, %v3067
          %v3069 = vmul.f32 %v2986, %v3037
          %v3070 = vadd.f32 %v3068, %v3069
          %v3071 = vmul.f32 %v2991, %v3033
          %v3072 = vmul.f32 %v2996, %v3038
          %v3073 = vadd.f32 %v3071, %v3072
          %v3074 = vmul.f32 %v3001, %v3039
          %v3075 = vadd.f32 %v3073, %v3074
          %v3076 = vmul.f32 %v2991, %v3038
          %v3077 = vmul.f32 %v2996, %v3035
          %v3078 = vadd.f32 %v3076, %v3077
          %v3079 = vmul.f32 %v3001, %v3040
          %v3080 = vadd.f32 %v3078, %v3079
          %v3081 = vmul.f32 %v2991, %v3039
          %v3082 = vmul.f32 %v2996, %v3040
          %v3083 = vadd.f32 %v3081, %v3082
          %v3084 = vmul.f32 %v3001, %v3037
          %v3085 = vadd.f32 %v3083, %v3084
          %v3086 = vmul.f32 %v3045, %v3045
          %v3087 = vmul.f32 %v3060, %v3060
          %v3088 = vadd.f32 %v3086, %v3087
          %v3089 = vmul.f32 %v3075, %v3075
          %v3090 = vadd.f32 %v3088, %v3089
          %v3091 = vmul.f32 %v3045, %v3050
          %v3092 = vmul.f32 %v3060, %v3065
          %v3093 = vadd.f32 %v3091, %v3092
          %v3094 = vmul.f32 %v3075, %v3080
          %v3095 = vadd.f32 %v3093, %v3094
          %v3096 = vmul.f32 %v3045, %v3055
          %v3097 = vmul.f32 %v3060, %v3070
          %v3098 = vadd.f32 %v3096, %v3097
          %v3099 = vmul.f32 %v3075, %v3085
          %v3100 = vadd.f32 %v3098, %v3099
          %v3101 = vmul.f32 %v3050, %v3050
          %v3102 = vmul.f32 %v3065, %v3065
          %v3103 = vadd.f32 %v3101, %v3102
          %v3104 = vmul.f32 %v3080, %v3080
          %v3105 = vadd.f32 %v3103, %v3104
          %v3106 = vmul.f32 %v3050, %v3055
          %v3107 = vmul.f32 %v3065, %v3070
          %v3108 = vadd.f32 %v3106, %v3107
          %v3109 = vmul.f32 %v3080, %v3085
          %v3110 = vadd.f32 %v3108, %v3109
          %v3111 = vmul.f32 %v3055, %v3055
          %v3112 = vmul.f32 %v3070, %v3070
          %v3113 = vadd.f32 %v3111, %v3112
          %v3114 = vmul.f32 %v3085, %v3085
          %v3115 = vadd.f32 %v3113, %v3114
          %v3116 = vmul.f32 %v3090, 0.5
          %v3117 = vsub.f32 1.5, %v3116
          %v3118 = vmul.f32 %v3105, 0.5
          %v3119 = vsub.f32 1.5, %v3118
          %v3120 = vmul.f32 %v3115, 0.5
          %v3121 = vsub.f32 1.5, %v3120
          %v3122 = vmul.f32 %v3095, -0.5
          %v3123 = vmul.f32 %v3100, -0.5
          %v3124 = vmul.f32 %v3110, -0.5
          %v3125 = vmul.f32 %v3045, %v3117
          %v3126 = vmul.f32 %v3050, %v3122
          %v3127 = vadd.f32 %v3125, %v3126
          %v3128 = vmul.f32 %v3055, %v3123
          %v3129 = vadd.f32 %v3127, %v3128
          %v3130 = vmul.f32 %v3045, %v3122
          %v3131 = vmul.f32 %v3050, %v3119
          %v3132 = vadd.f32 %v3130, %v3131
          %v3133 = vmul.f32 %v3055, %v3124
          %v3134 = vadd.f32 %v3132, %v3133
          %v3135 = vmul.f32 %v3045, %v3123
          %v3136 = vmul.f32 %v3050, %v3124
          %v3137 = vadd.f32 %v3135, %v3136
          %v3138 = vmul.f32 %v3055, %v3121
          %v3139 = vadd.f32 %v3137, %v3138
          %v3140 = vmul.f32 %v3060, %v3117
          %v3141 = vmul.f32 %v3065, %v3122
          %v3142 = vadd.f32 %v3140, %v3141
          %v3143 = vmul.f32 %v3070, %v3123
          %v3144 = vadd.f32 %v3142, %v3143
          %v3145 = vmul.f32 %v3060, %v3122
          %v3146 = vmul.f32 %v3065, %v3119
          %v3147 = vadd.f32 %v3145, %v3146
          %v3148 = vmul.f32 %v3070, %v3124
          %v3149 = vadd.f32 %v3147, %v3148
          %v3150 = vmul.f32 %v3060, %v3123
          %v3151 = vmul.f32 %v3065, %v3124
          %v3152 = vadd.f32 %v3150, %v3151
          %v3153 = vmul.f32 %v3070, %v3121
          %v3154 = vadd.f32 %v3152, %v3153
          %v3155 = vmul.f32 %v3075, %v3117
          %v3156 = vmul.f32 %v3080, %v3122
          %v3157 = vadd.f32 %v3155, %v3156
          %v3158 = vmul.f32 %v3085, %v3123
          %v3159 = vadd.f32 %v3157, %v3158
          %v3160 = vmul.f32 %v3075, %v3122
          %v3161 = vmul.f32 %v3080, %v3119
          %v3162 = vadd.f32 %v3160, %v3161
          %v3163 = vmul.f32 %v3085, %v3124
          %v3164 = vadd.f32 %v3162, %v3163
          %v3165 = vmul.f32 %v3075, %v3123
          %v3166 = vmul.f32 %v3080, %v3124
          %v3167 = vadd.f32 %v3165, %v3166
          %v3168 = vmul.f32 %v3085, %v3121
          %v3169 = vadd.f32 %v3167, %v3168
          %v3170 = vadd.f32 %v3129, %v3149
          %v3171 = vadd.f32 %v3170, %v3169
          %v3172 = vmul.f32 %v3171, 0.5
          %v3173 = vsub.f32 %v3172, 0.5
          %v3174 = vmax.f32 %v3173, -1.0
          %v3175 = vmin.f32 %v3174, 1.0
          %v3176 = vmul.f32 %v3175, %v3175
          %v3177 = vsub.f32 1.0, %v3176
          %v3178 = vmax.f32 %v3177, 0.0
          %v3179 = vrsqrt.pop %v3178
          %v3180 = vmul.f32 %v3178, %v3179
          %vm3181 = vcmp.eq.f32.partialorder %v3178, inf
          %v3182 = vsel %vm3181, %v3178, %v3180
          %vm3183 = vcmp.eq.f32.partialorder %v3178, 0.0
          %v3184 = vand.u32 %v3178, 2147483648
          %v3185 = vsel %vm3183, %v3184, %v3182
          %v3186 = vand.u32 2147483647, %v3175
          %v3187 = vand.u32 2147483647, %v3185
          %v3188 = vmin.f32 %v3186, %v3187
          %v3189 = vmax.f32 %v3186, %v3187
          %v3190 = vrcp.pop %v3189
          %v3191 = vmul.f32 %v3188, %v3190
          %v3192 = vmul.f32 %v3191, %v3191
          %v3193 = vmul.f32 0.002785687, %v3192
          %v3194 = vadd.f32 %v3193, -0.015866
          %v3195 = vmul.f32 %v3194, %v3192
          %v3196 = vadd.f32 %v3195, 0.04247222
          %v3197 = vmul.f32 %v3196, %v3192
          %v3198 = vadd.f32 %v3197, -0.074975304
          %v3199 = vmul.f32 %v3198, %v3192
          %v3200 = vadd.f32 %v3199, 0.1064488
          %v3201 = vmul.f32 %v3200, %v3192
          %v3202 = vadd.f32 %v3201, -0.14207031
          %v3203 = vmul.f32 %v3202, %v3192
          %v3204 = vadd.f32 %v3203, 0.19993454
          %v3205 = vmul.f32 %v3204, %v3192
          %v3206 = vadd.f32 %v3205, -0.33333147
          %v3207 = vmul.f32 %v3206, %v3192
          %v3208 = vmul.f32 %v3207, %v3191
          %v3209 = vadd.f32 %v3208, %v3191
          %vm3210 = vcmp.gt.f32.partialorder %v3187, %v3186
          %v3211 = vsub.f32 1.5707964, %v3209
          %v3212 = vsel %vm3210, %v3211, %v3209
          %vm3213 = vcmp.lt.f32.partialorder %v3175, 0.0
          %v3214 = vsub.f32 3.1415927, %v3212
          %v3215 = vsel %vm3213, %v3214, %v3212
          %vm3216 = vcmp.lt.s32.totalorder %v3175, 0
          %v3217 = vsel %vm3216, 3.1415927, 0.0
          %vm3218 = vcmp.eq.f32.partialorder %v3185, 0.0
          %v3219 = vsel %vm3218, %v3217, %v3215
          %vm3220 = vcmp.ne.f32.partialorder %v3175, %v3175
          %vm3221 = vcmp.ne.f32.partialorder %v3185, %v3185
          %vm3222 = vmor %vm3220, %vm3221
          %v3223 = vsel %vm3222, nan, %v3219
          %vm3224 = vcmp.lt.f32.partialorder %v3175, 0.0
          %v3225 = vsel %vm3224, 2.3561945, 0.7853982
          %vm3226 = vcmp.eq.s32.totalorder %v3186, inf
          %vm3227 = vcmp.eq.s32.totalorder %v3187, inf
          %vm3228 = vmand %vm3226, %vm3227
          %v3229 = vsel %vm3228, %v3225, %v3223
          %v3230 = vand.u32 2147483647, %v3229
          %v3231 = vand.u32 %v3185, 2147483648
          %v3232 = vor.u32 %v3230, %v3231
          %vm3233 = vcmp.lt.f32.partialorder %v3232, 1e-06
          %v3234 = vmul.f32 %v3232, 0.5
          %vm3235 = vcmp.lt.f32.partialorder %v3185, 1e-07
          %v3236 = vsel %vm3235, 1.0, %v3185
          %v3237 = vrcp.pop %v3236
          %v3238 = vmul.f32 %v3234, %v3237
          %v3239 = vsub.f32 %v3164, %v3154
          %v3240 = vmul.f32 %v3238, %v3239
          %v3241 = vsel %vm3233, %v3164, %v3240
          %v3242 = vsub.f32 %v3139, %v3159
          %v3243 = vmul.f32 %v3238, %v3242
          %v3244 = vsel %vm3233, %v3139, %v3243
          %v3245 = vsub.f32 %v3144, %v3134
          %v3246 = vmul.f32 %v3238, %v3245
          %v3247 = vsel %vm3233, %v3144, %v3246
          %v3248 = vand.u32 2147483647, %v3241
          %vm3249 = vcmp.le.f32.partialorder %v3248, 1.0
          %v3250 = vmul.f32 %v3241, 0.5
          %v3251 = vmul.f32 %v3250, %v3241
          %v3252 = vsub.f32 %v3248, 0.5
          %v3253 = vsel %vm3249, %v3251, %v3252
          %v3254 = vand.u32 2147483647, %v3244
          %vm3255 = vcmp.le.f32.partialorder %v3254, 1.0
          %v3256 = vmul.f32 %v3244, 0.5
          %v3257 = vmul.f32 %v3256, %v3244
          %v3258 = vsub.f32 %v3254, 0.5
          %v3259 = vsel %vm3255, %v3257, %v3258
          %v3260 = vadd.f32 %v3253, %v3259
          %v3261 = vand.u32 2147483647, %v3247
          %vm3262 = vcmp.le.f32.partialorder %v3261, 1.0
          %v3263 = vmul.f32 %v3247, 0.5
          %v3264 = vmul.f32 %v3263, %v3247
          %v3265 = vsub.f32 %v3261, 0.5
          %v3266 = vsel %vm3262, %v3264, %v3265
          %v3267 = vadd.f32 %v3260, %v3266
          %v3268 = vrot.slane %v3267, 4
          %v3269 = vadd.f32 %v3267, %v3268
          %v3270 = vrot.slane %v3269, 2
          %v3271 = vadd.f32 %v3269, %v3270
          %v3272 = vrot.slane %v3271, 1
          %v3273 = vadd.f32 %v3271, %v3272
          %v3274 = vadd.f32 %v3273, 0.0
          %v3275 = vld [vmem:[#allocation2 + $0x8] sm:$0xff]
          %v3276 = vld [vmem:[%s2147 + $0x8] sm:$0xff]
          %v3277 = vld [vmem:[%s2150 + $0x8] sm:$0xff]
          %v3278 = vld [vmem:[%s2153 + $0x8] sm:$0xff]
          %v3279 = vld [vmem:[%s2156 + $0x8] sm:$0xff]
          %v3280 = vld [vmem:[%s2159 + $0x8] sm:$0xff]
          %v3281 = vld [vmem:[%s2162 + $0x8] sm:$0xff]
          %v3282 = vld [vmem:[%s2165 + $0x8] sm:$0xff]
          %v3283 = vld [vmem:[%s2168 + $0x8] sm:$0xff]
          %v3284 = vmul.f32 %v3275, %v3275
          %v3285 = vmul.f32 %v3278, %v3278
          %v3286 = vadd.f32 %v3284, %v3285
          %v3287 = vmul.f32 %v3281, %v3281
          %v3288 = vadd.f32 %v3286, %v3287
          %v3289 = vmul.f32 %v3275, %v3276
          %v3290 = vmul.f32 %v3278, %v3279
          %v3291 = vadd.f32 %v3289, %v3290
          %v3292 = vmul.f32 %v3281, %v3282
          %v3293 = vadd.f32 %v3291, %v3292
          %v3294 = vmul.f32 %v3275, %v3277
          %v3295 = vmul.f32 %v3278, %v3280
          %v3296 = vadd.f32 %v3294, %v3295
          %v3297 = vmul.f32 %v3281, %v3283
          %v3298 = vadd.f32 %v3296, %v3297
          %v3299 = vmul.f32 %v3276, %v3276
          %v3300 = vmul.f32 %v3279, %v3279
          %v3301 = vadd.f32 %v3299, %v3300
          %v3302 = vmul.f32 %v3282, %v3282
          %v3303 = vadd.f32 %v3301, %v3302
          %v3304 = vmul.f32 %v3276, %v3277
          %v3305 = vmul.f32 %v3279, %v3280
          %v3306 = vadd.f32 %v3304, %v3305
          %v3307 = vmul.f32 %v3282, %v3283
          %v3308 = vadd.f32 %v3306, %v3307
          %v3309 = vmul.f32 %v3277, %v3277
          %v3310 = vmul.f32 %v3280, %v3280
          %v3311 = vadd.f32 %v3309, %v3310
          %v3312 = vmul.f32 %v3283, %v3283
          %v3313 = vadd.f32 %v3311, %v3312
          %v3314 = vmul.f32 %v3288, 0.5
          %v3315 = vsub.f32 1.5, %v3314
          %v3316 = vmul.f32 %v3303, 0.5
          %v3317 = vsub.f32 1.5, %v3316
          %v3318 = vmul.f32 %v3313, 0.5
          %v3319 = vsub.f32 1.5, %v3318
          %v3320 = vmul.f32 %v3293, -0.5
          %v3321 = vmul.f32 %v3298, -0.5
          %v3322 = vmul.f32 %v3308, -0.5
          %v3323 = vmul.f32 %v3275, %v3315
          %v3324 = vmul.f32 %v3276, %v3320
          %v3325 = vadd.f32 %v3323, %v3324
          %v3326 = vmul.f32 %v3277, %v3321
          %v3327 = vadd.f32 %v3325, %v3326
          %v3328 = vmul.f32 %v3275, %v3320
          %v3329 = vmul.f32 %v3276, %v3317
          %v3330 = vadd.f32 %v3328, %v3329
          %v3331 = vmul.f32 %v3277, %v3322
          %v3332 = vadd.f32 %v3330, %v3331
          %v3333 = vmul.f32 %v3275, %v3321
          %v3334 = vmul.f32 %v3276, %v3322
          %v3335 = vadd.f32 %v3333, %v3334
          %v3336 = vmul.f32 %v3277, %v3319
          %v3337 = vadd.f32 %v3335, %v3336
          %v3338 = vmul.f32 %v3278, %v3315
          %v3339 = vmul.f32 %v3279, %v3320
          %v3340 = vadd.f32 %v3338, %v3339
          %v3341 = vmul.f32 %v3280, %v3321
          %v3342 = vadd.f32 %v3340, %v3341
          %v3343 = vmul.f32 %v3278, %v3320
          %v3344 = vmul.f32 %v3279, %v3317
          %v3345 = vadd.f32 %v3343, %v3344
          %v3346 = vmul.f32 %v3280, %v3322
          %v3347 = vadd.f32 %v3345, %v3346
          %v3348 = vmul.f32 %v3278, %v3321
          %v3349 = vmul.f32 %v3279, %v3322
          %v3350 = vadd.f32 %v3348, %v3349
          %v3351 = vmul.f32 %v3280, %v3319
          %v3352 = vadd.f32 %v3350, %v3351
          %v3353 = vmul.f32 %v3281, %v3315
          %v3354 = vmul.f32 %v3282, %v3320
          %v3355 = vadd.f32 %v3353, %v3354
          %v3356 = vmul.f32 %v3283, %v3321
          %v3357 = vadd.f32 %v3355, %v3356
          %v3358 = vmul.f32 %v3281, %v3320
          %v3359 = vmul.f32 %v3282, %v3317
          %v3360 = vadd.f32 %v3358, %v3359
          %v3361 = vmul.f32 %v3283, %v3322
          %v3362 = vadd.f32 %v3360, %v3361
          %v3363 = vmul.f32 %v3281, %v3321
          %v3364 = vmul.f32 %v3282, %v3322
          %v3365 = vadd.f32 %v3363, %v3364
          %v3366 = vmul.f32 %v3283, %v3319
          %v3367 = vadd.f32 %v3365, %v3366
          %v3368 = vmul.f32 %v3327, %v3327
          %v3369 = vmul.f32 %v3342, %v3342
          %v3370 = vadd.f32 %v3368, %v3369
          %v3371 = vmul.f32 %v3357, %v3357
          %v3372 = vadd.f32 %v3370, %v3371
          %v3373 = vmul.f32 %v3327, %v3332
          %v3374 = vmul.f32 %v3342, %v3347
          %v3375 = vadd.f32 %v3373, %v3374
          %v3376 = vmul.f32 %v3357, %v3362
          %v3377 = vadd.f32 %v3375, %v3376
          %v3378 = vmul.f32 %v3327, %v3337
          %v3379 = vmul.f32 %v3342, %v3352
          %v3380 = vadd.f32 %v3378, %v3379
          %v3381 = vmul.f32 %v3357, %v3367
          %v3382 = vadd.f32 %v3380, %v3381
          %v3383 = vmul.f32 %v3332, %v3332
          %v3384 = vmul.f32 %v3347, %v3347
          %v3385 = vadd.f32 %v3383, %v3384
          %v3386 = vmul.f32 %v3362, %v3362
          %v3387 = vadd.f32 %v3385, %v3386
          %v3388 = vmul.f32 %v3332, %v3337
          %v3389 = vmul.f32 %v3347, %v3352
          %v3390 = vadd.f32 %v3388, %v3389
          %v3391 = vmul.f32 %v3362, %v3367
          %v3392 = vadd.f32 %v3390, %v3391
          %v3393 = vmul.f32 %v3337, %v3337
          %v3394 = vmul.f32 %v3352, %v3352
          %v3395 = vadd.f32 %v3393, %v3394
          %v3396 = vmul.f32 %v3367, %v3367
          %v3397 = vadd.f32 %v3395, %v3396
          %v3398 = vmul.f32 %v3372, 0.5
          %v3399 = vsub.f32 1.5, %v3398
          %v3400 = vmul.f32 %v3387, 0.5
          %v3401 = vsub.f32 1.5, %v3400
          %v3402 = vmul.f32 %v3397, 0.5
          %v3403 = vsub.f32 1.5, %v3402
          %v3404 = vmul.f32 %v3377, -0.5
          %v3405 = vmul.f32 %v3382, -0.5
          %v3406 = vmul.f32 %v3392, -0.5
          %v3407 = vmul.f32 %v3327, %v3399
          %v3408 = vmul.f32 %v3332, %v3404
          %v3409 = vadd.f32 %v3407, %v3408
          %v3410 = vmul.f32 %v3337, %v3405
          %v3411 = vadd.f32 %v3409, %v3410
          %v3412 = vmul.f32 %v3327, %v3404
          %v3413 = vmul.f32 %v3332, %v3401
          %v3414 = vadd.f32 %v3412, %v3413
          %v3415 = vmul.f32 %v3337, %v3406
          %v3416 = vadd.f32 %v3414, %v3415
          %v3417 = vmul.f32 %v3327, %v3405
          %v3418 = vmul.f32 %v3332, %v3406
          %v3419 = vadd.f32 %v3417, %v3418
          %v3420 = vmul.f32 %v3337, %v3403
          %v3421 = vadd.f32 %v3419, %v3420
          %v3422 = vmul.f32 %v3342, %v3399
          %v3423 = vmul.f32 %v3347, %v3404
          %v3424 = vadd.f32 %v3422, %v3423
          %v3425 = vmul.f32 %v3352, %v3405
          %v3426 = vadd.f32 %v3424, %v3425
          %v3427 = vmul.f32 %v3342, %v3404
          %v3428 = vmul.f32 %v3347, %v3401
          %v3429 = vadd.f32 %v3427, %v3428
          %v3430 = vmul.f32 %v3352, %v3406
          %v3431 = vadd.f32 %v3429, %v3430
          %v3432 = vmul.f32 %v3342, %v3405
          %v3433 = vmul.f32 %v3347, %v3406
          %v3434 = vadd.f32 %v3432, %v3433
          %v3435 = vmul.f32 %v3352, %v3403
          %v3436 = vadd.f32 %v3434, %v3435
          %v3437 = vmul.f32 %v3357, %v3399
          %v3438 = vmul.f32 %v3362, %v3404
          %v3439 = vadd.f32 %v3437, %v3438
          %v3440 = vmul.f32 %v3367, %v3405
          %v3441 = vadd.f32 %v3439, %v3440
          %v3442 = vmul.f32 %v3357, %v3404
          %v3443 = vmul.f32 %v3362, %v3401
          %v3444 = vadd.f32 %v3442, %v3443
          %v3445 = vmul.f32 %v3367, %v3406
          %v3446 = vadd.f32 %v3444, %v3445
          %v3447 = vmul.f32 %v3357, %v3405
          %v3448 = vmul.f32 %v3362, %v3406
          %v3449 = vadd.f32 %v3447, %v3448
          %v3450 = vmul.f32 %v3367, %v3403
          %v3451 = vadd.f32 %v3449, %v3450
          %v3452 = vmul.f32 %v3411, %v3411
          %v3453 = vmul.f32 %v3426, %v3426
          %v3454 = vadd.f32 %v3452, %v3453
          %v3455 = vmul.f32 %v3441, %v3441
          %v3456 = vadd.f32 %v3454, %v3455
          %v3457 = vmul.f32 %v3411, %v3416
          %v3458 = vmul.f32 %v3426, %v3431
          %v3459 = vadd.f32 %v3457, %v3458
          %v3460 = vmul.f32 %v3441, %v3446
          %v3461 = vadd.f32 %v3459, %v3460
          %v3462 = vmul.f32 %v3411, %v3421
          %v3463 = vmul.f32 %v3426, %v3436
          %v3464 = vadd.f32 %v3462, %v3463
          %v3465 = vmul.f32 %v3441, %v3451
          %v3466 = vadd.f32 %v3464, %v3465
          %v3467 = vmul.f32 %v3416, %v3416
          %v3468 = vmul.f32 %v3431, %v3431
          %v3469 = vadd.f32 %v3467, %v3468
          %v3470 = vmul.f32 %v3446, %v3446
          %v3471 = vadd.f32 %v3469, %v3470
          %v3472 = vmul.f32 %v3416, %v3421
          %v3473 = vmul.f32 %v3431, %v3436
          %v3474 = vadd.f32 %v3472, %v3473
          %v3475 = vmul.f32 %v3446, %v3451
          %v3476 = vadd.f32 %v3474, %v3475
          %v3477 = vmul.f32 %v3421, %v3421
          %v3478 = vmul.f32 %v3436, %v3436
          %v3479 = vadd.f32 %v3477, %v3478
          %v3480 = vmul.f32 %v3451, %v3451
          %v3481 = vadd.f32 %v3479, %v3480
          %v3482 = vmul.f32 %v3456, 0.5
          %v3483 = vsub.f32 1.5, %v3482
          %v3484 = vmul.f32 %v3471, 0.5
          %v3485 = vsub.f32 1.5, %v3484
          %v3486 = vmul.f32 %v3481, 0.5
          %v3487 = vsub.f32 1.5, %v3486
          %v3488 = vmul.f32 %v3461, -0.5
          %v3489 = vmul.f32 %v3466, -0.5
          %v3490 = vmul.f32 %v3476, -0.5
          %v3491 = vmul.f32 %v3411, %v3483
          %v3492 = vmul.f32 %v3416, %v3488
          %v3493 = vadd.f32 %v3491, %v3492
          %v3494 = vmul.f32 %v3421, %v3489
          %v3495 = vadd.f32 %v3493, %v3494
          %v3496 = vmul.f32 %v3411, %v3488
          %v3497 = vmul.f32 %v3416, %v3485
          %v3498 = vadd.f32 %v3496, %v3497
          %v3499 = vmul.f32 %v3421, %v3490
          %v3500 = vadd.f32 %v3498, %v3499
          %v3501 = vmul.f32 %v3411, %v3489
          %v3502 = vmul.f32 %v3416, %v3490
          %v3503 = vadd.f32 %v3501, %v3502
          %v3504 = vmul.f32 %v3421, %v3487
          %v3505 = vadd.f32 %v3503, %v3504
          %v3506 = vmul.f32 %v3426, %v3483
          %v3507 = vmul.f32 %v3431, %v3488
          %v3508 = vadd.f32 %v3506, %v3507
          %v3509 = vmul.f32 %v3436, %v3489
          %v3510 = vadd.f32 %v3508, %v3509
          %v3511 = vmul.f32 %v3426, %v3488
          %v3512 = vmul.f32 %v3431, %v3485
          %v3513 = vadd.f32 %v3511, %v3512
          %v3514 = vmul.f32 %v3436, %v3490
          %v3515 = vadd.f32 %v3513, %v3514
          %v3516 = vmul.f32 %v3426, %v3489
          %v3517 = vmul.f32 %v3431, %v3490
          %v3518 = vadd.f32 %v3516, %v3517
          %v3519 = vmul.f32 %v3436, %v3487
          %v3520 = vadd.f32 %v3518, %v3519
          %v3521 = vmul.f32 %v3441, %v3483
          %v3522 = vmul.f32 %v3446, %v3488
          %v3523 = vadd.f32 %v3521, %v3522
          %v3524 = vmul.f32 %v3451, %v3489
          %v3525 = vadd.f32 %v3523, %v3524
          %v3526 = vmul.f32 %v3441, %v3488
          %v3527 = vmul.f32 %v3446, %v3485
          %v3528 = vadd.f32 %v3526, %v3527
          %v3529 = vmul.f32 %v3451, %v3490
          %v3530 = vadd.f32 %v3528, %v3529
          %v3531 = vmul.f32 %v3441, %v3489
          %v3532 = vmul.f32 %v3446, %v3490
          %v3533 = vadd.f32 %v3531, %v3532
          %v3534 = vmul.f32 %v3451, %v3487
          %v3535 = vadd.f32 %v3533, %v3534
          %v3536 = vadd.f32 %v3495, %v3515
          %v3537 = vadd.f32 %v3536, %v3535
          %v3538 = vmul.f32 %v3537, 0.5
          %v3539 = vsub.f32 %v3538, 0.5
          %v3540 = vmax.f32 %v3539, -1.0
          %v3541 = vmin.f32 %v3540, 1.0
          %v3542 = vmul.f32 %v3541, %v3541
          %v3543 = vsub.f32 1.0, %v3542
          %v3544 = vmax.f32 %v3543, 0.0
          %v3545 = vrsqrt.pop %v3544
          %v3546 = vmul.f32 %v3544, %v3545
          %vm3547 = vcmp.eq.f32.partialorder %v3544, inf
          %v3548 = vsel %vm3547, %v3544, %v3546
          %vm3549 = vcmp.eq.f32.partialorder %v3544, 0.0
          %v3550 = vand.u32 %v3544, 2147483648
          %v3551 = vsel %vm3549, %v3550, %v3548
          %v3552 = vand.u32 2147483647, %v3541
          %v3553 = vand.u32 2147483647, %v3551
          %v3554 = vmin.f32 %v3552, %v3553
          %v3555 = vmax.f32 %v3552, %v3553
          %v3556 = vrcp.pop %v3555
          %v3557 = vmul.f32 %v3554, %v3556
          %v3558 = vmul.f32 %v3557, %v3557
          %v3559 = vmul.f32 0.002785687, %v3558
          %v3560 = vadd.f32 %v3559, -0.015866
          %v3561 = vmul.f32 %v3560, %v3558
          %v3562 = vadd.f32 %v3561, 0.04247222
          %v3563 = vmul.f32 %v3562, %v3558
          %v3564 = vadd.f32 %v3563, -0.074975304
          %v3565 = vmul.f32 %v3564, %v3558
          %v3566 = vadd.f32 %v3565, 0.1064488
          %v3567 = vmul.f32 %v3566, %v3558
          %v3568 = vadd.f32 %v3567, -0.14207031
          %v3569 = vmul.f32 %v3568, %v3558
          %v3570 = vadd.f32 %v3569, 0.19993454
          %v3571 = vmul.f32 %v3570, %v3558
          %v3572 = vadd.f32 %v3571, -0.33333147
          %v3573 = vmul.f32 %v3572, %v3558
          %v3574 = vmul.f32 %v3573, %v3557
          %v3575 = vadd.f32 %v3574, %v3557
          %vm3576 = vcmp.gt.f32.partialorder %v3553, %v3552
          %v3577 = vsub.f32 1.5707964, %v3575
          %v3578 = vsel %vm3576, %v3577, %v3575
          %vm3579 = vcmp.lt.f32.partialorder %v3541, 0.0
          %v3580 = vsub.f32 3.1415927, %v3578
          %v3581 = vsel %vm3579, %v3580, %v3578
          %vm3582 = vcmp.lt.s32.totalorder %v3541, 0
          %v3583 = vsel %vm3582, 3.1415927, 0.0
          %vm3584 = vcmp.eq.f32.partialorder %v3551, 0.0
          %v3585 = vsel %vm3584, %v3583, %v3581
          %vm3586 = vcmp.ne.f32.partialorder %v3541, %v3541
          %vm3587 = vcmp.ne.f32.partialorder %v3551, %v3551
          %vm3588 = vmor %vm3586, %vm3587
          %v3589 = vsel %vm3588, nan, %v3585
          %vm3590 = vcmp.lt.f32.partialorder %v3541, 0.0
          %v3591 = vsel %vm3590, 2.3561945, 0.7853982
          %vm3592 = vcmp.eq.s32.totalorder %v3552, inf
          %vm3593 = vcmp.eq.s32.totalorder %v3553, inf
          %vm3594 = vmand %vm3592, %vm3593
          %v3595 = vsel %vm3594, %v3591, %v3589
          %v3596 = vand.u32 2147483647, %v3595
          %v3597 = vand.u32 %v3551, 2147483648
          %v3598 = vor.u32 %v3596, %v3597
          %vm3599 = vcmp.lt.f32.partialorder %v3598, 1e-06
          %v3600 = vmul.f32 %v3598, 0.5
          %vm3601 = vcmp.lt.f32.partialorder %v3551, 1e-07
          %v3602 = vsel %vm3601, 1.0, %v3551
          %v3603 = vrcp.pop %v3602
          %v3604 = vmul.f32 %v3600, %v3603
          %v3605 = vsub.f32 %v3530, %v3520
          %v3606 = vmul.f32 %v3604, %v3605
          %v3607 = vsel %vm3599, %v3530, %v3606
          %v3608 = vsub.f32 %v3505, %v3525
          %v3609 = vmul.f32 %v3604, %v3608
          %v3610 = vsel %vm3599, %v3505, %v3609
          %v3611 = vsub.f32 %v3510, %v3500
          %v3612 = vmul.f32 %v3604, %v3611
          %v3613 = vsel %vm3599, %v3510, %v3612
          %v3614 = vand.u32 2147483647, %v3607
          %vm3615 = vcmp.le.f32.partialorder %v3614, 1.0
          %v3616 = vmul.f32 %v3607, 0.5
          %v3617 = vmul.f32 %v3616, %v3607
          %v3618 = vsub.f32 %v3614, 0.5
          %v3619 = vsel %vm3615, %v3617, %v3618
          %v3620 = vand.u32 2147483647, %v3610
          %vm3621 = vcmp.le.f32.partialorder %v3620, 1.0
          %v3622 = vmul.f32 %v3610, 0.5
          %v3623 = vmul.f32 %v3622, %v3610
          %v3624 = vsub.f32 %v3620, 0.5
          %v3625 = vsel %vm3621, %v3623, %v3624
          %v3626 = vadd.f32 %v3619, %v3625
          %v3627 = vand.u32 2147483647, %v3613
          %vm3628 = vcmp.le.f32.partialorder %v3627, 1.0
          %v3629 = vmul.f32 %v3613, 0.5
          %v3630 = vmul.f32 %v3629, %v3613
          %v3631 = vsub.f32 %v3627, 0.5
          %v3632 = vsel %vm3628, %v3630, %v3631
          %v3633 = vadd.f32 %v3626, %v3632
          %v3634 = vrot.slane %v3633, 4
          %v3635 = vadd.f32 %v3633, %v3634
          %v3636 = vrot.slane %v3635, 2
          %v3637 = vadd.f32 %v3635, %v3636
          %v3638 = vrot.slane %v3637, 1
          %v3639 = vadd.f32 %v3637, %v3638
          %v3640 = vadd.f32 %v3274, %v3639
          %v3641 = vld [vmem:[#allocation2 + $0x10] sm:$0xff]
          %v3642 = vld [vmem:[%s2147 + $0x10] sm:$0xff]
          %v3643 = vld [vmem:[%s2150 + $0x10] sm:$0xff]
          %v3644 = vld [vmem:[%s2153 + $0x10] sm:$0xff]
          %v3645 = vld [vmem:[%s2156 + $0x10] sm:$0xff]
          %v3646 = vld [vmem:[%s2159 + $0x10] sm:$0xff]
          %v3647 = vld [vmem:[%s2162 + $0x10] sm:$0xff]
          %v3648 = vld [vmem:[%s2165 + $0x10] sm:$0xff]
          %v3649 = vld [vmem:[%s2168 + $0x10] sm:$0xff]
          %v3650 = vmul.f32 %v3641, %v3641
          %v3651 = vmul.f32 %v3644, %v3644
          %v3652 = vadd.f32 %v3650, %v3651
          %v3653 = vmul.f32 %v3647, %v3647
          %v3654 = vadd.f32 %v3652, %v3653
          %v3655 = vmul.f32 %v3641, %v3642
          %v3656 = vmul.f32 %v3644, %v3645
          %v3657 = vadd.f32 %v3655, %v3656
          %v3658 = vmul.f32 %v3647, %v3648
          %v3659 = vadd.f32 %v3657, %v3658
          %v3660 = vmul.f32 %v3641, %v3643
          %v3661 = vmul.f32 %v3644, %v3646
          %v3662 = vadd.f32 %v3660, %v3661
          %v3663 = vmul.f32 %v3647, %v3649
          %v3664 = vadd.f32 %v3662, %v3663
          %v3665 = vmul.f32 %v3642, %v3642
          %v3666 = vmul.f32 %v3645, %v3645
          %v3667 = vadd.f32 %v3665, %v3666
          %v3668 = vmul.f32 %v3648, %v3648
          %v3669 = vadd.f32 %v3667, %v3668
          %v3670 = vmul.f32 %v3642, %v3643
          %v3671 = vmul.f32 %v3645, %v3646
          %v3672 = vadd.f32 %v3670, %v3671
          %v3673 = vmul.f32 %v3648, %v3649
          %v3674 = vadd.f32 %v3672, %v3673
          %v3675 = vmul.f32 %v3643, %v3643
          %v3676 = vmul.f32 %v3646, %v3646
          %v3677 = vadd.f32 %v3675, %v3676
          %v3678 = vmul.f32 %v3649, %v3649
          %v3679 = vadd.f32 %v3677, %v3678
          %v3680 = vmul.f32 %v3654, 0.5
          %v3681 = vsub.f32 1.5, %v3680
          %v3682 = vmul.f32 %v3669, 0.5
          %v3683 = vsub.f32 1.5, %v3682
          %v3684 = vmul.f32 %v3679, 0.5
          %v3685 = vsub.f32 1.5, %v3684
          %v3686 = vmul.f32 %v3659, -0.5
          %v3687 = vmul.f32 %v3664, -0.5
          %v3688 = vmul.f32 %v3674, -0.5
          %v3689 = vmul.f32 %v3641, %v3681
          %v3690 = vmul.f32 %v3642, %v3686
          %v3691 = vadd.f32 %v3689, %v3690
          %v3692 = vmul.f32 %v3643, %v3687
          %v3693 = vadd.f32 %v3691, %v3692
          %v3694 = vmul.f32 %v3641, %v3686
          %v3695 = vmul.f32 %v3642, %v3683
          %v3696 = vadd.f32 %v3694, %v3695
          %v3697 = vmul.f32 %v3643, %v3688
          %v3698 = vadd.f32 %v3696, %v3697
          %v3699 = vmul.f32 %v3641, %v3687
          %v3700 = vmul.f32 %v3642, %v3688
          %v3701 = vadd.f32 %v3699, %v3700
          %v3702 = vmul.f32 %v3643, %v3685
          %v3703 = vadd.f32 %v3701, %v3702
          %v3704 = vmul.f32 %v3644, %v3681
          %v3705 = vmul.f32 %v3645, %v3686
          %v3706 = vadd.f32 %v3704, %v3705
          %v3707 = vmul.f32 %v3646, %v3687
          %v3708 = vadd.f32 %v3706, %v3707
          %v3709 = vmul.f32 %v3644, %v3686
          %v3710 = vmul.f32 %v3645, %v3683
          %v3711 = vadd.f32 %v3709, %v3710
          %v3712 = vmul.f32 %v3646, %v3688
          %v3713 = vadd.f32 %v3711, %v3712
          %v3714 = vmul.f32 %v3644, %v3687
          %v3715 = vmul.f32 %v3645, %v3688
          %v3716 = vadd.f32 %v3714, %v3715
          %v3717 = vmul.f32 %v3646, %v3685
          %v3718 = vadd.f32 %v3716, %v3717
          %v3719 = vmul.f32 %v3647, %v3681
          %v3720 = vmul.f32 %v3648, %v3686
          %v3721 = vadd.f32 %v3719, %v3720
          %v3722 = vmul.f32 %v3649, %v3687
          %v3723 = vadd.f32 %v3721, %v3722
          %v3724 = vmul.f32 %v3647, %v3686
          %v3725 = vmul.f32 %v3648, %v3683
          %v3726 = vadd.f32 %v3724, %v3725
          %v3727 = vmul.f32 %v3649, %v3688
          %v3728 = vadd.f32 %v3726, %v3727
          %v3729 = vmul.f32 %v3647, %v3687
          %v3730 = vmul.f32 %v3648, %v3688
          %v3731 = vadd.f32 %v3729, %v3730
          %v3732 = vmul.f32 %v3649, %v3685
          %v3733 = vadd.f32 %v3731, %v3732
          %v3734 = vmul.f32 %v3693, %v3693
          %v3735 = vmul.f32 %v3708, %v3708
          %v3736 = vadd.f32 %v3734, %v3735
          %v3737 = vmul.f32 %v3723, %v3723
          %v3738 = vadd.f32 %v3736, %v3737
          %v3739 = vmul.f32 %v3693, %v3698
          %v3740 = vmul.f32 %v3708, %v3713
          %v3741 = vadd.f32 %v3739, %v3740
          %v3742 = vmul.f32 %v3723, %v3728
          %v3743 = vadd.f32 %v3741, %v3742
          %v3744 = vmul.f32 %v3693, %v3703
          %v3745 = vmul.f32 %v3708, %v3718
          %v3746 = vadd.f32 %v3744, %v3745
          %v3747 = vmul.f32 %v3723, %v3733
          %v3748 = vadd.f32 %v3746, %v3747
          %v3749 = vmul.f32 %v3698, %v3698
          %v3750 = vmul.f32 %v3713, %v3713
          %v3751 = vadd.f32 %v3749, %v3750
          %v3752 = vmul.f32 %v3728, %v3728
          %v3753 = vadd.f32 %v3751, %v3752
          %v3754 = vmul.f32 %v3698, %v3703
          %v3755 = vmul.f32 %v3713, %v3718
          %v3756 = vadd.f32 %v3754, %v3755
          %v3757 = vmul.f32 %v3728, %v3733
          %v3758 = vadd.f32 %v3756, %v3757
          %v3759 = vmul.f32 %v3703, %v3703
          %v3760 = vmul.f32 %v3718, %v3718
          %v3761 = vadd.f32 %v3759, %v3760
          %v3762 = vmul.f32 %v3733, %v3733
          %v3763 = vadd.f32 %v3761, %v3762
          %v3764 = vmul.f32 %v3738, 0.5
          %v3765 = vsub.f32 1.5, %v3764
          %v3766 = vmul.f32 %v3753, 0.5
          %v3767 = vsub.f32 1.5, %v3766
          %v3768 = vmul.f32 %v3763, 0.5
          %v3769 = vsub.f32 1.5, %v3768
          %v3770 = vmul.f32 %v3743, -0.5
          %v3771 = vmul.f32 %v3748, -0.5
          %v3772 = vmul.f32 %v3758, -0.5
          %v3773 = vmul.f32 %v3693, %v3765
          %v3774 = vmul.f32 %v3698, %v3770
          %v3775 = vadd.f32 %v3773, %v3774
          %v3776 = vmul.f32 %v3703, %v3771
          %v3777 = vadd.f32 %v3775, %v3776
          %v3778 = vmul.f32 %v3693, %v3770
          %v3779 = vmul.f32 %v3698, %v3767
          %v3780 = vadd.f32 %v3778, %v3779
          %v3781 = vmul.f32 %v3703, %v3772
          %v3782 = vadd.f32 %v3780, %v3781
          %v3783 = vmul.f32 %v3693, %v3771
          %v3784 = vmul.f32 %v3698, %v3772
          %v3785 = vadd.f32 %v3783, %v3784
          %v3786 = vmul.f32 %v3703, %v3769
          %v3787 = vadd.f32 %v3785, %v3786
          %v3788 = vmul.f32 %v3708, %v3765
          %v3789 = vmul.f32 %v3713, %v3770
          %v3790 = vadd.f32 %v3788, %v3789
          %v3791 = vmul.f32 %v3718, %v3771
          %v3792 = vadd.f32 %v3790, %v3791
          %v3793 = vmul.f32 %v3708, %v3770
          %v3794 = vmul.f32 %v3713, %v3767
          %v3795 = vadd.f32 %v3793, %v3794
          %v3796 = vmul.f32 %v3718, %v3772
          %v3797 = vadd.f32 %v3795, %v3796
          %v3798 = vmul.f32 %v3708, %v3771
          %v3799 = vmul.f32 %v3713, %v3772
          %v3800 = vadd.f32 %v3798, %v3799
          %v3801 = vmul.f32 %v3718, %v3769
          %v3802 = vadd.f32 %v3800, %v3801
          %v3803 = vmul.f32 %v3723, %v3765
          %v3804 = vmul.f32 %v3728, %v3770
          %v3805 = vadd.f32 %v3803, %v3804
          %v3806 = vmul.f32 %v3733, %v3771
          %v3807 = vadd.f32 %v3805, %v3806
          %v3808 = vmul.f32 %v3723, %v3770
          %v3809 = vmul.f32 %v3728, %v3767
          %v3810 = vadd.f32 %v3808, %v3809
          %v3811 = vmul.f32 %v3733, %v3772
          %v3812 = vadd.f32 %v3810, %v3811
          %v3813 = vmul.f32 %v3723, %v3771
          %v3814 = vmul.f32 %v3728, %v3772
          %v3815 = vadd.f32 %v3813, %v3814
          %v3816 = vmul.f32 %v3733, %v3769
          %v3817 = vadd.f32 %v3815, %v3816
          %v3818 = vmul.f32 %v3777, %v3777
          %v3819 = vmul.f32 %v3792, %v3792
          %v3820 = vadd.f32 %v3818, %v3819
          %v3821 = vmul.f32 %v3807, %v3807
          %v3822 = vadd.f32 %v3820, %v3821
          %v3823 = vmul.f32 %v3777, %v3782
          %v3824 = vmul.f32 %v3792, %v3797
          %v3825 = vadd.f32 %v3823, %v3824
          %v3826 = vmul.f32 %v3807, %v3812
          %v3827 = vadd.f32 %v3825, %v3826
          %v3828 = vmul.f32 %v3777, %v3787
          %v3829 = vmul.f32 %v3792, %v3802
          %v3830 = vadd.f32 %v3828, %v3829
          %v3831 = vmul.f32 %v3807, %v3817
          %v3832 = vadd.f32 %v3830, %v3831
          %v3833 = vmul.f32 %v3782, %v3782
          %v3834 = vmul.f32 %v3797, %v3797
          %v3835 = vadd.f32 %v3833, %v3834
          %v3836 = vmul.f32 %v3812, %v3812
          %v3837 = vadd.f32 %v3835, %v3836
          %v3838 = vmul.f32 %v3782, %v3787
          %v3839 = vmul.f32 %v3797, %v3802
          %v3840 = vadd.f32 %v3838, %v3839
          %v3841 = vmul.f32 %v3812, %v3817
          %v3842 = vadd.f32 %v3840, %v3841
          %v3843 = vmul.f32 %v3787, %v3787
          %v3844 = vmul.f32 %v3802, %v3802
          %v3845 = vadd.f32 %v3843, %v3844
          %v3846 = vmul.f32 %v3817, %v3817
          %v3847 = vadd.f32 %v3845, %v3846
          %v3848 = vmul.f32 %v3822, 0.5
          %v3849 = vsub.f32 1.5, %v3848
          %v3850 = vmul.f32 %v3837, 0.5
          %v3851 = vsub.f32 1.5, %v3850
          %v3852 = vmul.f32 %v3847, 0.5
          %v3853 = vsub.f32 1.5, %v3852
          %v3854 = vmul.f32 %v3827, -0.5
          %v3855 = vmul.f32 %v3832, -0.5
          %v3856 = vmul.f32 %v3842, -0.5
          %v3857 = vmul.f32 %v3777, %v3849
          %v3858 = vmul.f32 %v3782, %v3854
          %v3859 = vadd.f32 %v3857, %v3858
          %v3860 = vmul.f32 %v3787, %v3855
          %v3861 = vadd.f32 %v3859, %v3860
          %v3862 = vmul.f32 %v3777, %v3854
          %v3863 = vmul.f32 %v3782, %v3851
          %v3864 = vadd.f32 %v3862, %v3863
          %v3865 = vmul.f32 %v3787, %v3856
          %v3866 = vadd.f32 %v3864, %v3865
          %v3867 = vmul.f32 %v3777, %v3855
          %v3868 = vmul.f32 %v3782, %v3856
          %v3869 = vadd.f32 %v3867, %v3868
          %v3870 = vmul.f32 %v3787, %v3853
          %v3871 = vadd.f32 %v3869, %v3870
          %v3872 = vmul.f32 %v3792, %v3849
          %v3873 = vmul.f32 %v3797, %v3854
          %v3874 = vadd.f32 %v3872, %v3873
          %v3875 = vmul.f32 %v3802, %v3855
          %v3876 = vadd.f32 %v3874, %v3875
          %v3877 = vmul.f32 %v3792, %v3854
          %v3878 = vmul.f32 %v3797, %v3851
          %v3879 = vadd.f32 %v3877, %v3878
          %v3880 = vmul.f32 %v3802, %v3856
          %v3881 = vadd.f32 %v3879, %v3880
          %v3882 = vmul.f32 %v3792, %v3855
          %v3883 = vmul.f32 %v3797, %v3856
          %v3884 = vadd.f32 %v3882, %v3883
          %v3885 = vmul.f32 %v3802, %v3853
          %v3886 = vadd.f32 %v3884, %v3885
          %v3887 = vmul.f32 %v3807, %v3849
          %v3888 = vmul.f32 %v3812, %v3854
          %v3889 = vadd.f32 %v3887, %v3888
          %v3890 = vmul.f32 %v3817, %v3855
          %v3891 = vadd.f32 %v3889, %v3890
          %v3892 = vmul.f32 %v3807, %v3854
          %v3893 = vmul.f32 %v3812, %v3851
          %v3894 = vadd.f32 %v3892, %v3893
          %v3895 = vmul.f32 %v3817, %v3856
          %v3896 = vadd.f32 %v3894, %v3895
          %v3897 = vmul.f32 %v3807, %v3855
          %v3898 = vmul.f32 %v3812, %v3856
          %v3899 = vadd.f32 %v3897, %v3898
          %v3900 = vmul.f32 %v3817, %v3853
          %v3901 = vadd.f32 %v3899, %v3900
          %v3902 = vadd.f32 %v3861, %v3881
          %v3903 = vadd.f32 %v3902, %v3901
          %v3904 = vmul.f32 %v3903, 0.5
          %v3905 = vsub.f32 %v3904, 0.5
          %v3906 = vmax.f32 %v3905, -1.0
          %v3907 = vmin.f32 %v3906, 1.0
          %v3908 = vmul.f32 %v3907, %v3907
          %v3909 = vsub.f32 1.0, %v3908
          %v3910 = vmax.f32 %v3909, 0.0
          %v3911 = vrsqrt.pop %v3910
          %v3912 = vmul.f32 %v3910, %v3911
          %vm3913 = vcmp.eq.f32.partialorder %v3910, inf
          %v3914 = vsel %vm3913, %v3910, %v3912
          %vm3915 = vcmp.eq.f32.partialorder %v3910, 0.0
          %v3916 = vand.u32 %v3910, 2147483648
          %v3917 = vsel %vm3915, %v3916, %v3914
          %v3918 = vand.u32 2147483647, %v3907
          %v3919 = vand.u32 2147483647, %v3917
          %v3920 = vmin.f32 %v3918, %v3919
          %v3921 = vmax.f32 %v3918, %v3919
          %v3922 = vrcp.pop %v3921
          %v3923 = vmul.f32 %v3920, %v3922
          %v3924 = vmul.f32 %v3923, %v3923
          %v3925 = vmul.f32 0.002785687, %v3924
          %v3926 = vadd.f32 %v3925, -0.015866
          %v3927 = vmul.f32 %v3926, %v3924
          %v3928 = vadd.f32 %v3927, 0.04247222
          %v3929 = vmul.f32 %v3928, %v3924
          %v3930 = vadd.f32 %v3929, -0.074975304
          %v3931 = vmul.f32 %v3930, %v3924
          %v3932 = vadd.f32 %v3931, 0.1064488
          %v3933 = vmul.f32 %v3932, %v3924
          %v3934 = vadd.f32 %v3933, -0.14207031
          %v3935 = vmul.f32 %v3934, %v3924
          %v3936 = vadd.f32 %v3935, 0.19993454
          %v3937 = vmul.f32 %v3936, %v3924
          %v3938 = vadd.f32 %v3937, -0.33333147
          %v3939 = vmul.f32 %v3938, %v3924
          %v3940 = vmul.f32 %v3939, %v3923
          %v3941 = vadd.f32 %v3940, %v3923
          %vm3942 = vcmp.gt.f32.partialorder %v3919, %v3918
          %v3943 = vsub.f32 1.5707964, %v3941
          %v3944 = vsel %vm3942, %v3943, %v3941
          %vm3945 = vcmp.lt.f32.partialorder %v3907, 0.0
          %v3946 = vsub.f32 3.1415927, %v3944
          %v3947 = vsel %vm3945, %v3946, %v3944
          %vm3948 = vcmp.lt.s32.totalorder %v3907, 0
          %v3949 = vsel %vm3948, 3.1415927, 0.0
          %vm3950 = vcmp.eq.f32.partialorder %v3917, 0.0
          %v3951 = vsel %vm3950, %v3949, %v3947
          %vm3952 = vcmp.ne.f32.partialorder %v3907, %v3907
          %vm3953 = vcmp.ne.f32.partialorder %v3917, %v3917
          %vm3954 = vmor %vm3952, %vm3953
          %v3955 = vsel %vm3954, nan, %v3951
          %vm3956 = vcmp.lt.f32.partialorder %v3907, 0.0
          %v3957 = vsel %vm3956, 2.3561945, 0.7853982
          %vm3958 = vcmp.eq.s32.totalorder %v3918, inf
          %vm3959 = vcmp.eq.s32.totalorder %v3919, inf
          %vm3960 = vmand %vm3958, %vm3959
          %v3961 = vsel %vm3960, %v3957, %v3955
          %v3962 = vand.u32 2147483647, %v3961
          %v3963 = vand.u32 %v3917, 2147483648
          %v3964 = vor.u32 %v3962, %v3963
          %vm3965 = vcmp.lt.f32.partialorder %v3964, 1e-06
          %v3966 = vmul.f32 %v3964, 0.5
          %vm3967 = vcmp.lt.f32.partialorder %v3917, 1e-07
          %v3968 = vsel %vm3967, 1.0, %v3917
          %v3969 = vrcp.pop %v3968
          %v3970 = vmul.f32 %v3966, %v3969
          %v3971 = vsub.f32 %v3896, %v3886
          %v3972 = vmul.f32 %v3970, %v3971
          %v3973 = vsel %vm3965, %v3896, %v3972
          %v3974 = vsub.f32 %v3871, %v3891
          %v3975 = vmul.f32 %v3970, %v3974
          %v3976 = vsel %vm3965, %v3871, %v3975
          %v3977 = vsub.f32 %v3876, %v3866
          %v3978 = vmul.f32 %v3970, %v3977
          %v3979 = vsel %vm3965, %v3876, %v3978
          %v3980 = vand.u32 2147483647, %v3973
          %vm3981 = vcmp.le.f32.partialorder %v3980, 1.0
          %v3982 = vmul.f32 %v3973, 0.5
          %v3983 = vmul.f32 %v3982, %v3973
          %v3984 = vsub.f32 %v3980, 0.5
          %v3985 = vsel %vm3981, %v3983, %v3984
          %v3986 = vand.u32 2147483647, %v3976
          %vm3987 = vcmp.le.f32.partialorder %v3986, 1.0
          %v3988 = vmul.f32 %v3976, 0.5
          %v3989 = vmul.f32 %v3988, %v3976
          %v3990 = vsub.f32 %v3986, 0.5
          %v3991 = vsel %vm3987, %v3989, %v3990
          %v3992 = vadd.f32 %v3985, %v3991
          %v3993 = vand.u32 2147483647, %v3979
          %vm3994 = vcmp.le.f32.partialorder %v3993, 1.0
          %v3995 = vmul.f32 %v3979, 0.5
          %v3996 = vmul.f32 %v3995, %v3979
          %v3997 = vsub.f32 %v3993, 0.5
          %v3998 = vsel %vm3994, %v3996, %v3997
          %v3999 = vadd.f32 %v3992, %v3998
          %v4000 = vrot.slane %v3999, 4
          %v4001 = vadd.f32 %v3999, %v4000
          %v4002 = vrot.slane %v4001, 2
          %v4003 = vadd.f32 %v4001, %v4002
          %v4004 = vrot.slane %v4003, 1
          %v4005 = vadd.f32 %v4003, %v4004
          %v4006 = vadd.f32 %v3640, %v4005
          %v4007 = vld [vmem:[#allocation2 + $0x18] sm:$0x7f]
          %v4008 = vld [vmem:[%s2147 + $0x18] sm:$0x7f]
          %v4009 = vld [vmem:[%s2150 + $0x18] sm:$0x7f]
          %v4010 = vld [vmem:[%s2153 + $0x18] sm:$0x7f]
          %v4011 = vld [vmem:[%s2156 + $0x18] sm:$0x7f]
          %v4012 = vld [vmem:[%s2159 + $0x18] sm:$0x7f]
          %v4013 = vld [vmem:[%s2162 + $0x18] sm:$0x7f]
          %v4014 = vld [vmem:[%s2165 + $0x18] sm:$0x7f]
          %v4015 = vld [vmem:[%s2168 + $0x18] sm:$0x7f]
          %v4016 = vmul.f32 %v4007, %v4007
          %v4017 = vmul.f32 %v4010, %v4010
          %v4018 = vadd.f32 %v4016, %v4017
          %v4019 = vmul.f32 %v4013, %v4013
          %v4020 = vadd.f32 %v4018, %v4019
          %v4021 = vmul.f32 %v4007, %v4008
          %v4022 = vmul.f32 %v4010, %v4011
          %v4023 = vadd.f32 %v4021, %v4022
          %v4024 = vmul.f32 %v4013, %v4014
          %v4025 = vadd.f32 %v4023, %v4024
          %v4026 = vmul.f32 %v4007, %v4009
          %v4027 = vmul.f32 %v4010, %v4012
          %v4028 = vadd.f32 %v4026, %v4027
          %v4029 = vmul.f32 %v4013, %v4015
          %v4030 = vadd.f32 %v4028, %v4029
          %v4031 = vmul.f32 %v4008, %v4008
          %v4032 = vmul.f32 %v4011, %v4011
          %v4033 = vadd.f32 %v4031, %v4032
          %v4034 = vmul.f32 %v4014, %v4014
          %v4035 = vadd.f32 %v4033, %v4034
          %v4036 = vmul.f32 %v4008, %v4009
          %v4037 = vmul.f32 %v4011, %v4012
          %v4038 = vadd.f32 %v4036, %v4037
          %v4039 = vmul.f32 %v4014, %v4015
          %v4040 = vadd.f32 %v4038, %v4039
          %v4041 = vmul.f32 %v4009, %v4009
          %v4042 = vmul.f32 %v4012, %v4012
          %v4043 = vadd.f32 %v4041, %v4042
          %v4044 = vmul.f32 %v4015, %v4015
          %v4045 = vadd.f32 %v4043, %v4044
          %v4046 = vmul.f32 %v4020, 0.5
          %v4047 = vsub.f32 1.5, %v4046
          %v4048 = vmul.f32 %v4035, 0.5
          %v4049 = vsub.f32 1.5, %v4048
          %v4050 = vmul.f32 %v4045, 0.5
          %v4051 = vsub.f32 1.5, %v4050
          %v4052 = vmul.f32 %v4025, -0.5
          %v4053 = vmul.f32 %v4030, -0.5
          %v4054 = vmul.f32 %v4040, -0.5
          %v4055 = vmul.f32 %v4007, %v4047
          %v4056 = vmul.f32 %v4008, %v4052
          %v4057 = vadd.f32 %v4055, %v4056
          %v4058 = vmul.f32 %v4009, %v4053
          %v4059 = vadd.f32 %v4057, %v4058
          %v4060 = vmul.f32 %v4007, %v4052
          %v4061 = vmul.f32 %v4008, %v4049
          %v4062 = vadd.f32 %v4060, %v4061
          %v4063 = vmul.f32 %v4009, %v4054
          %v4064 = vadd.f32 %v4062, %v4063
          %v4065 = vmul.f32 %v4007, %v4053
          %v4066 = vmul.f32 %v4008, %v4054
          %v4067 = vadd.f32 %v4065, %v4066
          %v4068 = vmul.f32 %v4009, %v4051
          %v4069 = vadd.f32 %v4067, %v4068
          %v4070 = vmul.f32 %v4010, %v4047
          %v4071 = vmul.f32 %v4011, %v4052
          %v4072 = vadd.f32 %v4070, %v4071
          %v4073 = vmul.f32 %v4012, %v4053
          %v4074 = vadd.f32 %v4072, %v4073
          %v4075 = vmul.f32 %v4010, %v4052
          %v4076 = vmul.f32 %v4011, %v4049
          %v4077 = vadd.f32 %v4075, %v4076
          %v4078 = vmul.f32 %v4012, %v4054
          %v4079 = vadd.f32 %v4077, %v4078
          %v4080 = vmul.f32 %v4010, %v4053
          %v4081 = vmul.f32 %v4011, %v4054
          %v4082 = vadd.f32 %v4080, %v4081
          %v4083 = vmul.f32 %v4012, %v4051
          %v4084 = vadd.f32 %v4082, %v4083
          %v4085 = vmul.f32 %v4013, %v4047
          %v4086 = vmul.f32 %v4014, %v4052
          %v4087 = vadd.f32 %v4085, %v4086
          %v4088 = vmul.f32 %v4015, %v4053
          %v4089 = vadd.f32 %v4087, %v4088
          %v4090 = vmul.f32 %v4013, %v4052
          %v4091 = vmul.f32 %v4014, %v4049
          %v4092 = vadd.f32 %v4090, %v4091
          %v4093 = vmul.f32 %v4015, %v4054
          %v4094 = vadd.f32 %v4092, %v4093
          %v4095 = vmul.f32 %v4013, %v4053
          %v4096 = vmul.f32 %v4014, %v4054
          %v4097 = vadd.f32 %v4095, %v4096
          %v4098 = vmul.f32 %v4015, %v4051
          %v4099 = vadd.f32 %v4097, %v4098
          %v4100 = vmul.f32 %v4059, %v4059
          %v4101 = vmul.f32 %v4074, %v4074
          %v4102 = vadd.f32 %v4100, %v4101
          %v4103 = vmul.f32 %v4089, %v4089
          %v4104 = vadd.f32 %v4102, %v4103
          %v4105 = vmul.f32 %v4059, %v4064
          %v4106 = vmul.f32 %v4074, %v4079
          %v4107 = vadd.f32 %v4105, %v4106
          %v4108 = vmul.f32 %v4089, %v4094
          %v4109 = vadd.f32 %v4107, %v4108
          %v4110 = vmul.f32 %v4059, %v4069
          %v4111 = vmul.f32 %v4074, %v4084
          %v4112 = vadd.f32 %v4110, %v4111
          %v4113 = vmul.f32 %v4089, %v4099
          %v4114 = vadd.f32 %v4112, %v4113
          %v4115 = vmul.f32 %v4064, %v4064
          %v4116 = vmul.f32 %v4079, %v4079
          %v4117 = vadd.f32 %v4115, %v4116
          %v4118 = vmul.f32 %v4094, %v4094
          %v4119 = vadd.f32 %v4117, %v4118
          %v4120 = vmul.f32 %v4064, %v4069
          %v4121 = vmul.f32 %v4079, %v4084
          %v4122 = vadd.f32 %v4120, %v4121
          %v4123 = vmul.f32 %v4094, %v4099
          %v4124 = vadd.f32 %v4122, %v4123
          %v4125 = vmul.f32 %v4069, %v4069
          %v4126 = vmul.f32 %v4084, %v4084
          %v4127 = vadd.f32 %v4125, %v4126
          %v4128 = vmul.f32 %v4099, %v4099
          %v4129 = vadd.f32 %v4127, %v4128
          %v4130 = vmul.f32 %v4104, 0.5
          %v4131 = vsub.f32 1.5, %v4130
          %v4132 = vmul.f32 %v4119, 0.5
          %v4133 = vsub.f32 1.5, %v4132
          %v4134 = vmul.f32 %v4129, 0.5
          %v4135 = vsub.f32 1.5, %v4134
          %v4136 = vmul.f32 %v4109, -0.5
          %v4137 = vmul.f32 %v4114, -0.5
          %v4138 = vmul.f32 %v4124, -0.5
          %v4139 = vmul.f32 %v4059, %v4131
          %v4140 = vmul.f32 %v4064, %v4136
          %v4141 = vadd.f32 %v4139, %v4140
          %v4142 = vmul.f32 %v4069, %v4137
          %v4143 = vadd.f32 %v4141, %v4142
          %v4144 = vmul.f32 %v4059, %v4136
          %v4145 = vmul.f32 %v4064, %v4133
          %v4146 = vadd.f32 %v4144, %v4145
          %v4147 = vmul.f32 %v4069, %v4138
          %v4148 = vadd.f32 %v4146, %v4147
          %v4149 = vmul.f32 %v4059, %v4137
          %v4150 = vmul.f32 %v4064, %v4138
          %v4151 = vadd.f32 %v4149, %v4150
          %v4152 = vmul.f32 %v4069, %v4135
          %v4153 = vadd.f32 %v4151, %v4152
          %v4154 = vmul.f32 %v4074, %v4131
          %v4155 = vmul.f32 %v4079, %v4136
          %v4156 = vadd.f32 %v4154, %v4155
          %v4157 = vmul.f32 %v4084, %v4137
          %v4158 = vadd.f32 %v4156, %v4157
          %v4159 = vmul.f32 %v4074, %v4136
          %v4160 = vmul.f32 %v4079, %v4133
          %v4161 = vadd.f32 %v4159, %v4160
          %v4162 = vmul.f32 %v4084, %v4138
          %v4163 = vadd.f32 %v4161, %v4162
          %v4164 = vmul.f32 %v4074, %v4137
          %v4165 = vmul.f32 %v4079, %v4138
          %v4166 = vadd.f32 %v4164, %v4165
          %v4167 = vmul.f32 %v4084, %v4135
          %v4168 = vadd.f32 %v4166, %v4167
          %v4169 = vmul.f32 %v4089, %v4131
          %v4170 = vmul.f32 %v4094, %v4136
          %v4171 = vadd.f32 %v4169, %v4170
          %v4172 = vmul.f32 %v4099, %v4137
          %v4173 = vadd.f32 %v4171, %v4172
          %v4174 = vmul.f32 %v4089, %v4136
          %v4175 = vmul.f32 %v4094, %v4133
          %v4176 = vadd.f32 %v4174, %v4175
          %v4177 = vmul.f32 %v4099, %v4138
          %v4178 = vadd.f32 %v4176, %v4177
          %v4179 = vmul.f32 %v4089, %v4137
          %v4180 = vmul.f32 %v4094, %v4138
          %v4181 = vadd.f32 %v4179, %v4180
          %v4182 = vmul.f32 %v4099, %v4135
          %v4183 = vadd.f32 %v4181, %v4182
          %v4184 = vmul.f32 %v4143, %v4143
          %v4185 = vmul.f32 %v4158, %v4158
          %v4186 = vadd.f32 %v4184, %v4185
          %v4187 = vmul.f32 %v4173, %v4173
          %v4188 = vadd.f32 %v4186, %v4187
          %v4189 = vmul.f32 %v4143, %v4148
          %v4190 = vmul.f32 %v4158, %v4163
          %v4191 = vadd.f32 %v4189, %v4190
          %v4192 = vmul.f32 %v4173, %v4178
          %v4193 = vadd.f32 %v4191, %v4192
          %v4194 = vmul.f32 %v4143, %v4153
          %v4195 = vmul.f32 %v4158, %v4168
          %v4196 = vadd.f32 %v4194, %v4195
          %v4197 = vmul.f32 %v4173, %v4183
          %v4198 = vadd.f32 %v4196, %v4197
          %v4199 = vmul.f32 %v4148, %v4148
          %v4200 = vmul.f32 %v4163, %v4163
          %v4201 = vadd.f32 %v4199, %v4200
          %v4202 = vmul.f32 %v4178, %v4178
          %v4203 = vadd.f32 %v4201, %v4202
          %v4204 = vmul.f32 %v4148, %v4153
          %v4205 = vmul.f32 %v4163, %v4168
          %v4206 = vadd.f32 %v4204, %v4205
          %v4207 = vmul.f32 %v4178, %v4183
          %v4208 = vadd.f32 %v4206, %v4207
          %v4209 = vmul.f32 %v4153, %v4153
          %v4210 = vmul.f32 %v4168, %v4168
          %v4211 = vadd.f32 %v4209, %v4210
          %v4212 = vmul.f32 %v4183, %v4183
          %v4213 = vadd.f32 %v4211, %v4212
          %v4214 = vmul.f32 %v4188, 0.5
          %v4215 = vsub.f32 1.5, %v4214
          %v4216 = vmul.f32 %v4203, 0.5
          %v4217 = vsub.f32 1.5, %v4216
          %v4218 = vmul.f32 %v4213, 0.5
          %v4219 = vsub.f32 1.5, %v4218
          %v4220 = vmul.f32 %v4193, -0.5
          %v4221 = vmul.f32 %v4198, -0.5
          %v4222 = vmul.f32 %v4208, -0.5
          %v4223 = vmul.f32 %v4143, %v4215
          %v4224 = vmul.f32 %v4148, %v4220
          %v4225 = vadd.f32 %v4223, %v4224
          %v4226 = vmul.f32 %v4153, %v4221
          %v4227 = vadd.f32 %v4225, %v4226
          %v4228 = vmul.f32 %v4143, %v4220
          %v4229 = vmul.f32 %v4148, %v4217
          %v4230 = vadd.f32 %v4228, %v4229
          %v4231 = vmul.f32 %v4153, %v4222
          %v4232 = vadd.f32 %v4230, %v4231
          %v4233 = vmul.f32 %v4143, %v4221
          %v4234 = vmul.f32 %v4148, %v4222
          %v4235 = vadd.f32 %v4233, %v4234
          %v4236 = vmul.f32 %v4153, %v4219
          %v4237 = vadd.f32 %v4235, %v4236
          %v4238 = vmul.f32 %v4158, %v4215
          %v4239 = vmul.f32 %v4163, %v4220
          %v4240 = vadd.f32 %v4238, %v4239
          %v4241 = vmul.f32 %v4168, %v4221
          %v4242 = vadd.f32 %v4240, %v4241
          %v4243 = vmul.f32 %v4158, %v4220
          %v4244 = vmul.f32 %v4163, %v4217
          %v4245 = vadd.f32 %v4243, %v4244
          %v4246 = vmul.f32 %v4168, %v4222
          %v4247 = vadd.f32 %v4245, %v4246
          %v4248 = vmul.f32 %v4158, %v4221
          %v4249 = vmul.f32 %v4163, %v4222
          %v4250 = vadd.f32 %v4248, %v4249
          %v4251 = vmul.f32 %v4168, %v4219
          %v4252 = vadd.f32 %v4250, %v4251
          %v4253 = vmul.f32 %v4173, %v4215
          %v4254 = vmul.f32 %v4178, %v4220
          %v4255 = vadd.f32 %v4253, %v4254
          %v4256 = vmul.f32 %v4183, %v4221
          %v4257 = vadd.f32 %v4255, %v4256
          %v4258 = vmul.f32 %v4173, %v4220
          %v4259 = vmul.f32 %v4178, %v4217
          %v4260 = vadd.f32 %v4258, %v4259
          %v4261 = vmul.f32 %v4183, %v4222
          %v4262 = vadd.f32 %v4260, %v4261
          %v4263 = vmul.f32 %v4173, %v4221
          %v4264 = vmul.f32 %v4178, %v4222
          %v4265 = vadd.f32 %v4263, %v4264
          %v4266 = vmul.f32 %v4183, %v4219
          %v4267 = vadd.f32 %v4265, %v4266
          %v4268 = vadd.f32 %v4227, %v4247
          %v4269 = vadd.f32 %v4268, %v4267
          %v4270 = vmul.f32 %v4269, 0.5
          %v4271 = vsub.f32 %v4270, 0.5
          %v4272 = vmax.f32 %v4271, -1.0
          %v4273 = vmin.f32 %v4272, 1.0
          %v4274 = vmul.f32 %v4273, %v4273
          %v4275 = vsub.f32 1.0, %v4274
          %v4276 = vmax.f32 %v4275, 0.0
          %v4277 = vrsqrt.pop %v4276
          %v4278 = vmul.f32 %v4276, %v4277
          %vm4279 = vcmp.eq.f32.partialorder %v4276, inf
          %v4280 = vsel %vm4279, %v4276, %v4278
          %vm4281 = vcmp.eq.f32.partialorder %v4276, 0.0
          %v4282 = vand.u32 %v4276, 2147483648
          %v4283 = vsel %vm4281, %v4282, %v4280
          %v4284 = vand.u32 2147483647, %v4273
          %v4285 = vand.u32 2147483647, %v4283
          %v4286 = vmin.f32 %v4284, %v4285
          %v4287 = vmax.f32 %v4284, %v4285
          %v4288 = vrcp.pop %v4287
          %v4289 = vmul.f32 %v4286, %v4288
          %v4290 = vmul.f32 %v4289, %v4289
          %v4291 = vmul.f32 0.002785687, %v4290
          %v4292 = vadd.f32 %v4291, -0.015866
          %v4293 = vmul.f32 %v4292, %v4290
          %v4294 = vadd.f32 %v4293, 0.04247222
          %v4295 = vmul.f32 %v4294, %v4290
          %v4296 = vadd.f32 %v4295, -0.074975304
          %v4297 = vmul.f32 %v4296, %v4290
          %v4298 = vadd.f32 %v4297, 0.1064488
          %v4299 = vmul.f32 %v4298, %v4290
          %v4300 = vadd.f32 %v4299, -0.14207031
          %v4301 = vmul.f32 %v4300, %v4290
          %v4302 = vadd.f32 %v4301, 0.19993454
          %v4303 = vmul.f32 %v4302, %v4290
          %v4304 = vadd.f32 %v4303, -0.33333147
          %v4305 = vmul.f32 %v4304, %v4290
          %v4306 = vmul.f32 %v4305, %v4289
          %v4307 = vadd.f32 %v4306, %v4289
          %vm4308 = vcmp.gt.f32.partialorder %v4285, %v4284
          %v4309 = vsub.f32 1.5707964, %v4307
          %v4310 = vsel %vm4308, %v4309, %v4307
          %vm4311 = vcmp.lt.f32.partialorder %v4273, 0.0
          %v4312 = vsub.f32 3.1415927, %v4310
          %v4313 = vsel %vm4311, %v4312, %v4310
          %vm4314 = vcmp.lt.s32.totalorder %v4273, 0
          %v4315 = vsel %vm4314, 3.1415927, 0.0
          %vm4316 = vcmp.eq.f32.partialorder %v4283, 0.0
          %v4317 = vsel %vm4316, %v4315, %v4313
          %vm4318 = vcmp.ne.f32.partialorder %v4273, %v4273
          %vm4319 = vcmp.ne.f32.partialorder %v4283, %v4283
          %vm4320 = vmor %vm4318, %vm4319
          %v4321 = vsel %vm4320, nan, %v4317
          %vm4322 = vcmp.lt.f32.partialorder %v4273, 0.0
          %v4323 = vsel %vm4322, 2.3561945, 0.7853982
          %vm4324 = vcmp.eq.s32.totalorder %v4284, inf
          %vm4325 = vcmp.eq.s32.totalorder %v4285, inf
          %vm4326 = vmand %vm4324, %vm4325
          %v4327 = vsel %vm4326, %v4323, %v4321
          %v4328 = vand.u32 2147483647, %v4327
          %v4329 = vand.u32 %v4283, 2147483648
          %v4330 = vor.u32 %v4328, %v4329
          %vm4331 = vcmp.lt.f32.partialorder %v4330, 1e-06
          %v4332 = vmul.f32 %v4330, 0.5
          %vm4333 = vcmp.lt.f32.partialorder %v4283, 1e-07
          %v4334 = vsel %vm4333, 1.0, %v4283
          %v4335 = vrcp.pop %v4334
          %v4336 = vmul.f32 %v4332, %v4335
          %v4337 = vsub.f32 %v4262, %v4252
          %v4338 = vmul.f32 %v4336, %v4337
          %v4339 = vsel %vm4331, %v4262, %v4338
          %v4340 = vsub.f32 %v4237, %v4257
          %v4341 = vmul.f32 %v4336, %v4340
          %v4342 = vsel %vm4331, %v4237, %v4341
          %v4343 = vsub.f32 %v4242, %v4232
          %v4344 = vmul.f32 %v4336, %v4343
          %v4345 = vsel %vm4331, %v4242, %v4344
          %v4346 = vand.u32 2147483647, %v4339
          %vm4347 = vcmp.le.f32.partialorder %v4346, 1.0
          %v4348 = vmul.f32 %v4339, 0.5
          %v4349 = vmul.f32 %v4348, %v4339
          %v4350 = vsub.f32 %v4346, 0.5
          %v4351 = vsel %vm4347, %v4349, %v4350
          %v4352 = vand.u32 2147483647, %v4342
          %vm4353 = vcmp.le.f32.partialorder %v4352, 1.0
          %v4354 = vmul.f32 %v4342, 0.5
          %v4355 = vmul.f32 %v4354, %v4342
          %v4356 = vsub.f32 %v4352, 0.5
          %v4357 = vsel %vm4353, %v4355, %v4356
          %v4358 = vadd.f32 %v4351, %v4357
          %v4359 = vand.u32 2147483647, %v4345
          %vm4360 = vcmp.le.f32.partialorder %v4359, 1.0
          %v4361 = vmul.f32 %v4345, 0.5
          %v4362 = vmul.f32 %v4361, %v4345
          %v4363 = vsub.f32 %v4359, 0.5
          %v4364 = vsel %vm4360, %v4362, %v4363
          %v4365 = vadd.f32 %v4358, %v4364
          %vm4366 = vcmask 1046528
          %v4367 = vsel %vm4366, %v4365, 0.0
          %v4368 = vrot.slane %v4367, 4
          %v4369 = vadd.f32 %v4367, %v4368
          %v4370 = vrot.slane %v4369, 2
          %v4371 = vadd.f32 %v4369, %v4370
          %v4372 = vrot.slane %v4371, 1
          %v4373 = vadd.f32 %v4371, %v4372
          %v4374 = vadd.f32 %v4006, %v4373
          %v4375 = vmul.f32 %v726, 1500.0
          %v4376 = vadd.f32 %v538, %v4375
          %v4377 = vmul.f32 %v4374, 2000.0
          %v4378 = vadd.f32 %v4376, %v4377
        $region52: #{triple_loss.1} parent=42 // loop_footer
          %s537 = sadd.s32 1, %s533
        $region53: #{triple_loss.1} parent=42 // loop_footer_branch
          %532 = sbr.rel target = $region49
        $region54: #{triple_loss.1} parent=42 // loop_exit
          _
        %4379 = vst [vmem:[%s531] sm:$0x1] %v538
        %p4380 = scmp.lt.s32.totalorder %s12, 1
        %s4381 = scalar_select %p4380, %s12, 1
        %s4382 = scalar_lea.vmem %s1, %s4381
        // Predicated region
        $region55: #{triple_loss.1} parent=42 // pred_check
          %p4383 = pneg %p56
        $region56: #{triple_loss.1} parent=42 // pred_check_branch
          %4385 = sbr.rel (%p4383) target = $region58
        $region57: #{triple_loss.1} parent=42 // pred_region
          _
        $region58: #{triple_loss.1} parent=42 // pred_fallthru
          _
      $region43: #{triple_loss.1} parent=5 // pred_fallthru
        _
      %p4386 = scmp.le.s32.totalorder 2, %s7
      // Predicated region
      $region59: #{triple_loss.1} parent=5 // pred_check
        %p4387 = pneg %p4386
      $region60: #{triple_loss.1} parent=5 // pred_check_branch
        %4389 = sbr.rel (%p4387) target = $region62
      $region61: #{triple_loss.1} parent=5 // pred_region
        %s4390 = ssub.s32 %s7, 2
        // Predicated region
        $region63: #{triple_loss.1} parent=61 // pred_check
          %p4391 = pneg %p62
        $region64: #{triple_loss.1} parent=61 // pred_check_branch
          %4393 = sbr.rel (%p4391) target = $region66
        $region65: #{triple_loss.1} parent=61 // pred_region
          %p4394 = scmp.lt.s32.totalorder %s13, 1
          %s4395 = scalar_select %p4394, %s13, 1
          %s4396 = scalar_lea.vmem %s1, %s4395
        $region66: #{triple_loss.1} parent=61 // pred_fallthru
          _
      $region62: #{triple_loss.1} parent=5 // pred_fallthru
        _
    $region6: #{triple_loss.1} parent=1 // loop_footer
      %s11 = sadd.s32 1, %s7
    $region7: #{triple_loss.1} parent=1 // loop_footer_branch
      %6 = sbr.rel target = $region3
    $region8: #{triple_loss.1} parent=1 // loop_exit
      _

</llo_original>
